<compile_context>
chip_gen: v6e
topology: v6e:2x2x1
jax: 0.10.0
libtpu: 0.0.40
codegen_flags: <defaults>
</compile_context>

<pallas_src>
import functools
import math

import jax
import jax.numpy as jnp
from jax import lax
from jax.experimental import pallas as pl
from jax.experimental.pallas import tpu as pltpu


# ----------------------------------------------------------------------------
# Fused bidirectional LSTM layer (one kernel, one grid step, both directions).
# ----------------------------------------------------------------------------
def _bilstm_kernel(xg_ref, whh_ref, o_ref, out_f_sc, out_b_sc, *, T, B, H):
    # xg_ref : (T, B, 8H)  gate-interleaved [i_f,i_b,f_f,f_b,g_f,g_b,o_f,o_b];
    #          the backward half is already time-reversed (row t holds the
    #          backward input projection of original time T-1-t).
    # whh_ref: (2H, 8H)    block-diagonal recurrent weight, same column order.
    # o_ref  : (T, B, 2H)  [h_fwd | h_bwd], time-aligned.
    whh = whh_ref[...]
    h = jnp.zeros((B, 2 * H), jnp.float32)
    c = jnp.zeros((B, 2 * H), jnp.float32)

    # T is static -> full static unroll of the latency-bound recurrence so the
    # LLO scheduler can overlap the xg load / EUP / VPU / MXU across steps.
    # TODO(synk): for long sequences, switch to lax.fori_loop(unroll=k) with a
    # T-chunked grid axis so xg pipelines and fits v7x's 64 MiB VMEM.
    for t in range(T):
        gates = xg_ref[t] + jnp.dot(h, whh, preferred_element_type=jnp.float32)
        # Full-width EUP nonlinearities over the (B, 8H) gates.
        sig = 1.0 / (1.0 + jnp.exp(-gates))
        th = jnp.tanh(gates)
        i = sig[:, 0:2 * H]            # [i_f | i_b]
        f = sig[:, 2 * H:4 * H]        # [f_f | f_b]
        g = th[:, 4 * H:6 * H]         # [g_f | g_b]
        o = sig[:, 6 * H:8 * H]        # [o_f | o_b]
        c = f * c + i * g
        h = o * jnp.tanh(c)
        out_f_sc[t] = h[:, 0:H]            # fwd hidden at original time t
        out_b_sc[T - 1 - t] = h[:, H:2 * H]  # bwd hidden at original time T-1-t

    # One lane-dense slab store; no host-side direction concat needed.
    o_ref[...] = jnp.concatenate([out_f_sc[...], out_b_sc[...]], axis=-1)


def bilstm_layer(xg, whh_bd, *, T, B, H):
    """xg: (T, B, 8H) precomputed input gates; whh_bd: (2H, 8H).
    Returns (T, B, 2H) = [fwd | bwd] hidden states, time-major."""
    kernel = functools.partial(_bilstm_kernel, T=T, B=B, H=H)
    return pl.pallas_call(
        kernel,
        out_shape=jax.ShapeDtypeStruct((T, B, 2 * H), jnp.float32),
        grid=(1,),
        in_specs=[
            pl.BlockSpec((T, B, 8 * H), lambda i: (0, 0, 0)),
            pl.BlockSpec((2 * H, 8 * H), lambda i: (0, 0)),
        ],
        out_specs=pl.BlockSpec((T, B, 2 * H), lambda i: (0, 0, 0)),
        scratch_shapes=[
            pltpu.VMEM((T, B, H), jnp.float32),   # fwd hidden buffer
            pltpu.VMEM((T, B, H), jnp.float32),   # bwd hidden buffer
        ],
        compiler_params=pltpu.CompilerParams(dimension_semantics=("arbitrary",)),
    )(xg, whh_bd)


# ----------------------------------------------------------------------------
# Fused transformer stack: BN(eval)+PE + all layers (QKV, per-head softmax,
# single fc_out matmul, LN1, FFN, LN2) in one kernel; grid over batch.
# ----------------------------------------------------------------------------
def _layernorm(x, gamma, beta):
    mu = jnp.mean(x, axis=-1, keepdims=True)
    var = jnp.mean(jnp.square(x - mu), axis=-1, keepdims=True)
    return (x - mu) * lax.rsqrt(var + 1e-5) * gamma + beta


def _transformer_kernel(x_ref, bns_ref, bnb_ref, pe_ref,
                        wq_ref, wk_ref, wv_ref, wo_ref, bo_ref,
                        g1_ref, be1_ref, w1_ref, b1_ref, w2_ref, b2_ref,
                        g2_ref, be2_ref, o_ref, *, layers, heads):
    T, E = pe_ref.shape
    D = E // heads

    # Fused BatchNorm1d (eval, folded scale/shift) + positional encoding.
    x = x_ref[0] * bns_ref[...] + bnb_ref[...] + pe_ref[...]        # (T, E)

    # TODO(synk): flash-style tiling over the key axis / T for large T so the
    # per-batch working set fits v7x's 64 MiB VMEM.
    for l in range(layers):
        # All-head Q/K/V: three lane-dense (T,E)@(E,E) matmuls (block-diag
        # shared head weights; attention scale pre-folded into wq).
        q = jnp.dot(x, wq_ref[l], preferred_element_type=jnp.float32)
        k = jnp.dot(x, wk_ref[l], preferred_element_type=jnp.float32)
        v = jnp.dot(x, wv_ref[l], preferred_element_type=jnp.float32)

        outs = []
        for hh in range(heads):
            lo = hh * D
            qh = q[:, lo:lo + D]
            kh = k[:, lo:lo + D]
            vh = v[:, lo:lo + D]
            s = lax.dot_general(qh, kh, (((1,), (1,)), ((), ())),
                                preferred_element_type=jnp.float32)   # (T, T)
            s = s - jnp.max(s, axis=-1, keepdims=True)
            p = jnp.exp(s)
            p = p * pl.reciprocal(jnp.sum(p, axis=-1, keepdims=True), approx=True)
            outs.append(jnp.dot(p, vh, preferred_element_type=jnp.float32))
        attn = jnp.concatenate(outs, axis=-1)                          # (T, E)

        # Single K=E fc_out matmul instead of per-head rank-D updates.
        o1 = jnp.dot(attn, wo_ref[l], preferred_element_type=jnp.float32) + bo_ref[l]
        h1 = _layernorm(o1 + x, g1_ref[l], be1_ref[l])                 # norm1(attn + query)
        f = jnp.maximum(
            jnp.dot(h1, w1_ref[l], preferred_element_type=jnp.float32) + b1_ref[l],
            0.0)
        f = jnp.dot(f, w2_ref[l], preferred_element_type=jnp.float32) + b2_ref[l]
        x = _layernorm(f + h1, g2_ref[l], be2_ref[l])

    o_ref[0] = x


def transformer_stack(y, bn_scale, bn_shift, pe, blk, heads):
    B, T, E = y.shape
    L = blk["wq"].shape[0]
    F = blk["w1"].shape[2]
    kernel = functools.partial(_transformer_kernel, layers=L, heads=heads)

    def wspec(shape):
        return pl.BlockSpec(shape, lambda b: (0,) * len(shape))

    # TODO(synk): use pltpu.CORE_PARALLEL on the batch axis to shard across
    # v7x's two TensorCores (plain "parallel" is a serial loop on 1-TC chips).
    return pl.pallas_call(
        kernel,
        out_shape=jax.ShapeDtypeStruct((B, T, E), jnp.float32),
        grid=(B,),
        in_specs=[
            pl.BlockSpec((1, T, E), lambda b: (b, 0, 0)),   # x
            wspec((1, E)),          # bn scale (folded)
            wspec((1, E)),          # bn shift (folded)
            wspec((T, E)),          # positional encoding
            wspec((L, E, E)),       # wq (block-diag, scale folded)
            wspec((L, E, E)),       # wk (block-diag)
            wspec((L, E, E)),       # wv (block-diag)
            wspec((L, E, E)),       # wo
            wspec((L, 1, E)),       # bo
            wspec((L, 1, E)),       # ln1 gamma
            wspec((L, 1, E)),       # ln1 beta
            wspec((L, E, F)),       # ffn w1
            wspec((L, 1, F)),       # ffn b1
            wspec((L, F, E)),       # ffn w2
            wspec((L, 1, E)),       # ffn b2
            wspec((L, 1, E)),       # ln2 gamma
            wspec((L, 1, E)),       # ln2 beta
        ],
        out_specs=pl.BlockSpec((1, T, E), lambda b: (b, 0, 0)),
        compiler_params=pltpu.CompilerParams(dimension_semantics=("parallel",)),
    )(y, bn_scale, bn_shift, pe,
      blk["wq"], blk["wk"], blk["wv"], blk["wo"], blk["bo"],
      blk["g1"], blk["be1"], blk["w1"], blk["b1"], blk["w2"], blk["b2"],
      blk["g2"], blk["be2"])


# ----------------------------------------------------------------------------
# Parameters / glue.
# ----------------------------------------------------------------------------
def make_positional_encoding(max_len, d_model):
    position = jnp.arange(max_len, dtype=jnp.float32)[:, None]
    div_term = jnp.exp(jnp.arange(0, d_model, 2, dtype=jnp.float32)
                       * (-math.log(10000.0) / d_model))
    pe = jnp.zeros((max_len, d_model), dtype=jnp.float32)
    pe = pe.at[:, 0::2].set(jnp.sin(position * div_term))
    pe = pe.at[:, 1::2].set(jnp.cos(position * div_term))
    return pe


def init_params(key, *, input_dim, hidden_dim, lstm_layers, embed_size,
                num_heads, num_transformer_layers, forward_expansion, max_length):
    H = hidden_dim
    E = embed_size
    D = E // num_heads
    F = forward_expansion * E
    keys = iter(jax.random.split(key, 1024))

    def nrm(shape, scale=0.1):
        return scale * jax.random.normal(next(keys), shape, dtype=jnp.float32)

    # --- LSTM layers: PyTorch-layout weights -> packed kernel forms ---
    lstm = []
    din = input_dim
    for _ in range(lstm_layers):
        wih_f = nrm((4 * H, din)).T          # (din, 4H), gate cols [i,f,g,o]
        wih_b = nrm((4 * H, din)).T
        whh_f = nrm((4 * H, H)).T            # (H, 4H)
        whh_b = nrm((4 * H, H)).T
        b_f = nrm((4 * H,)) + nrm((4 * H,))  # b_ih + b_hh (forward)
        b_b = nrm((4 * H,)) + nrm((4 * H,))  # b_ih + b_hh (backward)

        # Block-diagonal recurrent weight with gate-interleaved columns:
        # cols = [i_f, i_b, f_f, f_b, g_f, g_b, o_f, o_b]; rows = [h_f | h_b].
        whh_bd = jnp.zeros((2 * H, 8 * H), dtype=jnp.float32)
        for g in range(4):
            whh_bd = whh_bd.at[0:H, (2 * g) * H:(2 * g + 1) * H].set(
                whh_f[:, g * H:(g + 1) * H])
            whh_bd = whh_bd.at[H:2 * H, (2 * g + 1) * H:(2 * g + 2) * H].set(
                whh_b[:, g * H:(g + 1) * H])

        lstm.append(dict(
            wih_f=wih_f, wih_b=wih_b,
            b_f=b_f.reshape(1, 1, 4 * H), b_b=b_b.reshape(1, 1, 4 * H),
            whh_bd=whh_bd))
        din = 2 * H

    # --- BatchNorm1d (eval) folded to per-feature scale/shift ---
    gamma = 1.0 + nrm((E,))
    beta = nrm((E,))
    mean = nrm((E,))
    var = 1.0 + jnp.abs(nrm((E,)))
    inv = gamma * lax.rsqrt(var + 1e-5)
    bn_scale = inv.reshape(1, E)
    bn_shift = (beta - mean * inv).reshape(1, E)

    # --- transformer layers, stacked on a leading layer axis ---
    eye_h = jnp.eye(num_heads, dtype=jnp.float32)
    scale = 1.0 / math.sqrt(E)           # matches softmax(energy / embed_size**0.5)
    stk = {k: [] for k in ("wq", "wk", "wv", "wo", "bo", "g1", "be1",
                           "w1", "b1", "w2", "b2", "g2", "be2")}
    for _ in range(num_transformer_layers):
        wq, wk, wv = nrm((D, D)), nrm((D, D)), nrm((D, D))
        # Shared per-head (D,D) Linear expanded block-diagonally; fold the
        # attention scale into wq at init (one free host-side transform).
        stk["wq"].append(jnp.kron(eye_h, wq.T) * scale)
        stk["wk"].append(jnp.kron(eye_h, wk.T))
        stk["wv"].append(jnp.kron(eye_h, wv.T))
        wo, bo = nrm((E, E)), nrm((E,))
        stk["wo"].append(wo.T)
        stk["bo"].append(bo.reshape(1, E))
        stk["g1"].append((1.0 + nrm((E,))).reshape(1, E))
        stk["be1"].append(nrm((E,)).reshape(1, E))
        w1, b1 = nrm((F, E)), nrm((F,))
        w2, b2 = nrm((E, F)), nrm((E,))
        stk["w1"].append(w1.T)
        stk["b1"].append(b1.reshape(1, F))
        stk["w2"].append(w2.T)
        stk["b2"].append(b2.reshape(1, E))
        stk["g2"].append((1.0 + nrm((E,))).reshape(1, E))
        stk["be2"].append(nrm((E,)).reshape(1, E))
    blocks = {k: jnp.stack(v) for k, v in stk.items()}

    return dict(lstm=lstm, bn_scale=bn_scale, bn_shift=bn_shift,
                pe=make_positional_encoding(max_length, E), blocks=blocks)


def bilstm_transformer_forward(x, params, num_heads):
    # x: (B, T, input_dim)
    B, T, _ = x.shape

    # --- bidirectional, multi-layer LSTM (inter-layer dropout = identity) ---
    h_tm = jnp.transpose(x, (1, 0, 2))                   # (T, B, Din) time-major
    for lp in params["lstm"]:
        H = lp["whh_bd"].shape[0] // 2                   # static (from shape)
        # Hoisted input projection for ALL timesteps + bias (XLA matmul),
        # backward stream time-reversed and gate-interleaved host-side so the
        # kernel only does aligned xg[t] loads.
        xg_f = jnp.einsum("tbd,dg->tbg", h_tm, lp["wih_f"]) + lp["b_f"]
        xg_b = jnp.einsum("tbd,dg->tbg", h_tm, lp["wih_b"]) + lp["b_b"]
        xg_b = xg_b[::-1]                                # time reversal for bwd dir
        parts = []
        for g in range(4):
            parts.append(xg_f[..., g * H:(g + 1) * H])
            parts.append(xg_b[..., g * H:(g + 1) * H])
        xg = jnp.concatenate(parts, axis=-1)             # (T, B, 8H)
        h_tm = bilstm_layer(xg, lp["whh_bd"], T=T, B=B, H=H)   # (T, B, 2H)

    y = jnp.transpose(h_tm, (1, 0, 2))                   # (B, T, 2H)

    # --- fused BN(eval)+PE + all transformer layers (one kernel) ---
    y = transformer_stack(y, params["bn_scale"], params["bn_shift"],
                          params["pe"][:T], params["blocks"], num_heads)

    # --- final permute; Dropout is identity in eval ---
    # TODO(synk): training-mode dropout / batch-statistics BatchNorm not
    # implemented (inference semantics); final permute could move in-kernel
    # (XLU transpose of the (T,E) tile) to save one HBM pass.
    return jnp.transpose(y, (0, 2, 1))                   # (B, 2H, T)


if __name__ == "__main__":
    B, T = 2, 8
    input_dim = 16
    hidden_dim = 32
    lstm_layers = 2
    embed_size = 2 * hidden_dim                          # 64
    num_heads = 8
    num_transformer_layers = 2
    forward_expansion = 4

    key = jax.random.PRNGKey(0)
    kx, kp = jax.random.split(key)
    x = jax.random.normal(kx, (B, T, input_dim), dtype=jnp.float32)
    params = init_params(
        kp, input_dim=input_dim, hidden_dim=hidden_dim, lstm_layers=lstm_layers,
        embed_size=embed_size, num_heads=num_heads,
        num_transformer_layers=num_transformer_layers,
        forward_expansion=forward_expansion, max_length=T)

    fwd = jax.jit(bilstm_transformer_forward, static_argnums=(2,))
    out = jax.block_until_ready(fwd(x, params, num_heads))

    assert out.shape == (B, embed_size, T), out.shape
    assert bool(jnp.all(jnp.isfinite(out)))
    print("KERNEL_OK")
</pallas_src>

<mosaic_0001>
module attributes {stable_mosaic.version = 11 : i64} {
  func.func @_bilstm_kernel(%arg0: i32, %arg1: memref<8x2x256xf32, #tpu.memory_space<vmem>>, %arg2: memref<64x256xf32, #tpu.memory_space<vmem>>, %arg3: memref<8x2x64xf32, #tpu.memory_space<vmem>>, %arg4: memref<8x2x32xf32, #tpu.memory_space<vmem>>, %arg5: memref<8x2x32xf32, #tpu.memory_space<vmem>>) attributes {dimension_semantics = [#tpu.dimension_semantics<arbitrary>], iteration_bounds = array<i64: 1>, scalar_prefetch = 0 : i64, scratch_operands = 2 : i64, tpu.core_type = #tpu.core_type<tc>, window_params = [{pipeline_mode = #tpu.pipeline_mode<synchronous>, transform_indices = @transform_0, window_bounds = array<i64: 8, 2, 256>}, {pipeline_mode = #tpu.pipeline_mode<synchronous>, transform_indices = @transform_1, window_bounds = array<i64: 64, 256>}, {pipeline_mode = #tpu.pipeline_mode<synchronous>, transform_indices = @transform_2, window_bounds = array<i64: 8, 2, 64>}]} {
    %c0 = arith.constant 0 : index
    %c0_0 = arith.constant 0 : index
    %0 = vector.load %arg2[%c0, %c0_0] : memref<64x256xf32, #tpu.memory_space<vmem>>, vector<64x256xf32>
    %cst = arith.constant 0.000000e+00 : f32
    %1 = vector.broadcast %cst : f32 to vector<2x64xf32>
    %cst_1 = arith.constant 0.000000e+00 : f32
    %2 = vector.broadcast %cst_1 : f32 to vector<2x64xf32>
    %c0_2 = arith.constant 0 : index
    %c0_3 = arith.constant 0 : index
    %c0_4 = arith.constant 0 : index
    %3 = vector.load %arg1[%c0_2, %c0_3, %c0_4] : memref<8x2x256xf32, #tpu.memory_space<vmem>>, vector<1x2x256xf32>
    %4 = vector.shape_cast %3 : vector<1x2x256xf32> to vector<2x256xf32>
    %cst_5 = arith.constant dense<0.000000e+00> : vector<2x256xf32>
    %5 = tpu.matmul %1, %0, %cst_5 {dimension_numbers = #tpu.dot_dimension_numbers<[1], [0], [0], [1], [0, 0, 1, 1], [], []>} : vector<2x64xf32>, vector<64x256xf32>, vector<2x256xf32> -> vector<2x256xf32>
    %6 = arith.addf %4, %5 : vector<2x256xf32>
    %cst_6 = arith.constant 0.000000e+00 : f32
    %7 = vector.broadcast %cst_6 : f32 to vector<2x256xf32>
    %8 = arith.subf %7, %6 : vector<2x256xf32>
    %9 = math.exp %8 : vector<2x256xf32>
    %cst_7 = arith.constant 1.000000e+00 : f32
    %10 = vector.broadcast %cst_7 : f32 to vector<2x256xf32>
    %11 = arith.addf %10, %9 : vector<2x256xf32>
    %cst_8 = arith.constant 1.000000e+00 : f32
    %12 = vector.broadcast %cst_8 : f32 to vector<2x256xf32>
    %13 = arith.divf %12, %11 : vector<2x256xf32>
    %14 = math.tanh %6 : vector<2x256xf32>
    %15 = vector.extract_strided_slice %13 {offsets = [0, 0], sizes = [2, 64], strides = [1, 1]} : vector<2x256xf32> to vector<2x64xf32>
    %16 = vector.extract_strided_slice %13 {offsets = [0, 64], sizes = [2, 64], strides = [1, 1]} : vector<2x256xf32> to vector<2x64xf32>
    %17 = vector.extract_strided_slice %14 {offsets = [0, 128], sizes = [2, 64], strides = [1, 1]} : vector<2x256xf32> to vector<2x64xf32>
    %18 = vector.extract_strided_slice %13 {offsets = [0, 192], sizes = [2, 64], strides = [1, 1]} : vector<2x256xf32> to vector<2x64xf32>
    %19 = arith.mulf %16, %2 : vector<2x64xf32>
    %20 = arith.mulf %15, %17 : vector<2x64xf32>
    %21 = arith.addf %19, %20 : vector<2x64xf32>
    %22 = math.tanh %21 : vector<2x64xf32>
    %23 = arith.mulf %18, %22 : vector<2x64xf32>
    %24 = vector.extract_strided_slice %23 {offsets = [0, 0], sizes = [2, 32], strides = [1, 1]} : vector<2x64xf32> to vector<2x32xf32>
    %c0_9 = arith.constant 0 : index
    %c0_10 = arith.constant 0 : index
    %c0_11 = arith.constant 0 : index
    %25 = vector.load %arg4[%c0_9, %c0_10, %c0_11] : memref<8x2x32xf32, #tpu.memory_space<vmem>>, vector<1x2x32xf32>
    %26 = vector.shape_cast %25 : vector<1x2x32xf32> to vector<2x32xf32>
    %27 = vector.shape_cast %24 : vector<2x32xf32> to vector<1x2x32xf32>
    tpu.vector_store %arg4[%c0_9, %c0_10, %c0_11], %27 {strides = array<i32>} : memref<8x2x32xf32, #tpu.memory_space<vmem>>, vector<1x2x32xf32>,
    %28 = vector.extract_strided_slice %23 {offsets = [0, 32], sizes = [2, 32], strides = [1, 1]} : vector<2x64xf32> to vector<2x32xf32>
    %c7 = arith.constant 7 : index
    %c0_12 = arith.constant 0 : index
    %c0_13 = arith.constant 0 : index
    %29 = vector.load %arg5[%c7, %c0_12, %c0_13] : memref<8x2x32xf32, #tpu.memory_space<vmem>>, vector<1x2x32xf32>
    %30 = vector.shape_cast %29 : vector<1x2x32xf32> to vector<2x32xf32>
    %31 = vector.shape_cast %28 : vector<2x32xf32> to vector<1x2x32xf32>
    tpu.vector_store %arg5[%c7, %c0_12, %c0_13], %31 {strides = array<i32>} : memref<8x2x32xf32, #tpu.memory_space<vmem>>, vector<1x2x32xf32>,
    %c1 = arith.constant 1 : index
    %c0_14 = arith.constant 0 : index
    %c0_15 = arith.constant 0 : index
    %32 = vector.load %arg1[%c1, %c0_14, %c0_15] : memref<8x2x256xf32, #tpu.memory_space<vmem>>, vector<1x2x256xf32>
    %33 = vector.shape_cast %32 : vector<1x2x256xf32> to vector<2x256xf32>
    %cst_16 = arith.constant dense<0.000000e+00> : vector<2x256xf32>
    %34 = tpu.matmul %23, %0, %cst_16 {dimension_numbers = #tpu.dot_dimension_numbers<[1], [0], [0], [1], [0, 0, 1, 1], [], []>} : vector<2x64xf32>, vector<64x256xf32>, vector<2x256xf32> -> vector<2x256xf32>
    %35 = arith.addf %33, %34 : vector<2x256xf32>
    %cst_17 = arith.constant 0.000000e+00 : f32
    %36 = vector.broadcast %cst_17 : f32 to vector<2x256xf32>
    %37 = arith.subf %36, %35 : vector<2x256xf32>
    %38 = math.exp %37 : vector<2x256xf32>
    %cst_18 = arith.constant 1.000000e+00 : f32
    %39 = vector.broadcast %cst_18 : f32 to vector<2x256xf32>
    %40 = arith.addf %39, %38 : vector<2x256xf32>
    %cst_19 = arith.constant 1.000000e+00 : f32
    %41 = vector.broadcast %cst_19 : f32 to vector<2x256xf32>
    %42 = arith.divf %41, %40 : vector<2x256xf32>
    %43 = math.tanh %35 : vector<2x256xf32>
    %44 = vector.extract_strided_slice %42 {offsets = [0, 0], sizes = [2, 64], strides = [1, 1]} : vector<2x256xf32> to vector<2x64xf32>
    %45 = vector.extract_strided_slice %42 {offsets = [0, 64], sizes = [2, 64], strides = [1, 1]} : vector<2x256xf32> to vector<2x64xf32>
    %46 = vector.extract_strided_slice %43 {offsets = [0, 128], sizes = [2, 64], strides = [1, 1]} : vector<2x256xf32> to vector<2x64xf32>
    %47 = vector.extract_strided_slice %42 {offsets = [0, 192], sizes = [2, 64], strides = [1, 1]} : vector<2x256xf32> to vector<2x64xf32>
    %48 = arith.mulf %45, %21 : vector<2x64xf32>
    %49 = arith.mulf %44, %46 : vector<2x64xf32>
    %50 = arith.addf %48, %49 : vector<2x64xf32>
    %51 = math.tanh %50 : vector<2x64xf32>
    %52 = arith.mulf %47, %51 : vector<2x64xf32>
    %53 = vector.extract_strided_slice %52 {offsets = [0, 0], sizes = [2, 32], strides = [1, 1]} : vector<2x64xf32> to vector<2x32xf32>
    %c1_20 = arith.constant 1 : index
    %c0_21 = arith.constant 0 : index
    %c0_22 = arith.constant 0 : index
    %54 = vector.load %arg4[%c1_20, %c0_21, %c0_22] : memref<8x2x32xf32, #tpu.memory_space<vmem>>, vector<1x2x32xf32>
    %55 = vector.shape_cast %54 : vector<1x2x32xf32> to vector<2x32xf32>
    %56 = vector.shape_cast %53 : vector<2x32xf32> to vector<1x2x32xf32>
    tpu.vector_store %arg4[%c1_20, %c0_21, %c0_22], %56 {strides = array<i32>} : memref<8x2x32xf32, #tpu.memory_space<vmem>>, vector<1x2x32xf32>,
    %57 = vector.extract_strided_slice %52 {offsets = [0, 32], sizes = [2, 32], strides = [1, 1]} : vector<2x64xf32> to vector<2x32xf32>
    %c6 = arith.constant 6 : index
    %c0_23 = arith.constant 0 : index
    %c0_24 = arith.constant 0 : index
    %58 = vector.load %arg5[%c6, %c0_23, %c0_24] : memref<8x2x32xf32, #tpu.memory_space<vmem>>, vector<1x2x32xf32>
    %59 = vector.shape_cast %58 : vector<1x2x32xf32> to vector<2x32xf32>
    %60 = vector.shape_cast %57 : vector<2x32xf32> to vector<1x2x32xf32>
    tpu.vector_store %arg5[%c6, %c0_23, %c0_24], %60 {strides = array<i32>} : memref<8x2x32xf32, #tpu.memory_space<vmem>>, vector<1x2x32xf32>,
    %c2 = arith.constant 2 : index
    %c0_25 = arith.constant 0 : index
    %c0_26 = arith.constant 0 : index
    %61 = vector.load %arg1[%c2, %c0_25, %c0_26] : memref<8x2x256xf32, #tpu.memory_space<vmem>>, vector<1x2x256xf32>
    %62 = vector.shape_cast %61 : vector<1x2x256xf32> to vector<2x256xf32>
    %cst_27 = arith.constant dense<0.000000e+00> : vector<2x256xf32>
    %63 = tpu.matmul %52, %0, %cst_27 {dimension_numbers = #tpu.dot_dimension_numbers<[1], [0], [0], [1], [0, 0, 1, 1], [], []>} : vector<2x64xf32>, vector<64x256xf32>, vector<2x256xf32> -> vector<2x256xf32>
    %64 = arith.addf %62, %63 : vector<2x256xf32>
    %cst_28 = arith.constant 0.000000e+00 : f32
    %65 = vector.broadcast %cst_28 : f32 to vector<2x256xf32>
    %66 = arith.subf %65, %64 : vector<2x256xf32>
    %67 = math.exp %66 : vector<2x256xf32>
    %cst_29 = arith.constant 1.000000e+00 : f32
    %68 = vector.broadcast %cst_29 : f32 to vector<2x256xf32>
    %69 = arith.addf %68, %67 : vector<2x256xf32>
    %cst_30 = arith.constant 1.000000e+00 : f32
    %70 = vector.broadcast %cst_30 : f32 to vector<2x256xf32>
    %71 = arith.divf %70, %69 : vector<2x256xf32>
    %72 = math.tanh %64 : vector<2x256xf32>
    %73 = vector.extract_strided_slice %71 {offsets = [0, 0], sizes = [2, 64], strides = [1, 1]} : vector<2x256xf32> to vector<2x64xf32>
    %74 = vector.extract_strided_slice %71 {offsets = [0, 64], sizes = [2, 64], strides = [1, 1]} : vector<2x256xf32> to vector<2x64xf32>
    %75 = vector.extract_strided_slice %72 {offsets = [0, 128], sizes = [2, 64], strides = [1, 1]} : vector<2x256xf32> to vector<2x64xf32>
    %76 = vector.extract_strided_slice %71 {offsets = [0, 192], sizes = [2, 64], strides = [1, 1]} : vector<2x256xf32> to vector<2x64xf32>
    %77 = arith.mulf %74, %50 : vector<2x64xf32>
    %78 = arith.mulf %73, %75 : vector<2x64xf32>
    %79 = arith.addf %77, %78 : vector<2x64xf32>
    %80 = math.tanh %79 : vector<2x64xf32>
    %81 = arith.mulf %76, %80 : vector<2x64xf32>
    %82 = vector.extract_strided_slice %81 {offsets = [0, 0], sizes = [2, 32], strides = [1, 1]} : vector<2x64xf32> to vector<2x32xf32>
    %c2_31 = arith.constant 2 : index
    %c0_32 = arith.constant 0 : index
    %c0_33 = arith.constant 0 : index
    %83 = vector.load %arg4[%c2_31, %c0_32, %c0_33] : memref<8x2x32xf32, #tpu.memory_space<vmem>>, vector<1x2x32xf32>
    %84 = vector.shape_cast %83 : vector<1x2x32xf32> to vector<2x32xf32>
    %85 = vector.shape_cast %82 : vector<2x32xf32> to vector<1x2x32xf32>
    tpu.vector_store %arg4[%c2_31, %c0_32, %c0_33], %85 {strides = array<i32>} : memref<8x2x32xf32, #tpu.memory_space<vmem>>, vector<1x2x32xf32>,
    %86 = vector.extract_strided_slice %81 {offsets = [0, 32], sizes = [2, 32], strides = [1, 1]} : vector<2x64xf32> to vector<2x32xf32>
    %c5 = arith.constant 5 : index
    %c0_34 = arith.constant 0 : index
    %c0_35 = arith.constant 0 : index
    %87 = vector.load %arg5[%c5, %c0_34, %c0_35] : memref<8x2x32xf32, #tpu.memory_space<vmem>>, vector<1x2x32xf32>
    %88 = vector.shape_cast %87 : vector<1x2x32xf32> to vector<2x32xf32>
    %89 = vector.shape_cast %86 : vector<2x32xf32> to vector<1x2x32xf32>
    tpu.vector_store %arg5[%c5, %c0_34, %c0_35], %89 {strides = array<i32>} : memref<8x2x32xf32, #tpu.memory_space<vmem>>, vector<1x2x32xf32>,
    %c3 = arith.constant 3 : index
    %c0_36 = arith.constant 0 : index
    %c0_37 = arith.constant 0 : index
    %90 = vector.load %arg1[%c3, %c0_36, %c0_37] : memref<8x2x256xf32, #tpu.memory_space<vmem>>, vector<1x2x256xf32>
    %91 = vector.shape_cast %90 : vector<1x2x256xf32> to vector<2x256xf32>
    %cst_38 = arith.constant dense<0.000000e+00> : vector<2x256xf32>
    %92 = tpu.matmul %81, %0, %cst_38 {dimension_numbers = #tpu.dot_dimension_numbers<[1], [0], [0], [1], [0, 0, 1, 1], [], []>} : vector<2x64xf32>, vector<64x256xf32>, vector<2x256xf32> -> vector<2x256xf32>
    %93 = arith.addf %91, %92 : vector<2x256xf32>
    %cst_39 = arith.constant 0.000000e+00 : f32
    %94 = vector.broadcast %cst_39 : f32 to vector<2x256xf32>
    %95 = arith.subf %94, %93 : vector<2x256xf32>
    %96 = math.exp %95 : vector<2x256xf32>
    %cst_40 = arith.constant 1.000000e+00 : f32
    %97 = vector.broadcast %cst_40 : f32 to vector<2x256xf32>
    %98 = arith.addf %97, %96 : vector<2x256xf32>
    %cst_41 = arith.constant 1.000000e+00 : f32
    %99 = vector.broadcast %cst_41 : f32 to vector<2x256xf32>
    %100 = arith.divf %99, %98 : vector<2x256xf32>
    %101 = math.tanh %93 : vector<2x256xf32>
    %102 = vector.extract_strided_slice %100 {offsets = [0, 0], sizes = [2, 64], strides = [1, 1]} : vector<2x256xf32> to vector<2x64xf32>
    %103 = vector.extract_strided_slice %100 {offsets = [0, 64], sizes = [2, 64], strides = [1, 1]} : vector<2x256xf32> to vector<2x64xf32>
    %104 = vector.extract_strided_slice %101 {offsets = [0, 128], sizes = [2, 64], strides = [1, 1]} : vector<2x256xf32> to vector<2x64xf32>
    %105 = vector.extract_strided_slice %100 {offsets = [0, 192], sizes = [2, 64], strides = [1, 1]} : vector<2x256xf32> to vector<2x64xf32>
    %106 = arith.mulf %103, %79 : vector<2x64xf32>
    %107 = arith.mulf %102, %104 : vector<2x64xf32>
    %108 = arith.addf %106, %107 : vector<2x64xf32>
    %109 = math.tanh %108 : vector<2x64xf32>
    %110 = arith.mulf %105, %109 : vector<2x64xf32>
    %111 = vector.extract_strided_slice %110 {offsets = [0, 0], sizes = [2, 32], strides = [1, 1]} : vector<2x64xf32> to vector<2x32xf32>
    %c3_42 = arith.constant 3 : index
    %c0_43 = arith.constant 0 : index
    %c0_44 = arith.constant 0 : index
    %112 = vector.load %arg4[%c3_42, %c0_43, %c0_44] : memref<8x2x32xf32, #tpu.memory_space<vmem>>, vector<1x2x32xf32>
    %113 = vector.shape_cast %112 : vector<1x2x32xf32> to vector<2x32xf32>
    %114 = vector.shape_cast %111 : vector<2x32xf32> to vector<1x2x32xf32>
    tpu.vector_store %arg4[%c3_42, %c0_43, %c0_44], %114 {strides = array<i32>} : memref<8x2x32xf32, #tpu.memory_space<vmem>>, vector<1x2x32xf32>,
    %115 = vector.extract_strided_slice %110 {offsets = [0, 32], sizes = [2, 32], strides = [1, 1]} : vector<2x64xf32> to vector<2x32xf32>
    %c4 = arith.constant 4 : index
    %c0_45 = arith.constant 0 : index
    %c0_46 = arith.constant 0 : index
    %116 = vector.load %arg5[%c4, %c0_45, %c0_46] : memref<8x2x32xf32, #tpu.memory_space<vmem>>, vector<1x2x32xf32>
    %117 = vector.shape_cast %116 : vector<1x2x32xf32> to vector<2x32xf32>
    %118 = vector.shape_cast %115 : vector<2x32xf32> to vector<1x2x32xf32>
    tpu.vector_store %arg5[%c4, %c0_45, %c0_46], %118 {strides = array<i32>} : memref<8x2x32xf32, #tpu.memory_space<vmem>>, vector<1x2x32xf32>,
    %c4_47 = arith.constant 4 : index
    %c0_48 = arith.constant 0 : index
    %c0_49 = arith.constant 0 : index
    %119 = vector.load %arg1[%c4_47, %c0_48, %c0_49] : memref<8x2x256xf32, #tpu.memory_space<vmem>>, vector<1x2x256xf32>
    %120 = vector.shape_cast %119 : vector<1x2x256xf32> to vector<2x256xf32>
    %cst_50 = arith.constant dense<0.000000e+00> : vector<2x256xf32>
    %121 = tpu.matmul %110, %0, %cst_50 {dimension_numbers = #tpu.dot_dimension_numbers<[1], [0], [0], [1], [0, 0, 1, 1], [], []>} : vector<2x64xf32>, vector<64x256xf32>, vector<2x256xf32> -> vector<2x256xf32>
    %122 = arith.addf %120, %121 : vector<2x256xf32>
    %cst_51 = arith.constant 0.000000e+00 : f32
    %123 = vector.broadcast %cst_51 : f32 to vector<2x256xf32>
    %124 = arith.subf %123, %122 : vector<2x256xf32>
    %125 = math.exp %124 : vector<2x256xf32>
    %cst_52 = arith.constant 1.000000e+00 : f32
    %126 = vector.broadcast %cst_52 : f32 to vector<2x256xf32>
    %127 = arith.addf %126, %125 : vector<2x256xf32>
    %cst_53 = arith.constant 1.000000e+00 : f32
    %128 = vector.broadcast %cst_53 : f32 to vector<2x256xf32>
    %129 = arith.divf %128, %127 : vector<2x256xf32>
    %130 = math.tanh %122 : vector<2x256xf32>
    %131 = vector.extract_strided_slice %129 {offsets = [0, 0], sizes = [2, 64], strides = [1, 1]} : vector<2x256xf32> to vector<2x64xf32>
    %132 = vector.extract_strided_slice %129 {offsets = [0, 64], sizes = [2, 64], strides = [1, 1]} : vector<2x256xf32> to vector<2x64xf32>
    %133 = vector.extract_strided_slice %130 {offsets = [0, 128], sizes = [2, 64], strides = [1, 1]} : vector<2x256xf32> to vector<2x64xf32>
    %134 = vector.extract_strided_slice %129 {offsets = [0, 192], sizes = [2, 64], strides = [1, 1]} : vector<2x256xf32> to vector<2x64xf32>
    %135 = arith.mulf %132, %108 : vector<2x64xf32>
    %136 = arith.mulf %131, %133 : vector<2x64xf32>
    %137 = arith.addf %135, %136 : vector<2x64xf32>
    %138 = math.tanh %137 : vector<2x64xf32>
    %139 = arith.mulf %134, %138 : vector<2x64xf32>
    %140 = vector.extract_strided_slice %139 {offsets = [0, 0], sizes = [2, 32], strides = [1, 1]} : vector<2x64xf32> to vector<2x32xf32>
    %c4_54 = arith.constant 4 : index
    %c0_55 = arith.constant 0 : index
    %c0_56 = arith.constant 0 : index
    %141 = vector.load %arg4[%c4_54, %c0_55, %c0_56] : memref<8x2x32xf32, #tpu.memory_space<vmem>>, vector<1x2x32xf32>
    %142 = vector.shape_cast %141 : vector<1x2x32xf32> to vector<2x32xf32>
    %143 = vector.shape_cast %140 : vector<2x32xf32> to vector<1x2x32xf32>
    tpu.vector_store %arg4[%c4_54, %c0_55, %c0_56], %143 {strides = array<i32>} : memref<8x2x32xf32, #tpu.memory_space<vmem>>, vector<1x2x32xf32>,
    %144 = vector.extract_strided_slice %139 {offsets = [0, 32], sizes = [2, 32], strides = [1, 1]} : vector<2x64xf32> to vector<2x32xf32>
    %c3_57 = arith.constant 3 : index
    %c0_58 = arith.constant 0 : index
    %c0_59 = arith.constant 0 : index
    %145 = vector.load %arg5[%c3_57, %c0_58, %c0_59] : memref<8x2x32xf32, #tpu.memory_space<vmem>>, vector<1x2x32xf32>
    %146 = vector.shape_cast %145 : vector<1x2x32xf32> to vector<2x32xf32>
    %147 = vector.shape_cast %144 : vector<2x32xf32> to vector<1x2x32xf32>
    tpu.vector_store %arg5[%c3_57, %c0_58, %c0_59], %147 {strides = array<i32>} : memref<8x2x32xf32, #tpu.memory_space<vmem>>, vector<1x2x32xf32>,
    %c5_60 = arith.constant 5 : index
    %c0_61 = arith.constant 0 : index
    %c0_62 = arith.constant 0 : index
    %148 = vector.load %arg1[%c5_60, %c0_61, %c0_62] : memref<8x2x256xf32, #tpu.memory_space<vmem>>, vector<1x2x256xf32>
    %149 = vector.shape_cast %148 : vector<1x2x256xf32> to vector<2x256xf32>
    %cst_63 = arith.constant dense<0.000000e+00> : vector<2x256xf32>
    %150 = tpu.matmul %139, %0, %cst_63 {dimension_numbers = #tpu.dot_dimension_numbers<[1], [0], [0], [1], [0, 0, 1, 1], [], []>} : vector<2x64xf32>, vector<64x256xf32>, vector<2x256xf32> -> vector<2x256xf32>
    %151 = arith.addf %149, %150 : vector<2x256xf32>
    %cst_64 = arith.constant 0.000000e+00 : f32
    %152 = vector.broadcast %cst_64 : f32 to vector<2x256xf32>
    %153 = arith.subf %152, %151 : vector<2x256xf32>
    %154 = math.exp %153 : vector<2x256xf32>
    %cst_65 = arith.constant 1.000000e+00 : f32
    %155 = vector.broadcast %cst_65 : f32 to vector<2x256xf32>
    %156 = arith.addf %155, %154 : vector<2x256xf32>
    %cst_66 = arith.constant 1.000000e+00 : f32
    %157 = vector.broadcast %cst_66 : f32 to vector<2x256xf32>
    %158 = arith.divf %157, %156 : vector<2x256xf32>
    %159 = math.tanh %151 : vector<2x256xf32>
    %160 = vector.extract_strided_slice %158 {offsets = [0, 0], sizes = [2, 64], strides = [1, 1]} : vector<2x256xf32> to vector<2x64xf32>
    %161 = vector.extract_strided_slice %158 {offsets = [0, 64], sizes = [2, 64], strides = [1, 1]} : vector<2x256xf32> to vector<2x64xf32>
    %162 = vector.extract_strided_slice %159 {offsets = [0, 128], sizes = [2, 64], strides = [1, 1]} : vector<2x256xf32> to vector<2x64xf32>
    %163 = vector.extract_strided_slice %158 {offsets = [0, 192], sizes = [2, 64], strides = [1, 1]} : vector<2x256xf32> to vector<2x64xf32>
    %164 = arith.mulf %161, %137 : vector<2x64xf32>
    %165 = arith.mulf %160, %162 : vector<2x64xf32>
    %166 = arith.addf %164, %165 : vector<2x64xf32>
    %167 = math.tanh %166 : vector<2x64xf32>
    %168 = arith.mulf %163, %167 : vector<2x64xf32>
    %169 = vector.extract_strided_slice %168 {offsets = [0, 0], sizes = [2, 32], strides = [1, 1]} : vector<2x64xf32> to vector<2x32xf32>
    %c5_67 = arith.constant 5 : index
    %c0_68 = arith.constant 0 : index
    %c0_69 = arith.constant 0 : index
    %170 = vector.load %arg4[%c5_67, %c0_68, %c0_69] : memref<8x2x32xf32, #tpu.memory_space<vmem>>, vector<1x2x32xf32>
    %171 = vector.shape_cast %170 : vector<1x2x32xf32> to vector<2x32xf32>
    %172 = vector.shape_cast %169 : vector<2x32xf32> to vector<1x2x32xf32>
    tpu.vector_store %arg4[%c5_67, %c0_68, %c0_69], %172 {strides = array<i32>} : memref<8x2x32xf32, #tpu.memory_space<vmem>>, vector<1x2x32xf32>,
    %173 = vector.extract_strided_slice %168 {offsets = [0, 32], sizes = [2, 32], strides = [1, 1]} : vector<2x64xf32> to vector<2x32xf32>
    %c2_70 = arith.constant 2 : index
    %c0_71 = arith.constant 0 : index
    %c0_72 = arith.constant 0 : index
    %174 = vector.load %arg5[%c2_70, %c0_71, %c0_72] : memref<8x2x32xf32, #tpu.memory_space<vmem>>, vector<1x2x32xf32>
    %175 = vector.shape_cast %174 : vector<1x2x32xf32> to vector<2x32xf32>
    %176 = vector.shape_cast %173 : vector<2x32xf32> to vector<1x2x32xf32>
    tpu.vector_store %arg5[%c2_70, %c0_71, %c0_72], %176 {strides = array<i32>} : memref<8x2x32xf32, #tpu.memory_space<vmem>>, vector<1x2x32xf32>,
    %c6_73 = arith.constant 6 : index
    %c0_74 = arith.constant 0 : index
    %c0_75 = arith.constant 0 : index
    %177 = vector.load %arg1[%c6_73, %c0_74, %c0_75] : memref<8x2x256xf32, #tpu.memory_space<vmem>>, vector<1x2x256xf32>
    %178 = vector.shape_cast %177 : vector<1x2x256xf32> to vector<2x256xf32>
    %cst_76 = arith.constant dense<0.000000e+00> : vector<2x256xf32>
    %179 = tpu.matmul %168, %0, %cst_76 {dimension_numbers = #tpu.dot_dimension_numbers<[1], [0], [0], [1], [0, 0, 1, 1], [], []>} : vector<2x64xf32>, vector<64x256xf32>, vector<2x256xf32> -> vector<2x256xf32>
    %180 = arith.addf %178, %179 : vector<2x256xf32>
    %cst_77 = arith.constant 0.000000e+00 : f32
    %181 = vector.broadcast %cst_77 : f32 to vector<2x256xf32>
    %182 = arith.subf %181, %180 : vector<2x256xf32>
    %183 = math.exp %182 : vector<2x256xf32>
    %cst_78 = arith.constant 1.000000e+00 : f32
    %184 = vector.broadcast %cst_78 : f32 to vector<2x256xf32>
    %185 = arith.addf %184, %183 : vector<2x256xf32>
    %cst_79 = arith.constant 1.000000e+00 : f32
    %186 = vector.broadcast %cst_79 : f32 to vector<2x256xf32>
    %187 = arith.divf %186, %185 : vector<2x256xf32>
    %188 = math.tanh %180 : vector<2x256xf32>
    %189 = vector.extract_strided_slice %187 {offsets = [0, 0], sizes = [2, 64], strides = [1, 1]} : vector<2x256xf32> to vector<2x64xf32>
    %190 = vector.extract_strided_slice %187 {offsets = [0, 64], sizes = [2, 64], strides = [1, 1]} : vector<2x256xf32> to vector<2x64xf32>
    %191 = vector.extract_strided_slice %188 {offsets = [0, 128], sizes = [2, 64], strides = [1, 1]} : vector<2x256xf32> to vector<2x64xf32>
    %192 = vector.extract_strided_slice %187 {offsets = [0, 192], sizes = [2, 64], strides = [1, 1]} : vector<2x256xf32> to vector<2x64xf32>
    %193 = arith.mulf %190, %166 : vector<2x64xf32>
    %194 = arith.mulf %189, %191 : vector<2x64xf32>
    %195 = arith.addf %193, %194 : vector<2x64xf32>
    %196 = math.tanh %195 : vector<2x64xf32>
    %197 = arith.mulf %192, %196 : vector<2x64xf32>
    %198 = vector.extract_strided_slice %197 {offsets = [0, 0], sizes = [2, 32], strides = [1, 1]} : vector<2x64xf32> to vector<2x32xf32>
    %c6_80 = arith.constant 6 : index
    %c0_81 = arith.constant 0 : index
    %c0_82 = arith.constant 0 : index
    %199 = vector.load %arg4[%c6_80, %c0_81, %c0_82] : memref<8x2x32xf32, #tpu.memory_space<vmem>>, vector<1x2x32xf32>
    %200 = vector.shape_cast %199 : vector<1x2x32xf32> to vector<2x32xf32>
    %201 = vector.shape_cast %198 : vector<2x32xf32> to vector<1x2x32xf32>
    tpu.vector_store %arg4[%c6_80, %c0_81, %c0_82], %201 {strides = array<i32>} : memref<8x2x32xf32, #tpu.memory_space<vmem>>, vector<1x2x32xf32>,
    %202 = vector.extract_strided_slice %197 {offsets = [0, 32], sizes = [2, 32], strides = [1, 1]} : vector<2x64xf32> to vector<2x32xf32>
    %c1_83 = arith.constant 1 : index
    %c0_84 = arith.constant 0 : index
    %c0_85 = arith.constant 0 : index
    %203 = vector.load %arg5[%c1_83, %c0_84, %c0_85] : memref<8x2x32xf32, #tpu.memory_space<vmem>>, vector<1x2x32xf32>
    %204 = vector.shape_cast %203 : vector<1x2x32xf32> to vector<2x32xf32>
    %205 = vector.shape_cast %202 : vector<2x32xf32> to vector<1x2x32xf32>
    tpu.vector_store %arg5[%c1_83, %c0_84, %c0_85], %205 {strides = array<i32>} : memref<8x2x32xf32, #tpu.memory_space<vmem>>, vector<1x2x32xf32>,
    %c7_86 = arith.constant 7 : index
    %c0_87 = arith.constant 0 : index
    %c0_88 = arith.constant 0 : index
    %206 = vector.load %arg1[%c7_86, %c0_87, %c0_88] : memref<8x2x256xf32, #tpu.memory_space<vmem>>, vector<1x2x256xf32>
    %207 = vector.shape_cast %206 : vector<1x2x256xf32> to vector<2x256xf32>
    %cst_89 = arith.constant dense<0.000000e+00> : vector<2x256xf32>
    %208 = tpu.matmul %197, %0, %cst_89 {dimension_numbers = #tpu.dot_dimension_numbers<[1], [0], [0], [1], [0, 0, 1, 1], [], []>} : vector<2x64xf32>, vector<64x256xf32>, vector<2x256xf32> -> vector<2x256xf32>
    %209 = arith.addf %207, %208 : vector<2x256xf32>
    %cst_90 = arith.constant 0.000000e+00 : f32
    %210 = vector.broadcast %cst_90 : f32 to vector<2x256xf32>
    %211 = arith.subf %210, %209 : vector<2x256xf32>
    %212 = math.exp %211 : vector<2x256xf32>
    %cst_91 = arith.constant 1.000000e+00 : f32
    %213 = vector.broadcast %cst_91 : f32 to vector<2x256xf32>
    %214 = arith.addf %213, %212 : vector<2x256xf32>
    %cst_92 = arith.constant 1.000000e+00 : f32
    %215 = vector.broadcast %cst_92 : f32 to vector<2x256xf32>
    %216 = arith.divf %215, %214 : vector<2x256xf32>
    %217 = math.tanh %209 : vector<2x256xf32>
    %218 = vector.extract_strided_slice %216 {offsets = [0, 0], sizes = [2, 64], strides = [1, 1]} : vector<2x256xf32> to vector<2x64xf32>
    %219 = vector.extract_strided_slice %216 {offsets = [0, 64], sizes = [2, 64], strides = [1, 1]} : vector<2x256xf32> to vector<2x64xf32>
    %220 = vector.extract_strided_slice %217 {offsets = [0, 128], sizes = [2, 64], strides = [1, 1]} : vector<2x256xf32> to vector<2x64xf32>
    %221 = vector.extract_strided_slice %216 {offsets = [0, 192], sizes = [2, 64], strides = [1, 1]} : vector<2x256xf32> to vector<2x64xf32>
    %222 = arith.mulf %219, %195 : vector<2x64xf32>
    %223 = arith.mulf %218, %220 : vector<2x64xf32>
    %224 = arith.addf %222, %223 : vector<2x64xf32>
    %225 = math.tanh %224 : vector<2x64xf32>
    %226 = arith.mulf %221, %225 : vector<2x64xf32>
    %227 = vector.extract_strided_slice %226 {offsets = [0, 0], sizes = [2, 32], strides = [1, 1]} : vector<2x64xf32> to vector<2x32xf32>
    %c7_93 = arith.constant 7 : index
    %c0_94 = arith.constant 0 : index
    %c0_95 = arith.constant 0 : index
    %228 = vector.load %arg4[%c7_93, %c0_94, %c0_95] : memref<8x2x32xf32, #tpu.memory_space<vmem>>, vector<1x2x32xf32>
    %229 = vector.shape_cast %228 : vector<1x2x32xf32> to vector<2x32xf32>
    %230 = vector.shape_cast %227 : vector<2x32xf32> to vector<1x2x32xf32>
    tpu.vector_store %arg4[%c7_93, %c0_94, %c0_95], %230 {strides = array<i32>} : memref<8x2x32xf32, #tpu.memory_space<vmem>>, vector<1x2x32xf32>,
    %231 = vector.extract_strided_slice %226 {offsets = [0, 32], sizes = [2, 32], strides = [1, 1]} : vector<2x64xf32> to vector<2x32xf32>
    %c0_96 = arith.constant 0 : index
    %c0_97 = arith.constant 0 : index
    %c0_98 = arith.constant 0 : index
    %232 = vector.load %arg5[%c0_96, %c0_97, %c0_98] : memref<8x2x32xf32, #tpu.memory_space<vmem>>, vector<1x2x32xf32>
    %233 = vector.shape_cast %232 : vector<1x2x32xf32> to vector<2x32xf32>
    %234 = vector.shape_cast %231 : vector<2x32xf32> to vector<1x2x32xf32>
    tpu.vector_store %arg5[%c0_96, %c0_97, %c0_98], %234 {strides = array<i32>} : memref<8x2x32xf32, #tpu.memory_space<vmem>>, vector<1x2x32xf32>,
    %c0_99 = arith.constant 0 : index
    %c0_100 = arith.constant 0 : index
    %c0_101 = arith.constant 0 : index
    %235 = vector.load %arg4[%c0_99, %c0_100, %c0_101] : memref<8x2x32xf32, #tpu.memory_space<vmem>>, vector<8x2x32xf32>
    %c0_102 = arith.constant 0 : index
    %c0_103 = arith.constant 0 : index
    %c0_104 = arith.constant 0 : index
    %236 = vector.load %arg5[%c0_102, %c0_103, %c0_104] : memref<8x2x32xf32, #tpu.memory_space<vmem>>, vector<8x2x32xf32>
    %237 = tpu.concatenate %235, %236 in 2 : vector<8x2x32xf32>, vector<8x2x32xf32> -> vector<8x2x64xf32>
    %c0_105 = arith.constant 0 : index
    %c0_106 = arith.constant 0 : index
    %c0_107 = arith.constant 0 : index
    %238 = vector.load %arg3[%c0_105, %c0_106, %c0_107] : memref<8x2x64xf32, #tpu.memory_space<vmem>>, vector<8x2x64xf32>
    tpu.vector_store %arg3[%c0_105, %c0_106, %c0_107], %237 {strides = array<i32>} : memref<8x2x64xf32, #tpu.memory_space<vmem>>, vector<8x2x64xf32>,
    return
  }
  func.func @transform_0(%arg0: i32) -> (i32, i32, i32) {
    %c0_i32 = arith.constant 0 : i32
    %c0_i32_0 = arith.constant 0 : i32
    %c0_i32_1 = arith.constant 0 : i32
    %c0_i32_2 = arith.constant 0 : i32
    return %c0_i32, %c0_i32_0, %c0_i32_1 : i32, i32, i32
  }
  func.func @transform_1(%arg0: i32) -> (i32, i32) {
    %c0_i32 = arith.constant 0 : i32
    %c0_i32_0 = arith.constant 0 : i32
    %c0_i32_1 = arith.constant 0 : i32
    return %c0_i32, %c0_i32_0 : i32, i32
  }
  func.func @transform_2(%arg0: i32) -> (i32, i32, i32) {
    %c0_i32 = arith.constant 0 : i32
    %c0_i32_0 = arith.constant 0 : i32
    %c0_i32_1 = arith.constant 0 : i32
    %c0_i32_2 = arith.constant 0 : i32
    return %c0_i32, %c0_i32_0, %c0_i32_1 : i32, i32, i32
  }
}

module attributes {stable_mosaic.version = 11 : i64} {
  func.func @_transformer_kernel(%arg0: i32, %arg1: memref<1x8x64xf32, #tpu.memory_space<vmem>>, %arg2: memref<1x64xf32, #tpu.memory_space<vmem>>, %arg3: memref<1x64xf32, #tpu.memory_space<vmem>>, %arg4: memref<8x64xf32, #tpu.memory_space<vmem>>, %arg5: memref<2x64x64xf32, #tpu.memory_space<vmem>>, %arg6: memref<2x64x64xf32, #tpu.memory_space<vmem>>, %arg7: memref<2x64x64xf32, #tpu.memory_space<vmem>>, %arg8: memref<2x64x64xf32, #tpu.memory_space<vmem>>, %arg9: memref<2x1x64xf32, #tpu.memory_space<vmem>>, %arg10: memref<2x1x64xf32, #tpu.memory_space<vmem>>, %arg11: memref<2x1x64xf32, #tpu.memory_space<vmem>>, %arg12: memref<2x64x256xf32, #tpu.memory_space<vmem>>, %arg13: memref<2x1x256xf32, #tpu.memory_space<vmem>>, %arg14: memref<2x256x64xf32, #tpu.memory_space<vmem>>, %arg15: memref<2x1x64xf32, #tpu.memory_space<vmem>>, %arg16: memref<2x1x64xf32, #tpu.memory_space<vmem>>, %arg17: memref<2x1x64xf32, #tpu.memory_space<vmem>>, %arg18: memref<1x8x64xf32, #tpu.memory_space<vmem>>) attributes {dimension_semantics = [#tpu.dimension_semantics<parallel>], iteration_bounds = array<i64: 2>, scalar_prefetch = 0 : i64, scratch_operands = 0 : i64, tpu.core_type = #tpu.core_type<tc>, window_params = [{transform_indices = @transform_0, window_bounds = array<i64: 1, 8, 64>}, {pipeline_mode = #tpu.pipeline_mode<synchronous>, transform_indices = @transform_1, window_bounds = array<i64: 1, 64>}, {pipeline_mode = #tpu.pipeline_mode<synchronous>, transform_indices = @transform_2, window_bounds = array<i64: 1, 64>}, {pipeline_mode = #tpu.pipeline_mode<synchronous>, transform_indices = @transform_3, window_bounds = array<i64: 8, 64>}, {pipeline_mode = #tpu.pipeline_mode<synchronous>, transform_indices = @transform_4, window_bounds = array<i64: 2, 64, 64>}, {pipeline_mode = #tpu.pipeline_mode<synchronous>, transform_indices = @transform_5, window_bounds = array<i64: 2, 64, 64>}, {pipeline_mode = #tpu.pipeline_mode<synchronous>, transform_indices = @transform_6, window_bounds = array<i64: 2, 64, 64>}, {pipeline_mode = #tpu.pipeline_mode<synchronous>, transform_indices = @transform_7, window_bounds = array<i64: 2, 64, 64>}, {pipeline_mode = #tpu.pipeline_mode<synchronous>, transform_indices = @transform_8, window_bounds = array<i64: 2, 1, 64>}, {pipeline_mode = #tpu.pipeline_mode<synchronous>, transform_indices = @transform_9, window_bounds = array<i64: 2, 1, 64>}, {pipeline_mode = #tpu.pipeline_mode<synchronous>, transform_indices = @transform_10, window_bounds = array<i64: 2, 1, 64>}, {pipeline_mode = #tpu.pipeline_mode<synchronous>, transform_indices = @transform_11, window_bounds = array<i64: 2, 64, 256>}, {pipeline_mode = #tpu.pipeline_mode<synchronous>, transform_indices = @transform_12, window_bounds = array<i64: 2, 1, 256>}, {pipeline_mode = #tpu.pipeline_mode<synchronous>, transform_indices = @transform_13, window_bounds = array<i64: 2, 256, 64>}, {pipeline_mode = #tpu.pipeline_mode<synchronous>, transform_indices = @transform_14, window_bounds = array<i64: 2, 1, 64>}, {pipeline_mode = #tpu.pipeline_mode<synchronous>, transform_indices = @transform_15, window_bounds = array<i64: 2, 1, 64>}, {pipeline_mode = #tpu.pipeline_mode<synchronous>, transform_indices = @transform_16, window_bounds = array<i64: 2, 1, 64>}, {transform_indices = @transform_17, window_bounds = array<i64: 1, 8, 64>}]} {
    %c0 = arith.constant 0 : index
    %c0_0 = arith.constant 0 : index
    %c0_1 = arith.constant 0 : index
    %0 = vector.load %arg1[%c0, %c0_0, %c0_1] : memref<1x8x64xf32, #tpu.memory_space<vmem>>, vector<1x8x64xf32>
    %1 = vector.shape_cast %0 : vector<1x8x64xf32> to vector<8x64xf32>
    %c0_2 = arith.constant 0 : index
    %c0_3 = arith.constant 0 : index
    %2 = vector.load %arg2[%c0_2, %c0_3] : memref<1x64xf32, #tpu.memory_space<vmem>>, vector<1x64xf32>
    %3 = vector.broadcast %2 : vector<1x64xf32> to vector<8x64xf32>
    %4 = arith.mulf %1, %3 : vector<8x64xf32>
    %c0_4 = arith.constant 0 : index
    %c0_5 = arith.constant 0 : index
    %5 = vector.load %arg3[%c0_4, %c0_5] : memref<1x64xf32, #tpu.memory_space<vmem>>, vector<1x64xf32>
    %6 = vector.broadcast %5 : vector<1x64xf32> to vector<8x64xf32>
    %7 = arith.addf %4, %6 : vector<8x64xf32>
    %c0_6 = arith.constant 0 : index
    %c0_7 = arith.constant 0 : index
    %8 = vector.load %arg4[%c0_6, %c0_7] : memref<8x64xf32, #tpu.memory_space<vmem>>, vector<8x64xf32>
    %9 = arith.addf %7, %8 : vector<8x64xf32>
    %c0_8 = arith.constant 0 : index
    %c0_9 = arith.constant 0 : index
    %c0_10 = arith.constant 0 : index
    %10 = vector.load %arg5[%c0_8, %c0_9, %c0_10] : memref<2x64x64xf32, #tpu.memory_space<vmem>>, vector<1x64x64xf32>
    %11 = vector.shape_cast %10 : vector<1x64x64xf32> to vector<64x64xf32>
    %cst = arith.constant dense<0.000000e+00> : vector<8x64xf32>
    %12 = tpu.matmul %9, %11, %cst {dimension_numbers = #tpu.dot_dimension_numbers<[1], [0], [0], [1], [0, 0, 1, 1], [], []>} : vector<8x64xf32>, vector<64x64xf32>, vector<8x64xf32> -> vector<8x64xf32>
    %c0_11 = arith.constant 0 : index
    %c0_12 = arith.constant 0 : index
    %c0_13 = arith.constant 0 : index
    %13 = vector.load %arg6[%c0_11, %c0_12, %c0_13] : memref<2x64x64xf32, #tpu.memory_space<vmem>>, vector<1x64x64xf32>
    %14 = vector.shape_cast %13 : vector<1x64x64xf32> to vector<64x64xf32>
    %cst_14 = arith.constant dense<0.000000e+00> : vector<8x64xf32>
    %15 = tpu.matmul %9, %14, %cst_14 {dimension_numbers = #tpu.dot_dimension_numbers<[1], [0], [0], [1], [0, 0, 1, 1], [], []>} : vector<8x64xf32>, vector<64x64xf32>, vector<8x64xf32> -> vector<8x64xf32>
    %c0_15 = arith.constant 0 : index
    %c0_16 = arith.constant 0 : index
    %c0_17 = arith.constant 0 : index
    %16 = vector.load %arg7[%c0_15, %c0_16, %c0_17] : memref<2x64x64xf32, #tpu.memory_space<vmem>>, vector<1x64x64xf32>
    %17 = vector.shape_cast %16 : vector<1x64x64xf32> to vector<64x64xf32>
    %cst_18 = arith.constant dense<0.000000e+00> : vector<8x64xf32>
    %18 = tpu.matmul %9, %17, %cst_18 {dimension_numbers = #tpu.dot_dimension_numbers<[1], [0], [0], [1], [0, 0, 1, 1], [], []>} : vector<8x64xf32>, vector<64x64xf32>, vector<8x64xf32> -> vector<8x64xf32>
    %19 = vector.extract_strided_slice %12 {offsets = [0, 0], sizes = [8, 8], strides = [1, 1]} : vector<8x64xf32> to vector<8x8xf32>
    %20 = vector.extract_strided_slice %15 {offsets = [0, 0], sizes = [8, 8], strides = [1, 1]} : vector<8x64xf32> to vector<8x8xf32>
    %21 = vector.extract_strided_slice %18 {offsets = [0, 0], sizes = [8, 8], strides = [1, 1]} : vector<8x64xf32> to vector<8x8xf32>
    %cst_19 = arith.constant dense<0.000000e+00> : vector<8x8xf32>
    %22 = tpu.matmul %19, %20, %cst_19 {dimension_numbers = #tpu.dot_dimension_numbers<[1], [1], [0], [0], [0, 0, 1, 0], [], []>} : vector<8x8xf32>, vector<8x8xf32>, vector<8x8xf32> -> vector<8x8xf32>
    %cst_20 = arith.constant dense<0xFF800000> : vector<8xf32>
    %23 = vector.multi_reduction <maximumf>, %22, %cst_20 [1] : vector<8x8xf32> to vector<8xf32>
    %24 = vector.shape_cast %23 : vector<8xf32> to vector<8x1xf32>
    %25 = vector.broadcast %24 : vector<8x1xf32> to vector<8x8xf32>
    %26 = arith.subf %22, %25 : vector<8x8xf32>
    %27 = math.exp %26 : vector<8x8xf32>
    %cst_21 = arith.constant dense<0.000000e+00> : vector<8xf32>
    %28 = vector.multi_reduction <add>, %27, %cst_21 [1] : vector<8x8xf32> to vector<8xf32>
    %29 = vector.shape_cast %28 : vector<8xf32> to vector<8x1xf32>
    %30 = tpu.reciprocal %29 {approx = true} : vector<8x1xf32> -> vector<8x1xf32>
    %31 = vector.broadcast %30 : vector<8x1xf32> to vector<8x8xf32>
    %32 = arith.mulf %27, %31 : vector<8x8xf32>
    %cst_22 = arith.constant dense<0.000000e+00> : vector<8x8xf32>
    %33 = tpu.matmul %32, %21, %cst_22 {dimension_numbers = #tpu.dot_dimension_numbers<[1], [0], [0], [1], [0, 0, 1, 1], [], []>} : vector<8x8xf32>, vector<8x8xf32>, vector<8x8xf32> -> vector<8x8xf32>
    %34 = vector.extract_strided_slice %12 {offsets = [0, 8], sizes = [8, 8], strides = [1, 1]} : vector<8x64xf32> to vector<8x8xf32>
    %35 = vector.extract_strided_slice %15 {offsets = [0, 8], sizes = [8, 8], strides = [1, 1]} : vector<8x64xf32> to vector<8x8xf32>
    %36 = vector.extract_strided_slice %18 {offsets = [0, 8], sizes = [8, 8], strides = [1, 1]} : vector<8x64xf32> to vector<8x8xf32>
    %cst_23 = arith.constant dense<0.000000e+00> : vector<8x8xf32>
    %37 = tpu.matmul %34, %35, %cst_23 {dimension_numbers = #tpu.dot_dimension_numbers<[1], [1], [0], [0], [0, 0, 1, 0], [], []>} : vector<8x8xf32>, vector<8x8xf32>, vector<8x8xf32> -> vector<8x8xf32>
    %cst_24 = arith.constant dense<0xFF800000> : vector<8xf32>
    %38 = vector.multi_reduction <maximumf>, %37, %cst_24 [1] : vector<8x8xf32> to vector<8xf32>
    %39 = vector.shape_cast %38 : vector<8xf32> to vector<8x1xf32>
    %40 = vector.broadcast %39 : vector<8x1xf32> to vector<8x8xf32>
    %41 = arith.subf %37, %40 : vector<8x8xf32>
    %42 = math.exp %41 : vector<8x8xf32>
    %cst_25 = arith.constant dense<0.000000e+00> : vector<8xf32>
    %43 = vector.multi_reduction <add>, %42, %cst_25 [1] : vector<8x8xf32> to vector<8xf32>
    %44 = vector.shape_cast %43 : vector<8xf32> to vector<8x1xf32>
    %45 = tpu.reciprocal %44 {approx = true} : vector<8x1xf32> -> vector<8x1xf32>
    %46 = vector.broadcast %45 : vector<8x1xf32> to vector<8x8xf32>
    %47 = arith.mulf %42, %46 : vector<8x8xf32>
    %cst_26 = arith.constant dense<0.000000e+00> : vector<8x8xf32>
    %48 = tpu.matmul %47, %36, %cst_26 {dimension_numbers = #tpu.dot_dimension_numbers<[1], [0], [0], [1], [0, 0, 1, 1], [], []>} : vector<8x8xf32>, vector<8x8xf32>, vector<8x8xf32> -> vector<8x8xf32>
    %49 = vector.extract_strided_slice %12 {offsets = [0, 16], sizes = [8, 8], strides = [1, 1]} : vector<8x64xf32> to vector<8x8xf32>
    %50 = vector.extract_strided_slice %15 {offsets = [0, 16], sizes = [8, 8], strides = [1, 1]} : vector<8x64xf32> to vector<8x8xf32>
    %51 = vector.extract_strided_slice %18 {offsets = [0, 16], sizes = [8, 8], strides = [1, 1]} : vector<8x64xf32> to vector<8x8xf32>
    %cst_27 = arith.constant dense<0.000000e+00> : vector<8x8xf32>
    %52 = tpu.matmul %49, %50, %cst_27 {dimension_numbers = #tpu.dot_dimension_numbers<[1], [1], [0], [0], [0, 0, 1, 0], [], []>} : vector<8x8xf32>, vector<8x8xf32>, vector<8x8xf32> -> vector<8x8xf32>
    %cst_28 = arith.constant dense<0xFF800000> : vector<8xf32>
    %53 = vector.multi_reduction <maximumf>, %52, %cst_28 [1] : vector<8x8xf32> to vector<8xf32>
    %54 = vector.shape_cast %53 : vector<8xf32> to vector<8x1xf32>
    %55 = vector.broadcast %54 : vector<8x1xf32> to vector<8x8xf32>
    %56 = arith.subf %52, %55 : vector<8x8xf32>
    %57 = math.exp %56 : vector<8x8xf32>
    %cst_29 = arith.constant dense<0.000000e+00> : vector<8xf32>
    %58 = vector.multi_reduction <add>, %57, %cst_29 [1] : vector<8x8xf32> to vector<8xf32>
    %59 = vector.shape_cast %58 : vector<8xf32> to vector<8x1xf32>
    %60 = tpu.reciprocal %59 {approx = true} : vector<8x1xf32> -> vector<8x1xf32>
    %61 = vector.broadcast %60 : vector<8x1xf32> to vector<8x8xf32>
    %62 = arith.mulf %57, %61 : vector<8x8xf32>
    %cst_30 = arith.constant dense<0.000000e+00> : vector<8x8xf32>
    %63 = tpu.matmul %62, %51, %cst_30 {dimension_numbers = #tpu.dot_dimension_numbers<[1], [0], [0], [1], [0, 0, 1, 1], [], []>} : vector<8x8xf32>, vector<8x8xf32>, vector<8x8xf32> -> vector<8x8xf32>
    %64 = vector.extract_strided_slice %12 {offsets = [0, 24], sizes = [8, 8], strides = [1, 1]} : vector<8x64xf32> to vector<8x8xf32>
    %65 = vector.extract_strided_slice %15 {offsets = [0, 24], sizes = [8, 8], strides = [1, 1]} : vector<8x64xf32> to vector<8x8xf32>
    %66 = vector.extract_strided_slice %18 {offsets = [0, 24], sizes = [8, 8], strides = [1, 1]} : vector<8x64xf32> to vector<8x8xf32>
    %cst_31 = arith.constant dense<0.000000e+00> : vector<8x8xf32>
    %67 = tpu.matmul %64, %65, %cst_31 {dimension_numbers = #tpu.dot_dimension_numbers<[1], [1], [0], [0], [0, 0, 1, 0], [], []>} : vector<8x8xf32>, vector<8x8xf32>, vector<8x8xf32> -> vector<8x8xf32>
    %cst_32 = arith.constant dense<0xFF800000> : vector<8xf32>
    %68 = vector.multi_reduction <maximumf>, %67, %cst_32 [1] : vector<8x8xf32> to vector<8xf32>
    %69 = vector.shape_cast %68 : vector<8xf32> to vector<8x1xf32>
    %70 = vector.broadcast %69 : vector<8x1xf32> to vector<8x8xf32>
    %71 = arith.subf %67, %70 : vector<8x8xf32>
    %72 = math.exp %71 : vector<8x8xf32>
    %cst_33 = arith.constant dense<0.000000e+00> : vector<8xf32>
    %73 = vector.multi_reduction <add>, %72, %cst_33 [1] : vector<8x8xf32> to vector<8xf32>
    %74 = vector.shape_cast %73 : vector<8xf32> to vector<8x1xf32>
    %75 = tpu.reciprocal %74 {approx = true} : vector<8x1xf32> -> vector<8x1xf32>
    %76 = vector.broadcast %75 : vector<8x1xf32> to vector<8x8xf32>
    %77 = arith.mulf %72, %76 : vector<8x8xf32>
    %cst_34 = arith.constant dense<0.000000e+00> : vector<8x8xf32>
    %78 = tpu.matmul %77, %66, %cst_34 {dimension_numbers = #tpu.dot_dimension_numbers<[1], [0], [0], [1], [0, 0, 1, 1], [], []>} : vector<8x8xf32>, vector<8x8xf32>, vector<8x8xf32> -> vector<8x8xf32>
    %79 = vector.extract_strided_slice %12 {offsets = [0, 32], sizes = [8, 8], strides = [1, 1]} : vector<8x64xf32> to vector<8x8xf32>
    %80 = vector.extract_strided_slice %15 {offsets = [0, 32], sizes = [8, 8], strides = [1, 1]} : vector<8x64xf32> to vector<8x8xf32>
    %81 = vector.extract_strided_slice %18 {offsets = [0, 32], sizes = [8, 8], strides = [1, 1]} : vector<8x64xf32> to vector<8x8xf32>
    %cst_35 = arith.constant dense<0.000000e+00> : vector<8x8xf32>
    %82 = tpu.matmul %79, %80, %cst_35 {dimension_numbers = #tpu.dot_dimension_numbers<[1], [1], [0], [0], [0, 0, 1, 0], [], []>} : vector<8x8xf32>, vector<8x8xf32>, vector<8x8xf32> -> vector<8x8xf32>
    %cst_36 = arith.constant dense<0xFF800000> : vector<8xf32>
    %83 = vector.multi_reduction <maximumf>, %82, %cst_36 [1] : vector<8x8xf32> to vector<8xf32>
    %84 = vector.shape_cast %83 : vector<8xf32> to vector<8x1xf32>
    %85 = vector.broadcast %84 : vector<8x1xf32> to vector<8x8xf32>
    %86 = arith.subf %82, %85 : vector<8x8xf32>
    %87 = math.exp %86 : vector<8x8xf32>
    %cst_37 = arith.constant dense<0.000000e+00> : vector<8xf32>
    %88 = vector.multi_reduction <add>, %87, %cst_37 [1] : vector<8x8xf32> to vector<8xf32>
    %89 = vector.shape_cast %88 : vector<8xf32> to vector<8x1xf32>
    %90 = tpu.reciprocal %89 {approx = true} : vector<8x1xf32> -> vector<8x1xf32>
    %91 = vector.broadcast %90 : vector<8x1xf32> to vector<8x8xf32>
    %92 = arith.mulf %87, %91 : vector<8x8xf32>
    %cst_38 = arith.constant dense<0.000000e+00> : vector<8x8xf32>
    %93 = tpu.matmul %92, %81, %cst_38 {dimension_numbers = #tpu.dot_dimension_numbers<[1], [0], [0], [1], [0, 0, 1, 1], [], []>} : vector<8x8xf32>, vector<8x8xf32>, vector<8x8xf32> -> vector<8x8xf32>
    %94 = vector.extract_strided_slice %12 {offsets = [0, 40], sizes = [8, 8], strides = [1, 1]} : vector<8x64xf32> to vector<8x8xf32>
    %95 = vector.extract_strided_slice %15 {offsets = [0, 40], sizes = [8, 8], strides = [1, 1]} : vector<8x64xf32> to vector<8x8xf32>
    %96 = vector.extract_strided_slice %18 {offsets = [0, 40], sizes = [8, 8], strides = [1, 1]} : vector<8x64xf32> to vector<8x8xf32>
    %cst_39 = arith.constant dense<0.000000e+00> : vector<8x8xf32>
    %97 = tpu.matmul %94, %95, %cst_39 {dimension_numbers = #tpu.dot_dimension_numbers<[1], [1], [0], [0], [0, 0, 1, 0], [], []>} : vector<8x8xf32>, vector<8x8xf32>, vector<8x8xf32> -> vector<8x8xf32>
    %cst_40 = arith.constant dense<0xFF800000> : vector<8xf32>
    %98 = vector.multi_reduction <maximumf>, %97, %cst_40 [1] : vector<8x8xf32> to vector<8xf32>
    %99 = vector.shape_cast %98 : vector<8xf32> to vector<8x1xf32>
    %100 = vector.broadcast %99 : vector<8x1xf32> to vector<8x8xf32>
    %101 = arith.subf %97, %100 : vector<8x8xf32>
    %102 = math.exp %101 : vector<8x8xf32>
    %cst_41 = arith.constant dense<0.000000e+00> : vector<8xf32>
    %103 = vector.multi_reduction <add>, %102, %cst_41 [1] : vector<8x8xf32> to vector<8xf32>
    %104 = vector.shape_cast %103 : vector<8xf32> to vector<8x1xf32>
    %105 = tpu.reciprocal %104 {approx = true} : vector<8x1xf32> -> vector<8x1xf32>
    %106 = vector.broadcast %105 : vector<8x1xf32> to vector<8x8xf32>
    %107 = arith.mulf %102, %106 : vector<8x8xf32>
    %cst_42 = arith.constant dense<0.000000e+00> : vector<8x8xf32>
    %108 = tpu.matmul %107, %96, %cst_42 {dimension_numbers = #tpu.dot_dimension_numbers<[1], [0], [0], [1], [0, 0, 1, 1], [], []>} : vector<8x8xf32>, vector<8x8xf32>, vector<8x8xf32> -> vector<8x8xf32>
    %109 = vector.extract_strided_slice %12 {offsets = [0, 48], sizes = [8, 8], strides = [1, 1]} : vector<8x64xf32> to vector<8x8xf32>
    %110 = vector.extract_strided_slice %15 {offsets = [0, 48], sizes = [8, 8], strides = [1, 1]} : vector<8x64xf32> to vector<8x8xf32>
    %111 = vector.extract_strided_slice %18 {offsets = [0, 48], sizes = [8, 8], strides = [1, 1]} : vector<8x64xf32> to vector<8x8xf32>
    %cst_43 = arith.constant dense<0.000000e+00> : vector<8x8xf32>
    %112 = tpu.matmul %109, %110, %cst_43 {dimension_numbers = #tpu.dot_dimension_numbers<[1], [1], [0], [0], [0, 0, 1, 0], [], []>} : vector<8x8xf32>, vector<8x8xf32>, vector<8x8xf32> -> vector<8x8xf32>
    %cst_44 = arith.constant dense<0xFF800000> : vector<8xf32>
    %113 = vector.multi_reduction <maximumf>, %112, %cst_44 [1] : vector<8x8xf32> to vector<8xf32>
    %114 = vector.shape_cast %113 : vector<8xf32> to vector<8x1xf32>
    %115 = vector.broadcast %114 : vector<8x1xf32> to vector<8x8xf32>
    %116 = arith.subf %112, %115 : vector<8x8xf32>
    %117 = math.exp %116 : vector<8x8xf32>
    %cst_45 = arith.constant dense<0.000000e+00> : vector<8xf32>
    %118 = vector.multi_reduction <add>, %117, %cst_45 [1] : vector<8x8xf32> to vector<8xf32>
    %119 = vector.shape_cast %118 : vector<8xf32> to vector<8x1xf32>
    %120 = tpu.reciprocal %119 {approx = true} : vector<8x1xf32> -> vector<8x1xf32>
    %121 = vector.broadcast %120 : vector<8x1xf32> to vector<8x8xf32>
    %122 = arith.mulf %117, %121 : vector<8x8xf32>
    %cst_46 = arith.constant dense<0.000000e+00> : vector<8x8xf32>
    %123 = tpu.matmul %122, %111, %cst_46 {dimension_numbers = #tpu.dot_dimension_numbers<[1], [0], [0], [1], [0, 0, 1, 1], [], []>} : vector<8x8xf32>, vector<8x8xf32>, vector<8x8xf32> -> vector<8x8xf32>
    %124 = vector.extract_strided_slice %12 {offsets = [0, 56], sizes = [8, 8], strides = [1, 1]} : vector<8x64xf32> to vector<8x8xf32>
    %125 = vector.extract_strided_slice %15 {offsets = [0, 56], sizes = [8, 8], strides = [1, 1]} : vector<8x64xf32> to vector<8x8xf32>
    %126 = vector.extract_strided_slice %18 {offsets = [0, 56], sizes = [8, 8], strides = [1, 1]} : vector<8x64xf32> to vector<8x8xf32>
    %cst_47 = arith.constant dense<0.000000e+00> : vector<8x8xf32>
    %127 = tpu.matmul %124, %125, %cst_47 {dimension_numbers = #tpu.dot_dimension_numbers<[1], [1], [0], [0], [0, 0, 1, 0], [], []>} : vector<8x8xf32>, vector<8x8xf32>, vector<8x8xf32> -> vector<8x8xf32>
    %cst_48 = arith.constant dense<0xFF800000> : vector<8xf32>
    %128 = vector.multi_reduction <maximumf>, %127, %cst_48 [1] : vector<8x8xf32> to vector<8xf32>
    %129 = vector.shape_cast %128 : vector<8xf32> to vector<8x1xf32>
    %130 = vector.broadcast %129 : vector<8x1xf32> to vector<8x8xf32>
    %131 = arith.subf %127, %130 : vector<8x8xf32>
    %132 = math.exp %131 : vector<8x8xf32>
    %cst_49 = arith.constant dense<0.000000e+00> : vector<8xf32>
    %133 = vector.multi_reduction <add>, %132, %cst_49 [1] : vector<8x8xf32> to vector<8xf32>
    %134 = vector.shape_cast %133 : vector<8xf32> to vector<8x1xf32>
    %135 = tpu.reciprocal %134 {approx = true} : vector<8x1xf32> -> vector<8x1xf32>
    %136 = vector.broadcast %135 : vector<8x1xf32> to vector<8x8xf32>
    %137 = arith.mulf %132, %136 : vector<8x8xf32>
    %cst_50 = arith.constant dense<0.000000e+00> : vector<8x8xf32>
    %138 = tpu.matmul %137, %126, %cst_50 {dimension_numbers = #tpu.dot_dimension_numbers<[1], [0], [0], [1], [0, 0, 1, 1], [], []>} : vector<8x8xf32>, vector<8x8xf32>, vector<8x8xf32> -> vector<8x8xf32>
    %139 = tpu.concatenate %33, %48, %63, %78, %93, %108, %123, %138 in 1 : vector<8x8xf32>, vector<8x8xf32>, vector<8x8xf32>, vector<8x8xf32>, vector<8x8xf32>, vector<8x8xf32>, vector<8x8xf32>, vector<8x8xf32> -> vector<8x64xf32>
    %c0_51 = arith.constant 0 : index
    %c0_52 = arith.constant 0 : index
    %c0_53 = arith.constant 0 : index
    %140 = vector.load %arg8[%c0_51, %c0_52, %c0_53] : memref<2x64x64xf32, #tpu.memory_space<vmem>>, vector<1x64x64xf32>
    %141 = vector.shape_cast %140 : vector<1x64x64xf32> to vector<64x64xf32>
    %cst_54 = arith.constant dense<0.000000e+00> : vector<8x64xf32>
    %142 = tpu.matmul %139, %141, %cst_54 {dimension_numbers = #tpu.dot_dimension_numbers<[1], [0], [0], [1], [0, 0, 1, 1], [], []>} : vector<8x64xf32>, vector<64x64xf32>, vector<8x64xf32> -> vector<8x64xf32>
    %c0_55 = arith.constant 0 : index
    %c0_56 = arith.constant 0 : index
    %c0_57 = arith.constant 0 : index
    %143 = vector.load %arg9[%c0_55, %c0_56, %c0_57] : memref<2x1x64xf32, #tpu.memory_space<vmem>>, vector<1x1x64xf32>
    %144 = vector.shape_cast %143 : vector<1x1x64xf32> to vector<1x64xf32>
    %145 = vector.broadcast %144 : vector<1x64xf32> to vector<8x64xf32>
    %146 = arith.addf %142, %145 : vector<8x64xf32>
    %147 = arith.addf %146, %9 : vector<8x64xf32>
    %c0_58 = arith.constant 0 : index
    %c0_59 = arith.constant 0 : index
    %c0_60 = arith.constant 0 : index
    %148 = vector.load %arg10[%c0_58, %c0_59, %c0_60] : memref<2x1x64xf32, #tpu.memory_space<vmem>>, vector<1x1x64xf32>
    %149 = vector.shape_cast %148 : vector<1x1x64xf32> to vector<1x64xf32>
    %c0_61 = arith.constant 0 : index
    %c0_62 = arith.constant 0 : index
    %c0_63 = arith.constant 0 : index
    %150 = vector.load %arg11[%c0_61, %c0_62, %c0_63] : memref<2x1x64xf32, #tpu.memory_space<vmem>>, vector<1x1x64xf32>
    %151 = vector.shape_cast %150 : vector<1x1x64xf32> to vector<1x64xf32>
    %cst_64 = arith.constant dense<0.000000e+00> : vector<8xf32>
    %152 = vector.multi_reduction <add>, %147, %cst_64 [1] : vector<8x64xf32> to vector<8xf32>
    %153 = vector.shape_cast %152 : vector<8xf32> to vector<8x1xf32>
    %cst_65 = arith.constant 6.400000e+01 : f32
    %154 = vector.broadcast %cst_65 : f32 to vector<8x1xf32>
    %155 = arith.divf %153, %154 : vector<8x1xf32>
    %156 = vector.broadcast %155 : vector<8x1xf32> to vector<8x64xf32>
    %157 = arith.subf %147, %156 : vector<8x64xf32>
    %158 = arith.mulf %157, %157 : vector<8x64xf32>
    %cst_66 = arith.constant dense<0.000000e+00> : vector<8xf32>
    %159 = vector.multi_reduction <add>, %158, %cst_66 [1] : vector<8x64xf32> to vector<8xf32>
    %160 = vector.shape_cast %159 : vector<8xf32> to vector<8x1xf32>
    %cst_67 = arith.constant 6.400000e+01 : f32
    %161 = vector.broadcast %cst_67 : f32 to vector<8x1xf32>
    %162 = arith.divf %160, %161 : vector<8x1xf32>
    %163 = vector.broadcast %155 : vector<8x1xf32> to vector<8x64xf32>
    %164 = arith.subf %147, %163 : vector<8x64xf32>
    %cst_68 = arith.constant 9.99999974E-6 : f32
    %165 = vector.broadcast %cst_68 : f32 to vector<8x1xf32>
    %166 = arith.addf %162, %165 : vector<8x1xf32>
    %167 = math.rsqrt %166 : vector<8x1xf32>
    %168 = vector.broadcast %167 : vector<8x1xf32> to vector<8x64xf32>
    %169 = arith.mulf %164, %168 : vector<8x64xf32>
    %170 = vector.broadcast %149 : vector<1x64xf32> to vector<8x64xf32>
    %171 = arith.mulf %169, %170 : vector<8x64xf32>
    %172 = vector.broadcast %151 : vector<1x64xf32> to vector<8x64xf32>
    %173 = arith.addf %171, %172 : vector<8x64xf32>
    %c0_69 = arith.constant 0 : index
    %c0_70 = arith.constant 0 : index
    %c0_71 = arith.constant 0 : index
    %174 = vector.load %arg12[%c0_69, %c0_70, %c0_71] : memref<2x64x256xf32, #tpu.memory_space<vmem>>, vector<1x64x256xf32>
    %175 = vector.shape_cast %174 : vector<1x64x256xf32> to vector<64x256xf32>
    %cst_72 = arith.constant dense<0.000000e+00> : vector<8x256xf32>
    %176 = tpu.matmul %173, %175, %cst_72 {dimension_numbers = #tpu.dot_dimension_numbers<[1], [0], [0], [1], [0, 0, 1, 1], [], []>} : vector<8x64xf32>, vector<64x256xf32>, vector<8x256xf32> -> vector<8x256xf32>
    %c0_73 = arith.constant 0 : index
    %c0_74 = arith.constant 0 : index
    %c0_75 = arith.constant 0 : index
    %177 = vector.load %arg13[%c0_73, %c0_74, %c0_75] : memref<2x1x256xf32, #tpu.memory_space<vmem>>, vector<1x1x256xf32>
    %178 = vector.shape_cast %177 : vector<1x1x256xf32> to vector<1x256xf32>
    %179 = vector.broadcast %178 : vector<1x256xf32> to vector<8x256xf32>
    %180 = arith.addf %176, %179 : vector<8x256xf32>
    %cst_76 = arith.constant 0.000000e+00 : f32
    %181 = vector.broadcast %cst_76 : f32 to vector<8x256xf32>
    %182 = arith.maximumf %180, %181 : vector<8x256xf32>
    %c0_77 = arith.constant 0 : index
    %c0_78 = arith.constant 0 : index
    %c0_79 = arith.constant 0 : index
    %183 = vector.load %arg14[%c0_77, %c0_78, %c0_79] : memref<2x256x64xf32, #tpu.memory_space<vmem>>, vector<1x256x64xf32>
    %184 = vector.shape_cast %183 : vector<1x256x64xf32> to vector<256x64xf32>
    %cst_80 = arith.constant dense<0.000000e+00> : vector<8x64xf32>
    %185 = tpu.matmul %182, %184, %cst_80 {dimension_numbers = #tpu.dot_dimension_numbers<[1], [0], [0], [1], [0, 0, 1, 1], [], []>} : vector<8x256xf32>, vector<256x64xf32>, vector<8x64xf32> -> vector<8x64xf32>
    %c0_81 = arith.constant 0 : index
    %c0_82 = arith.constant 0 : index
    %c0_83 = arith.constant 0 : index
    %186 = vector.load %arg15[%c0_81, %c0_82, %c0_83] : memref<2x1x64xf32, #tpu.memory_space<vmem>>, vector<1x1x64xf32>
    %187 = vector.shape_cast %186 : vector<1x1x64xf32> to vector<1x64xf32>
    %188 = vector.broadcast %187 : vector<1x64xf32> to vector<8x64xf32>
    %189 = arith.addf %185, %188 : vector<8x64xf32>
    %190 = arith.addf %189, %173 : vector<8x64xf32>
    %c0_84 = arith.constant 0 : index
    %c0_85 = arith.constant 0 : index
    %c0_86 = arith.constant 0 : index
    %191 = vector.load %arg16[%c0_84, %c0_85, %c0_86] : memref<2x1x64xf32, #tpu.memory_space<vmem>>, vector<1x1x64xf32>
    %192 = vector.shape_cast %191 : vector<1x1x64xf32> to vector<1x64xf32>
    %c0_87 = arith.constant 0 : index
    %c0_88 = arith.constant 0 : index
    %c0_89 = arith.constant 0 : index
    %193 = vector.load %arg17[%c0_87, %c0_88, %c0_89] : memref<2x1x64xf32, #tpu.memory_space<vmem>>, vector<1x1x64xf32>
    %194 = vector.shape_cast %193 : vector<1x1x64xf32> to vector<1x64xf32>
    %cst_90 = arith.constant dense<0.000000e+00> : vector<8xf32>
    %195 = vector.multi_reduction <add>, %190, %cst_90 [1] : vector<8x64xf32> to vector<8xf32>
    %196 = vector.shape_cast %195 : vector<8xf32> to vector<8x1xf32>
    %cst_91 = arith.constant 6.400000e+01 : f32
    %197 = vector.broadcast %cst_91 : f32 to vector<8x1xf32>
    %198 = arith.divf %196, %197 : vector<8x1xf32>
    %199 = vector.broadcast %198 : vector<8x1xf32> to vector<8x64xf32>
    %200 = arith.subf %190, %199 : vector<8x64xf32>
    %201 = arith.mulf %200, %200 : vector<8x64xf32>
    %cst_92 = arith.constant dense<0.000000e+00> : vector<8xf32>
    %202 = vector.multi_reduction <add>, %201, %cst_92 [1] : vector<8x64xf32> to vector<8xf32>
    %203 = vector.shape_cast %202 : vector<8xf32> to vector<8x1xf32>
    %cst_93 = arith.constant 6.400000e+01 : f32
    %204 = vector.broadcast %cst_93 : f32 to vector<8x1xf32>
    %205 = arith.divf %203, %204 : vector<8x1xf32>
    %206 = vector.broadcast %198 : vector<8x1xf32> to vector<8x64xf32>
    %207 = arith.subf %190, %206 : vector<8x64xf32>
    %cst_94 = arith.constant 9.99999974E-6 : f32
    %208 = vector.broadcast %cst_94 : f32 to vector<8x1xf32>
    %209 = arith.addf %205, %208 : vector<8x1xf32>
    %210 = math.rsqrt %209 : vector<8x1xf32>
    %211 = vector.broadcast %210 : vector<8x1xf32> to vector<8x64xf32>
    %212 = arith.mulf %207, %211 : vector<8x64xf32>
    %213 = vector.broadcast %192 : vector<1x64xf32> to vector<8x64xf32>
    %214 = arith.mulf %212, %213 : vector<8x64xf32>
    %215 = vector.broadcast %194 : vector<1x64xf32> to vector<8x64xf32>
    %216 = arith.addf %214, %215 : vector<8x64xf32>
    %c1 = arith.constant 1 : index
    %c0_95 = arith.constant 0 : index
    %c0_96 = arith.constant 0 : index
    %217 = vector.load %arg5[%c1, %c0_95, %c0_96] : memref<2x64x64xf32, #tpu.memory_space<vmem>>, vector<1x64x64xf32>
    %218 = vector.shape_cast %217 : vector<1x64x64xf32> to vector<64x64xf32>
    %cst_97 = arith.constant dense<0.000000e+00> : vector<8x64xf32>
    %219 = tpu.matmul %216, %218, %cst_97 {dimension_numbers = #tpu.dot_dimension_numbers<[1], [0], [0], [1], [0, 0, 1, 1], [], []>} : vector<8x64xf32>, vector<64x64xf32>, vector<8x64xf32> -> vector<8x64xf32>
    %c1_98 = arith.constant 1 : index
    %c0_99 = arith.constant 0 : index
    %c0_100 = arith.constant 0 : index
    %220 = vector.load %arg6[%c1_98, %c0_99, %c0_100] : memref<2x64x64xf32, #tpu.memory_space<vmem>>, vector<1x64x64xf32>
    %221 = vector.shape_cast %220 : vector<1x64x64xf32> to vector<64x64xf32>
    %cst_101 = arith.constant dense<0.000000e+00> : vector<8x64xf32>
    %222 = tpu.matmul %216, %221, %cst_101 {dimension_numbers = #tpu.dot_dimension_numbers<[1], [0], [0], [1], [0, 0, 1, 1], [], []>} : vector<8x64xf32>, vector<64x64xf32>, vector<8x64xf32> -> vector<8x64xf32>
    %c1_102 = arith.constant 1 : index
    %c0_103 = arith.constant 0 : index
    %c0_104 = arith.constant 0 : index
    %223 = vector.load %arg7[%c1_102, %c0_103, %c0_104] : memref<2x64x64xf32, #tpu.memory_space<vmem>>, vector<1x64x64xf32>
    %224 = vector.shape_cast %223 : vector<1x64x64xf32> to vector<64x64xf32>
    %cst_105 = arith.constant dense<0.000000e+00> : vector<8x64xf32>
    %225 = tpu.matmul %216, %224, %cst_105 {dimension_numbers = #tpu.dot_dimension_numbers<[1], [0], [0], [1], [0, 0, 1, 1], [], []>} : vector<8x64xf32>, vector<64x64xf32>, vector<8x64xf32> -> vector<8x64xf32>
    %226 = vector.extract_strided_slice %219 {offsets = [0, 0], sizes = [8, 8], strides = [1, 1]} : vector<8x64xf32> to vector<8x8xf32>
    %227 = vector.extract_strided_slice %222 {offsets = [0, 0], sizes = [8, 8], strides = [1, 1]} : vector<8x64xf32> to vector<8x8xf32>
    %228 = vector.extract_strided_slice %225 {offsets = [0, 0], sizes = [8, 8], strides = [1, 1]} : vector<8x64xf32> to vector<8x8xf32>
    %cst_106 = arith.constant dense<0.000000e+00> : vector<8x8xf32>
    %229 = tpu.matmul %226, %227, %cst_106 {dimension_numbers = #tpu.dot_dimension_numbers<[1], [1], [0], [0], [0, 0, 1, 0], [], []>} : vector<8x8xf32>, vector<8x8xf32>, vector<8x8xf32> -> vector<8x8xf32>
    %cst_107 = arith.constant dense<0xFF800000> : vector<8xf32>
    %230 = vector.multi_reduction <maximumf>, %229, %cst_107 [1] : vector<8x8xf32> to vector<8xf32>
    %231 = vector.shape_cast %230 : vector<8xf32> to vector<8x1xf32>
    %232 = vector.broadcast %231 : vector<8x1xf32> to vector<8x8xf32>
    %233 = arith.subf %229, %232 : vector<8x8xf32>
    %234 = math.exp %233 : vector<8x8xf32>
    %cst_108 = arith.constant dense<0.000000e+00> : vector<8xf32>
    %235 = vector.multi_reduction <add>, %234, %cst_108 [1] : vector<8x8xf32> to vector<8xf32>
    %236 = vector.shape_cast %235 : vector<8xf32> to vector<8x1xf32>
    %237 = tpu.reciprocal %236 {approx = true} : vector<8x1xf32> -> vector<8x1xf32>
    %238 = vector.broadcast %237 : vector<8x1xf32> to vector<8x8xf32>
    %239 = arith.mulf %234, %238 : vector<8x8xf32>
    %cst_109 = arith.constant dense<0.000000e+00> : vector<8x8xf32>
    %240 = tpu.matmul %239, %228, %cst_109 {dimension_numbers = #tpu.dot_dimension_numbers<[1], [0], [0], [1], [0, 0, 1, 1], [], []>} : vector<8x8xf32>, vector<8x8xf32>, vector<8x8xf32> -> vector<8x8xf32>
    %241 = vector.extract_strided_slice %219 {offsets = [0, 8], sizes = [8, 8], strides = [1, 1]} : vector<8x64xf32> to vector<8x8xf32>
    %242 = vector.extract_strided_slice %222 {offsets = [0, 8], sizes = [8, 8], strides = [1, 1]} : vector<8x64xf32> to vector<8x8xf32>
    %243 = vector.extract_strided_slice %225 {offsets = [0, 8], sizes = [8, 8], strides = [1, 1]} : vector<8x64xf32> to vector<8x8xf32>
    %cst_110 = arith.constant dense<0.000000e+00> : vector<8x8xf32>
    %244 = tpu.matmul %241, %242, %cst_110 {dimension_numbers = #tpu.dot_dimension_numbers<[1], [1], [0], [0], [0, 0, 1, 0], [], []>} : vector<8x8xf32>, vector<8x8xf32>, vector<8x8xf32> -> vector<8x8xf32>
    %cst_111 = arith.constant dense<0xFF800000> : vector<8xf32>
    %245 = vector.multi_reduction <maximumf>, %244, %cst_111 [1] : vector<8x8xf32> to vector<8xf32>
    %246 = vector.shape_cast %245 : vector<8xf32> to vector<8x1xf32>
    %247 = vector.broadcast %246 : vector<8x1xf32> to vector<8x8xf32>
    %248 = arith.subf %244, %247 : vector<8x8xf32>
    %249 = math.exp %248 : vector<8x8xf32>
    %cst_112 = arith.constant dense<0.000000e+00> : vector<8xf32>
    %250 = vector.multi_reduction <add>, %249, %cst_112 [1] : vector<8x8xf32> to vector<8xf32>
    %251 = vector.shape_cast %250 : vector<8xf32> to vector<8x1xf32>
    %252 = tpu.reciprocal %251 {approx = true} : vector<8x1xf32> -> vector<8x1xf32>
    %253 = vector.broadcast %252 : vector<8x1xf32> to vector<8x8xf32>
    %254 = arith.mulf %249, %253 : vector<8x8xf32>
    %cst_113 = arith.constant dense<0.000000e+00> : vector<8x8xf32>
    %255 = tpu.matmul %254, %243, %cst_113 {dimension_numbers = #tpu.dot_dimension_numbers<[1], [0], [0], [1], [0, 0, 1, 1], [], []>} : vector<8x8xf32>, vector<8x8xf32>, vector<8x8xf32> -> vector<8x8xf32>
    %256 = vector.extract_strided_slice %219 {offsets = [0, 16], sizes = [8, 8], strides = [1, 1]} : vector<8x64xf32> to vector<8x8xf32>
    %257 = vector.extract_strided_slice %222 {offsets = [0, 16], sizes = [8, 8], strides = [1, 1]} : vector<8x64xf32> to vector<8x8xf32>
    %258 = vector.extract_strided_slice %225 {offsets = [0, 16], sizes = [8, 8], strides = [1, 1]} : vector<8x64xf32> to vector<8x8xf32>
    %cst_114 = arith.constant dense<0.000000e+00> : vector<8x8xf32>
    %259 = tpu.matmul %256, %257, %cst_114 {dimension_numbers = #tpu.dot_dimension_numbers<[1], [1], [0], [0], [0, 0, 1, 0], [], []>} : vector<8x8xf32>, vector<8x8xf32>, vector<8x8xf32> -> vector<8x8xf32>
    %cst_115 = arith.constant dense<0xFF800000> : vector<8xf32>
    %260 = vector.multi_reduction <maximumf>, %259, %cst_115 [1] : vector<8x8xf32> to vector<8xf32>
    %261 = vector.shape_cast %260 : vector<8xf32> to vector<8x1xf32>
    %262 = vector.broadcast %261 : vector<8x1xf32> to vector<8x8xf32>
    %263 = arith.subf %259, %262 : vector<8x8xf32>
    %264 = math.exp %263 : vector<8x8xf32>
    %cst_116 = arith.constant dense<0.000000e+00> : vector<8xf32>
    %265 = vector.multi_reduction <add>, %264, %cst_116 [1] : vector<8x8xf32> to vector<8xf32>
    %266 = vector.shape_cast %265 : vector<8xf32> to vector<8x1xf32>
    %267 = tpu.reciprocal %266 {approx = true} : vector<8x1xf32> -> vector<8x1xf32>
    %268 = vector.broadcast %267 : vector<8x1xf32> to vector<8x8xf32>
    %269 = arith.mulf %264, %268 : vector<8x8xf32>
    %cst_117 = arith.constant dense<0.000000e+00> : vector<8x8xf32>
    %270 = tpu.matmul %269, %258, %cst_117 {dimension_numbers = #tpu.dot_dimension_numbers<[1], [0], [0], [1], [0, 0, 1, 1], [], []>} : vector<8x8xf32>, vector<8x8xf32>, vector<8x8xf32> -> vector<8x8xf32>
    %271 = vector.extract_strided_slice %219 {offsets = [0, 24], sizes = [8, 8], strides = [1, 1]} : vector<8x64xf32> to vector<8x8xf32>
    %272 = vector.extract_strided_slice %222 {offsets = [0, 24], sizes = [8, 8], strides = [1, 1]} : vector<8x64xf32> to vector<8x8xf32>
    %273 = vector.extract_strided_slice %225 {offsets = [0, 24], sizes = [8, 8], strides = [1, 1]} : vector<8x64xf32> to vector<8x8xf32>
    %cst_118 = arith.constant dense<0.000000e+00> : vector<8x8xf32>
    %274 = tpu.matmul %271, %272, %cst_118 {dimension_numbers = #tpu.dot_dimension_numbers<[1], [1], [0], [0], [0, 0, 1, 0], [], []>} : vector<8x8xf32>, vector<8x8xf32>, vector<8x8xf32> -> vector<8x8xf32>
    %cst_119 = arith.constant dense<0xFF800000> : vector<8xf32>
    %275 = vector.multi_reduction <maximumf>, %274, %cst_119 [1] : vector<8x8xf32> to vector<8xf32>
    %276 = vector.shape_cast %275 : vector<8xf32> to vector<8x1xf32>
    %277 = vector.broadcast %276 : vector<8x1xf32> to vector<8x8xf32>
    %278 = arith.subf %274, %277 : vector<8x8xf32>
    %279 = math.exp %278 : vector<8x8xf32>
    %cst_120 = arith.constant dense<0.000000e+00> : vector<8xf32>
    %280 = vector.multi_reduction <add>, %279, %cst_120 [1] : vector<8x8xf32> to vector<8xf32>
    %281 = vector.shape_cast %280 : vector<8xf32> to vector<8x1xf32>
    %282 = tpu.reciprocal %281 {approx = true} : vector<8x1xf32> -> vector<8x1xf32>
    %283 = vector.broadcast %282 : vector<8x1xf32> to vector<8x8xf32>
    %284 = arith.mulf %279, %283 : vector<8x8xf32>
    %cst_121 = arith.constant dense<0.000000e+00> : vector<8x8xf32>
    %285 = tpu.matmul %284, %273, %cst_121 {dimension_numbers = #tpu.dot_dimension_numbers<[1], [0], [0], [1], [0, 0, 1, 1], [], []>} : vector<8x8xf32>, vector<8x8xf32>, vector<8x8xf32> -> vector<8x8xf32>
    %286 = vector.extract_strided_slice %219 {offsets = [0, 32], sizes = [8, 8], strides = [1, 1]} : vector<8x64xf32> to vector<8x8xf32>
    %287 = vector.extract_strided_slice %222 {offsets = [0, 32], sizes = [8, 8], strides = [1, 1]} : vector<8x64xf32> to vector<8x8xf32>
    %288 = vector.extract_strided_slice %225 {offsets = [0, 32], sizes = [8, 8], strides = [1, 1]} : vector<8x64xf32> to vector<8x8xf32>
    %cst_122 = arith.constant dense<0.000000e+00> : vector<8x8xf32>
    %289 = tpu.matmul %286, %287, %cst_122 {dimension_numbers = #tpu.dot_dimension_numbers<[1], [1], [0], [0], [0, 0, 1, 0], [], []>} : vector<8x8xf32>, vector<8x8xf32>, vector<8x8xf32> -> vector<8x8xf32>
    %cst_123 = arith.constant dense<0xFF800000> : vector<8xf32>
    %290 = vector.multi_reduction <maximumf>, %289, %cst_123 [1] : vector<8x8xf32> to vector<8xf32>
    %291 = vector.shape_cast %290 : vector<8xf32> to vector<8x1xf32>
    %292 = vector.broadcast %291 : vector<8x1xf32> to vector<8x8xf32>
    %293 = arith.subf %289, %292 : vector<8x8xf32>
    %294 = math.exp %293 : vector<8x8xf32>
    %cst_124 = arith.constant dense<0.000000e+00> : vector<8xf32>
    %295 = vector.multi_reduction <add>, %294, %cst_124 [1] : vector<8x8xf32> to vector<8xf32>
    %296 = vector.shape_cast %295 : vector<8xf32> to vector<8x1xf32>
    %297 = tpu.reciprocal %296 {approx = true} : vector<8x1xf32> -> vector<8x1xf32>
    %298 = vector.broadcast %297 : vector<8x1xf32> to vector<8x8xf32>
    %299 = arith.mulf %294, %298 : vector<8x8xf32>
    %cst_125 = arith.constant dense<0.000000e+00> : vector<8x8xf32>
    %300 = tpu.matmul %299, %288, %cst_125 {dimension_numbers = #tpu.dot_dimension_numbers<[1], [0], [0], [1], [0, 0, 1, 1], [], []>} : vector<8x8xf32>, vector<8x8xf32>, vector<8x8xf32> -> vector<8x8xf32>
    %301 = vector.extract_strided_slice %219 {offsets = [0, 40], sizes = [8, 8], strides = [1, 1]} : vector<8x64xf32> to vector<8x8xf32>
    %302 = vector.extract_strided_slice %222 {offsets = [0, 40], sizes = [8, 8], strides = [1, 1]} : vector<8x64xf32> to vector<8x8xf32>
    %303 = vector.extract_strided_slice %225 {offsets = [0, 40], sizes = [8, 8], strides = [1, 1]} : vector<8x64xf32> to vector<8x8xf32>
    %cst_126 = arith.constant dense<0.000000e+00> : vector<8x8xf32>
    %304 = tpu.matmul %301, %302, %cst_126 {dimension_numbers = #tpu.dot_dimension_numbers<[1], [1], [0], [0], [0, 0, 1, 0], [], []>} : vector<8x8xf32>, vector<8x8xf32>, vector<8x8xf32> -> vector<8x8xf32>
    %cst_127 = arith.constant dense<0xFF800000> : vector<8xf32>
    %305 = vector.multi_reduction <maximumf>, %304, %cst_127 [1] : vector<8x8xf32> to vector<8xf32>
    %306 = vector.shape_cast %305 : vector<8xf32> to vector<8x1xf32>
    %307 = vector.broadcast %306 : vector<8x1xf32> to vector<8x8xf32>
    %308 = arith.subf %304, %307 : vector<8x8xf32>
    %309 = math.exp %308 : vector<8x8xf32>
    %cst_128 = arith.constant dense<0.000000e+00> : vector<8xf32>
    %310 = vector.multi_reduction <add>, %309, %cst_128 [1] : vector<8x8xf32> to vector<8xf32>
    %311 = vector.shape_cast %310 : vector<8xf32> to vector<8x1xf32>
    %312 = tpu.reciprocal %311 {approx = true} : vector<8x1xf32> -> vector<8x1xf32>
    %313 = vector.broadcast %312 : vector<8x1xf32> to vector<8x8xf32>
    %314 = arith.mulf %309, %313 : vector<8x8xf32>
    %cst_129 = arith.constant dense<0.000000e+00> : vector<8x8xf32>
    %315 = tpu.matmul %314, %303, %cst_129 {dimension_numbers = #tpu.dot_dimension_numbers<[1], [0], [0], [1], [0, 0, 1, 1], [], []>} : vector<8x8xf32>, vector<8x8xf32>, vector<8x8xf32> -> vector<8x8xf32>
    %316 = vector.extract_strided_slice %219 {offsets = [0, 48], sizes = [8, 8], strides = [1, 1]} : vector<8x64xf32> to vector<8x8xf32>
    %317 = vector.extract_strided_slice %222 {offsets = [0, 48], sizes = [8, 8], strides = [1, 1]} : vector<8x64xf32> to vector<8x8xf32>
    %318 = vector.extract_strided_slice %225 {offsets = [0, 48], sizes = [8, 8], strides = [1, 1]} : vector<8x64xf32> to vector<8x8xf32>
    %cst_130 = arith.constant dense<0.000000e+00> : vector<8x8xf32>
    %319 = tpu.matmul %316, %317, %cst_130 {dimension_numbers = #tpu.dot_dimension_numbers<[1], [1], [0], [0], [0, 0, 1, 0], [], []>} : vector<8x8xf32>, vector<8x8xf32>, vector<8x8xf32> -> vector<8x8xf32>
    %cst_131 = arith.constant dense<0xFF800000> : vector<8xf32>
    %320 = vector.multi_reduction <maximumf>, %319, %cst_131 [1] : vector<8x8xf32> to vector<8xf32>
    %321 = vector.shape_cast %320 : vector<8xf32> to vector<8x1xf32>
    %322 = vector.broadcast %321 : vector<8x1xf32> to vector<8x8xf32>
    %323 = arith.subf %319, %322 : vector<8x8xf32>
    %324 = math.exp %323 : vector<8x8xf32>
    %cst_132 = arith.constant dense<0.000000e+00> : vector<8xf32>
    %325 = vector.multi_reduction <add>, %324, %cst_132 [1] : vector<8x8xf32> to vector<8xf32>
    %326 = vector.shape_cast %325 : vector<8xf32> to vector<8x1xf32>
    %327 = tpu.reciprocal %326 {approx = true} : vector<8x1xf32> -> vector<8x1xf32>
    %328 = vector.broadcast %327 : vector<8x1xf32> to vector<8x8xf32>
    %329 = arith.mulf %324, %328 : vector<8x8xf32>
    %cst_133 = arith.constant dense<0.000000e+00> : vector<8x8xf32>
    %330 = tpu.matmul %329, %318, %cst_133 {dimension_numbers = #tpu.dot_dimension_numbers<[1], [0], [0], [1], [0, 0, 1, 1], [], []>} : vector<8x8xf32>, vector<8x8xf32>, vector<8x8xf32> -> vector<8x8xf32>
    %331 = vector.extract_strided_slice %219 {offsets = [0, 56], sizes = [8, 8], strides = [1, 1]} : vector<8x64xf32> to vector<8x8xf32>
    %332 = vector.extract_strided_slice %222 {offsets = [0, 56], sizes = [8, 8], strides = [1, 1]} : vector<8x64xf32> to vector<8x8xf32>
    %333 = vector.extract_strided_slice %225 {offsets = [0, 56], sizes = [8, 8], strides = [1, 1]} : vector<8x64xf32> to vector<8x8xf32>
    %cst_134 = arith.constant dense<0.000000e+00> : vector<8x8xf32>
    %334 = tpu.matmul %331, %332, %cst_134 {dimension_numbers = #tpu.dot_dimension_numbers<[1], [1], [0], [0], [0, 0, 1, 0], [], []>} : vector<8x8xf32>, vector<8x8xf32>, vector<8x8xf32> -> vector<8x8xf32>
    %cst_135 = arith.constant dense<0xFF800000> : vector<8xf32>
    %335 = vector.multi_reduction <maximumf>, %334, %cst_135 [1] : vector<8x8xf32> to vector<8xf32>
    %336 = vector.shape_cast %335 : vector<8xf32> to vector<8x1xf32>
    %337 = vector.broadcast %336 : vector<8x1xf32> to vector<8x8xf32>
    %338 = arith.subf %334, %337 : vector<8x8xf32>
    %339 = math.exp %338 : vector<8x8xf32>
    %cst_136 = arith.constant dense<0.000000e+00> : vector<8xf32>
    %340 = vector.multi_reduction <add>, %339, %cst_136 [1] : vector<8x8xf32> to vector<8xf32>
    %341 = vector.shape_cast %340 : vector<8xf32> to vector<8x1xf32>
    %342 = tpu.reciprocal %341 {approx = true} : vector<8x1xf32> -> vector<8x1xf32>
    %343 = vector.broadcast %342 : vector<8x1xf32> to vector<8x8xf32>
    %344 = arith.mulf %339, %343 : vector<8x8xf32>
    %cst_137 = arith.constant dense<0.000000e+00> : vector<8x8xf32>
    %345 = tpu.matmul %344, %333, %cst_137 {dimension_numbers = #tpu.dot_dimension_numbers<[1], [0], [0], [1], [0, 0, 1, 1], [], []>} : vector<8x8xf32>, vector<8x8xf32>, vector<8x8xf32> -> vector<8x8xf32>
    %346 = tpu.concatenate %240, %255, %270, %285, %300, %315, %330, %345 in 1 : vector<8x8xf32>, vector<8x8xf32>, vector<8x8xf32>, vector<8x8xf32>, vector<8x8xf32>, vector<8x8xf32>, vector<8x8xf32>, vector<8x8xf32> -> vector<8x64xf32>
    %c1_138 = arith.constant 1 : index
    %c0_139 = arith.constant 0 : index
    %c0_140 = arith.constant 0 : index
    %347 = vector.load %arg8[%c1_138, %c0_139, %c0_140] : memref<2x64x64xf32, #tpu.memory_space<vmem>>, vector<1x64x64xf32>
    %348 = vector.shape_cast %347 : vector<1x64x64xf32> to vector<64x64xf32>
    %cst_141 = arith.constant dense<0.000000e+00> : vector<8x64xf32>
    %349 = tpu.matmul %346, %348, %cst_141 {dimension_numbers = #tpu.dot_dimension_numbers<[1], [0], [0], [1], [0, 0, 1, 1], [], []>} : vector<8x64xf32>, vector<64x64xf32>, vector<8x64xf32> -> vector<8x64xf32>
    %c1_142 = arith.constant 1 : index
    %c0_143 = arith.constant 0 : index
    %c0_144 = arith.constant 0 : index
    %350 = vector.load %arg9[%c1_142, %c0_143, %c0_144] : memref<2x1x64xf32, #tpu.memory_space<vmem>>, vector<1x1x64xf32>
    %351 = vector.shape_cast %350 : vector<1x1x64xf32> to vector<1x64xf32>
    %352 = vector.broadcast %351 : vector<1x64xf32> to vector<8x64xf32>
    %353 = arith.addf %349, %352 : vector<8x64xf32>
    %354 = arith.addf %353, %216 : vector<8x64xf32>
    %c1_145 = arith.constant 1 : index
    %c0_146 = arith.constant 0 : index
    %c0_147 = arith.constant 0 : index
    %355 = vector.load %arg10[%c1_145, %c0_146, %c0_147] : memref<2x1x64xf32, #tpu.memory_space<vmem>>, vector<1x1x64xf32>
    %356 = vector.shape_cast %355 : vector<1x1x64xf32> to vector<1x64xf32>
    %c1_148 = arith.constant 1 : index
    %c0_149 = arith.constant 0 : index
    %c0_150 = arith.constant 0 : index
    %357 = vector.load %arg11[%c1_148, %c0_149, %c0_150] : memref<2x1x64xf32, #tpu.memory_space<vmem>>, vector<1x1x64xf32>
    %358 = vector.shape_cast %357 : vector<1x1x64xf32> to vector<1x64xf32>
    %cst_151 = arith.constant dense<0.000000e+00> : vector<8xf32>
    %359 = vector.multi_reduction <add>, %354, %cst_151 [1] : vector<8x64xf32> to vector<8xf32>
    %360 = vector.shape_cast %359 : vector<8xf32> to vector<8x1xf32>
    %cst_152 = arith.constant 6.400000e+01 : f32
    %361 = vector.broadcast %cst_152 : f32 to vector<8x1xf32>
    %362 = arith.divf %360, %361 : vector<8x1xf32>
    %363 = vector.broadcast %362 : vector<8x1xf32> to vector<8x64xf32>
    %364 = arith.subf %354, %363 : vector<8x64xf32>
    %365 = arith.mulf %364, %364 : vector<8x64xf32>
    %cst_153 = arith.constant dense<0.000000e+00> : vector<8xf32>
    %366 = vector.multi_reduction <add>, %365, %cst_153 [1] : vector<8x64xf32> to vector<8xf32>
    %367 = vector.shape_cast %366 : vector<8xf32> to vector<8x1xf32>
    %cst_154 = arith.constant 6.400000e+01 : f32
    %368 = vector.broadcast %cst_154 : f32 to vector<8x1xf32>
    %369 = arith.divf %367, %368 : vector<8x1xf32>
    %370 = vector.broadcast %362 : vector<8x1xf32> to vector<8x64xf32>
    %371 = arith.subf %354, %370 : vector<8x64xf32>
    %cst_155 = arith.constant 9.99999974E-6 : f32
    %372 = vector.broadcast %cst_155 : f32 to vector<8x1xf32>
    %373 = arith.addf %369, %372 : vector<8x1xf32>
    %374 = math.rsqrt %373 : vector<8x1xf32>
    %375 = vector.broadcast %374 : vector<8x1xf32> to vector<8x64xf32>
    %376 = arith.mulf %371, %375 : vector<8x64xf32>
    %377 = vector.broadcast %356 : vector<1x64xf32> to vector<8x64xf32>
    %378 = arith.mulf %376, %377 : vector<8x64xf32>
    %379 = vector.broadcast %358 : vector<1x64xf32> to vector<8x64xf32>
    %380 = arith.addf %378, %379 : vector<8x64xf32>
    %c1_156 = arith.constant 1 : index
    %c0_157 = arith.constant 0 : index
    %c0_158 = arith.constant 0 : index
    %381 = vector.load %arg12[%c1_156, %c0_157, %c0_158] : memref<2x64x256xf32, #tpu.memory_space<vmem>>, vector<1x64x256xf32>
    %382 = vector.shape_cast %381 : vector<1x64x256xf32> to vector<64x256xf32>
    %cst_159 = arith.constant dense<0.000000e+00> : vector<8x256xf32>
    %383 = tpu.matmul %380, %382, %cst_159 {dimension_numbers = #tpu.dot_dimension_numbers<[1], [0], [0], [1], [0, 0, 1, 1], [], []>} : vector<8x64xf32>, vector<64x256xf32>, vector<8x256xf32> -> vector<8x256xf32>
    %c1_160 = arith.constant 1 : index
    %c0_161 = arith.constant 0 : index
    %c0_162 = arith.constant 0 : index
    %384 = vector.load %arg13[%c1_160, %c0_161, %c0_162] : memref<2x1x256xf32, #tpu.memory_space<vmem>>, vector<1x1x256xf32>
    %385 = vector.shape_cast %384 : vector<1x1x256xf32> to vector<1x256xf32>
    %386 = vector.broadcast %385 : vector<1x256xf32> to vector<8x256xf32>
    %387 = arith.addf %383, %386 : vector<8x256xf32>
    %cst_163 = arith.constant 0.000000e+00 : f32
    %388 = vector.broadcast %cst_163 : f32 to vector<8x256xf32>
    %389 = arith.maximumf %387, %388 : vector<8x256xf32>
    %c1_164 = arith.constant 1 : index
    %c0_165 = arith.constant 0 : index
    %c0_166 = arith.constant 0 : index
    %390 = vector.load %arg14[%c1_164, %c0_165, %c0_166] : memref<2x256x64xf32, #tpu.memory_space<vmem>>, vector<1x256x64xf32>
    %391 = vector.shape_cast %390 : vector<1x256x64xf32> to vector<256x64xf32>
    %cst_167 = arith.constant dense<0.000000e+00> : vector<8x64xf32>
    %392 = tpu.matmul %389, %391, %cst_167 {dimension_numbers = #tpu.dot_dimension_numbers<[1], [0], [0], [1], [0, 0, 1, 1], [], []>} : vector<8x256xf32>, vector<256x64xf32>, vector<8x64xf32> -> vector<8x64xf32>
    %c1_168 = arith.constant 1 : index
    %c0_169 = arith.constant 0 : index
    %c0_170 = arith.constant 0 : index
    %393 = vector.load %arg15[%c1_168, %c0_169, %c0_170] : memref<2x1x64xf32, #tpu.memory_space<vmem>>, vector<1x1x64xf32>
    %394 = vector.shape_cast %393 : vector<1x1x64xf32> to vector<1x64xf32>
    %395 = vector.broadcast %394 : vector<1x64xf32> to vector<8x64xf32>
    %396 = arith.addf %392, %395 : vector<8x64xf32>
    %397 = arith.addf %396, %380 : vector<8x64xf32>
    %c1_171 = arith.constant 1 : index
    %c0_172 = arith.constant 0 : index
    %c0_173 = arith.constant 0 : index
    %398 = vector.load %arg16[%c1_171, %c0_172, %c0_173] : memref<2x1x64xf32, #tpu.memory_space<vmem>>, vector<1x1x64xf32>
    %399 = vector.shape_cast %398 : vector<1x1x64xf32> to vector<1x64xf32>
    %c1_174 = arith.constant 1 : index
    %c0_175 = arith.constant 0 : index
    %c0_176 = arith.constant 0 : index
    %400 = vector.load %arg17[%c1_174, %c0_175, %c0_176] : memref<2x1x64xf32, #tpu.memory_space<vmem>>, vector<1x1x64xf32>
    %401 = vector.shape_cast %400 : vector<1x1x64xf32> to vector<1x64xf32>
    %cst_177 = arith.constant dense<0.000000e+00> : vector<8xf32>
    %402 = vector.multi_reduction <add>, %397, %cst_177 [1] : vector<8x64xf32> to vector<8xf32>
    %403 = vector.shape_cast %402 : vector<8xf32> to vector<8x1xf32>
    %cst_178 = arith.constant 6.400000e+01 : f32
    %404 = vector.broadcast %cst_178 : f32 to vector<8x1xf32>
    %405 = arith.divf %403, %404 : vector<8x1xf32>
    %406 = vector.broadcast %405 : vector<8x1xf32> to vector<8x64xf32>
    %407 = arith.subf %397, %406 : vector<8x64xf32>
    %408 = arith.mulf %407, %407 : vector<8x64xf32>
    %cst_179 = arith.constant dense<0.000000e+00> : vector<8xf32>
    %409 = vector.multi_reduction <add>, %408, %cst_179 [1] : vector<8x64xf32> to vector<8xf32>
    %410 = vector.shape_cast %409 : vector<8xf32> to vector<8x1xf32>
    %cst_180 = arith.constant 6.400000e+01 : f32
    %411 = vector.broadcast %cst_180 : f32 to vector<8x1xf32>
    %412 = arith.divf %410, %411 : vector<8x1xf32>
    %413 = vector.broadcast %405 : vector<8x1xf32> to vector<8x64xf32>
    %414 = arith.subf %397, %413 : vector<8x64xf32>
    %cst_181 = arith.constant 9.99999974E-6 : f32
    %415 = vector.broadcast %cst_181 : f32 to vector<8x1xf32>
    %416 = arith.addf %412, %415 : vector<8x1xf32>
    %417 = math.rsqrt %416 : vector<8x1xf32>
    %418 = vector.broadcast %417 : vector<8x1xf32> to vector<8x64xf32>
    %419 = arith.mulf %414, %418 : vector<8x64xf32>
    %420 = vector.broadcast %399 : vector<1x64xf32> to vector<8x64xf32>
    %421 = arith.mulf %419, %420 : vector<8x64xf32>
    %422 = vector.broadcast %401 : vector<1x64xf32> to vector<8x64xf32>
    %423 = arith.addf %421, %422 : vector<8x64xf32>
    %c0_182 = arith.constant 0 : index
    %c0_183 = arith.constant 0 : index
    %c0_184 = arith.constant 0 : index
    %424 = vector.load %arg18[%c0_182, %c0_183, %c0_184] : memref<1x8x64xf32, #tpu.memory_space<vmem>>, vector<1x8x64xf32>
    %425 = vector.shape_cast %424 : vector<1x8x64xf32> to vector<8x64xf32>
    %426 = vector.shape_cast %423 : vector<8x64xf32> to vector<1x8x64xf32>
    tpu.vector_store %arg18[%c0_182, %c0_183, %c0_184], %426 {strides = array<i32>} : memref<1x8x64xf32, #tpu.memory_space<vmem>>, vector<1x8x64xf32>,
    return
  }
  func.func @transform_0(%arg0: i32) -> (i32, i32, i32) {
    %c0_i32 = arith.constant 0 : i32
    %c0_i32_0 = arith.constant 0 : i32
    %c0_i32_1 = arith.constant 0 : i32
    return %arg0, %c0_i32, %c0_i32_0 : i32, i32, i32
  }
  func.func @transform_1(%arg0: i32) -> (i32, i32) {
    %c0_i32 = arith.constant 0 : i32
    %c0_i32_0 = arith.constant 0 : i32
    %c0_i32_1 = arith.constant 0 : i32
    return %c0_i32, %c0_i32_0 : i32, i32
  }
  func.func @transform_2(%arg0: i32) -> (i32, i32) {
    %c0_i32 = arith.constant 0 : i32
    %c0_i32_0 = arith.constant 0 : i32
    %c0_i32_1 = arith.constant 0 : i32
    return %c0_i32, %c0_i32_0 : i32, i32
  }
  func.func @transform_3(%arg0: i32) -> (i32, i32) {
    %c0_i32 = arith.constant 0 : i32
    %c0_i32_0 = arith.constant 0 : i32
    %c0_i32_1 = arith.constant 0 : i32
    return %c0_i32, %c0_i32_0 : i32, i32
  }
  func.func @transform_4(%arg0: i32) -> (i32, i32, i32) {
    %c0_i32 = arith.constant 0 : i32
    %c0_i32_0 = arith.constant 0 : i32
    %c0_i32_1 = arith.constant 0 : i32
    %c0_i32_2 = arith.constant 0 : i32
    return %c0_i32, %c0_i32_0, %c0_i32_1 : i32, i32, i32
  }
  func.func @transform_5(%arg0: i32) -> (i32, i32, i32) {
    %c0_i32 = arith.constant 0 : i32
    %c0_i32_0 = arith.constant 0 : i32
    %c0_i32_1 = arith.constant 0 : i32
    %c0_i32_2 = arith.constant 0 : i32
    return %c0_i32, %c0_i32_0, %c0_i32_1 : i32, i32, i32
  }
  func.func @transform_6(%arg0: i32) -> (i32, i32, i32) {
    %c0_i32 = arith.constant 0 : i32
    %c0_i32_0 = arith.constant 0 : i32
    %c0_i32_1 = arith.constant 0 : i32
    %c0_i32_2 = arith.constant 0 : i32
    return %c0_i32, %c0_i32_0, %c0_i32_1 : i32, i32, i32
  }
  func.func @transform_7(%arg0: i32) -> (i32, i32, i32) {
    %c0_i32 = arith.constant 0 : i32
    %c0_i32_0 = arith.constant 0 : i32
    %c0_i32_1 = arith.constant 0 : i32
    %c0_i32_2 = arith.constant 0 : i32
    return %c0_i32, %c0_i32_0, %c0_i32_1 : i32, i32, i32
  }
  func.func @transform_8(%arg0: i32) -> (i32, i32, i32) {
    %c0_i32 = arith.constant 0 : i32
    %c0_i32_0 = arith.constant 0 : i32
    %c0_i32_1 = arith.constant 0 : i32
    %c0_i32_2 = arith.constant 0 : i32
    return %c0_i32, %c0_i32_0, %c0_i32_1 : i32, i32, i32
  }
  func.func @transform_9(%arg0: i32) -> (i32, i32, i32) {
    %c0_i32 = arith.constant 0 : i32
    %c0_i32_0 = arith.constant 0 : i32
    %c0_i32_1 = arith.constant 0 : i32
    %c0_i32_2 = arith.constant 0 : i32
    return %c0_i32, %c0_i32_0, %c0_i32_1 : i32, i32, i32
  }
  func.func @transform_10(%arg0: i32) -> (i32, i32, i32) {
    %c0_i32 = arith.constant 0 : i32
    %c0_i32_0 = arith.constant 0 : i32
    %c0_i32_1 = arith.constant 0 : i32
    %c0_i32_2 = arith.constant 0 : i32
    return %c0_i32, %c0_i32_0, %c0_i32_1 : i32, i32, i32
  }
  func.func @transform_11(%arg0: i32) -> (i32, i32, i32) {
    %c0_i32 = arith.constant 0 : i32
    %c0_i32_0 = arith.constant 0 : i32
    %c0_i32_1 = arith.constant 0 : i32
    %c0_i32_2 = arith.constant 0 : i32
    return %c0_i32, %c0_i32_0, %c0_i32_1 : i32, i32, i32
  }
  func.func @transform_12(%arg0: i32) -> (i32, i32, i32) {
    %c0_i32 = arith.constant 0 : i32
    %c0_i32_0 = arith.constant 0 : i32
    %c0_i32_1 = arith.constant 0 : i32
    %c0_i32_2 = arith.constant 0 : i32
    return %c0_i32, %c0_i32_0, %c0_i32_1 : i32, i32, i32
  }
  func.func @transform_13(%arg0: i32) -> (i32, i32, i32) {
    %c0_i32 = arith.constant 0 : i32
    %c0_i32_0 = arith.constant 0 : i32
    %c0_i32_1 = arith.constant 0 : i32
    %c0_i32_2 = arith.constant 0 : i32
    return %c0_i32, %c0_i32_0, %c0_i32_1 : i32, i32, i32
  }
  func.func @transform_14(%arg0: i32) -> (i32, i32, i32) {
    %c0_i32 = arith.constant 0 : i32
    %c0_i32_0 = arith.constant 0 : i32
    %c0_i32_1 = arith.constant 0 : i32
    %c0_i32_2 = arith.constant 0 : i32
    return %c0_i32, %c0_i32_0, %c0_i32_1 : i32, i32, i32
  }
  func.func @transform_15(%arg0: i32) -> (i32, i32, i32) {
    %c0_i32 = arith.constant 0 : i32
    %c0_i32_0 = arith.constant 0 : i32
    %c0_i32_1 = arith.constant 0 : i32
    %c0_i32_2 = arith.constant 0 : i32
    return %c0_i32, %c0_i32_0, %c0_i32_1 : i32, i32, i32
  }
  func.func @transform_16(%arg0: i32) -> (i32, i32, i32) {
    %c0_i32 = arith.constant 0 : i32
    %c0_i32_0 = arith.constant 0 : i32
    %c0_i32_1 = arith.constant 0 : i32
    %c0_i32_2 = arith.constant 0 : i32
    return %c0_i32, %c0_i32_0, %c0_i32_1 : i32, i32, i32
  }
  func.func @transform_17(%arg0: i32) -> (i32, i32, i32) {
    %c0_i32 = arith.constant 0 : i32
    %c0_i32_0 = arith.constant 0 : i32
    %c0_i32_1 = arith.constant 0 : i32
    return %arg0, %c0_i32, %c0_i32_0 : i32, i32, i32
  }
}

</mosaic_0001>

<llo_original>
// kernel: reverse.3
$region0: #{reverse.3}
  #allocation0 [shape = 's32[1]{0}', space=sflag, size = 0x4, scoped, tag = 'scoped memory for reverse.3']
  %s0 = inlined_call_operand.vmem [shape: f32[8,2,32], index: 0, kind: input, shape index: {}]
  %s1 = inlined_call_operand.vmem [shape: f32[8,2,32], index: 1, kind: output, shape index: {}]
  %s2 = scalar_lea.vmem %s0, 14
  %v3 = vld [vmem:[%s2] sm:$0x3]
  %4 = vst [vmem:[%s1] sm:$0x3] %v3
  %s5 = scalar_lea.vmem %s0, 12
  %v6 = vld [vmem:[%s5] sm:$0x3]
  %s7 = scalar_lea.vmem %s1, 2
  %8 = vst [vmem:[%s7] sm:$0x3] %v6
  %s9 = scalar_lea.vmem %s0, 10
  %v10 = vld [vmem:[%s9] sm:$0x3]
  %s11 = scalar_lea.vmem %s1, 4
  %12 = vst [vmem:[%s11] sm:$0x3] %v10
  %s13 = scalar_lea.vmem %s0, 8
  %v14 = vld [vmem:[%s13] sm:$0x3]
  %s15 = scalar_lea.vmem %s1, 6
  %16 = vst [vmem:[%s15] sm:$0x3] %v14
  %s17 = scalar_lea.vmem %s0, 6
  %v18 = vld [vmem:[%s17] sm:$0x3]
  %s19 = scalar_lea.vmem %s1, 8
  %20 = vst [vmem:[%s19] sm:$0x3] %v18
  %s21 = scalar_lea.vmem %s0, 4
  %v22 = vld [vmem:[%s21] sm:$0x3]
  %s23 = scalar_lea.vmem %s1, 10
  %24 = vst [vmem:[%s23] sm:$0x3] %v22
  %s25 = scalar_lea.vmem %s0, 2
  %v26 = vld [vmem:[%s25] sm:$0x3]
  %s27 = scalar_lea.vmem %s1, 12
  %28 = vst [vmem:[%s27] sm:$0x3] %v26
  %v29 = vld [vmem:[%s0] sm:$0x3]
  %s30 = scalar_lea.vmem %s1, 14
  %31 = vst [vmem:[%s30] sm:$0x3] %v29

// kernel: bilstm_transformer_forward.3
$region0: #{bilstm_transformer_forward.3}
  #allocation0 [shape = 'u32[]', space=smem, size = 0x4, offset = 0x4, fixed_abs, tag = 'smem constant byte address 0x4 - core index']
  #allocation1 [shape = 'u32[144,128]{1,0:T(1,128)}', space=vmem, size = 0x12000, scoped, tag = 'internal scratch']
  #allocation2 [shape = 'f32[8,2,32]{2,1,0:T(2,128)}', space=vmem, size = 0x2000, scoped, tag = 'scratch operand']
  #allocation3 [shape = 'f32[8,2,32]{2,1,0:T(2,128)}', space=vmem, size = 0x2000, scoped, tag = 'scratch operand']
  %s0 = inlined_call_operand.vmem [shape: f32[8,2,256], index: 0, kind: input, shape index: {}]
  %s1 = inlined_call_operand.vmem [shape: f32[64,256], index: 1, kind: input, shape index: {}]
  %s2 = inlined_call_operand.vmem [shape: f32[8,2,64], index: 2, kind: output, shape index: {}]
  %s3 = sld [smem:[#allocation0]]
  $region18: #{bilstm_transformer_forward.3} parent=0
    _
  %s5 = ssub.s32 1, %s3
  %s6 = scalar_select 0, %s5, %s3
  // Predicated region
  $region2: #{bilstm_transformer_forward.3} parent=0 // pred_check
    _
  $region3: #{bilstm_transformer_forward.3} parent=0 // pred_check_branch
    %8 = sbr.rel (0) target = $region5
  $region4: #{bilstm_transformer_forward.3} parent=0 // pred_region
    _
  $region5: #{bilstm_transformer_forward.3} parent=0 // pred_fallthru
    _
  // Predicated region
  $region6: #{bilstm_transformer_forward.3} parent=0 // pred_check
    _
  $region7: #{bilstm_transformer_forward.3} parent=0 // pred_check_branch
    %10 = sbr.rel (0) target = $region9
  $region8: #{bilstm_transformer_forward.3} parent=0 // pred_region
    _
  $region9: #{bilstm_transformer_forward.3} parent=0 // pred_fallthru
    _
  %v11 = vld [vmem:[%s1] sm:$0xff]
  %v12 = vld [vmem:[%s1 + $0x8] sm:$0xff]
  %v13 = vld [vmem:[%s1 + $0x10] sm:$0xff]
  %v14 = vld [vmem:[%s1 + $0x18] sm:$0xff]
  %v15 = vld [vmem:[%s1 + $0x20] sm:$0xff]
  %v16 = vld [vmem:[%s1 + $0x28] sm:$0xff]
  %v17 = vld [vmem:[%s1 + $0x30] sm:$0xff]
  %v18 = vld [vmem:[%s1 + $0x38] sm:$0xff]
  %v19 = vld [vmem:[%s1 + $0x40] sm:$0xff]
  %v20 = vld [vmem:[%s1 + $0x48] sm:$0xff]
  %v21 = vld [vmem:[%s1 + $0x50] sm:$0xff]
  %v22 = vld [vmem:[%s1 + $0x58] sm:$0xff]
  %v23 = vld [vmem:[%s1 + $0x60] sm:$0xff]
  %v24 = vld [vmem:[%s1 + $0x68] sm:$0xff]
  %v25 = vld [vmem:[%s1 + $0x70] sm:$0xff]
  %v26 = vld [vmem:[%s1 + $0x78] sm:$0xff]
  %v27 = vld [vmem:[%s0] sm:$0xf]
  %vm28 = vcmask 523264
  %v30 = vsel %vm28, 0.0, 0
  %32 = vmatprep.subr.mxu0 0.0
  %33 = vmatpush1.msra.mxu0 0.0
  %34 = vmatprep.subr.mxu0 0.0
  %35 = vmatpush1.msra.mxu0 0.0
  %36 = vmatprep.subr.mxu0 0.0
  %37 = vmatpush1.msra.mxu0 0.0
  %38 = vmatprep.subr.mxu0 0.0
  %39 = vmatpush1.msra.mxu0 0.0
  %40 = vmatprep.subr.mxu0 0.0
  %41 = vmatpush1.msra.mxu0 0.0
  %42 = vmatprep.subr.mxu0 0.0
  %43 = vmatpush1.msra.mxu0 0.0
  %44 = vmatprep.subr.mxu0 0.0
  %45 = vmatpush1.msra.mxu0 0.0
  %46 = vmatprep.subr.mxu0 0.0
  %47 = vmatpush1.msra.mxu0 0.0
  %48 = vmatprep.subr.mxu0 %v26
  %49 = vmatpush1.msra.mxu0 %v25
  %50 = vmatprep.subr.mxu0 %v24
  %51 = vmatpush1.msra.mxu0 %v23
  %52 = vmatprep.subr.mxu0 %v22
  %53 = vmatpush1.msra.mxu0 %v21
  %54 = vmatprep.subr.mxu0 %v20
  %55 = vmatpush1.msra.mxu0 %v19
  %56 = vmatprep.subr.mxu0 %v18
  %57 = vmatpush1.msra.mxu0 %v17
  %58 = vmatprep.subr.mxu0 %v16
  %59 = vmatpush1.msra.mxu0 %v15
  %60 = vmatprep.subr.mxu0 %v14
  %61 = vmatpush1.msra.mxu0 %v13
  %62 = vmatprep.subr.mxu0 %v12
  %63 = vmatpush1.msra.mxu0 %v11
  %64 = vmatprep.subr.mxu0 0.0
  %65 = vmatpush2.msra.mxu0 0.0
  %66 = vmatprep.subr.mxu0 0.0
  %67 = vmatpush2.msra.mxu0 0.0
  %68 = vmatprep.subr.mxu0 0.0
  %69 = vmatpush2.msra.mxu0 0.0
  %70 = vmatprep.subr.mxu0 0.0
  %71 = vmatpush2.msra.mxu0 0.0
  %72 = vmatprep.subr.mxu0 0.0
  %73 = vmatpush2.msra.mxu0 0.0
  %74 = vmatprep.subr.mxu0 0.0
  %75 = vmatpush2.msra.mxu0 0.0
  %76 = vmatprep.subr.mxu0 0.0
  %77 = vmatpush2.msra.mxu0 0.0
  %78 = vmatprep.subr.mxu0 0.0
  %79 = vmatpush2.msra.mxu0 0.0
  %80 = vmatprep.subr.mxu0 0.0
  %81 = vmatpush2.msra.mxu0 0.0
  %82 = vmatprep.subr.mxu0 0.0
  %83 = vmatpush2.msra.mxu0 0.0
  %84 = vmatprep.subr.mxu0 0.0
  %85 = vmatpush2.msra.mxu0 0.0
  %86 = vmatprep.subr.mxu0 0.0
  %87 = vmatpush2.msra.mxu0 0.0
  %88 = vmatprep.subr.mxu0 0.0
  %89 = vmatpush2.msra.mxu0 0.0
  %90 = vmatprep.subr.mxu0 0.0
  %91 = vmatpush2.msra.mxu0 0.0
  %92 = vmatprep.subr.mxu0 0.0
  %93 = vmatpush2.msra.mxu0 0.0
  %94 = vmatprep.subr.mxu0 0.0
  %95 = vmatpush2.msra.mxu0 0.0
  %96 = vmatprep.mubr.f32.mxu0 0.0
  %97 = vmatmul.mubr.f32.gmra.mxu0 %v30
  %v98 = vpop.f32.mrf.mxu0
  %v99 = vadd.f32 0.0, %v98
  %v100 = vpop.f32.mrf.mxu0
  %v101 = vadd.f32 0.0, %v100
  %102 = vdwg.mxu0
  %v105 = vcombine.low %v99, %v101
  %v107 = vunpack.c.l.s4 1983009808
  %v108 = vunpack.c.0.s8 %v107
  %v109 = vlaneseq
  %v110 = vshrl.u32 %v109, 7
  %v111 = vsub.s32 %v108, %v110
  %v112 = vrot.slane %v105, %v111
  %v114 = vadd.f32 %v27, %v112
  %v115 = vsub.f32 0.0, %v114
  %v116 = vmul.f32 %v115, 1.442695
  %v117 = vpow.pop %v116
  %v118 = vadd.f32 %v117, 1.0
  %v119 = vrcp.pop %v118
  %v120 = vmul.f32 1.0, %v119
  %v121 = vtanh.pop %v114
  %v122 = vmul.f32 %v120, 0.0
  %v124 = vrot.slane %v121, 2
  %v126 = vmul.f32 %v120, %v124
  %128 = vrot.lane.b32.xlu0 %v126, 64
  %v129 = vpop.permute.xlu0 %128
  %v131 = vadd.f32 %v122, %v129
  %v132 = vtanh.pop %v131
  %134 = vrot.lane.b32.xlu0 %v120, 64
  %v135 = vpop.permute.xlu0 %134
  %v136 = vrot.slane %v135, 2
  %139 = vrot.lane.b32.xlu0 %v132, 64
  %v140 = vpop.permute.xlu0 %139
  %v142 = vmul.f32 %v136, %v140
  %vm143 = vcmask 254976
  %144 = vst.msk [vmem:[#allocation2] sm:$0x3] %vm143, %v142
  %v147 = vunpack.c.l.s4 1983009808
  %v148 = vunpack.c.0.s8 %v147
  %v149 = vlaneseq
  %v150 = vshrl.u32 %v149, 7
  %v151 = vsub.s32 %v148, %v150
  %v152 = vrot.slane %v142, %v151
  %153 = vrot.lane.b32.xlu0 %v152, 96
  %v154 = vpop.permute.xlu0 %153
  %s156 = scalar_lea.vmem [#allocation3], 14
  %157 = vst.msk [vmem:[%s156] sm:$0x3] %vm143, %v154
  %s158 = scalar_lea.vmem %s0, 4
  %v159 = vld [vmem:[%s158] sm:$0xf]
  %v160 = vsel %vm28, %v142, 0
  %162 = vmatprep.subr.mxu0 0.0
  %163 = vmatpush1.msra.mxu0 0.0
  %164 = vmatprep.subr.mxu0 0.0
  %165 = vmatpush1.msra.mxu0 0.0
  %166 = vmatprep.subr.mxu0 0.0
  %167 = vmatpush1.msra.mxu0 0.0
  %168 = vmatprep.subr.mxu0 0.0
  %169 = vmatpush1.msra.mxu0 0.0
  %170 = vmatprep.subr.mxu0 0.0
  %171 = vmatpush1.msra.mxu0 0.0
  %172 = vmatprep.subr.mxu0 0.0
  %173 = vmatpush1.msra.mxu0 0.0
  %174 = vmatprep.subr.mxu0 0.0
  %175 = vmatpush1.msra.mxu0 0.0
  %176 = vmatprep.subr.mxu0 0.0
  %177 = vmatpush1.msra.mxu0 0.0
  %178 = vmatprep.subr.mxu0 %v26
  %179 = vmatpush1.msra.mxu0 %v25
  %180 = vmatprep.subr.mxu0 %v24
  %181 = vmatpush1.msra.mxu0 %v23
  %182 = vmatprep.subr.mxu0 %v22
  %183 = vmatpush1.msra.mxu0 %v21
  %184 = vmatprep.subr.mxu0 %v20
  %185 = vmatpush1.msra.mxu0 %v19
  %186 = vmatprep.subr.mxu0 %v18
  %187 = vmatpush1.msra.mxu0 %v17
  %188 = vmatprep.subr.mxu0 %v16
  %189 = vmatpush1.msra.mxu0 %v15
  %190 = vmatprep.subr.mxu0 %v14
  %191 = vmatpush1.msra.mxu0 %v13
  %192 = vmatprep.subr.mxu0 %v12
  %193 = vmatpush1.msra.mxu0 %v11
  %194 = vmatprep.subr.mxu0 0.0
  %195 = vmatpush2.msra.mxu0 0.0
  %196 = vmatprep.subr.mxu0 0.0
  %197 = vmatpush2.msra.mxu0 0.0
  %198 = vmatprep.subr.mxu0 0.0
  %199 = vmatpush2.msra.mxu0 0.0
  %200 = vmatprep.subr.mxu0 0.0
  %201 = vmatpush2.msra.mxu0 0.0
  %202 = vmatprep.subr.mxu0 0.0
  %203 = vmatpush2.msra.mxu0 0.0
  %204 = vmatprep.subr.mxu0 0.0
  %205 = vmatpush2.msra.mxu0 0.0
  %206 = vmatprep.subr.mxu0 0.0
  %207 = vmatpush2.msra.mxu0 0.0
  %208 = vmatprep.subr.mxu0 0.0
  %209 = vmatpush2.msra.mxu0 0.0
  %210 = vmatprep.subr.mxu0 0.0
  %211 = vmatpush2.msra.mxu0 0.0
  %212 = vmatprep.subr.mxu0 0.0
  %213 = vmatpush2.msra.mxu0 0.0
  %214 = vmatprep.subr.mxu0 0.0
  %215 = vmatpush2.msra.mxu0 0.0
  %216 = vmatprep.subr.mxu0 0.0
  %217 = vmatpush2.msra.mxu0 0.0
  %218 = vmatprep.subr.mxu0 0.0
  %219 = vmatpush2.msra.mxu0 0.0
  %220 = vmatprep.subr.mxu0 0.0
  %221 = vmatpush2.msra.mxu0 0.0
  %222 = vmatprep.subr.mxu0 0.0
  %223 = vmatpush2.msra.mxu0 0.0
  %224 = vmatprep.subr.mxu0 0.0
  %225 = vmatpush2.msra.mxu0 0.0
  %226 = vmatprep.mubr.f32.mxu0 0.0
  %227 = vmatmul.mubr.f32.gmra.mxu0 %v160
  %v228 = vpop.f32.mrf.mxu0
  %v229 = vadd.f32 0.0, %v228
  %v230 = vpop.f32.mrf.mxu0
  %v231 = vadd.f32 0.0, %v230
  %232 = vdwg.mxu0
  %v235 = vcombine.low %v229, %v231
  %v237 = vunpack.c.l.s4 1983009808
  %v238 = vunpack.c.0.s8 %v237
  %v239 = vlaneseq
  %v240 = vshrl.u32 %v239, 7
  %v241 = vsub.s32 %v238, %v240
  %v242 = vrot.slane %v235, %v241
  %v244 = vadd.f32 %v159, %v242
  %v245 = vsub.f32 0.0, %v244
  %v246 = vmul.f32 %v245, 1.442695
  %v247 = vpow.pop %v246
  %v248 = vadd.f32 %v247, 1.0
  %v249 = vrcp.pop %v248
  %v250 = vmul.f32 1.0, %v249
  %v251 = vtanh.pop %v244
  %v252 = vmul.f32 %v250, %v131
  %v254 = vrot.slane %v251, 2
  %v256 = vmul.f32 %v250, %v254
  %258 = vrot.lane.b32.xlu0 %v256, 64
  %v259 = vpop.permute.xlu0 %258
  %v261 = vadd.f32 %v252, %v259
  %v262 = vtanh.pop %v261
  %264 = vrot.lane.b32.xlu0 %v250, 64
  %v265 = vpop.permute.xlu0 %264
  %v266 = vrot.slane %v265, 2
  %269 = vrot.lane.b32.xlu0 %v262, 64
  %v270 = vpop.permute.xlu0 %269
  %v272 = vmul.f32 %v266, %v270
  %s273 = scalar_lea.vmem [#allocation2], 2
  %274 = vst.msk [vmem:[%s273] sm:$0x3] %vm143, %v272
  %v277 = vunpack.c.l.s4 1983009808
  %v278 = vunpack.c.0.s8 %v277
  %v279 = vlaneseq
  %v280 = vshrl.u32 %v279, 7
  %v281 = vsub.s32 %v278, %v280
  %v282 = vrot.slane %v272, %v281
  %283 = vrot.lane.b32.xlu0 %v282, 96
  %v284 = vpop.permute.xlu0 %283
  %s286 = scalar_lea.vmem [#allocation3], 12
  %287 = vst.msk [vmem:[%s286] sm:$0x3] %vm143, %v284
  %s288 = scalar_lea.vmem %s0, 8
  %v289 = vld [vmem:[%s288] sm:$0xf]
  %v290 = vsel %vm28, %v272, 0
  %292 = vmatprep.subr.mxu0 0.0
  %293 = vmatpush1.msra.mxu0 0.0
  %294 = vmatprep.subr.mxu0 0.0
  %295 = vmatpush1.msra.mxu0 0.0
  %296 = vmatprep.subr.mxu0 0.0
  %297 = vmatpush1.msra.mxu0 0.0
  %298 = vmatprep.subr.mxu0 0.0
  %299 = vmatpush1.msra.mxu0 0.0
  %300 = vmatprep.subr.mxu0 0.0
  %301 = vmatpush1.msra.mxu0 0.0
  %302 = vmatprep.subr.mxu0 0.0
  %303 = vmatpush1.msra.mxu0 0.0
  %304 = vmatprep.subr.mxu0 0.0
  %305 = vmatpush1.msra.mxu0 0.0
  %306 = vmatprep.subr.mxu0 0.0
  %307 = vmatpush1.msra.mxu0 0.0
  %308 = vmatprep.subr.mxu0 %v26
  %309 = vmatpush1.msra.mxu0 %v25
  %310 = vmatprep.subr.mxu0 %v24
  %311 = vmatpush1.msra.mxu0 %v23
  %312 = vmatprep.subr.mxu0 %v22
  %313 = vmatpush1.msra.mxu0 %v21
  %314 = vmatprep.subr.mxu0 %v20
  %315 = vmatpush1.msra.mxu0 %v19
  %316 = vmatprep.subr.mxu0 %v18
  %317 = vmatpush1.msra.mxu0 %v17
  %318 = vmatprep.subr.mxu0 %v16
  %319 = vmatpush1.msra.mxu0 %v15
  %320 = vmatprep.subr.mxu0 %v14
  %321 = vmatpush1.msra.mxu0 %v13
  %322 = vmatprep.subr.mxu0 %v12
  %323 = vmatpush1.msra.mxu0 %v11
  %324 = vmatprep.subr.mxu0 0.0
  %325 = vmatpush2.msra.mxu0 0.0
  %326 = vmatprep.subr.mxu0 0.0
  %327 = vmatpush2.msra.mxu0 0.0
  %328 = vmatprep.subr.mxu0 0.0
  %329 = vmatpush2.msra.mxu0 0.0
  %330 = vmatprep.subr.mxu0 0.0
  %331 = vmatpush2.msra.mxu0 0.0
  %332 = vmatprep.subr.mxu0 0.0
  %333 = vmatpush2.msra.mxu0 0.0
  %334 = vmatprep.subr.mxu0 0.0
  %335 = vmatpush2.msra.mxu0 0.0
  %336 = vmatprep.subr.mxu0 0.0
  %337 = vmatpush2.msra.mxu0 0.0
  %338 = vmatprep.subr.mxu0 0.0
  %339 = vmatpush2.msra.mxu0 0.0
  %340 = vmatprep.subr.mxu0 0.0
  %341 = vmatpush2.msra.mxu0 0.0
  %342 = vmatprep.subr.mxu0 0.0
  %343 = vmatpush2.msra.mxu0 0.0
  %344 = vmatprep.subr.mxu0 0.0
  %345 = vmatpush2.msra.mxu0 0.0
  %346 = vmatprep.subr.mxu0 0.0
  %347 = vmatpush2.msra.mxu0 0.0
  %348 = vmatprep.subr.mxu0 0.0
  %349 = vmatpush2.msra.mxu0 0.0
  %350 = vmatprep.subr.mxu0 0.0
  %351 = vmatpush2.msra.mxu0 0.0
  %352 = vmatprep.subr.mxu0 0.0
  %353 = vmatpush2.msra.mxu0 0.0
  %354 = vmatprep.subr.mxu0 0.0
  %355 = vmatpush2.msra.mxu0 0.0
  %356 = vmatprep.mubr.f32.mxu0 0.0
  %357 = vmatmul.mubr.f32.gmra.mxu0 %v290
  %v358 = vpop.f32.mrf.mxu0
  %v359 = vadd.f32 0.0, %v358
  %v360 = vpop.f32.mrf.mxu0
  %v361 = vadd.f32 0.0, %v360
  %362 = vdwg.mxu0
  %v365 = vcombine.low %v359, %v361
  %v367 = vunpack.c.l.s4 1983009808
  %v368 = vunpack.c.0.s8 %v367
  %v369 = vlaneseq
  %v370 = vshrl.u32 %v369, 7
  %v371 = vsub.s32 %v368, %v370
  %v372 = vrot.slane %v365, %v371
  %v374 = vadd.f32 %v289, %v372
  %v375 = vsub.f32 0.0, %v374
  %v376 = vmul.f32 %v375, 1.442695
  %v377 = vpow.pop %v376
  %v378 = vadd.f32 %v377, 1.0
  %v379 = vrcp.pop %v378
  %v380 = vmul.f32 1.0, %v379
  %v381 = vtanh.pop %v374
  %v382 = vmul.f32 %v380, %v261
  %v384 = vrot.slane %v381, 2
  %v386 = vmul.f32 %v380, %v384
  %388 = vrot.lane.b32.xlu0 %v386, 64
  %v389 = vpop.permute.xlu0 %388
  %v391 = vadd.f32 %v382, %v389
  %v392 = vtanh.pop %v391
  %394 = vrot.lane.b32.xlu0 %v380, 64
  %v395 = vpop.permute.xlu0 %394
  %v396 = vrot.slane %v395, 2
  %399 = vrot.lane.b32.xlu0 %v392, 64
  %v400 = vpop.permute.xlu0 %399
  %v402 = vmul.f32 %v396, %v400
  %s403 = scalar_lea.vmem [#allocation2], 4
  %404 = vst.msk [vmem:[%s403] sm:$0x3] %vm143, %v402
  %v407 = vunpack.c.l.s4 1983009808
  %v408 = vunpack.c.0.s8 %v407
  %v409 = vlaneseq
  %v410 = vshrl.u32 %v409, 7
  %v411 = vsub.s32 %v408, %v410
  %v412 = vrot.slane %v402, %v411
  %413 = vrot.lane.b32.xlu0 %v412, 96
  %v414 = vpop.permute.xlu0 %413
  %s416 = scalar_lea.vmem [#allocation3], 10
  %417 = vst.msk [vmem:[%s416] sm:$0x3] %vm143, %v414
  %s418 = scalar_lea.vmem %s0, 12
  %v419 = vld [vmem:[%s418] sm:$0xf]
  %v420 = vsel %vm28, %v402, 0
  %422 = vmatprep.subr.mxu0 0.0
  %423 = vmatpush1.msra.mxu0 0.0
  %424 = vmatprep.subr.mxu0 0.0
  %425 = vmatpush1.msra.mxu0 0.0
  %426 = vmatprep.subr.mxu0 0.0
  %427 = vmatpush1.msra.mxu0 0.0
  %428 = vmatprep.subr.mxu0 0.0
  %429 = vmatpush1.msra.mxu0 0.0
  %430 = vmatprep.subr.mxu0 0.0
  %431 = vmatpush1.msra.mxu0 0.0
  %432 = vmatprep.subr.mxu0 0.0
  %433 = vmatpush1.msra.mxu0 0.0
  %434 = vmatprep.subr.mxu0 0.0
  %435 = vmatpush1.msra.mxu0 0.0
  %436 = vmatprep.subr.mxu0 0.0
  %437 = vmatpush1.msra.mxu0 0.0
  %438 = vmatprep.subr.mxu0 %v26
  %439 = vmatpush1.msra.mxu0 %v25
  %440 = vmatprep.subr.mxu0 %v24
  %441 = vmatpush1.msra.mxu0 %v23
  %442 = vmatprep.subr.mxu0 %v22
  %443 = vmatpush1.msra.mxu0 %v21
  %444 = vmatprep.subr.mxu0 %v20
  %445 = vmatpush1.msra.mxu0 %v19
  %446 = vmatprep.subr.mxu0 %v18
  %447 = vmatpush1.msra.mxu0 %v17
  %448 = vmatprep.subr.mxu0 %v16
  %449 = vmatpush1.msra.mxu0 %v15
  %450 = vmatprep.subr.mxu0 %v14
  %451 = vmatpush1.msra.mxu0 %v13
  %452 = vmatprep.subr.mxu0 %v12
  %453 = vmatpush1.msra.mxu0 %v11
  %454 = vmatprep.subr.mxu0 0.0
  %455 = vmatpush2.msra.mxu0 0.0
  %456 = vmatprep.subr.mxu0 0.0
  %457 = vmatpush2.msra.mxu0 0.0
  %458 = vmatprep.subr.mxu0 0.0
  %459 = vmatpush2.msra.mxu0 0.0
  %460 = vmatprep.subr.mxu0 0.0
  %461 = vmatpush2.msra.mxu0 0.0
  %462 = vmatprep.subr.mxu0 0.0
  %463 = vmatpush2.msra.mxu0 0.0
  %464 = vmatprep.subr.mxu0 0.0
  %465 = vmatpush2.msra.mxu0 0.0
  %466 = vmatprep.subr.mxu0 0.0
  %467 = vmatpush2.msra.mxu0 0.0
  %468 = vmatprep.subr.mxu0 0.0
  %469 = vmatpush2.msra.mxu0 0.0
  %470 = vmatprep.subr.mxu0 0.0
  %471 = vmatpush2.msra.mxu0 0.0
  %472 = vmatprep.subr.mxu0 0.0
  %473 = vmatpush2.msra.mxu0 0.0
  %474 = vmatprep.subr.mxu0 0.0
  %475 = vmatpush2.msra.mxu0 0.0
  %476 = vmatprep.subr.mxu0 0.0
  %477 = vmatpush2.msra.mxu0 0.0
  %478 = vmatprep.subr.mxu0 0.0
  %479 = vmatpush2.msra.mxu0 0.0
  %480 = vmatprep.subr.mxu0 0.0
  %481 = vmatpush2.msra.mxu0 0.0
  %482 = vmatprep.subr.mxu0 0.0
  %483 = vmatpush2.msra.mxu0 0.0
  %484 = vmatprep.subr.mxu0 0.0
  %485 = vmatpush2.msra.mxu0 0.0
  %486 = vmatprep.mubr.f32.mxu0 0.0
  %487 = vmatmul.mubr.f32.gmra.mxu0 %v420
  %v488 = vpop.f32.mrf.mxu0
  %v489 = vadd.f32 0.0, %v488
  %v490 = vpop.f32.mrf.mxu0
  %v491 = vadd.f32 0.0, %v490
  %492 = vdwg.mxu0
  %v495 = vcombine.low %v489, %v491
  %v497 = vunpack.c.l.s4 1983009808
  %v498 = vunpack.c.0.s8 %v497
  %v499 = vlaneseq
  %v500 = vshrl.u32 %v499, 7
  %v501 = vsub.s32 %v498, %v500
  %v502 = vrot.slane %v495, %v501
  %v504 = vadd.f32 %v419, %v502
  %v505 = vsub.f32 0.0, %v504
  %v506 = vmul.f32 %v505, 1.442695
  %v507 = vpow.pop %v506
  %v508 = vadd.f32 %v507, 1.0
  %v509 = vrcp.pop %v508
  %v510 = vmul.f32 1.0, %v509
  %v511 = vtanh.pop %v504
  %v512 = vmul.f32 %v510, %v391
  %v514 = vrot.slane %v511, 2
  %v516 = vmul.f32 %v510, %v514
  %518 = vrot.lane.b32.xlu0 %v516, 64
  %v519 = vpop.permute.xlu0 %518
  %v521 = vadd.f32 %v512, %v519
  %v522 = vtanh.pop %v521
  %524 = vrot.lane.b32.xlu0 %v510, 64
  %v525 = vpop.permute.xlu0 %524
  %v526 = vrot.slane %v525, 2
  %529 = vrot.lane.b32.xlu0 %v522, 64
  %v530 = vpop.permute.xlu0 %529
  %v532 = vmul.f32 %v526, %v530
  %s533 = scalar_lea.vmem [#allocation2], 6
  %534 = vst.msk [vmem:[%s533] sm:$0x3] %vm143, %v532
  %v537 = vunpack.c.l.s4 1983009808
  %v538 = vunpack.c.0.s8 %v537
  %v539 = vlaneseq
  %v540 = vshrl.u32 %v539, 7
  %v541 = vsub.s32 %v538, %v540
  %v542 = vrot.slane %v532, %v541
  %543 = vrot.lane.b32.xlu0 %v542, 96
  %v544 = vpop.permute.xlu0 %543
  %s546 = scalar_lea.vmem [#allocation3], 8
  %547 = vst.msk [vmem:[%s546] sm:$0x3] %vm143, %v544
  %s548 = scalar_lea.vmem %s0, 16
  %v549 = vld [vmem:[%s548] sm:$0xf]
  %v550 = vsel %vm28, %v532, 0
  %552 = vmatprep.subr.mxu0 0.0
  %553 = vmatpush1.msra.mxu0 0.0
  %554 = vmatprep.subr.mxu0 0.0
  %555 = vmatpush1.msra.mxu0 0.0
  %556 = vmatprep.subr.mxu0 0.0
  %557 = vmatpush1.msra.mxu0 0.0
  %558 = vmatprep.subr.mxu0 0.0
  %559 = vmatpush1.msra.mxu0 0.0
  %560 = vmatprep.subr.mxu0 0.0
  %561 = vmatpush1.msra.mxu0 0.0
  %562 = vmatprep.subr.mxu0 0.0
  %563 = vmatpush1.msra.mxu0 0.0
  %564 = vmatprep.subr.mxu0 0.0
  %565 = vmatpush1.msra.mxu0 0.0
  %566 = vmatprep.subr.mxu0 0.0
  %567 = vmatpush1.msra.mxu0 0.0
  %568 = vmatprep.subr.mxu0 %v26
  %569 = vmatpush1.msra.mxu0 %v25
  %570 = vmatprep.subr.mxu0 %v24
  %571 = vmatpush1.msra.mxu0 %v23
  %572 = vmatprep.subr.mxu0 %v22
  %573 = vmatpush1.msra.mxu0 %v21
  %574 = vmatprep.subr.mxu0 %v20
  %575 = vmatpush1.msra.mxu0 %v19
  %576 = vmatprep.subr.mxu0 %v18
  %577 = vmatpush1.msra.mxu0 %v17
  %578 = vmatprep.subr.mxu0 %v16
  %579 = vmatpush1.msra.mxu0 %v15
  %580 = vmatprep.subr.mxu0 %v14
  %581 = vmatpush1.msra.mxu0 %v13
  %582 = vmatprep.subr.mxu0 %v12
  %583 = vmatpush1.msra.mxu0 %v11
  %584 = vmatprep.subr.mxu0 0.0
  %585 = vmatpush2.msra.mxu0 0.0
  %586 = vmatprep.subr.mxu0 0.0
  %587 = vmatpush2.msra.mxu0 0.0
  %588 = vmatprep.subr.mxu0 0.0
  %589 = vmatpush2.msra.mxu0 0.0
  %590 = vmatprep.subr.mxu0 0.0
  %591 = vmatpush2.msra.mxu0 0.0
  %592 = vmatprep.subr.mxu0 0.0
  %593 = vmatpush2.msra.mxu0 0.0
  %594 = vmatprep.subr.mxu0 0.0
  %595 = vmatpush2.msra.mxu0 0.0
  %596 = vmatprep.subr.mxu0 0.0
  %597 = vmatpush2.msra.mxu0 0.0
  %598 = vmatprep.subr.mxu0 0.0
  %599 = vmatpush2.msra.mxu0 0.0
  %600 = vmatprep.subr.mxu0 0.0
  %601 = vmatpush2.msra.mxu0 0.0
  %602 = vmatprep.subr.mxu0 0.0
  %603 = vmatpush2.msra.mxu0 0.0
  %604 = vmatprep.subr.mxu0 0.0
  %605 = vmatpush2.msra.mxu0 0.0
  %606 = vmatprep.subr.mxu0 0.0
  %607 = vmatpush2.msra.mxu0 0.0
  %608 = vmatprep.subr.mxu0 0.0
  %609 = vmatpush2.msra.mxu0 0.0
  %610 = vmatprep.subr.mxu0 0.0
  %611 = vmatpush2.msra.mxu0 0.0
  %612 = vmatprep.subr.mxu0 0.0
  %613 = vmatpush2.msra.mxu0 0.0
  %614 = vmatprep.subr.mxu0 0.0
  %615 = vmatpush2.msra.mxu0 0.0
  %616 = vmatprep.mubr.f32.mxu0 0.0
  %617 = vmatmul.mubr.f32.gmra.mxu0 %v550
  %v618 = vpop.f32.mrf.mxu0
  %v619 = vadd.f32 0.0, %v618
  %v620 = vpop.f32.mrf.mxu0
  %v621 = vadd.f32 0.0, %v620
  %622 = vdwg.mxu0
  %v625 = vcombine.low %v619, %v621
  %v627 = vunpack.c.l.s4 1983009808
  %v628 = vunpack.c.0.s8 %v627
  %v629 = vlaneseq
  %v630 = vshrl.u32 %v629, 7
  %v631 = vsub.s32 %v628, %v630
  %v632 = vrot.slane %v625, %v631
  %v634 = vadd.f32 %v549, %v632
  %v635 = vsub.f32 0.0, %v634
  %v636 = vmul.f32 %v635, 1.442695
  %v637 = vpow.pop %v636
  %v638 = vadd.f32 %v637, 1.0
  %v639 = vrcp.pop %v638
  %v640 = vmul.f32 1.0, %v639
  %v641 = vtanh.pop %v634
  %v642 = vmul.f32 %v640, %v521
  %v644 = vrot.slane %v641, 2
  %v646 = vmul.f32 %v640, %v644
  %648 = vrot.lane.b32.xlu0 %v646, 64
  %v649 = vpop.permute.xlu0 %648
  %v651 = vadd.f32 %v642, %v649
  %v652 = vtanh.pop %v651
  %654 = vrot.lane.b32.xlu0 %v640, 64
  %v655 = vpop.permute.xlu0 %654
  %v656 = vrot.slane %v655, 2
  %659 = vrot.lane.b32.xlu0 %v652, 64
  %v660 = vpop.permute.xlu0 %659
  %v662 = vmul.f32 %v656, %v660
  %s663 = scalar_lea.vmem [#allocation2], 8
  %664 = vst.msk [vmem:[%s663] sm:$0x3] %vm143, %v662
  %v667 = vunpack.c.l.s4 1983009808
  %v668 = vunpack.c.0.s8 %v667
  %v669 = vlaneseq
  %v670 = vshrl.u32 %v669, 7
  %v671 = vsub.s32 %v668, %v670
  %v672 = vrot.slane %v662, %v671
  %673 = vrot.lane.b32.xlu0 %v672, 96
  %v674 = vpop.permute.xlu0 %673
  %s676 = scalar_lea.vmem [#allocation3], 6
  %677 = vst.msk [vmem:[%s676] sm:$0x3] %vm143, %v674
  %s678 = scalar_lea.vmem %s0, 20
  %v679 = vld [vmem:[%s678] sm:$0xf]
  %v680 = vsel %vm28, %v662, 0
  %682 = vmatprep.subr.mxu0 0.0
  %683 = vmatpush1.msra.mxu0 0.0
  %684 = vmatprep.subr.mxu0 0.0
  %685 = vmatpush1.msra.mxu0 0.0
  %686 = vmatprep.subr.mxu0 0.0
  %687 = vmatpush1.msra.mxu0 0.0
  %688 = vmatprep.subr.mxu0 0.0
  %689 = vmatpush1.msra.mxu0 0.0
  %690 = vmatprep.subr.mxu0 0.0
  %691 = vmatpush1.msra.mxu0 0.0
  %692 = vmatprep.subr.mxu0 0.0
  %693 = vmatpush1.msra.mxu0 0.0
  %694 = vmatprep.subr.mxu0 0.0
  %695 = vmatpush1.msra.mxu0 0.0
  %696 = vmatprep.subr.mxu0 0.0
  %697 = vmatpush1.msra.mxu0 0.0
  %698 = vmatprep.subr.mxu0 %v26
  %699 = vmatpush1.msra.mxu0 %v25
  %700 = vmatprep.subr.mxu0 %v24
  %701 = vmatpush1.msra.mxu0 %v23
  %702 = vmatprep.subr.mxu0 %v22
  %703 = vmatpush1.msra.mxu0 %v21
  %704 = vmatprep.subr.mxu0 %v20
  %705 = vmatpush1.msra.mxu0 %v19
  %706 = vmatprep.subr.mxu0 %v18
  %707 = vmatpush1.msra.mxu0 %v17
  %708 = vmatprep.subr.mxu0 %v16
  %709 = vmatpush1.msra.mxu0 %v15
  %710 = vmatprep.subr.mxu0 %v14
  %711 = vmatpush1.msra.mxu0 %v13
  %712 = vmatprep.subr.mxu0 %v12
  %713 = vmatpush1.msra.mxu0 %v11
  %714 = vmatprep.subr.mxu0 0.0
  %715 = vmatpush2.msra.mxu0 0.0
  %716 = vmatprep.subr.mxu0 0.0
  %717 = vmatpush2.msra.mxu0 0.0
  %718 = vmatprep.subr.mxu0 0.0
  %719 = vmatpush2.msra.mxu0 0.0
  %720 = vmatprep.subr.mxu0 0.0
  %721 = vmatpush2.msra.mxu0 0.0
  %722 = vmatprep.subr.mxu0 0.0
  %723 = vmatpush2.msra.mxu0 0.0
  %724 = vmatprep.subr.mxu0 0.0
  %725 = vmatpush2.msra.mxu0 0.0
  %726 = vmatprep.subr.mxu0 0.0
  %727 = vmatpush2.msra.mxu0 0.0
  %728 = vmatprep.subr.mxu0 0.0
  %729 = vmatpush2.msra.mxu0 0.0
  %730 = vmatprep.subr.mxu0 0.0
  %731 = vmatpush2.msra.mxu0 0.0
  %732 = vmatprep.subr.mxu0 0.0
  %733 = vmatpush2.msra.mxu0 0.0
  %734 = vmatprep.subr.mxu0 0.0
  %735 = vmatpush2.msra.mxu0 0.0
  %736 = vmatprep.subr.mxu0 0.0
  %737 = vmatpush2.msra.mxu0 0.0
  %738 = vmatprep.subr.mxu0 0.0
  %739 = vmatpush2.msra.mxu0 0.0
  %740 = vmatprep.subr.mxu0 0.0
  %741 = vmatpush2.msra.mxu0 0.0
  %742 = vmatprep.subr.mxu0 0.0
  %743 = vmatpush2.msra.mxu0 0.0
  %744 = vmatprep.subr.mxu0 0.0
  %745 = vmatpush2.msra.mxu0 0.0
  %746 = vmatprep.mubr.f32.mxu0 0.0
  %747 = vmatmul.mubr.f32.gmra.mxu0 %v680
  %v748 = vpop.f32.mrf.mxu0
  %v749 = vadd.f32 0.0, %v748
  %v750 = vpop.f32.mrf.mxu0
  %v751 = vadd.f32 0.0, %v750
  %752 = vdwg.mxu0
  %v755 = vcombine.low %v749, %v751
  %v757 = vunpack.c.l.s4 1983009808
  %v758 = vunpack.c.0.s8 %v757
  %v759 = vlaneseq
  %v760 = vshrl.u32 %v759, 7
  %v761 = vsub.s32 %v758, %v760
  %v762 = vrot.slane %v755, %v761
  %v764 = vadd.f32 %v679, %v762
  %v765 = vsub.f32 0.0, %v764
  %v766 = vmul.f32 %v765, 1.442695
  %v767 = vpow.pop %v766
  %v768 = vadd.f32 %v767, 1.0
  %v769 = vrcp.pop %v768
  %v770 = vmul.f32 1.0, %v769
  %v771 = vtanh.pop %v764
  %v772 = vmul.f32 %v770, %v651
  %v774 = vrot.slane %v771, 2
  %v776 = vmul.f32 %v770, %v774
  %778 = vrot.lane.b32.xlu0 %v776, 64
  %v779 = vpop.permute.xlu0 %778
  %v781 = vadd.f32 %v772, %v779
  %v782 = vtanh.pop %v781
  %784 = vrot.lane.b32.xlu0 %v770, 64
  %v785 = vpop.permute.xlu0 %784
  %v786 = vrot.slane %v785, 2
  %789 = vrot.lane.b32.xlu0 %v782, 64
  %v790 = vpop.permute.xlu0 %789
  %v792 = vmul.f32 %v786, %v790
  %s793 = scalar_lea.vmem [#allocation2], 10
  %794 = vst.msk [vmem:[%s793] sm:$0x3] %vm143, %v792
  %v797 = vunpack.c.l.s4 1983009808
  %v798 = vunpack.c.0.s8 %v797
  %v799 = vlaneseq
  %v800 = vshrl.u32 %v799, 7
  %v801 = vsub.s32 %v798, %v800
  %v802 = vrot.slane %v792, %v801
  %803 = vrot.lane.b32.xlu0 %v802, 96
  %v804 = vpop.permute.xlu0 %803
  %s806 = scalar_lea.vmem [#allocation3], 4
  %807 = vst.msk [vmem:[%s806] sm:$0x3] %vm143, %v804
  %s808 = scalar_lea.vmem %s0, 24
  %v809 = vld [vmem:[%s808] sm:$0xf]
  %v810 = vsel %vm28, %v792, 0
  %812 = vmatprep.subr.mxu0 0.0
  %813 = vmatpush1.msra.mxu0 0.0
  %814 = vmatprep.subr.mxu0 0.0
  %815 = vmatpush1.msra.mxu0 0.0
  %816 = vmatprep.subr.mxu0 0.0
  %817 = vmatpush1.msra.mxu0 0.0
  %818 = vmatprep.subr.mxu0 0.0
  %819 = vmatpush1.msra.mxu0 0.0
  %820 = vmatprep.subr.mxu0 0.0
  %821 = vmatpush1.msra.mxu0 0.0
  %822 = vmatprep.subr.mxu0 0.0
  %823 = vmatpush1.msra.mxu0 0.0
  %824 = vmatprep.subr.mxu0 0.0
  %825 = vmatpush1.msra.mxu0 0.0
  %826 = vmatprep.subr.mxu0 0.0
  %827 = vmatpush1.msra.mxu0 0.0
  %828 = vmatprep.subr.mxu0 %v26
  %829 = vmatpush1.msra.mxu0 %v25
  %830 = vmatprep.subr.mxu0 %v24
  %831 = vmatpush1.msra.mxu0 %v23
  %832 = vmatprep.subr.mxu0 %v22
  %833 = vmatpush1.msra.mxu0 %v21
  %834 = vmatprep.subr.mxu0 %v20
  %835 = vmatpush1.msra.mxu0 %v19
  %836 = vmatprep.subr.mxu0 %v18
  %837 = vmatpush1.msra.mxu0 %v17
  %838 = vmatprep.subr.mxu0 %v16
  %839 = vmatpush1.msra.mxu0 %v15
  %840 = vmatprep.subr.mxu0 %v14
  %841 = vmatpush1.msra.mxu0 %v13
  %842 = vmatprep.subr.mxu0 %v12
  %843 = vmatpush1.msra.mxu0 %v11
  %844 = vmatprep.subr.mxu0 0.0
  %845 = vmatpush2.msra.mxu0 0.0
  %846 = vmatprep.subr.mxu0 0.0
  %847 = vmatpush2.msra.mxu0 0.0
  %848 = vmatprep.subr.mxu0 0.0
  %849 = vmatpush2.msra.mxu0 0.0
  %850 = vmatprep.subr.mxu0 0.0
  %851 = vmatpush2.msra.mxu0 0.0
  %852 = vmatprep.subr.mxu0 0.0
  %853 = vmatpush2.msra.mxu0 0.0
  %854 = vmatprep.subr.mxu0 0.0
  %855 = vmatpush2.msra.mxu0 0.0
  %856 = vmatprep.subr.mxu0 0.0
  %857 = vmatpush2.msra.mxu0 0.0
  %858 = vmatprep.subr.mxu0 0.0
  %859 = vmatpush2.msra.mxu0 0.0
  %860 = vmatprep.subr.mxu0 0.0
  %861 = vmatpush2.msra.mxu0 0.0
  %862 = vmatprep.subr.mxu0 0.0
  %863 = vmatpush2.msra.mxu0 0.0
  %864 = vmatprep.subr.mxu0 0.0
  %865 = vmatpush2.msra.mxu0 0.0
  %866 = vmatprep.subr.mxu0 0.0
  %867 = vmatpush2.msra.mxu0 0.0
  %868 = vmatprep.subr.mxu0 0.0
  %869 = vmatpush2.msra.mxu0 0.0
  %870 = vmatprep.subr.mxu0 0.0
  %871 = vmatpush2.msra.mxu0 0.0
  %872 = vmatprep.subr.mxu0 0.0
  %873 = vmatpush2.msra.mxu0 0.0
  %874 = vmatprep.subr.mxu0 0.0
  %875 = vmatpush2.msra.mxu0 0.0
  %876 = vmatprep.mubr.f32.mxu0 0.0
  %877 = vmatmul.mubr.f32.gmra.mxu0 %v810
  %v878 = vpop.f32.mrf.mxu0
  %v879 = vadd.f32 0.0, %v878
  %v880 = vpop.f32.mrf.mxu0
  %v881 = vadd.f32 0.0, %v880
  %882 = vdwg.mxu0
  %v885 = vcombine.low %v879, %v881
  %v887 = vunpack.c.l.s4 1983009808
  %v888 = vunpack.c.0.s8 %v887
  %v889 = vlaneseq
  %v890 = vshrl.u32 %v889, 7
  %v891 = vsub.s32 %v888, %v890
  %v892 = vrot.slane %v885, %v891
  %v894 = vadd.f32 %v809, %v892
  %v895 = vsub.f32 0.0, %v894
  %v896 = vmul.f32 %v895, 1.442695
  %v897 = vpow.pop %v896
  %v898 = vadd.f32 %v897, 1.0
  %v899 = vrcp.pop %v898
  %v900 = vmul.f32 1.0, %v899
  %v901 = vtanh.pop %v894
  %v902 = vmul.f32 %v900, %v781
  %v904 = vrot.slane %v901, 2
  %v906 = vmul.f32 %v900, %v904
  %908 = vrot.lane.b32.xlu0 %v906, 64
  %v909 = vpop.permute.xlu0 %908
  %v911 = vadd.f32 %v902, %v909
  %v912 = vtanh.pop %v911
  %914 = vrot.lane.b32.xlu0 %v900, 64
  %v915 = vpop.permute.xlu0 %914
  %v916 = vrot.slane %v915, 2
  %919 = vrot.lane.b32.xlu0 %v912, 64
  %v920 = vpop.permute.xlu0 %919
  %v922 = vmul.f32 %v916, %v920
  %s923 = scalar_lea.vmem [#allocation2], 12
  %924 = vst.msk [vmem:[%s923] sm:$0x3] %vm143, %v922
  %v927 = vunpack.c.l.s4 1983009808
  %v928 = vunpack.c.0.s8 %v927
  %v929 = vlaneseq
  %v930 = vshrl.u32 %v929, 7
  %v931 = vsub.s32 %v928, %v930
  %v932 = vrot.slane %v922, %v931
  %933 = vrot.lane.b32.xlu0 %v932, 96
  %v934 = vpop.permute.xlu0 %933
  %s936 = scalar_lea.vmem [#allocation3], 2
  %937 = vst.msk [vmem:[%s936] sm:$0x3] %vm143, %v934
  %s938 = scalar_lea.vmem %s0, 28
  %v939 = vld [vmem:[%s938] sm:$0xf]
  %v940 = vsel %vm28, %v922, 0
  %942 = vmatprep.subr.mxu0 0.0
  %943 = vmatpush1.msra.mxu0 0.0
  %944 = vmatprep.subr.mxu0 0.0
  %945 = vmatpush1.msra.mxu0 0.0
  %946 = vmatprep.subr.mxu0 0.0
  %947 = vmatpush1.msra.mxu0 0.0
  %948 = vmatprep.subr.mxu0 0.0
  %949 = vmatpush1.msra.mxu0 0.0
  %950 = vmatprep.subr.mxu0 0.0
  %951 = vmatpush1.msra.mxu0 0.0
  %952 = vmatprep.subr.mxu0 0.0
  %953 = vmatpush1.msra.mxu0 0.0
  %954 = vmatprep.subr.mxu0 0.0
  %955 = vmatpush1.msra.mxu0 0.0
  %956 = vmatprep.subr.mxu0 0.0
  %957 = vmatpush1.msra.mxu0 0.0
  %958 = vmatprep.subr.mxu0 %v26
  %959 = vmatpush1.msra.mxu0 %v25
  %960 = vmatprep.subr.mxu0 %v24
  %961 = vmatpush1.msra.mxu0 %v23
  %962 = vmatprep.subr.mxu0 %v22
  %963 = vmatpush1.msra.mxu0 %v21
  %964 = vmatprep.subr.mxu0 %v20
  %965 = vmatpush1.msra.mxu0 %v19
  %966 = vmatprep.subr.mxu0 %v18
  %967 = vmatpush1.msra.mxu0 %v17
  %968 = vmatprep.subr.mxu0 %v16
  %969 = vmatpush1.msra.mxu0 %v15
  %970 = vmatprep.subr.mxu0 %v14
  %971 = vmatpush1.msra.mxu0 %v13
  %972 = vmatprep.subr.mxu0 %v12
  %973 = vmatpush1.msra.mxu0 %v11
  %974 = vmatprep.subr.mxu0 0.0
  %975 = vmatpush2.msra.mxu0 0.0
  %976 = vmatprep.subr.mxu0 0.0
  %977 = vmatpush2.msra.mxu0 0.0
  %978 = vmatprep.subr.mxu0 0.0
  %979 = vmatpush2.msra.mxu0 0.0
  %980 = vmatprep.subr.mxu0 0.0
  %981 = vmatpush2.msra.mxu0 0.0
  %982 = vmatprep.subr.mxu0 0.0
  %983 = vmatpush2.msra.mxu0 0.0
  %984 = vmatprep.subr.mxu0 0.0
  %985 = vmatpush2.msra.mxu0 0.0
  %986 = vmatprep.subr.mxu0 0.0
  %987 = vmatpush2.msra.mxu0 0.0
  %988 = vmatprep.subr.mxu0 0.0
  %989 = vmatpush2.msra.mxu0 0.0
  %990 = vmatprep.subr.mxu0 0.0
  %991 = vmatpush2.msra.mxu0 0.0
  %992 = vmatprep.subr.mxu0 0.0
  %993 = vmatpush2.msra.mxu0 0.0
  %994 = vmatprep.subr.mxu0 0.0
  %995 = vmatpush2.msra.mxu0 0.0
  %996 = vmatprep.subr.mxu0 0.0
  %997 = vmatpush2.msra.mxu0 0.0
  %998 = vmatprep.subr.mxu0 0.0
  %999 = vmatpush2.msra.mxu0 0.0
  %1000 = vmatprep.subr.mxu0 0.0
  %1001 = vmatpush2.msra.mxu0 0.0
  %1002 = vmatprep.subr.mxu0 0.0
  %1003 = vmatpush2.msra.mxu0 0.0
  %1004 = vmatprep.subr.mxu0 0.0
  %1005 = vmatpush2.msra.mxu0 0.0
  %1006 = vmatprep.mubr.f32.mxu0 0.0
  %1007 = vmatmul.mubr.f32.gmra.mxu0 %v940
  %v1008 = vpop.f32.mrf.mxu0
  %v1009 = vadd.f32 0.0, %v1008
  %v1010 = vpop.f32.mrf.mxu0
  %v1011 = vadd.f32 0.0, %v1010
  %1012 = vdwg.mxu0
  %v1015 = vcombine.low %v1009, %v1011
  %v1017 = vunpack.c.l.s4 1983009808
  %v1018 = vunpack.c.0.s8 %v1017
  %v1019 = vlaneseq
  %v1020 = vshrl.u32 %v1019, 7
  %v1021 = vsub.s32 %v1018, %v1020
  %v1022 = vrot.slane %v1015, %v1021
  %v1024 = vadd.f32 %v939, %v1022
  %v1025 = vsub.f32 0.0, %v1024
  %v1026 = vmul.f32 %v1025, 1.442695
  %v1027 = vpow.pop %v1026
  %v1028 = vadd.f32 %v1027, 1.0
  %v1029 = vrcp.pop %v1028
  %v1030 = vmul.f32 1.0, %v1029
  %v1031 = vtanh.pop %v1024
  %v1032 = vmul.f32 %v1030, %v911
  %v1034 = vrot.slane %v1031, 2
  %v1036 = vmul.f32 %v1030, %v1034
  %1038 = vrot.lane.b32.xlu0 %v1036, 64
  %v1039 = vpop.permute.xlu0 %1038
  %v1041 = vadd.f32 %v1032, %v1039
  %v1042 = vtanh.pop %v1041
  %1044 = vrot.lane.b32.xlu0 %v1030, 64
  %v1045 = vpop.permute.xlu0 %1044
  %v1046 = vrot.slane %v1045, 2
  %1049 = vrot.lane.b32.xlu0 %v1042, 64
  %v1050 = vpop.permute.xlu0 %1049
  %v1052 = vmul.f32 %v1046, %v1050
  %s1053 = scalar_lea.vmem [#allocation2], 14
  %1054 = vst.msk [vmem:[%s1053] sm:$0x3] %vm143, %v1052
  %v1057 = vunpack.c.l.s4 1983009808
  %v1058 = vunpack.c.0.s8 %v1057
  %v1059 = vlaneseq
  %v1060 = vshrl.u32 %v1059, 7
  %v1061 = vsub.s32 %v1058, %v1060
  %v1062 = vrot.slane %v1052, %v1061
  %1063 = vrot.lane.b32.xlu0 %v1062, 96
  %v1064 = vpop.permute.xlu0 %1063
  %1066 = vst.msk [vmem:[#allocation3] sm:$0x3] %vm143, %v1064
  %v1067 = vld [vmem:[#allocation2] sm:$0x3]
  %v1068 = vld [vmem:[#allocation2 + $0x2] sm:$0x3]
  %v1069 = vld [vmem:[#allocation2 + $0x4] sm:$0x3]
  %v1070 = vld [vmem:[#allocation2 + $0x6] sm:$0x3]
  %v1071 = vld [vmem:[#allocation2 + $0x8] sm:$0x3]
  %v1072 = vld [vmem:[#allocation2 + $0xa] sm:$0x3]
  %v1073 = vld [vmem:[#allocation2 + $0xc] sm:$0x3]
  %v1074 = vld [vmem:[#allocation2 + $0xe] sm:$0x3]
  %v1075 = vld [vmem:[#allocation3] sm:$0x3]
  %v1076 = vld [vmem:[#allocation3 + $0x2] sm:$0x3]
  %v1077 = vld [vmem:[#allocation3 + $0x4] sm:$0x3]
  %v1078 = vld [vmem:[#allocation3 + $0x6] sm:$0x3]
  %v1079 = vld [vmem:[#allocation3 + $0x8] sm:$0x3]
  %v1080 = vld [vmem:[#allocation3 + $0xa] sm:$0x3]
  %v1081 = vld [vmem:[#allocation3 + $0xc] sm:$0x3]
  %v1082 = vld [vmem:[#allocation3 + $0xe] sm:$0x3]
  %1091 = vrot.lane.b32.xlu0 %v1075, 32
  %v1092 = vpop.permute.xlu0 %1091
  %1093 = vrot.lane.b32.xlu0 %v1076, 32
  %v1094 = vpop.permute.xlu0 %1093
  %1095 = vrot.lane.b32.xlu0 %v1077, 32
  %v1096 = vpop.permute.xlu0 %1095
  %1097 = vrot.lane.b32.xlu0 %v1078, 32
  %v1098 = vpop.permute.xlu0 %1097
  %1099 = vrot.lane.b32.xlu0 %v1079, 32
  %v1100 = vpop.permute.xlu0 %1099
  %1101 = vrot.lane.b32.xlu0 %v1080, 32
  %v1102 = vpop.permute.xlu0 %1101
  %1103 = vrot.lane.b32.xlu0 %v1081, 32
  %v1104 = vpop.permute.xlu0 %1103
  %1105 = vrot.lane.b32.xlu0 %v1082, 32
  %v1106 = vpop.permute.xlu0 %1105
  %vm1115 = vcmask 261120
  %v1116 = vsel %vm1115, %v1067, %v1092
  %v1117 = vsel %vm1115, %v1068, %v1094
  %v1118 = vsel %vm1115, %v1069, %v1096
  %v1119 = vsel %vm1115, %v1070, %v1098
  %v1120 = vsel %vm1115, %v1071, %v1100
  %v1121 = vsel %vm1115, %v1072, %v1102
  %v1122 = vsel %vm1115, %v1073, %v1104
  %v1123 = vsel %vm1115, %v1074, %v1106
  %vm1124 = vcmask 517120
  %1125 = vst.msk [vmem:[%s2] sm:$0x3] %vm1124, %v1116
  %1126 = vst.msk [vmem:[%s2 + $0x2] sm:$0x3] %vm1124, %v1117
  %1127 = vst.msk [vmem:[%s2 + $0x4] sm:$0x3] %vm1124, %v1118
  %1128 = vst.msk [vmem:[%s2 + $0x6] sm:$0x3] %vm1124, %v1119
  %1129 = vst.msk [vmem:[%s2 + $0x8] sm:$0x3] %vm1124, %v1120
  %1130 = vst.msk [vmem:[%s2 + $0xa] sm:$0x3] %vm1124, %v1121
  %1131 = vst.msk [vmem:[%s2 + $0xc] sm:$0x3] %vm1124, %v1122
  %1132 = vst.msk [vmem:[%s2 + $0xe] sm:$0x3] %vm1124, %v1123
  // Predicated region
  $region10: #{bilstm_transformer_forward.3} parent=0 // pred_check
    _
  $region11: #{bilstm_transformer_forward.3} parent=0 // pred_check_branch
    %1134 = sbr.rel (0) target = $region13
  $region12: #{bilstm_transformer_forward.3} parent=0 // pred_region
    _
  $region13: #{bilstm_transformer_forward.3} parent=0 // pred_fallthru
    _
  // Predicated region
  $region14: #{bilstm_transformer_forward.3} parent=0 // pred_check
    _
  $region15: #{bilstm_transformer_forward.3} parent=0 // pred_check_branch
    %1136 = sbr.rel (0) target = $region17
  $region16: #{bilstm_transformer_forward.3} parent=0 // pred_region
    _
  $region17: #{bilstm_transformer_forward.3} parent=0 // pred_fallthru
    _

// kernel: bilstm_transformer_forward.5
$region0: #{bilstm_transformer_forward.5}
  #allocation0 [shape = 'u32[]', space=smem, size = 0x4, offset = 0x4, fixed_abs, tag = 'smem constant byte address 0x4 - core index']
  #allocation1 [shape = 'u32[144,128]{1,0:T(1,128)}', space=vmem, size = 0x12000, scoped, tag = 'internal scratch']
  %s0 = inlined_call_operand.vmem [shape: f32[2,8,64], index: 0, kind: input, shape index: {}]
  %s1 = inlined_call_operand.vmem [shape: f32[1,64], index: 1, kind: input, shape index: {}]
  %s2 = inlined_call_operand.vmem [shape: f32[1,64], index: 2, kind: input, shape index: {}]
  %s3 = inlined_call_operand.vmem [shape: f32[8,64], index: 3, kind: input, shape index: {}]
  %s4 = inlined_call_operand.vmem [shape: f32[2,64,64], index: 4, kind: input, shape index: {}]
  %s5 = inlined_call_operand.vmem [shape: f32[2,64,64], index: 5, kind: input, shape index: {}]
  %s6 = inlined_call_operand.vmem [shape: f32[2,64,64], index: 6, kind: input, shape index: {}]
  %s7 = inlined_call_operand.vmem [shape: f32[2,64,64], index: 7, kind: input, shape index: {}]
  %s8 = inlined_call_operand.vmem [shape: f32[2,1,64], index: 8, kind: input, shape index: {}]
  %s9 = inlined_call_operand.vmem [shape: f32[2,1,64], index: 9, kind: input, shape index: {}]
  %s10 = inlined_call_operand.vmem [shape: f32[2,1,64], index: 10, kind: input, shape index: {}]
  %s11 = inlined_call_operand.vmem [shape: f32[2,64,256], index: 11, kind: input, shape index: {}]
  %s12 = inlined_call_operand.vmem [shape: f32[2,1,256], index: 12, kind: input, shape index: {}]
  %s13 = inlined_call_operand.vmem [shape: f32[2,256,64], index: 13, kind: input, shape index: {}]
  %s14 = inlined_call_operand.vmem [shape: f32[2,1,64], index: 14, kind: input, shape index: {}]
  %s15 = inlined_call_operand.vmem [shape: f32[2,1,64], index: 15, kind: input, shape index: {}]
  %s16 = inlined_call_operand.vmem [shape: f32[2,1,64], index: 16, kind: input, shape index: {}]
  %s17 = inlined_call_operand.hbm [shape: f32[2,8,64], index: 17, kind: output, shape index: {}]
  %s18 = sld [smem:[#allocation0]]
  $region101: #{bilstm_transformer_forward.5} parent=0
    _
  %s20 = ssub.s32 1, %s18
  %s21 = scalar_select 0, %s20, %s18
  $region1: #{bilstm_transformer_forward.5} parent=0
    #allocation2 [shape = 'u8[8192]{0}', space=vmem, size = 0x2000, scoped, tag = 'output window, operand 0']
    #allocation3 [shape = 's32[2]{0}', space=sflag, size = 0x8, scoped, tag = 'scoped memory for bilstm_transformer_forward.5']
    %22 = vsyncpa [#allocation3], 0
    %s23 = scalar_lea.sflag [#allocation3], 1
    %24 = vsyncpa %s23, 0
    loop: start=0, step=1, limit=4
    $region2: #{bilstm_transformer_forward.5} parent=1 // loop_pre_header
      _
    $region3: #{bilstm_transformer_forward.5} parent=1 // loop_header
      %s26 = sphi 0, %s30
      %p27 = scmp.ge.s32.totalorder %s26, 4
      %s36 = sphi 0, %s38
      %s39 = sphi 0, %s36
      %s40 = sphi 0, %s39
      %s56 = sphi 0, %s40
      %s60 = sphi 0, %s60
      %s62 = sphi 0, %s60
      %s63 = sphi 0, %s62
      %s77 = sphi 0, %s63
      %s81 = sphi 0, %s81
      %s83 = sphi 0, %s81
      %s84 = sphi 0, %s83
      %s98 = sphi 0, %s84
      %s102 = sphi 0, %s102
      %s104 = sphi 0, %s102
      %s105 = sphi 0, %s104
      %s119 = sphi 0, %s105
      %s123 = sphi 0, %s123
      %s125 = sphi 0, %s123
      %s126 = sphi 0, %s125
      %s140 = sphi 0, %s126
      %s144 = sphi 0, %s144
      %s146 = sphi 0, %s144
      %s147 = sphi 0, %s146
      %s161 = sphi 0, %s147
      %s165 = sphi 0, %s165
      %s167 = sphi 0, %s165
      %s168 = sphi 0, %s167
      %s182 = sphi 0, %s168
      %s186 = sphi 0, %s186
      %s188 = sphi 0, %s186
      %s189 = sphi 0, %s188
      %s203 = sphi 0, %s189
      %s207 = sphi 0, %s207
      %s209 = sphi 0, %s207
      %s210 = sphi 0, %s209
      %s224 = sphi 0, %s210
      %s228 = sphi 0, %s228
      %s230 = sphi 0, %s228
      %s231 = sphi 0, %s230
      %s245 = sphi 0, %s231
      %s249 = sphi 0, %s249
      %s251 = sphi 0, %s249
      %s252 = sphi 0, %s251
      %s266 = sphi 0, %s252
      %s270 = sphi 0, %s270
      %s272 = sphi 0, %s270
      %s273 = sphi 0, %s272
      %s287 = sphi 0, %s273
      %s291 = sphi 0, %s291
      %s293 = sphi 0, %s291
      %s294 = sphi 0, %s293
      %s308 = sphi 0, %s294
      %s312 = sphi 0, %s312
      %s314 = sphi 0, %s312
      %s315 = sphi 0, %s314
      %s329 = sphi 0, %s315
      %s333 = sphi 0, %s333
      %s335 = sphi 0, %s333
      %s336 = sphi 0, %s335
      %s350 = sphi 0, %s336
      %s354 = sphi 0, %s354
      %s356 = sphi 0, %s354
      %s357 = sphi 0, %s356
      %s371 = sphi 0, %s357
      %s375 = sphi 0, %s375
      %s377 = sphi 0, %s375
      %s378 = sphi 0, %s377
      %s392 = sphi 0, %s378
      %s398 = sphi 0, %s400
      %s401 = sphi 0, %s398
      %s402 = sphi 0, %s401
      %s418 = sphi 0, %s402
    $region4: #{bilstm_transformer_forward.5} parent=1 // loop_header_branch
      %29 = sbr.rel (%p27) target = $region8
    $region5: #{bilstm_transformer_forward.5} parent=1 // loop_body
      %s31 = ssub.s32 %s26, 1
      %s32 = ssub.s32 %s26, 2
      %s33 = sadd.s32 %s26, 1
      %s34 = ssub.s32 %s26, %s33
      %p35 = scmp.eq.s32.totalorder %s34, 0
      %s37 = sadd.s32 %s36, 1
      %s38 = scalar_select %p35, %s36, %s37
      %p41 = pneg %p35
      %p42 = scmp.eq.s32.totalorder %s26, 1
      %p43 = por %p41, %p42
      %p44 = scmp.ne.s32.totalorder %s36, %s39
      %p45 = scmp.eq.s32.totalorder %s26, 0
      %p46 = por %p44, %p45
      %p47 = scmp.ne.s32.totalorder %s36, %s39
      %p48 = scmp.eq.s32.totalorder %s31, 1
      %p49 = por %p47, %p48
      %p50 = scmp.ne.s32.totalorder %s39, %s40
      %p51 = scmp.eq.s32.totalorder %s31, 0
      %p52 = por %p50, %p51
      %p53 = scmp.ne.s32.totalorder %s39, %s40
      %p54 = scmp.eq.s32.totalorder %s32, 1
      %p55 = por %p53, %p54
      %p57 = scmp.ne.s32.totalorder %s40, %s56
      %p58 = scmp.eq.s32.totalorder %s32, 0
      %p59 = por %p57, %p58
      %s61 = sadd.s32 %s60, 1
      %p64 = scmp.eq.s32.totalorder %s26, 1
      %p65 = scmp.ne.s32.totalorder %s60, %s62
      %p66 = scmp.eq.s32.totalorder %s26, 0
      %p67 = por %p65, %p66
      %p68 = scmp.ne.s32.totalorder %s60, %s62
      %p69 = scmp.eq.s32.totalorder %s31, 1
      %p70 = por %p68, %p69
      %p71 = scmp.ne.s32.totalorder %s62, %s63
      %p72 = scmp.eq.s32.totalorder %s31, 0
      %p73 = por %p71, %p72
      %p74 = scmp.ne.s32.totalorder %s62, %s63
      %p75 = scmp.eq.s32.totalorder %s32, 1
      %p76 = por %p74, %p75
      %p78 = scmp.ne.s32.totalorder %s63, %s77
      %p79 = scmp.eq.s32.totalorder %s32, 0
      %p80 = por %p78, %p79
      %s82 = sadd.s32 %s81, 1
      %p85 = scmp.eq.s32.totalorder %s26, 1
      %p86 = scmp.ne.s32.totalorder %s81, %s83
      %p87 = scmp.eq.s32.totalorder %s26, 0
      %p88 = por %p86, %p87
      %p89 = scmp.ne.s32.totalorder %s81, %s83
      %p90 = scmp.eq.s32.totalorder %s31, 1
      %p91 = por %p89, %p90
      %p92 = scmp.ne.s32.totalorder %s83, %s84
      %p93 = scmp.eq.s32.totalorder %s31, 0
      %p94 = por %p92, %p93
      %p95 = scmp.ne.s32.totalorder %s83, %s84
      %p96 = scmp.eq.s32.totalorder %s32, 1
      %p97 = por %p95, %p96
      %p99 = scmp.ne.s32.totalorder %s84, %s98
      %p100 = scmp.eq.s32.totalorder %s32, 0
      %p101 = por %p99, %p100
      %s103 = sadd.s32 %s102, 1
      %p106 = scmp.eq.s32.totalorder %s26, 1
      %p107 = scmp.ne.s32.totalorder %s102, %s104
      %p108 = scmp.eq.s32.totalorder %s26, 0
      %p109 = por %p107, %p108
      %p110 = scmp.ne.s32.totalorder %s102, %s104
      %p111 = scmp.eq.s32.totalorder %s31, 1
      %p112 = por %p110, %p111
      %p113 = scmp.ne.s32.totalorder %s104, %s105
      %p114 = scmp.eq.s32.totalorder %s31, 0
      %p115 = por %p113, %p114
      %p116 = scmp.ne.s32.totalorder %s104, %s105
      %p117 = scmp.eq.s32.totalorder %s32, 1
      %p118 = por %p116, %p117
      %p120 = scmp.ne.s32.totalorder %s105, %s119
      %p121 = scmp.eq.s32.totalorder %s32, 0
      %p122 = por %p120, %p121
      %s124 = sadd.s32 %s123, 1
      %p127 = scmp.eq.s32.totalorder %s26, 1
      %p128 = scmp.ne.s32.totalorder %s123, %s125
      %p129 = scmp.eq.s32.totalorder %s26, 0
      %p130 = por %p128, %p129
      %p131 = scmp.ne.s32.totalorder %s123, %s125
      %p132 = scmp.eq.s32.totalorder %s31, 1
      %p133 = por %p131, %p132
      %p134 = scmp.ne.s32.totalorder %s125, %s126
      %p135 = scmp.eq.s32.totalorder %s31, 0
      %p136 = por %p134, %p135
      %p137 = scmp.ne.s32.totalorder %s125, %s126
      %p138 = scmp.eq.s32.totalorder %s32, 1
      %p139 = por %p137, %p138
      %p141 = scmp.ne.s32.totalorder %s126, %s140
      %p142 = scmp.eq.s32.totalorder %s32, 0
      %p143 = por %p141, %p142
      %s145 = sadd.s32 %s144, 1
      %p148 = scmp.eq.s32.totalorder %s26, 1
      %p149 = scmp.ne.s32.totalorder %s144, %s146
      %p150 = scmp.eq.s32.totalorder %s26, 0
      %p151 = por %p149, %p150
      %p152 = scmp.ne.s32.totalorder %s144, %s146
      %p153 = scmp.eq.s32.totalorder %s31, 1
      %p154 = por %p152, %p153
      %p155 = scmp.ne.s32.totalorder %s146, %s147
      %p156 = scmp.eq.s32.totalorder %s31, 0
      %p157 = por %p155, %p156
      %p158 = scmp.ne.s32.totalorder %s146, %s147
      %p159 = scmp.eq.s32.totalorder %s32, 1
      %p160 = por %p158, %p159
      %p162 = scmp.ne.s32.totalorder %s147, %s161
      %p163 = scmp.eq.s32.totalorder %s32, 0
      %p164 = por %p162, %p163
      %s166 = sadd.s32 %s165, 1
      %p169 = scmp.eq.s32.totalorder %s26, 1
      %p170 = scmp.ne.s32.totalorder %s165, %s167
      %p171 = scmp.eq.s32.totalorder %s26, 0
      %p172 = por %p170, %p171
      %p173 = scmp.ne.s32.totalorder %s165, %s167
      %p174 = scmp.eq.s32.totalorder %s31, 1
      %p175 = por %p173, %p174
      %p176 = scmp.ne.s32.totalorder %s167, %s168
      %p177 = scmp.eq.s32.totalorder %s31, 0
      %p178 = por %p176, %p177
      %p179 = scmp.ne.s32.totalorder %s167, %s168
      %p180 = scmp.eq.s32.totalorder %s32, 1
      %p181 = por %p179, %p180
      %p183 = scmp.ne.s32.totalorder %s168, %s182
      %p184 = scmp.eq.s32.totalorder %s32, 0
      %p185 = por %p183, %p184
      %s187 = sadd.s32 %s186, 1
      %p190 = scmp.eq.s32.totalorder %s26, 1
      %p191 = scmp.ne.s32.totalorder %s186, %s188
      %p192 = scmp.eq.s32.totalorder %s26, 0
      %p193 = por %p191, %p192
      %p194 = scmp.ne.s32.totalorder %s186, %s188
      %p195 = scmp.eq.s32.totalorder %s31, 1
      %p196 = por %p194, %p195
      %p197 = scmp.ne.s32.totalorder %s188, %s189
      %p198 = scmp.eq.s32.totalorder %s31, 0
      %p199 = por %p197, %p198
      %p200 = scmp.ne.s32.totalorder %s188, %s189
      %p201 = scmp.eq.s32.totalorder %s32, 1
      %p202 = por %p200, %p201
      %p204 = scmp.ne.s32.totalorder %s189, %s203
      %p205 = scmp.eq.s32.totalorder %s32, 0
      %p206 = por %p204, %p205
      %s208 = sadd.s32 %s207, 1
      %p211 = scmp.eq.s32.totalorder %s26, 1
      %p212 = scmp.ne.s32.totalorder %s207, %s209
      %p213 = scmp.eq.s32.totalorder %s26, 0
      %p214 = por %p212, %p213
      %p215 = scmp.ne.s32.totalorder %s207, %s209
      %p216 = scmp.eq.s32.totalorder %s31, 1
      %p217 = por %p215, %p216
      %p218 = scmp.ne.s32.totalorder %s209, %s210
      %p219 = scmp.eq.s32.totalorder %s31, 0
      %p220 = por %p218, %p219
      %p221 = scmp.ne.s32.totalorder %s209, %s210
      %p222 = scmp.eq.s32.totalorder %s32, 1
      %p223 = por %p221, %p222
      %p225 = scmp.ne.s32.totalorder %s210, %s224
      %p226 = scmp.eq.s32.totalorder %s32, 0
      %p227 = por %p225, %p226
      %s229 = sadd.s32 %s228, 1
      %p232 = scmp.eq.s32.totalorder %s26, 1
      %p233 = scmp.ne.s32.totalorder %s228, %s230
      %p234 = scmp.eq.s32.totalorder %s26, 0
      %p235 = por %p233, %p234
      %p236 = scmp.ne.s32.totalorder %s228, %s230
      %p237 = scmp.eq.s32.totalorder %s31, 1
      %p238 = por %p236, %p237
      %p239 = scmp.ne.s32.totalorder %s230, %s231
      %p240 = scmp.eq.s32.totalorder %s31, 0
      %p241 = por %p239, %p240
      %p242 = scmp.ne.s32.totalorder %s230, %s231
      %p243 = scmp.eq.s32.totalorder %s32, 1
      %p244 = por %p242, %p243
      %p246 = scmp.ne.s32.totalorder %s231, %s245
      %p247 = scmp.eq.s32.totalorder %s32, 0
      %p248 = por %p246, %p247
      %s250 = sadd.s32 %s249, 1
      %p253 = scmp.eq.s32.totalorder %s26, 1
      %p254 = scmp.ne.s32.totalorder %s249, %s251
      %p255 = scmp.eq.s32.totalorder %s26, 0
      %p256 = por %p254, %p255
      %p257 = scmp.ne.s32.totalorder %s249, %s251
      %p258 = scmp.eq.s32.totalorder %s31, 1
      %p259 = por %p257, %p258
      %p260 = scmp.ne.s32.totalorder %s251, %s252
      %p261 = scmp.eq.s32.totalorder %s31, 0
      %p262 = por %p260, %p261
      %p263 = scmp.ne.s32.totalorder %s251, %s252
      %p264 = scmp.eq.s32.totalorder %s32, 1
      %p265 = por %p263, %p264
      %p267 = scmp.ne.s32.totalorder %s252, %s266
      %p268 = scmp.eq.s32.totalorder %s32, 0
      %p269 = por %p267, %p268
      %s271 = sadd.s32 %s270, 1
      %p274 = scmp.eq.s32.totalorder %s26, 1
      %p275 = scmp.ne.s32.totalorder %s270, %s272
      %p276 = scmp.eq.s32.totalorder %s26, 0
      %p277 = por %p275, %p276
      %p278 = scmp.ne.s32.totalorder %s270, %s272
      %p279 = scmp.eq.s32.totalorder %s31, 1
      %p280 = por %p278, %p279
      %p281 = scmp.ne.s32.totalorder %s272, %s273
      %p282 = scmp.eq.s32.totalorder %s31, 0
      %p283 = por %p281, %p282
      %p284 = scmp.ne.s32.totalorder %s272, %s273
      %p285 = scmp.eq.s32.totalorder %s32, 1
      %p286 = por %p284, %p285
      %p288 = scmp.ne.s32.totalorder %s273, %s287
      %p289 = scmp.eq.s32.totalorder %s32, 0
      %p290 = por %p288, %p289
      %s292 = sadd.s32 %s291, 1
      %p295 = scmp.eq.s32.totalorder %s26, 1
      %p296 = scmp.ne.s32.totalorder %s291, %s293
      %p297 = scmp.eq.s32.totalorder %s26, 0
      %p298 = por %p296, %p297
      %p299 = scmp.ne.s32.totalorder %s291, %s293
      %p300 = scmp.eq.s32.totalorder %s31, 1
      %p301 = por %p299, %p300
      %p302 = scmp.ne.s32.totalorder %s293, %s294
      %p303 = scmp.eq.s32.totalorder %s31, 0
      %p304 = por %p302, %p303
      %p305 = scmp.ne.s32.totalorder %s293, %s294
      %p306 = scmp.eq.s32.totalorder %s32, 1
      %p307 = por %p305, %p306
      %p309 = scmp.ne.s32.totalorder %s294, %s308
      %p310 = scmp.eq.s32.totalorder %s32, 0
      %p311 = por %p309, %p310
      %s313 = sadd.s32 %s312, 1
      %p316 = scmp.eq.s32.totalorder %s26, 1
      %p317 = scmp.ne.s32.totalorder %s312, %s314
      %p318 = scmp.eq.s32.totalorder %s26, 0
      %p319 = por %p317, %p318
      %p320 = scmp.ne.s32.totalorder %s312, %s314
      %p321 = scmp.eq.s32.totalorder %s31, 1
      %p322 = por %p320, %p321
      %p323 = scmp.ne.s32.totalorder %s314, %s315
      %p324 = scmp.eq.s32.totalorder %s31, 0
      %p325 = por %p323, %p324
      %p326 = scmp.ne.s32.totalorder %s314, %s315
      %p327 = scmp.eq.s32.totalorder %s32, 1
      %p328 = por %p326, %p327
      %p330 = scmp.ne.s32.totalorder %s315, %s329
      %p331 = scmp.eq.s32.totalorder %s32, 0
      %p332 = por %p330, %p331
      %s334 = sadd.s32 %s333, 1
      %p337 = scmp.eq.s32.totalorder %s26, 1
      %p338 = scmp.ne.s32.totalorder %s333, %s335
      %p339 = scmp.eq.s32.totalorder %s26, 0
      %p340 = por %p338, %p339
      %p341 = scmp.ne.s32.totalorder %s333, %s335
      %p342 = scmp.eq.s32.totalorder %s31, 1
      %p343 = por %p341, %p342
      %p344 = scmp.ne.s32.totalorder %s335, %s336
      %p345 = scmp.eq.s32.totalorder %s31, 0
      %p346 = por %p344, %p345
      %p347 = scmp.ne.s32.totalorder %s335, %s336
      %p348 = scmp.eq.s32.totalorder %s32, 1
      %p349 = por %p347, %p348
      %p351 = scmp.ne.s32.totalorder %s336, %s350
      %p352 = scmp.eq.s32.totalorder %s32, 0
      %p353 = por %p351, %p352
      %s355 = sadd.s32 %s354, 1
      %p358 = scmp.eq.s32.totalorder %s26, 1
      %p359 = scmp.ne.s32.totalorder %s354, %s356
      %p360 = scmp.eq.s32.totalorder %s26, 0
      %p361 = por %p359, %p360
      %p362 = scmp.ne.s32.totalorder %s354, %s356
      %p363 = scmp.eq.s32.totalorder %s31, 1
      %p364 = por %p362, %p363
      %p365 = scmp.ne.s32.totalorder %s356, %s357
      %p366 = scmp.eq.s32.totalorder %s31, 0
      %p367 = por %p365, %p366
      %p368 = scmp.ne.s32.totalorder %s356, %s357
      %p369 = scmp.eq.s32.totalorder %s32, 1
      %p370 = por %p368, %p369
      %p372 = scmp.ne.s32.totalorder %s357, %s371
      %p373 = scmp.eq.s32.totalorder %s32, 0
      %p374 = por %p372, %p373
      %s376 = sadd.s32 %s375, 1
      %p379 = scmp.eq.s32.totalorder %s26, 1
      %p380 = scmp.ne.s32.totalorder %s375, %s377
      %p381 = scmp.eq.s32.totalorder %s26, 0
      %p382 = por %p380, %p381
      %p383 = scmp.ne.s32.totalorder %s375, %s377
      %p384 = scmp.eq.s32.totalorder %s31, 1
      %p385 = por %p383, %p384
      %p386 = scmp.ne.s32.totalorder %s377, %s378
      %p387 = scmp.eq.s32.totalorder %s31, 0
      %p388 = por %p386, %p387
      %p389 = scmp.ne.s32.totalorder %s377, %s378
      %p390 = scmp.eq.s32.totalorder %s32, 1
      %p391 = por %p389, %p390
      %p393 = scmp.ne.s32.totalorder %s378, %s392
      %p394 = scmp.eq.s32.totalorder %s32, 0
      %p395 = por %p393, %p394
      %s396 = ssub.s32 %s26, %s33
      %p397 = scmp.eq.s32.totalorder %s396, 0
      %s399 = sadd.s32 %s398, 1
      %s400 = scalar_select %p397, %s398, %s399
      %p403 = pneg %p397
      %p404 = scmp.eq.s32.totalorder %s26, 1
      %p405 = por %p403, %p404
      %p406 = scmp.ne.s32.totalorder %s398, %s401
      %p407 = scmp.eq.s32.totalorder %s26, 0
      %p408 = por %p406, %p407
      %p409 = scmp.ne.s32.totalorder %s398, %s401
      %p410 = scmp.eq.s32.totalorder %s31, 1
      %p411 = por %p409, %p410
      %p412 = scmp.ne.s32.totalorder %s401, %s402
      %p413 = scmp.eq.s32.totalorder %s31, 0
      %p414 = por %p412, %p413
      %p415 = scmp.ne.s32.totalorder %s401, %s402
      %p416 = scmp.eq.s32.totalorder %s32, 1
      %p417 = por %p415, %p416
      %p419 = scmp.ne.s32.totalorder %s402, %s418
      %p420 = scmp.eq.s32.totalorder %s32, 0
      %p421 = por %p419, %p420
      %p422 = scmp.le.s32.totalorder 1, %s26
      %p423 = scmp.lt.s32.totalorder %s26, 3
      %p424 = pnand %p422, %p423
      %p425 = pneg %p424
      // Predicated region
      $region9: #{bilstm_transformer_forward.5} parent=5 // pred_check
        _
      $region10: #{bilstm_transformer_forward.5} parent=5 // pred_check_branch
        %427 = sbr.rel (%p424) target = $region12
      $region11: #{bilstm_transformer_forward.5} parent=5 // pred_region
        %s428 = ssub.s32 %s26, 1
        // Predicated region
        $region13: #{bilstm_transformer_forward.5} parent=11 // pred_check
          %p429 = pneg %p73
        $region14: #{bilstm_transformer_forward.5} parent=11 // pred_check_branch
          %431 = sbr.rel (%p429) target = $region16
        $region15: #{bilstm_transformer_forward.5} parent=11 // pred_region
          _
        $region16: #{bilstm_transformer_forward.5} parent=11 // pred_fallthru
          _
        // Predicated region
        $region17: #{bilstm_transformer_forward.5} parent=11 // pred_check
          %p432 = pneg %p94
        $region18: #{bilstm_transformer_forward.5} parent=11 // pred_check_branch
          %434 = sbr.rel (%p432) target = $region20
        $region19: #{bilstm_transformer_forward.5} parent=11 // pred_region
          _
        $region20: #{bilstm_transformer_forward.5} parent=11 // pred_fallthru
          _
        // Predicated region
        $region21: #{bilstm_transformer_forward.5} parent=11 // pred_check
          %p435 = pneg %p115
        $region22: #{bilstm_transformer_forward.5} parent=11 // pred_check_branch
          %437 = sbr.rel (%p435) target = $region24
        $region23: #{bilstm_transformer_forward.5} parent=11 // pred_region
          _
        $region24: #{bilstm_transformer_forward.5} parent=11 // pred_fallthru
          _
        // Predicated region
        $region25: #{bilstm_transformer_forward.5} parent=11 // pred_check
          %p438 = pneg %p136
        $region26: #{bilstm_transformer_forward.5} parent=11 // pred_check_branch
          %440 = sbr.rel (%p438) target = $region28
        $region27: #{bilstm_transformer_forward.5} parent=11 // pred_region
          _
        $region28: #{bilstm_transformer_forward.5} parent=11 // pred_fallthru
          _
        // Predicated region
        $region29: #{bilstm_transformer_forward.5} parent=11 // pred_check
          %p441 = pneg %p157
        $region30: #{bilstm_transformer_forward.5} parent=11 // pred_check_branch
          %443 = sbr.rel (%p441) target = $region32
        $region31: #{bilstm_transformer_forward.5} parent=11 // pred_region
          _
        $region32: #{bilstm_transformer_forward.5} parent=11 // pred_fallthru
          _
        // Predicated region
        $region33: #{bilstm_transformer_forward.5} parent=11 // pred_check
          %p444 = pneg %p178
        $region34: #{bilstm_transformer_forward.5} parent=11 // pred_check_branch
          %446 = sbr.rel (%p444) target = $region36
        $region35: #{bilstm_transformer_forward.5} parent=11 // pred_region
          _
        $region36: #{bilstm_transformer_forward.5} parent=11 // pred_fallthru
          _
        // Predicated region
        $region37: #{bilstm_transformer_forward.5} parent=11 // pred_check
          %p447 = pneg %p199
        $region38: #{bilstm_transformer_forward.5} parent=11 // pred_check_branch
          %449 = sbr.rel (%p447) target = $region40
        $region39: #{bilstm_transformer_forward.5} parent=11 // pred_region
          _
        $region40: #{bilstm_transformer_forward.5} parent=11 // pred_fallthru
          _
        // Predicated region
        $region41: #{bilstm_transformer_forward.5} parent=11 // pred_check
          %p450 = pneg %p220
        $region42: #{bilstm_transformer_forward.5} parent=11 // pred_check_branch
          %452 = sbr.rel (%p450) target = $region44
        $region43: #{bilstm_transformer_forward.5} parent=11 // pred_region
          _
        $region44: #{bilstm_transformer_forward.5} parent=11 // pred_fallthru
          _
        // Predicated region
        $region45: #{bilstm_transformer_forward.5} parent=11 // pred_check
          %p453 = pneg %p241
        $region46: #{bilstm_transformer_forward.5} parent=11 // pred_check_branch
          %455 = sbr.rel (%p453) target = $region48
        $region47: #{bilstm_transformer_forward.5} parent=11 // pred_region
          _
        $region48: #{bilstm_transformer_forward.5} parent=11 // pred_fallthru
          _
        // Predicated region
        $region49: #{bilstm_transformer_forward.5} parent=11 // pred_check
          %p456 = pneg %p262
        $region50: #{bilstm_transformer_forward.5} parent=11 // pred_check_branch
          %458 = sbr.rel (%p456) target = $region52
        $region51: #{bilstm_transformer_forward.5} parent=11 // pred_region
          _
        $region52: #{bilstm_transformer_forward.5} parent=11 // pred_fallthru
          _
        // Predicated region
        $region53: #{bilstm_transformer_forward.5} parent=11 // pred_check
          %p459 = pneg %p283
        $region54: #{bilstm_transformer_forward.5} parent=11 // pred_check_branch
          %461 = sbr.rel (%p459) target = $region56
        $region55: #{bilstm_transformer_forward.5} parent=11 // pred_region
          _
        $region56: #{bilstm_transformer_forward.5} parent=11 // pred_fallthru
          _
        // Predicated region
        $region57: #{bilstm_transformer_forward.5} parent=11 // pred_check
          %p462 = pneg %p304
        $region58: #{bilstm_transformer_forward.5} parent=11 // pred_check_branch
          %464 = sbr.rel (%p462) target = $region60
        $region59: #{bilstm_transformer_forward.5} parent=11 // pred_region
          _
        $region60: #{bilstm_transformer_forward.5} parent=11 // pred_fallthru
          _
        // Predicated region
        $region61: #{bilstm_transformer_forward.5} parent=11 // pred_check
          %p465 = pneg %p325
        $region62: #{bilstm_transformer_forward.5} parent=11 // pred_check_branch
          %467 = sbr.rel (%p465) target = $region64
        $region63: #{bilstm_transformer_forward.5} parent=11 // pred_region
          _
        $region64: #{bilstm_transformer_forward.5} parent=11 // pred_fallthru
          _
        // Predicated region
        $region65: #{bilstm_transformer_forward.5} parent=11 // pred_check
          %p468 = pneg %p346
        $region66: #{bilstm_transformer_forward.5} parent=11 // pred_check_branch
          %470 = sbr.rel (%p468) target = $region68
        $region67: #{bilstm_transformer_forward.5} parent=11 // pred_region
          _
        $region68: #{bilstm_transformer_forward.5} parent=11 // pred_fallthru
          _
        // Predicated region
        $region69: #{bilstm_transformer_forward.5} parent=11 // pred_check
          %p471 = pneg %p367
        $region70: #{bilstm_transformer_forward.5} parent=11 // pred_check_branch
          %473 = sbr.rel (%p471) target = $region72
        $region71: #{bilstm_transformer_forward.5} parent=11 // pred_region
          _
        $region72: #{bilstm_transformer_forward.5} parent=11 // pred_fallthru
          _
        // Predicated region
        $region73: #{bilstm_transformer_forward.5} parent=11 // pred_check
          %p474 = pneg %p388
        $region74: #{bilstm_transformer_forward.5} parent=11 // pred_check_branch
          %476 = sbr.rel (%p474) target = $region76
        $region75: #{bilstm_transformer_forward.5} parent=11 // pred_region
          _
        $region76: #{bilstm_transformer_forward.5} parent=11 // pred_fallthru
          _
      $region12: #{bilstm_transformer_forward.5} parent=5 // pred_fallthru
        _
      %p477 = scmp.lt.s32.totalorder %s26, 2
      // Predicated region
      $region77: #{bilstm_transformer_forward.5} parent=5 // pred_check
        %p478 = pneg %p477
      $region78: #{bilstm_transformer_forward.5} parent=5 // pred_check_branch
        %480 = sbr.rel (%p478) target = $region80
      $region79: #{bilstm_transformer_forward.5} parent=5 // pred_region
        // Predicated region
        $region81: #{bilstm_transformer_forward.5} parent=79 // pred_check
          %p481 = pneg %p46
        $region82: #{bilstm_transformer_forward.5} parent=79 // pred_check_branch
          %483 = sbr.rel (%p481) target = $region84
        $region83: #{bilstm_transformer_forward.5} parent=79 // pred_region
          %p484 = scmp.lt.s32.totalorder %s26, 1
          %s485 = scalar_select %p484, %s26, 1
          %s486 = smul.addr %s485, 8
          %s487 = scalar_lea.vmem %s0, %s486
        $region84: #{bilstm_transformer_forward.5} parent=79 // pred_fallthru
          _
      $region80: #{bilstm_transformer_forward.5} parent=5 // pred_fallthru
        _
      %p488 = scmp.le.s32.totalorder 1, %s26
      %p489 = scmp.lt.s32.totalorder %s26, 3
      %p490 = pnand %p488, %p489
      %p491 = pneg %p490
      // Predicated region
      $region85: #{bilstm_transformer_forward.5} parent=5 // pred_check
        _
      $region86: #{bilstm_transformer_forward.5} parent=5 // pred_check_branch
        %493 = sbr.rel (%p490) target = $region88
      $region87: #{bilstm_transformer_forward.5} parent=5 // pred_region
        %s494 = ssub.s32 %s26, 1
        %p495 = scmp.lt.s32.totalorder %s31, 1
        %s496 = scalar_select %p495, %s31, 1
        %s497 = smul.addr %s496, 8
        %s498 = scalar_lea.vmem %s0, %s497
        %p499 = pneg %p52
        %p500 = pneg %p49
        %p501 = pneg %p73
        %p502 = pneg %p70
        %p503 = pneg %p94
        %p504 = pneg %p91
        %p505 = pneg %p115
        %p506 = pneg %p112
        %p507 = pneg %p136
        %p508 = pneg %p133
        %p509 = pneg %p157
        %p510 = pneg %p154
        %p511 = pneg %p178
        %p512 = pneg %p175
        %p513 = pneg %p199
        %p514 = pneg %p196
        %p515 = pneg %p220
        %p516 = pneg %p217
        %p517 = pneg %p241
        %p518 = pneg %p238
        %p519 = pneg %p262
        %p520 = pneg %p259
        %p521 = pneg %p283
        %p522 = pneg %p280
        %p523 = pneg %p304
        %p524 = pneg %p301
        %p525 = pneg %p325
        %p526 = pneg %p322
        %p527 = pneg %p346
        %p528 = pneg %p343
        %p529 = pneg %p367
        %p530 = pneg %p364
        %p531 = pneg %p388
        %p532 = pneg %p385
        %p533 = pneg %p414
        %p534 = pneg %p411
        %s535 = sand.u32 %s401, 1
        %s536 = scalar_lea.sflag [#allocation3], %s535
        %s537 = sand.u32 %s401, 1
        %s538 = smul.addr %s537, 8
        %s539 = scalar_lea.vmem [#allocation2], %s538
        %p540 = scmp.lt.s32.totalorder %s31, 1
        %s541 = scalar_select %p540, %s31, 1
        %s542 = smul.addr %s541, 8
        %s543 = scalar_lea.vmem %s0, %s542
        %v544 = vld [vmem:[%s543] sm:$0xff]
        %v545 = vld [vmem:[%s1] sm:$0x1]
        %v547 = vlaneseq
        %v548 = vshrl.u32 %v547, 7
        %v549 = vsub.s32 0, %v548
        %v550 = vrot.slane %v545, %v549
        %v552 = vmul.f32 %v544, %v550
        %v553 = vld [vmem:[%s2] sm:$0x1]
        %v555 = vlaneseq
        %v556 = vshrl.u32 %v555, 7
        %v557 = vsub.s32 0, %v556
        %v558 = vrot.slane %v553, %v557
        %v560 = vadd.f32 %v552, %v558
        %v561 = vld [vmem:[%s3] sm:$0xff]
        %v562 = vadd.f32 %v560, %v561
        %v563 = vld [vmem:[%s4] sm:$0xff]
        %v564 = vld [vmem:[%s4 + $0x8] sm:$0xff]
        %v565 = vld [vmem:[%s4 + $0x10] sm:$0xff]
        %v566 = vld [vmem:[%s4 + $0x18] sm:$0xff]
        %v567 = vld [vmem:[%s4 + $0x20] sm:$0xff]
        %v568 = vld [vmem:[%s4 + $0x28] sm:$0xff]
        %v569 = vld [vmem:[%s4 + $0x30] sm:$0xff]
        %v570 = vld [vmem:[%s4 + $0x38] sm:$0xff]
        %vm571 = vcmask 523264
        %v573 = vsel %vm571, %v562, 0
        %575 = vmatprep.subr.mxu0 0.0
        %576 = vmatpush1.msra.mxu0 0.0
        %577 = vmatprep.subr.mxu0 0.0
        %578 = vmatpush1.msra.mxu0 0.0
        %579 = vmatprep.subr.mxu0 0.0
        %580 = vmatpush1.msra.mxu0 0.0
        %581 = vmatprep.subr.mxu0 0.0
        %582 = vmatpush1.msra.mxu0 0.0
        %583 = vmatprep.subr.mxu0 0.0
        %584 = vmatpush1.msra.mxu0 0.0
        %585 = vmatprep.subr.mxu0 0.0
        %586 = vmatpush1.msra.mxu0 0.0
        %587 = vmatprep.subr.mxu0 0.0
        %588 = vmatpush1.msra.mxu0 0.0
        %589 = vmatprep.subr.mxu0 0.0
        %590 = vmatpush1.msra.mxu0 0.0
        %591 = vmatprep.subr.mxu0 0.0
        %592 = vmatpush1.msra.mxu0 %v570
        %593 = vmatprep.subr.mxu0 0.0
        %594 = vmatpush1.msra.mxu0 %v569
        %595 = vmatprep.subr.mxu0 0.0
        %596 = vmatpush1.msra.mxu0 %v568
        %597 = vmatprep.subr.mxu0 0.0
        %598 = vmatpush1.msra.mxu0 %v567
        %599 = vmatprep.subr.mxu0 0.0
        %600 = vmatpush1.msra.mxu0 %v566
        %601 = vmatprep.subr.mxu0 0.0
        %602 = vmatpush1.msra.mxu0 %v565
        %603 = vmatprep.subr.mxu0 0.0
        %604 = vmatpush1.msra.mxu0 %v564
        %605 = vmatprep.subr.mxu0 0.0
        %606 = vmatpush1.msra.mxu0 %v563
        %607 = vmatprep.subr.mxu0 0.0
        %608 = vmatpush2.msra.mxu0 0.0
        %609 = vmatprep.subr.mxu0 0.0
        %610 = vmatpush2.msra.mxu0 0.0
        %611 = vmatprep.subr.mxu0 0.0
        %612 = vmatpush2.msra.mxu0 0.0
        %613 = vmatprep.subr.mxu0 0.0
        %614 = vmatpush2.msra.mxu0 0.0
        %615 = vmatprep.subr.mxu0 0.0
        %616 = vmatpush2.msra.mxu0 0.0
        %617 = vmatprep.subr.mxu0 0.0
        %618 = vmatpush2.msra.mxu0 0.0
        %619 = vmatprep.subr.mxu0 0.0
        %620 = vmatpush2.msra.mxu0 0.0
        %621 = vmatprep.subr.mxu0 0.0
        %622 = vmatpush2.msra.mxu0 0.0
        %623 = vmatprep.subr.mxu0 0.0
        %624 = vmatpush2.msra.mxu0 0.0
        %625 = vmatprep.subr.mxu0 0.0
        %626 = vmatpush2.msra.mxu0 0.0
        %627 = vmatprep.subr.mxu0 0.0
        %628 = vmatpush2.msra.mxu0 0.0
        %629 = vmatprep.subr.mxu0 0.0
        %630 = vmatpush2.msra.mxu0 0.0
        %631 = vmatprep.subr.mxu0 0.0
        %632 = vmatpush2.msra.mxu0 0.0
        %633 = vmatprep.subr.mxu0 0.0
        %634 = vmatpush2.msra.mxu0 0.0
        %635 = vmatprep.subr.mxu0 0.0
        %636 = vmatpush2.msra.mxu0 0.0
        %637 = vmatprep.subr.mxu0 0.0
        %638 = vmatpush2.msra.mxu0 0.0
        %639 = vmatprep.mubr.f32.mxu0 0.0
        %640 = vmatmul.mubr.f32.gmra.mxu0 %v573
        %v641 = vpop.f32.mrf.mxu0
        %v642 = vadd.f32 0.0, %v641
        %v643 = vpop.f32.mrf.mxu0
        %644 = vdwg.mxu0
        %v645 = vld [vmem:[%s5] sm:$0xff]
        %v646 = vld [vmem:[%s5 + $0x8] sm:$0xff]
        %v647 = vld [vmem:[%s5 + $0x10] sm:$0xff]
        %v648 = vld [vmem:[%s5 + $0x18] sm:$0xff]
        %v649 = vld [vmem:[%s5 + $0x20] sm:$0xff]
        %v650 = vld [vmem:[%s5 + $0x28] sm:$0xff]
        %v651 = vld [vmem:[%s5 + $0x30] sm:$0xff]
        %v652 = vld [vmem:[%s5 + $0x38] sm:$0xff]
        %653 = vmatprep.subr.mxu0 0.0
        %654 = vmatpush1.msra.mxu0 0.0
        %655 = vmatprep.subr.mxu0 0.0
        %656 = vmatpush1.msra.mxu0 0.0
        %657 = vmatprep.subr.mxu0 0.0
        %658 = vmatpush1.msra.mxu0 0.0
        %659 = vmatprep.subr.mxu0 0.0
        %660 = vmatpush1.msra.mxu0 0.0
        %661 = vmatprep.subr.mxu0 0.0
        %662 = vmatpush1.msra.mxu0 0.0
        %663 = vmatprep.subr.mxu0 0.0
        %664 = vmatpush1.msra.mxu0 0.0
        %665 = vmatprep.subr.mxu0 0.0
        %666 = vmatpush1.msra.mxu0 0.0
        %667 = vmatprep.subr.mxu0 0.0
        %668 = vmatpush1.msra.mxu0 0.0
        %669 = vmatprep.subr.mxu0 0.0
        %670 = vmatpush1.msra.mxu0 %v652
        %671 = vmatprep.subr.mxu0 0.0
        %672 = vmatpush1.msra.mxu0 %v651
        %673 = vmatprep.subr.mxu0 0.0
        %674 = vmatpush1.msra.mxu0 %v650
        %675 = vmatprep.subr.mxu0 0.0
        %676 = vmatpush1.msra.mxu0 %v649
        %677 = vmatprep.subr.mxu0 0.0
        %678 = vmatpush1.msra.mxu0 %v648
        %679 = vmatprep.subr.mxu0 0.0
        %680 = vmatpush1.msra.mxu0 %v647
        %681 = vmatprep.subr.mxu0 0.0
        %682 = vmatpush1.msra.mxu0 %v646
        %683 = vmatprep.subr.mxu0 0.0
        %684 = vmatpush1.msra.mxu0 %v645
        %685 = vmatprep.subr.mxu0 0.0
        %686 = vmatpush2.msra.mxu0 0.0
        %687 = vmatprep.subr.mxu0 0.0
        %688 = vmatpush2.msra.mxu0 0.0
        %689 = vmatprep.subr.mxu0 0.0
        %690 = vmatpush2.msra.mxu0 0.0
        %691 = vmatprep.subr.mxu0 0.0
        %692 = vmatpush2.msra.mxu0 0.0
        %693 = vmatprep.subr.mxu0 0.0
        %694 = vmatpush2.msra.mxu0 0.0
        %695 = vmatprep.subr.mxu0 0.0
        %696 = vmatpush2.msra.mxu0 0.0
        %697 = vmatprep.subr.mxu0 0.0
        %698 = vmatpush2.msra.mxu0 0.0
        %699 = vmatprep.subr.mxu0 0.0
        %700 = vmatpush2.msra.mxu0 0.0
        %701 = vmatprep.subr.mxu0 0.0
        %702 = vmatpush2.msra.mxu0 0.0
        %703 = vmatprep.subr.mxu0 0.0
        %704 = vmatpush2.msra.mxu0 0.0
        %705 = vmatprep.subr.mxu0 0.0
        %706 = vmatpush2.msra.mxu0 0.0
        %707 = vmatprep.subr.mxu0 0.0
        %708 = vmatpush2.msra.mxu0 0.0
        %709 = vmatprep.subr.mxu0 0.0
        %710 = vmatpush2.msra.mxu0 0.0
        %711 = vmatprep.subr.mxu0 0.0
        %712 = vmatpush2.msra.mxu0 0.0
        %713 = vmatprep.subr.mxu0 0.0
        %714 = vmatpush2.msra.mxu0 0.0
        %715 = vmatprep.subr.mxu0 0.0
        %716 = vmatpush2.msra.mxu0 0.0
        %717 = vmatprep.mubr.f32.mxu0 0.0
        %718 = vmatmul.mubr.f32.gmra.mxu0 %v573
        %v719 = vpop.f32.mrf.mxu0
        %v720 = vadd.f32 0.0, %v719
        %v721 = vpop.f32.mrf.mxu0
        %722 = vdwg.mxu0
        %v723 = vld [vmem:[%s6] sm:$0xff]
        %v724 = vld [vmem:[%s6 + $0x8] sm:$0xff]
        %v725 = vld [vmem:[%s6 + $0x10] sm:$0xff]
        %v726 = vld [vmem:[%s6 + $0x18] sm:$0xff]
        %v727 = vld [vmem:[%s6 + $0x20] sm:$0xff]
        %v728 = vld [vmem:[%s6 + $0x28] sm:$0xff]
        %v729 = vld [vmem:[%s6 + $0x30] sm:$0xff]
        %v730 = vld [vmem:[%s6 + $0x38] sm:$0xff]
        %731 = vmatprep.subr.mxu0 0.0
        %732 = vmatpush1.msra.mxu0 0.0
        %733 = vmatprep.subr.mxu0 0.0
        %734 = vmatpush1.msra.mxu0 0.0
        %735 = vmatprep.subr.mxu0 0.0
        %736 = vmatpush1.msra.mxu0 0.0
        %737 = vmatprep.subr.mxu0 0.0
        %738 = vmatpush1.msra.mxu0 0.0
        %739 = vmatprep.subr.mxu0 0.0
        %740 = vmatpush1.msra.mxu0 0.0
        %741 = vmatprep.subr.mxu0 0.0
        %742 = vmatpush1.msra.mxu0 0.0
        %743 = vmatprep.subr.mxu0 0.0
        %744 = vmatpush1.msra.mxu0 0.0
        %745 = vmatprep.subr.mxu0 0.0
        %746 = vmatpush1.msra.mxu0 0.0
        %747 = vmatprep.subr.mxu0 0.0
        %748 = vmatpush1.msra.mxu0 %v730
        %749 = vmatprep.subr.mxu0 0.0
        %750 = vmatpush1.msra.mxu0 %v729
        %751 = vmatprep.subr.mxu0 0.0
        %752 = vmatpush1.msra.mxu0 %v728
        %753 = vmatprep.subr.mxu0 0.0
        %754 = vmatpush1.msra.mxu0 %v727
        %755 = vmatprep.subr.mxu0 0.0
        %756 = vmatpush1.msra.mxu0 %v726
        %757 = vmatprep.subr.mxu0 0.0
        %758 = vmatpush1.msra.mxu0 %v725
        %759 = vmatprep.subr.mxu0 0.0
        %760 = vmatpush1.msra.mxu0 %v724
        %761 = vmatprep.subr.mxu0 0.0
        %762 = vmatpush1.msra.mxu0 %v723
        %763 = vmatprep.subr.mxu0 0.0
        %764 = vmatpush2.msra.mxu0 0.0
        %765 = vmatprep.subr.mxu0 0.0
        %766 = vmatpush2.msra.mxu0 0.0
        %767 = vmatprep.subr.mxu0 0.0
        %768 = vmatpush2.msra.mxu0 0.0
        %769 = vmatprep.subr.mxu0 0.0
        %770 = vmatpush2.msra.mxu0 0.0
        %771 = vmatprep.subr.mxu0 0.0
        %772 = vmatpush2.msra.mxu0 0.0
        %773 = vmatprep.subr.mxu0 0.0
        %774 = vmatpush2.msra.mxu0 0.0
        %775 = vmatprep.subr.mxu0 0.0
        %776 = vmatpush2.msra.mxu0 0.0
        %777 = vmatprep.subr.mxu0 0.0
        %778 = vmatpush2.msra.mxu0 0.0
        %779 = vmatprep.subr.mxu0 0.0
        %780 = vmatpush2.msra.mxu0 0.0
        %781 = vmatprep.subr.mxu0 0.0
        %782 = vmatpush2.msra.mxu0 0.0
        %783 = vmatprep.subr.mxu0 0.0
        %784 = vmatpush2.msra.mxu0 0.0
        %785 = vmatprep.subr.mxu0 0.0
        %786 = vmatpush2.msra.mxu0 0.0
        %787 = vmatprep.subr.mxu0 0.0
        %788 = vmatpush2.msra.mxu0 0.0
        %789 = vmatprep.subr.mxu0 0.0
        %790 = vmatpush2.msra.mxu0 0.0
        %791 = vmatprep.subr.mxu0 0.0
        %792 = vmatpush2.msra.mxu0 0.0
        %793 = vmatprep.subr.mxu0 0.0
        %794 = vmatpush2.msra.mxu0 0.0
        %795 = vmatprep.mubr.f32.mxu0 0.0
        %796 = vmatmul.mubr.f32.gmra.mxu0 %v573
        %v797 = vpop.f32.mrf.mxu0
        %v798 = vadd.f32 0.0, %v797
        %v799 = vpop.f32.mrf.mxu0
        %800 = vdwg.mxu0
        %vm801 = vcmask 64512
        %v803 = vsel %vm801, %v642, 0
        %v806 = vsel %vm801, %v720, 0
        %808 = vmatprep.subr.mxu0 0.0
        %809 = vmatpush1.xpose.msra.mxu0 0.0
        %810 = vmatprep.subr.mxu0 0.0
        %811 = vmatpush1.xpose.msra.mxu0 0.0
        %812 = vmatprep.subr.mxu0 0.0
        %813 = vmatpush1.xpose.msra.mxu0 0.0
        %814 = vmatprep.subr.mxu0 0.0
        %815 = vmatpush1.xpose.msra.mxu0 0.0
        %816 = vmatprep.subr.mxu0 0.0
        %817 = vmatpush1.xpose.msra.mxu0 0.0
        %818 = vmatprep.subr.mxu0 0.0
        %819 = vmatpush1.xpose.msra.mxu0 0.0
        %820 = vmatprep.subr.mxu0 0.0
        %821 = vmatpush1.xpose.msra.mxu0 0.0
        %822 = vmatprep.subr.mxu0 0.0
        %823 = vmatpush1.xpose.msra.mxu0 0.0
        %824 = vmatprep.subr.mxu0 0.0
        %825 = vmatpush1.xpose.msra.mxu0 0.0
        %826 = vmatprep.subr.mxu0 0.0
        %827 = vmatpush1.xpose.msra.mxu0 0.0
        %828 = vmatprep.subr.mxu0 0.0
        %829 = vmatpush1.xpose.msra.mxu0 0.0
        %830 = vmatprep.subr.mxu0 0.0
        %831 = vmatpush1.xpose.msra.mxu0 0.0
        %832 = vmatprep.subr.mxu0 0.0
        %833 = vmatpush1.xpose.msra.mxu0 0.0
        %834 = vmatprep.subr.mxu0 0.0
        %835 = vmatpush1.xpose.msra.mxu0 0.0
        %836 = vmatprep.subr.mxu0 0.0
        %837 = vmatpush1.xpose.msra.mxu0 0.0
        %838 = vmatprep.subr.mxu0 0.0
        %839 = vmatpush1.xpose.msra.mxu0 %v806
        %840 = vmatprep.subr.mxu0 0.0
        %841 = vmatpush2.xpose.msra.mxu0 0.0
        %842 = vmatprep.subr.mxu0 0.0
        %843 = vmatpush2.xpose.msra.mxu0 0.0
        %844 = vmatprep.subr.mxu0 0.0
        %845 = vmatpush2.xpose.msra.mxu0 0.0
        %846 = vmatprep.subr.mxu0 0.0
        %847 = vmatpush2.xpose.msra.mxu0 0.0
        %848 = vmatprep.subr.mxu0 0.0
        %849 = vmatpush2.xpose.msra.mxu0 0.0
        %850 = vmatprep.subr.mxu0 0.0
        %851 = vmatpush2.xpose.msra.mxu0 0.0
        %852 = vmatprep.subr.mxu0 0.0
        %853 = vmatpush2.xpose.msra.mxu0 0.0
        %854 = vmatprep.subr.mxu0 0.0
        %855 = vmatpush2.xpose.msra.mxu0 0.0
        %856 = vmatprep.subr.mxu0 0.0
        %857 = vmatpush2.xpose.msra.mxu0 0.0
        %858 = vmatprep.subr.mxu0 0.0
        %859 = vmatpush2.xpose.msra.mxu0 0.0
        %860 = vmatprep.subr.mxu0 0.0
        %861 = vmatpush2.xpose.msra.mxu0 0.0
        %862 = vmatprep.subr.mxu0 0.0
        %863 = vmatpush2.xpose.msra.mxu0 0.0
        %864 = vmatprep.subr.mxu0 0.0
        %865 = vmatpush2.xpose.msra.mxu0 0.0
        %866 = vmatprep.subr.mxu0 0.0
        %867 = vmatpush2.xpose.msra.mxu0 0.0
        %868 = vmatprep.subr.mxu0 0.0
        %869 = vmatpush2.xpose.msra.mxu0 0.0
        %870 = vmatprep.subr.mxu0 0.0
        %871 = vmatpush2.xpose.msra.mxu0 0.0
        %872 = vmatprep.mubr.f32.mxu0 0.0
        %873 = vmatmul.mubr.f32.gmra.mxu0 %v803
        %v874 = vpop.f32.mrf.mxu0
        %v875 = vadd.f32 0.0, %v874
        %v876 = vpop.f32.mrf.mxu0
        %877 = vdwg.mxu0
        %v878 = vsel %vm801, %v875, -inf
        %879 = vmax.xlane.f32.xlu0 %v878
        %v880 = vpop.xlane.xlu0 %879
        %v881 = vsub.f32 %v875, %v880
        %v882 = vmul.f32 %v881, 1.442695
        %v883 = vpow.pop %v882
        %v884 = vsel %vm801, %v883, 0.0
        %885 = vadd.xlane.f32.xlu0 %v884
        %v886 = vpop.xlane.xlu0 %885
        %v887 = vrcp.pop %v886
        %v888 = vmul.f32 %v883, %v887
        %v890 = vsel %vm801, %v888, 0
        %892 = vmatprep.subr.mxu0 0.0
        %893 = vmatpush1.msra.mxu0 0.0
        %894 = vmatprep.subr.mxu0 0.0
        %895 = vmatpush1.msra.mxu0 0.0
        %896 = vmatprep.subr.mxu0 0.0
        %897 = vmatpush1.msra.mxu0 0.0
        %898 = vmatprep.subr.mxu0 0.0
        %899 = vmatpush1.msra.mxu0 0.0
        %900 = vmatprep.subr.mxu0 0.0
        %901 = vmatpush1.msra.mxu0 0.0
        %902 = vmatprep.subr.mxu0 0.0
        %903 = vmatpush1.msra.mxu0 0.0
        %904 = vmatprep.subr.mxu0 0.0
        %905 = vmatpush1.msra.mxu0 0.0
        %906 = vmatprep.subr.mxu0 0.0
        %907 = vmatpush1.msra.mxu0 0.0
        %908 = vmatprep.subr.mxu0 0.0
        %909 = vmatpush1.msra.mxu0 0.0
        %910 = vmatprep.subr.mxu0 0.0
        %911 = vmatpush1.msra.mxu0 0.0
        %912 = vmatprep.subr.mxu0 0.0
        %913 = vmatpush1.msra.mxu0 0.0
        %914 = vmatprep.subr.mxu0 0.0
        %915 = vmatpush1.msra.mxu0 0.0
        %916 = vmatprep.subr.mxu0 0.0
        %917 = vmatpush1.msra.mxu0 0.0
        %918 = vmatprep.subr.mxu0 0.0
        %919 = vmatpush1.msra.mxu0 0.0
        %920 = vmatprep.subr.mxu0 0.0
        %921 = vmatpush1.msra.mxu0 0.0
        %922 = vmatprep.subr.mxu0 0.0
        %923 = vmatpush1.msra.mxu0 %v798
        %924 = vmatprep.subr.mxu0 0.0
        %925 = vmatpush2.msra.mxu0 0.0
        %926 = vmatprep.subr.mxu0 0.0
        %927 = vmatpush2.msra.mxu0 0.0
        %928 = vmatprep.subr.mxu0 0.0
        %929 = vmatpush2.msra.mxu0 0.0
        %930 = vmatprep.subr.mxu0 0.0
        %931 = vmatpush2.msra.mxu0 0.0
        %932 = vmatprep.subr.mxu0 0.0
        %933 = vmatpush2.msra.mxu0 0.0
        %934 = vmatprep.subr.mxu0 0.0
        %935 = vmatpush2.msra.mxu0 0.0
        %936 = vmatprep.subr.mxu0 0.0
        %937 = vmatpush2.msra.mxu0 0.0
        %938 = vmatprep.subr.mxu0 0.0
        %939 = vmatpush2.msra.mxu0 0.0
        %940 = vmatprep.subr.mxu0 0.0
        %941 = vmatpush2.msra.mxu0 0.0
        %942 = vmatprep.subr.mxu0 0.0
        %943 = vmatpush2.msra.mxu0 0.0
        %944 = vmatprep.subr.mxu0 0.0
        %945 = vmatpush2.msra.mxu0 0.0
        %946 = vmatprep.subr.mxu0 0.0
        %947 = vmatpush2.msra.mxu0 0.0
        %948 = vmatprep.subr.mxu0 0.0
        %949 = vmatpush2.msra.mxu0 0.0
        %950 = vmatprep.subr.mxu0 0.0
        %951 = vmatpush2.msra.mxu0 0.0
        %952 = vmatprep.subr.mxu0 0.0
        %953 = vmatpush2.msra.mxu0 0.0
        %954 = vmatprep.subr.mxu0 0.0
        %955 = vmatpush2.msra.mxu0 0.0
        %956 = vmatprep.mubr.f32.mxu0 0.0
        %957 = vmatmul.mubr.f32.gmra.mxu0 %v890
        %v958 = vpop.f32.mrf.mxu0
        %v959 = vadd.f32 0.0, %v958
        %v960 = vpop.f32.mrf.mxu0
        %961 = vdwg.mxu0
        %962 = vrot.lane.b32.xlu0 %v642, 120
        %v963 = vpop.permute.xlu0 %962
        %964 = vrot.lane.b32.xlu0 %v720, 120
        %v965 = vpop.permute.xlu0 %964
        %v966 = vsel %vm801, %v963, 0
        %v968 = vsel %vm801, %v965, 0
        %970 = vmatprep.subr.mxu0 0.0
        %971 = vmatpush1.xpose.msra.mxu0 0.0
        %972 = vmatprep.subr.mxu0 0.0
        %973 = vmatpush1.xpose.msra.mxu0 0.0
        %974 = vmatprep.subr.mxu0 0.0
        %975 = vmatpush1.xpose.msra.mxu0 0.0
        %976 = vmatprep.subr.mxu0 0.0
        %977 = vmatpush1.xpose.msra.mxu0 0.0
        %978 = vmatprep.subr.mxu0 0.0
        %979 = vmatpush1.xpose.msra.mxu0 0.0
        %980 = vmatprep.subr.mxu0 0.0
        %981 = vmatpush1.xpose.msra.mxu0 0.0
        %982 = vmatprep.subr.mxu0 0.0
        %983 = vmatpush1.xpose.msra.mxu0 0.0
        %984 = vmatprep.subr.mxu0 0.0
        %985 = vmatpush1.xpose.msra.mxu0 0.0
        %986 = vmatprep.subr.mxu0 0.0
        %987 = vmatpush1.xpose.msra.mxu0 0.0
        %988 = vmatprep.subr.mxu0 0.0
        %989 = vmatpush1.xpose.msra.mxu0 0.0
        %990 = vmatprep.subr.mxu0 0.0
        %991 = vmatpush1.xpose.msra.mxu0 0.0
        %992 = vmatprep.subr.mxu0 0.0
        %993 = vmatpush1.xpose.msra.mxu0 0.0
        %994 = vmatprep.subr.mxu0 0.0
        %995 = vmatpush1.xpose.msra.mxu0 0.0
        %996 = vmatprep.subr.mxu0 0.0
        %997 = vmatpush1.xpose.msra.mxu0 0.0
        %998 = vmatprep.subr.mxu0 0.0
        %999 = vmatpush1.xpose.msra.mxu0 0.0
        %1000 = vmatprep.subr.mxu0 0.0
        %1001 = vmatpush1.xpose.msra.mxu0 %v968
        %1002 = vmatprep.subr.mxu0 0.0
        %1003 = vmatpush2.xpose.msra.mxu0 0.0
        %1004 = vmatprep.subr.mxu0 0.0
        %1005 = vmatpush2.xpose.msra.mxu0 0.0
        %1006 = vmatprep.subr.mxu0 0.0
        %1007 = vmatpush2.xpose.msra.mxu0 0.0
        %1008 = vmatprep.subr.mxu0 0.0
        %1009 = vmatpush2.xpose.msra.mxu0 0.0
        %1010 = vmatprep.subr.mxu0 0.0
        %1011 = vmatpush2.xpose.msra.mxu0 0.0
        %1012 = vmatprep.subr.mxu0 0.0
        %1013 = vmatpush2.xpose.msra.mxu0 0.0
        %1014 = vmatprep.subr.mxu0 0.0
        %1015 = vmatpush2.xpose.msra.mxu0 0.0
        %1016 = vmatprep.subr.mxu0 0.0
        %1017 = vmatpush2.xpose.msra.mxu0 0.0
        %1018 = vmatprep.subr.mxu0 0.0
        %1019 = vmatpush2.xpose.msra.mxu0 0.0
        %1020 = vmatprep.subr.mxu0 0.0
        %1021 = vmatpush2.xpose.msra.mxu0 0.0
        %1022 = vmatprep.subr.mxu0 0.0
        %1023 = vmatpush2.xpose.msra.mxu0 0.0
        %1024 = vmatprep.subr.mxu0 0.0
        %1025 = vmatpush2.xpose.msra.mxu0 0.0
        %1026 = vmatprep.subr.mxu0 0.0
        %1027 = vmatpush2.xpose.msra.mxu0 0.0
        %1028 = vmatprep.subr.mxu0 0.0
        %1029 = vmatpush2.xpose.msra.mxu0 0.0
        %1030 = vmatprep.subr.mxu0 0.0
        %1031 = vmatpush2.xpose.msra.mxu0 0.0
        %1032 = vmatprep.subr.mxu0 0.0
        %1033 = vmatpush2.xpose.msra.mxu0 0.0
        %1034 = vmatprep.mubr.f32.mxu0 0.0
        %1035 = vmatmul.mubr.f32.gmra.mxu0 %v966
        %v1036 = vpop.f32.mrf.mxu0
        %v1037 = vadd.f32 0.0, %v1036
        %v1038 = vpop.f32.mrf.mxu0
        %1039 = vdwg.mxu0
        %v1040 = vsel %vm801, %v1037, -inf
        %1041 = vmax.xlane.f32.xlu0 %v1040
        %v1042 = vpop.xlane.xlu0 %1041
        %v1043 = vsub.f32 %v1037, %v1042
        %v1044 = vmul.f32 %v1043, 1.442695
        %v1045 = vpow.pop %v1044
        %v1046 = vsel %vm801, %v1045, 0.0
        %1047 = vadd.xlane.f32.xlu0 %v1046
        %v1048 = vpop.xlane.xlu0 %1047
        %v1049 = vrcp.pop %v1048
        %v1050 = vmul.f32 %v1045, %v1049
        %1052 = vrot.lane.b32.xlu0 %v798, 120
        %v1053 = vpop.permute.xlu0 %1052
        %v1056 = vsel %vm801, %v1050, 0
        %1058 = vmatprep.subr.mxu0 0.0
        %1059 = vmatpush1.msra.mxu0 0.0
        %1060 = vmatprep.subr.mxu0 0.0
        %1061 = vmatpush1.msra.mxu0 0.0
        %1062 = vmatprep.subr.mxu0 0.0
        %1063 = vmatpush1.msra.mxu0 0.0
        %1064 = vmatprep.subr.mxu0 0.0
        %1065 = vmatpush1.msra.mxu0 0.0
        %1066 = vmatprep.subr.mxu0 0.0
        %1067 = vmatpush1.msra.mxu0 0.0
        %1068 = vmatprep.subr.mxu0 0.0
        %1069 = vmatpush1.msra.mxu0 0.0
        %1070 = vmatprep.subr.mxu0 0.0
        %1071 = vmatpush1.msra.mxu0 0.0
        %1072 = vmatprep.subr.mxu0 0.0
        %1073 = vmatpush1.msra.mxu0 0.0
        %1074 = vmatprep.subr.mxu0 0.0
        %1075 = vmatpush1.msra.mxu0 0.0
        %1076 = vmatprep.subr.mxu0 0.0
        %1077 = vmatpush1.msra.mxu0 0.0
        %1078 = vmatprep.subr.mxu0 0.0
        %1079 = vmatpush1.msra.mxu0 0.0
        %1080 = vmatprep.subr.mxu0 0.0
        %1081 = vmatpush1.msra.mxu0 0.0
        %1082 = vmatprep.subr.mxu0 0.0
        %1083 = vmatpush1.msra.mxu0 0.0
        %1084 = vmatprep.subr.mxu0 0.0
        %1085 = vmatpush1.msra.mxu0 0.0
        %1086 = vmatprep.subr.mxu0 0.0
        %1087 = vmatpush1.msra.mxu0 0.0
        %1088 = vmatprep.subr.mxu0 0.0
        %1089 = vmatpush1.msra.mxu0 %v1053
        %1090 = vmatprep.subr.mxu0 0.0
        %1091 = vmatpush2.msra.mxu0 0.0
        %1092 = vmatprep.subr.mxu0 0.0
        %1093 = vmatpush2.msra.mxu0 0.0
        %1094 = vmatprep.subr.mxu0 0.0
        %1095 = vmatpush2.msra.mxu0 0.0
        %1096 = vmatprep.subr.mxu0 0.0
        %1097 = vmatpush2.msra.mxu0 0.0
        %1098 = vmatprep.subr.mxu0 0.0
        %1099 = vmatpush2.msra.mxu0 0.0
        %1100 = vmatprep.subr.mxu0 0.0
        %1101 = vmatpush2.msra.mxu0 0.0
        %1102 = vmatprep.subr.mxu0 0.0
        %1103 = vmatpush2.msra.mxu0 0.0
        %1104 = vmatprep.subr.mxu0 0.0
        %1105 = vmatpush2.msra.mxu0 0.0
        %1106 = vmatprep.subr.mxu0 0.0
        %1107 = vmatpush2.msra.mxu0 0.0
        %1108 = vmatprep.subr.mxu0 0.0
        %1109 = vmatpush2.msra.mxu0 0.0
        %1110 = vmatprep.subr.mxu0 0.0
        %1111 = vmatpush2.msra.mxu0 0.0
        %1112 = vmatprep.subr.mxu0 0.0
        %1113 = vmatpush2.msra.mxu0 0.0
        %1114 = vmatprep.subr.mxu0 0.0
        %1115 = vmatpush2.msra.mxu0 0.0
        %1116 = vmatprep.subr.mxu0 0.0
        %1117 = vmatpush2.msra.mxu0 0.0
        %1118 = vmatprep.subr.mxu0 0.0
        %1119 = vmatpush2.msra.mxu0 0.0
        %1120 = vmatprep.subr.mxu0 0.0
        %1121 = vmatpush2.msra.mxu0 0.0
        %1122 = vmatprep.mubr.f32.mxu0 0.0
        %1123 = vmatmul.mubr.f32.gmra.mxu0 %v1056
        %v1124 = vpop.f32.mrf.mxu0
        %v1125 = vadd.f32 0.0, %v1124
        %v1126 = vpop.f32.mrf.mxu0
        %1127 = vdwg.mxu0
        %1128 = vrot.lane.b32.xlu0 %v642, 112
        %v1129 = vpop.permute.xlu0 %1128
        %1130 = vrot.lane.b32.xlu0 %v720, 112
        %v1131 = vpop.permute.xlu0 %1130
        %v1132 = vsel %vm801, %v1129, 0
        %v1134 = vsel %vm801, %v1131, 0
        %1136 = vmatprep.subr.mxu0 0.0
        %1137 = vmatpush1.xpose.msra.mxu0 0.0
        %1138 = vmatprep.subr.mxu0 0.0
        %1139 = vmatpush1.xpose.msra.mxu0 0.0
        %1140 = vmatprep.subr.mxu0 0.0
        %1141 = vmatpush1.xpose.msra.mxu0 0.0
        %1142 = vmatprep.subr.mxu0 0.0
        %1143 = vmatpush1.xpose.msra.mxu0 0.0
        %1144 = vmatprep.subr.mxu0 0.0
        %1145 = vmatpush1.xpose.msra.mxu0 0.0
        %1146 = vmatprep.subr.mxu0 0.0
        %1147 = vmatpush1.xpose.msra.mxu0 0.0
        %1148 = vmatprep.subr.mxu0 0.0
        %1149 = vmatpush1.xpose.msra.mxu0 0.0
        %1150 = vmatprep.subr.mxu0 0.0
        %1151 = vmatpush1.xpose.msra.mxu0 0.0
        %1152 = vmatprep.subr.mxu0 0.0
        %1153 = vmatpush1.xpose.msra.mxu0 0.0
        %1154 = vmatprep.subr.mxu0 0.0
        %1155 = vmatpush1.xpose.msra.mxu0 0.0
        %1156 = vmatprep.subr.mxu0 0.0
        %1157 = vmatpush1.xpose.msra.mxu0 0.0
        %1158 = vmatprep.subr.mxu0 0.0
        %1159 = vmatpush1.xpose.msra.mxu0 0.0
        %1160 = vmatprep.subr.mxu0 0.0
        %1161 = vmatpush1.xpose.msra.mxu0 0.0
        %1162 = vmatprep.subr.mxu0 0.0
        %1163 = vmatpush1.xpose.msra.mxu0 0.0
        %1164 = vmatprep.subr.mxu0 0.0
        %1165 = vmatpush1.xpose.msra.mxu0 0.0
        %1166 = vmatprep.subr.mxu0 0.0
        %1167 = vmatpush1.xpose.msra.mxu0 %v1134
        %1168 = vmatprep.subr.mxu0 0.0
        %1169 = vmatpush2.xpose.msra.mxu0 0.0
        %1170 = vmatprep.subr.mxu0 0.0
        %1171 = vmatpush2.xpose.msra.mxu0 0.0
        %1172 = vmatprep.subr.mxu0 0.0
        %1173 = vmatpush2.xpose.msra.mxu0 0.0
        %1174 = vmatprep.subr.mxu0 0.0
        %1175 = vmatpush2.xpose.msra.mxu0 0.0
        %1176 = vmatprep.subr.mxu0 0.0
        %1177 = vmatpush2.xpose.msra.mxu0 0.0
        %1178 = vmatprep.subr.mxu0 0.0
        %1179 = vmatpush2.xpose.msra.mxu0 0.0
        %1180 = vmatprep.subr.mxu0 0.0
        %1181 = vmatpush2.xpose.msra.mxu0 0.0
        %1182 = vmatprep.subr.mxu0 0.0
        %1183 = vmatpush2.xpose.msra.mxu0 0.0
        %1184 = vmatprep.subr.mxu0 0.0
        %1185 = vmatpush2.xpose.msra.mxu0 0.0
        %1186 = vmatprep.subr.mxu0 0.0
        %1187 = vmatpush2.xpose.msra.mxu0 0.0
        %1188 = vmatprep.subr.mxu0 0.0
        %1189 = vmatpush2.xpose.msra.mxu0 0.0
        %1190 = vmatprep.subr.mxu0 0.0
        %1191 = vmatpush2.xpose.msra.mxu0 0.0
        %1192 = vmatprep.subr.mxu0 0.0
        %1193 = vmatpush2.xpose.msra.mxu0 0.0
        %1194 = vmatprep.subr.mxu0 0.0
        %1195 = vmatpush2.xpose.msra.mxu0 0.0
        %1196 = vmatprep.subr.mxu0 0.0
        %1197 = vmatpush2.xpose.msra.mxu0 0.0
        %1198 = vmatprep.subr.mxu0 0.0
        %1199 = vmatpush2.xpose.msra.mxu0 0.0
        %1200 = vmatprep.mubr.f32.mxu0 0.0
        %1201 = vmatmul.mubr.f32.gmra.mxu0 %v1132
        %v1202 = vpop.f32.mrf.mxu0
        %v1203 = vadd.f32 0.0, %v1202
        %v1204 = vpop.f32.mrf.mxu0
        %1205 = vdwg.mxu0
        %v1206 = vsel %vm801, %v1203, -inf
        %1207 = vmax.xlane.f32.xlu0 %v1206
        %v1208 = vpop.xlane.xlu0 %1207
        %v1209 = vsub.f32 %v1203, %v1208
        %v1210 = vmul.f32 %v1209, 1.442695
        %v1211 = vpow.pop %v1210
        %v1212 = vsel %vm801, %v1211, 0.0
        %1213 = vadd.xlane.f32.xlu0 %v1212
        %v1214 = vpop.xlane.xlu0 %1213
        %v1215 = vrcp.pop %v1214
        %v1216 = vmul.f32 %v1211, %v1215
        %1217 = vrot.lane.b32.xlu0 %v798, 112
        %v1218 = vpop.permute.xlu0 %1217
        %v1221 = vsel %vm801, %v1216, 0
        %1223 = vmatprep.subr.mxu0 0.0
        %1224 = vmatpush1.msra.mxu0 0.0
        %1225 = vmatprep.subr.mxu0 0.0
        %1226 = vmatpush1.msra.mxu0 0.0
        %1227 = vmatprep.subr.mxu0 0.0
        %1228 = vmatpush1.msra.mxu0 0.0
        %1229 = vmatprep.subr.mxu0 0.0
        %1230 = vmatpush1.msra.mxu0 0.0
        %1231 = vmatprep.subr.mxu0 0.0
        %1232 = vmatpush1.msra.mxu0 0.0
        %1233 = vmatprep.subr.mxu0 0.0
        %1234 = vmatpush1.msra.mxu0 0.0
        %1235 = vmatprep.subr.mxu0 0.0
        %1236 = vmatpush1.msra.mxu0 0.0
        %1237 = vmatprep.subr.mxu0 0.0
        %1238 = vmatpush1.msra.mxu0 0.0
        %1239 = vmatprep.subr.mxu0 0.0
        %1240 = vmatpush1.msra.mxu0 0.0
        %1241 = vmatprep.subr.mxu0 0.0
        %1242 = vmatpush1.msra.mxu0 0.0
        %1243 = vmatprep.subr.mxu0 0.0
        %1244 = vmatpush1.msra.mxu0 0.0
        %1245 = vmatprep.subr.mxu0 0.0
        %1246 = vmatpush1.msra.mxu0 0.0
        %1247 = vmatprep.subr.mxu0 0.0
        %1248 = vmatpush1.msra.mxu0 0.0
        %1249 = vmatprep.subr.mxu0 0.0
        %1250 = vmatpush1.msra.mxu0 0.0
        %1251 = vmatprep.subr.mxu0 0.0
        %1252 = vmatpush1.msra.mxu0 0.0
        %1253 = vmatprep.subr.mxu0 0.0
        %1254 = vmatpush1.msra.mxu0 %v1218
        %1255 = vmatprep.subr.mxu0 0.0
        %1256 = vmatpush2.msra.mxu0 0.0
        %1257 = vmatprep.subr.mxu0 0.0
        %1258 = vmatpush2.msra.mxu0 0.0
        %1259 = vmatprep.subr.mxu0 0.0
        %1260 = vmatpush2.msra.mxu0 0.0
        %1261 = vmatprep.subr.mxu0 0.0
        %1262 = vmatpush2.msra.mxu0 0.0
        %1263 = vmatprep.subr.mxu0 0.0
        %1264 = vmatpush2.msra.mxu0 0.0
        %1265 = vmatprep.subr.mxu0 0.0
        %1266 = vmatpush2.msra.mxu0 0.0
        %1267 = vmatprep.subr.mxu0 0.0
        %1268 = vmatpush2.msra.mxu0 0.0
        %1269 = vmatprep.subr.mxu0 0.0
        %1270 = vmatpush2.msra.mxu0 0.0
        %1271 = vmatprep.subr.mxu0 0.0
        %1272 = vmatpush2.msra.mxu0 0.0
        %1273 = vmatprep.subr.mxu0 0.0
        %1274 = vmatpush2.msra.mxu0 0.0
        %1275 = vmatprep.subr.mxu0 0.0
        %1276 = vmatpush2.msra.mxu0 0.0
        %1277 = vmatprep.subr.mxu0 0.0
        %1278 = vmatpush2.msra.mxu0 0.0
        %1279 = vmatprep.subr.mxu0 0.0
        %1280 = vmatpush2.msra.mxu0 0.0
        %1281 = vmatprep.subr.mxu0 0.0
        %1282 = vmatpush2.msra.mxu0 0.0
        %1283 = vmatprep.subr.mxu0 0.0
        %1284 = vmatpush2.msra.mxu0 0.0
        %1285 = vmatprep.subr.mxu0 0.0
        %1286 = vmatpush2.msra.mxu0 0.0
        %1287 = vmatprep.mubr.f32.mxu0 0.0
        %1288 = vmatmul.mubr.f32.gmra.mxu0 %v1221
        %v1289 = vpop.f32.mrf.mxu0
        %v1290 = vadd.f32 0.0, %v1289
        %v1291 = vpop.f32.mrf.mxu0
        %1292 = vdwg.mxu0
        %1293 = vrot.lane.b32.xlu0 %v642, 104
        %v1294 = vpop.permute.xlu0 %1293
        %1295 = vrot.lane.b32.xlu0 %v720, 104
        %v1296 = vpop.permute.xlu0 %1295
        %v1297 = vsel %vm801, %v1294, 0
        %v1299 = vsel %vm801, %v1296, 0
        %1301 = vmatprep.subr.mxu0 0.0
        %1302 = vmatpush1.xpose.msra.mxu0 0.0
        %1303 = vmatprep.subr.mxu0 0.0
        %1304 = vmatpush1.xpose.msra.mxu0 0.0
        %1305 = vmatprep.subr.mxu0 0.0
        %1306 = vmatpush1.xpose.msra.mxu0 0.0
        %1307 = vmatprep.subr.mxu0 0.0
        %1308 = vmatpush1.xpose.msra.mxu0 0.0
        %1309 = vmatprep.subr.mxu0 0.0
        %1310 = vmatpush1.xpose.msra.mxu0 0.0
        %1311 = vmatprep.subr.mxu0 0.0
        %1312 = vmatpush1.xpose.msra.mxu0 0.0
        %1313 = vmatprep.subr.mxu0 0.0
        %1314 = vmatpush1.xpose.msra.mxu0 0.0
        %1315 = vmatprep.subr.mxu0 0.0
        %1316 = vmatpush1.xpose.msra.mxu0 0.0
        %1317 = vmatprep.subr.mxu0 0.0
        %1318 = vmatpush1.xpose.msra.mxu0 0.0
        %1319 = vmatprep.subr.mxu0 0.0
        %1320 = vmatpush1.xpose.msra.mxu0 0.0
        %1321 = vmatprep.subr.mxu0 0.0
        %1322 = vmatpush1.xpose.msra.mxu0 0.0
        %1323 = vmatprep.subr.mxu0 0.0
        %1324 = vmatpush1.xpose.msra.mxu0 0.0
        %1325 = vmatprep.subr.mxu0 0.0
        %1326 = vmatpush1.xpose.msra.mxu0 0.0
        %1327 = vmatprep.subr.mxu0 0.0
        %1328 = vmatpush1.xpose.msra.mxu0 0.0
        %1329 = vmatprep.subr.mxu0 0.0
        %1330 = vmatpush1.xpose.msra.mxu0 0.0
        %1331 = vmatprep.subr.mxu0 0.0
        %1332 = vmatpush1.xpose.msra.mxu0 %v1299
        %1333 = vmatprep.subr.mxu0 0.0
        %1334 = vmatpush2.xpose.msra.mxu0 0.0
        %1335 = vmatprep.subr.mxu0 0.0
        %1336 = vmatpush2.xpose.msra.mxu0 0.0
        %1337 = vmatprep.subr.mxu0 0.0
        %1338 = vmatpush2.xpose.msra.mxu0 0.0
        %1339 = vmatprep.subr.mxu0 0.0
        %1340 = vmatpush2.xpose.msra.mxu0 0.0
        %1341 = vmatprep.subr.mxu0 0.0
        %1342 = vmatpush2.xpose.msra.mxu0 0.0
        %1343 = vmatprep.subr.mxu0 0.0
        %1344 = vmatpush2.xpose.msra.mxu0 0.0
        %1345 = vmatprep.subr.mxu0 0.0
        %1346 = vmatpush2.xpose.msra.mxu0 0.0
        %1347 = vmatprep.subr.mxu0 0.0
        %1348 = vmatpush2.xpose.msra.mxu0 0.0
        %1349 = vmatprep.subr.mxu0 0.0
        %1350 = vmatpush2.xpose.msra.mxu0 0.0
        %1351 = vmatprep.subr.mxu0 0.0
        %1352 = vmatpush2.xpose.msra.mxu0 0.0
        %1353 = vmatprep.subr.mxu0 0.0
        %1354 = vmatpush2.xpose.msra.mxu0 0.0
        %1355 = vmatprep.subr.mxu0 0.0
        %1356 = vmatpush2.xpose.msra.mxu0 0.0
        %1357 = vmatprep.subr.mxu0 0.0
        %1358 = vmatpush2.xpose.msra.mxu0 0.0
        %1359 = vmatprep.subr.mxu0 0.0
        %1360 = vmatpush2.xpose.msra.mxu0 0.0
        %1361 = vmatprep.subr.mxu0 0.0
        %1362 = vmatpush2.xpose.msra.mxu0 0.0
        %1363 = vmatprep.subr.mxu0 0.0
        %1364 = vmatpush2.xpose.msra.mxu0 0.0
        %1365 = vmatprep.mubr.f32.mxu0 0.0
        %1366 = vmatmul.mubr.f32.gmra.mxu0 %v1297
        %v1367 = vpop.f32.mrf.mxu0
        %v1368 = vadd.f32 0.0, %v1367
        %v1369 = vpop.f32.mrf.mxu0
        %1370 = vdwg.mxu0
        %v1371 = vsel %vm801, %v1368, -inf
        %1372 = vmax.xlane.f32.xlu0 %v1371
        %v1373 = vpop.xlane.xlu0 %1372
        %v1374 = vsub.f32 %v1368, %v1373
        %v1375 = vmul.f32 %v1374, 1.442695
        %v1376 = vpow.pop %v1375
        %v1377 = vsel %vm801, %v1376, 0.0
        %1378 = vadd.xlane.f32.xlu0 %v1377
        %v1379 = vpop.xlane.xlu0 %1378
        %v1380 = vrcp.pop %v1379
        %v1381 = vmul.f32 %v1376, %v1380
        %1382 = vrot.lane.b32.xlu0 %v798, 104
        %v1383 = vpop.permute.xlu0 %1382
        %v1386 = vsel %vm801, %v1381, 0
        %1388 = vmatprep.subr.mxu0 0.0
        %1389 = vmatpush1.msra.mxu0 0.0
        %1390 = vmatprep.subr.mxu0 0.0
        %1391 = vmatpush1.msra.mxu0 0.0
        %1392 = vmatprep.subr.mxu0 0.0
        %1393 = vmatpush1.msra.mxu0 0.0
        %1394 = vmatprep.subr.mxu0 0.0
        %1395 = vmatpush1.msra.mxu0 0.0
        %1396 = vmatprep.subr.mxu0 0.0
        %1397 = vmatpush1.msra.mxu0 0.0
        %1398 = vmatprep.subr.mxu0 0.0
        %1399 = vmatpush1.msra.mxu0 0.0
        %1400 = vmatprep.subr.mxu0 0.0
        %1401 = vmatpush1.msra.mxu0 0.0
        %1402 = vmatprep.subr.mxu0 0.0
        %1403 = vmatpush1.msra.mxu0 0.0
        %1404 = vmatprep.subr.mxu0 0.0
        %1405 = vmatpush1.msra.mxu0 0.0
        %1406 = vmatprep.subr.mxu0 0.0
        %1407 = vmatpush1.msra.mxu0 0.0
        %1408 = vmatprep.subr.mxu0 0.0
        %1409 = vmatpush1.msra.mxu0 0.0
        %1410 = vmatprep.subr.mxu0 0.0
        %1411 = vmatpush1.msra.mxu0 0.0
        %1412 = vmatprep.subr.mxu0 0.0
        %1413 = vmatpush1.msra.mxu0 0.0
        %1414 = vmatprep.subr.mxu0 0.0
        %1415 = vmatpush1.msra.mxu0 0.0
        %1416 = vmatprep.subr.mxu0 0.0
        %1417 = vmatpush1.msra.mxu0 0.0
        %1418 = vmatprep.subr.mxu0 0.0
        %1419 = vmatpush1.msra.mxu0 %v1383
        %1420 = vmatprep.subr.mxu0 0.0
        %1421 = vmatpush2.msra.mxu0 0.0
        %1422 = vmatprep.subr.mxu0 0.0
        %1423 = vmatpush2.msra.mxu0 0.0
        %1424 = vmatprep.subr.mxu0 0.0
        %1425 = vmatpush2.msra.mxu0 0.0
        %1426 = vmatprep.subr.mxu0 0.0
        %1427 = vmatpush2.msra.mxu0 0.0
        %1428 = vmatprep.subr.mxu0 0.0
        %1429 = vmatpush2.msra.mxu0 0.0
        %1430 = vmatprep.subr.mxu0 0.0
        %1431 = vmatpush2.msra.mxu0 0.0
        %1432 = vmatprep.subr.mxu0 0.0
        %1433 = vmatpush2.msra.mxu0 0.0
        %1434 = vmatprep.subr.mxu0 0.0
        %1435 = vmatpush2.msra.mxu0 0.0
        %1436 = vmatprep.subr.mxu0 0.0
        %1437 = vmatpush2.msra.mxu0 0.0
        %1438 = vmatprep.subr.mxu0 0.0
        %1439 = vmatpush2.msra.mxu0 0.0
        %1440 = vmatprep.subr.mxu0 0.0
        %1441 = vmatpush2.msra.mxu0 0.0
        %1442 = vmatprep.subr.mxu0 0.0
        %1443 = vmatpush2.msra.mxu0 0.0
        %1444 = vmatprep.subr.mxu0 0.0
        %1445 = vmatpush2.msra.mxu0 0.0
        %1446 = vmatprep.subr.mxu0 0.0
        %1447 = vmatpush2.msra.mxu0 0.0
        %1448 = vmatprep.subr.mxu0 0.0
        %1449 = vmatpush2.msra.mxu0 0.0
        %1450 = vmatprep.subr.mxu0 0.0
        %1451 = vmatpush2.msra.mxu0 0.0
        %1452 = vmatprep.mubr.f32.mxu0 0.0
        %1453 = vmatmul.mubr.f32.gmra.mxu0 %v1386
        %v1454 = vpop.f32.mrf.mxu0
        %v1455 = vadd.f32 0.0, %v1454
        %v1456 = vpop.f32.mrf.mxu0
        %1457 = vdwg.mxu0
        %1458 = vrot.lane.b32.xlu0 %v642, 96
        %v1459 = vpop.permute.xlu0 %1458
        %1460 = vrot.lane.b32.xlu0 %v720, 96
        %v1461 = vpop.permute.xlu0 %1460
        %v1462 = vsel %vm801, %v1459, 0
        %v1464 = vsel %vm801, %v1461, 0
        %1466 = vmatprep.subr.mxu0 0.0
        %1467 = vmatpush1.xpose.msra.mxu0 0.0
        %1468 = vmatprep.subr.mxu0 0.0
        %1469 = vmatpush1.xpose.msra.mxu0 0.0
        %1470 = vmatprep.subr.mxu0 0.0
        %1471 = vmatpush1.xpose.msra.mxu0 0.0
        %1472 = vmatprep.subr.mxu0 0.0
        %1473 = vmatpush1.xpose.msra.mxu0 0.0
        %1474 = vmatprep.subr.mxu0 0.0
        %1475 = vmatpush1.xpose.msra.mxu0 0.0
        %1476 = vmatprep.subr.mxu0 0.0
        %1477 = vmatpush1.xpose.msra.mxu0 0.0
        %1478 = vmatprep.subr.mxu0 0.0
        %1479 = vmatpush1.xpose.msra.mxu0 0.0
        %1480 = vmatprep.subr.mxu0 0.0
        %1481 = vmatpush1.xpose.msra.mxu0 0.0
        %1482 = vmatprep.subr.mxu0 0.0
        %1483 = vmatpush1.xpose.msra.mxu0 0.0
        %1484 = vmatprep.subr.mxu0 0.0
        %1485 = vmatpush1.xpose.msra.mxu0 0.0
        %1486 = vmatprep.subr.mxu0 0.0
        %1487 = vmatpush1.xpose.msra.mxu0 0.0
        %1488 = vmatprep.subr.mxu0 0.0
        %1489 = vmatpush1.xpose.msra.mxu0 0.0
        %1490 = vmatprep.subr.mxu0 0.0
        %1491 = vmatpush1.xpose.msra.mxu0 0.0
        %1492 = vmatprep.subr.mxu0 0.0
        %1493 = vmatpush1.xpose.msra.mxu0 0.0
        %1494 = vmatprep.subr.mxu0 0.0
        %1495 = vmatpush1.xpose.msra.mxu0 0.0
        %1496 = vmatprep.subr.mxu0 0.0
        %1497 = vmatpush1.xpose.msra.mxu0 %v1464
        %1498 = vmatprep.subr.mxu0 0.0
        %1499 = vmatpush2.xpose.msra.mxu0 0.0
        %1500 = vmatprep.subr.mxu0 0.0
        %1501 = vmatpush2.xpose.msra.mxu0 0.0
        %1502 = vmatprep.subr.mxu0 0.0
        %1503 = vmatpush2.xpose.msra.mxu0 0.0
        %1504 = vmatprep.subr.mxu0 0.0
        %1505 = vmatpush2.xpose.msra.mxu0 0.0
        %1506 = vmatprep.subr.mxu0 0.0
        %1507 = vmatpush2.xpose.msra.mxu0 0.0
        %1508 = vmatprep.subr.mxu0 0.0
        %1509 = vmatpush2.xpose.msra.mxu0 0.0
        %1510 = vmatprep.subr.mxu0 0.0
        %1511 = vmatpush2.xpose.msra.mxu0 0.0
        %1512 = vmatprep.subr.mxu0 0.0
        %1513 = vmatpush2.xpose.msra.mxu0 0.0
        %1514 = vmatprep.subr.mxu0 0.0
        %1515 = vmatpush2.xpose.msra.mxu0 0.0
        %1516 = vmatprep.subr.mxu0 0.0
        %1517 = vmatpush2.xpose.msra.mxu0 0.0
        %1518 = vmatprep.subr.mxu0 0.0
        %1519 = vmatpush2.xpose.msra.mxu0 0.0
        %1520 = vmatprep.subr.mxu0 0.0
        %1521 = vmatpush2.xpose.msra.mxu0 0.0
        %1522 = vmatprep.subr.mxu0 0.0
        %1523 = vmatpush2.xpose.msra.mxu0 0.0
        %1524 = vmatprep.subr.mxu0 0.0
        %1525 = vmatpush2.xpose.msra.mxu0 0.0
        %1526 = vmatprep.subr.mxu0 0.0
        %1527 = vmatpush2.xpose.msra.mxu0 0.0
        %1528 = vmatprep.subr.mxu0 0.0
        %1529 = vmatpush2.xpose.msra.mxu0 0.0
        %1530 = vmatprep.mubr.f32.mxu0 0.0
        %1531 = vmatmul.mubr.f32.gmra.mxu0 %v1462
        %v1532 = vpop.f32.mrf.mxu0
        %v1533 = vadd.f32 0.0, %v1532
        %v1534 = vpop.f32.mrf.mxu0
        %1535 = vdwg.mxu0
        %v1536 = vsel %vm801, %v1533, -inf
        %1537 = vmax.xlane.f32.xlu0 %v1536
        %v1538 = vpop.xlane.xlu0 %1537
        %v1539 = vsub.f32 %v1533, %v1538
        %v1540 = vmul.f32 %v1539, 1.442695
        %v1541 = vpow.pop %v1540
        %v1542 = vsel %vm801, %v1541, 0.0
        %1543 = vadd.xlane.f32.xlu0 %v1542
        %v1544 = vpop.xlane.xlu0 %1543
        %v1545 = vrcp.pop %v1544
        %v1546 = vmul.f32 %v1541, %v1545
        %1547 = vrot.lane.b32.xlu0 %v798, 96
        %v1548 = vpop.permute.xlu0 %1547
        %v1551 = vsel %vm801, %v1546, 0
        %1553 = vmatprep.subr.mxu0 0.0
        %1554 = vmatpush1.msra.mxu0 0.0
        %1555 = vmatprep.subr.mxu0 0.0
        %1556 = vmatpush1.msra.mxu0 0.0
        %1557 = vmatprep.subr.mxu0 0.0
        %1558 = vmatpush1.msra.mxu0 0.0
        %1559 = vmatprep.subr.mxu0 0.0
        %1560 = vmatpush1.msra.mxu0 0.0
        %1561 = vmatprep.subr.mxu0 0.0
        %1562 = vmatpush1.msra.mxu0 0.0
        %1563 = vmatprep.subr.mxu0 0.0
        %1564 = vmatpush1.msra.mxu0 0.0
        %1565 = vmatprep.subr.mxu0 0.0
        %1566 = vmatpush1.msra.mxu0 0.0
        %1567 = vmatprep.subr.mxu0 0.0
        %1568 = vmatpush1.msra.mxu0 0.0
        %1569 = vmatprep.subr.mxu0 0.0
        %1570 = vmatpush1.msra.mxu0 0.0
        %1571 = vmatprep.subr.mxu0 0.0
        %1572 = vmatpush1.msra.mxu0 0.0
        %1573 = vmatprep.subr.mxu0 0.0
        %1574 = vmatpush1.msra.mxu0 0.0
        %1575 = vmatprep.subr.mxu0 0.0
        %1576 = vmatpush1.msra.mxu0 0.0
        %1577 = vmatprep.subr.mxu0 0.0
        %1578 = vmatpush1.msra.mxu0 0.0
        %1579 = vmatprep.subr.mxu0 0.0
        %1580 = vmatpush1.msra.mxu0 0.0
        %1581 = vmatprep.subr.mxu0 0.0
        %1582 = vmatpush1.msra.mxu0 0.0
        %1583 = vmatprep.subr.mxu0 0.0
        %1584 = vmatpush1.msra.mxu0 %v1548
        %1585 = vmatprep.subr.mxu0 0.0
        %1586 = vmatpush2.msra.mxu0 0.0
        %1587 = vmatprep.subr.mxu0 0.0
        %1588 = vmatpush2.msra.mxu0 0.0
        %1589 = vmatprep.subr.mxu0 0.0
        %1590 = vmatpush2.msra.mxu0 0.0
        %1591 = vmatprep.subr.mxu0 0.0
        %1592 = vmatpush2.msra.mxu0 0.0
        %1593 = vmatprep.subr.mxu0 0.0
        %1594 = vmatpush2.msra.mxu0 0.0
        %1595 = vmatprep.subr.mxu0 0.0
        %1596 = vmatpush2.msra.mxu0 0.0
        %1597 = vmatprep.subr.mxu0 0.0
        %1598 = vmatpush2.msra.mxu0 0.0
        %1599 = vmatprep.subr.mxu0 0.0
        %1600 = vmatpush2.msra.mxu0 0.0
        %1601 = vmatprep.subr.mxu0 0.0
        %1602 = vmatpush2.msra.mxu0 0.0
        %1603 = vmatprep.subr.mxu0 0.0
        %1604 = vmatpush2.msra.mxu0 0.0
        %1605 = vmatprep.subr.mxu0 0.0
        %1606 = vmatpush2.msra.mxu0 0.0
        %1607 = vmatprep.subr.mxu0 0.0
        %1608 = vmatpush2.msra.mxu0 0.0
        %1609 = vmatprep.subr.mxu0 0.0
        %1610 = vmatpush2.msra.mxu0 0.0
        %1611 = vmatprep.subr.mxu0 0.0
        %1612 = vmatpush2.msra.mxu0 0.0
        %1613 = vmatprep.subr.mxu0 0.0
        %1614 = vmatpush2.msra.mxu0 0.0
        %1615 = vmatprep.subr.mxu0 0.0
        %1616 = vmatpush2.msra.mxu0 0.0
        %1617 = vmatprep.mubr.f32.mxu0 0.0
        %1618 = vmatmul.mubr.f32.gmra.mxu0 %v1551
        %v1619 = vpop.f32.mrf.mxu0
        %v1620 = vadd.f32 0.0, %v1619
        %v1621 = vpop.f32.mrf.mxu0
        %1622 = vdwg.mxu0
        %1623 = vrot.lane.b32.xlu0 %v642, 88
        %v1624 = vpop.permute.xlu0 %1623
        %1625 = vrot.lane.b32.xlu0 %v720, 88
        %v1626 = vpop.permute.xlu0 %1625
        %v1627 = vsel %vm801, %v1624, 0
        %v1629 = vsel %vm801, %v1626, 0
        %1631 = vmatprep.subr.mxu0 0.0
        %1632 = vmatpush1.xpose.msra.mxu0 0.0
        %1633 = vmatprep.subr.mxu0 0.0
        %1634 = vmatpush1.xpose.msra.mxu0 0.0
        %1635 = vmatprep.subr.mxu0 0.0
        %1636 = vmatpush1.xpose.msra.mxu0 0.0
        %1637 = vmatprep.subr.mxu0 0.0
        %1638 = vmatpush1.xpose.msra.mxu0 0.0
        %1639 = vmatprep.subr.mxu0 0.0
        %1640 = vmatpush1.xpose.msra.mxu0 0.0
        %1641 = vmatprep.subr.mxu0 0.0
        %1642 = vmatpush1.xpose.msra.mxu0 0.0
        %1643 = vmatprep.subr.mxu0 0.0
        %1644 = vmatpush1.xpose.msra.mxu0 0.0
        %1645 = vmatprep.subr.mxu0 0.0
        %1646 = vmatpush1.xpose.msra.mxu0 0.0
        %1647 = vmatprep.subr.mxu0 0.0
        %1648 = vmatpush1.xpose.msra.mxu0 0.0
        %1649 = vmatprep.subr.mxu0 0.0
        %1650 = vmatpush1.xpose.msra.mxu0 0.0
        %1651 = vmatprep.subr.mxu0 0.0
        %1652 = vmatpush1.xpose.msra.mxu0 0.0
        %1653 = vmatprep.subr.mxu0 0.0
        %1654 = vmatpush1.xpose.msra.mxu0 0.0
        %1655 = vmatprep.subr.mxu0 0.0
        %1656 = vmatpush1.xpose.msra.mxu0 0.0
        %1657 = vmatprep.subr.mxu0 0.0
        %1658 = vmatpush1.xpose.msra.mxu0 0.0
        %1659 = vmatprep.subr.mxu0 0.0
        %1660 = vmatpush1.xpose.msra.mxu0 0.0
        %1661 = vmatprep.subr.mxu0 0.0
        %1662 = vmatpush1.xpose.msra.mxu0 %v1629
        %1663 = vmatprep.subr.mxu0 0.0
        %1664 = vmatpush2.xpose.msra.mxu0 0.0
        %1665 = vmatprep.subr.mxu0 0.0
        %1666 = vmatpush2.xpose.msra.mxu0 0.0
        %1667 = vmatprep.subr.mxu0 0.0
        %1668 = vmatpush2.xpose.msra.mxu0 0.0
        %1669 = vmatprep.subr.mxu0 0.0
        %1670 = vmatpush2.xpose.msra.mxu0 0.0
        %1671 = vmatprep.subr.mxu0 0.0
        %1672 = vmatpush2.xpose.msra.mxu0 0.0
        %1673 = vmatprep.subr.mxu0 0.0
        %1674 = vmatpush2.xpose.msra.mxu0 0.0
        %1675 = vmatprep.subr.mxu0 0.0
        %1676 = vmatpush2.xpose.msra.mxu0 0.0
        %1677 = vmatprep.subr.mxu0 0.0
        %1678 = vmatpush2.xpose.msra.mxu0 0.0
        %1679 = vmatprep.subr.mxu0 0.0
        %1680 = vmatpush2.xpose.msra.mxu0 0.0
        %1681 = vmatprep.subr.mxu0 0.0
        %1682 = vmatpush2.xpose.msra.mxu0 0.0
        %1683 = vmatprep.subr.mxu0 0.0
        %1684 = vmatpush2.xpose.msra.mxu0 0.0
        %1685 = vmatprep.subr.mxu0 0.0
        %1686 = vmatpush2.xpose.msra.mxu0 0.0
        %1687 = vmatprep.subr.mxu0 0.0
        %1688 = vmatpush2.xpose.msra.mxu0 0.0
        %1689 = vmatprep.subr.mxu0 0.0
        %1690 = vmatpush2.xpose.msra.mxu0 0.0
        %1691 = vmatprep.subr.mxu0 0.0
        %1692 = vmatpush2.xpose.msra.mxu0 0.0
        %1693 = vmatprep.subr.mxu0 0.0
        %1694 = vmatpush2.xpose.msra.mxu0 0.0
        %1695 = vmatprep.mubr.f32.mxu0 0.0
        %1696 = vmatmul.mubr.f32.gmra.mxu0 %v1627
        %v1697 = vpop.f32.mrf.mxu0
        %v1698 = vadd.f32 0.0, %v1697
        %v1699 = vpop.f32.mrf.mxu0
        %1700 = vdwg.mxu0
        %v1701 = vsel %vm801, %v1698, -inf
        %1702 = vmax.xlane.f32.xlu0 %v1701
        %v1703 = vpop.xlane.xlu0 %1702
        %v1704 = vsub.f32 %v1698, %v1703
        %v1705 = vmul.f32 %v1704, 1.442695
        %v1706 = vpow.pop %v1705
        %v1707 = vsel %vm801, %v1706, 0.0
        %1708 = vadd.xlane.f32.xlu0 %v1707
        %v1709 = vpop.xlane.xlu0 %1708
        %v1710 = vrcp.pop %v1709
        %v1711 = vmul.f32 %v1706, %v1710
        %1712 = vrot.lane.b32.xlu0 %v798, 88
        %v1713 = vpop.permute.xlu0 %1712
        %v1716 = vsel %vm801, %v1711, 0
        %1718 = vmatprep.subr.mxu0 0.0
        %1719 = vmatpush1.msra.mxu0 0.0
        %1720 = vmatprep.subr.mxu0 0.0
        %1721 = vmatpush1.msra.mxu0 0.0
        %1722 = vmatprep.subr.mxu0 0.0
        %1723 = vmatpush1.msra.mxu0 0.0
        %1724 = vmatprep.subr.mxu0 0.0
        %1725 = vmatpush1.msra.mxu0 0.0
        %1726 = vmatprep.subr.mxu0 0.0
        %1727 = vmatpush1.msra.mxu0 0.0
        %1728 = vmatprep.subr.mxu0 0.0
        %1729 = vmatpush1.msra.mxu0 0.0
        %1730 = vmatprep.subr.mxu0 0.0
        %1731 = vmatpush1.msra.mxu0 0.0
        %1732 = vmatprep.subr.mxu0 0.0
        %1733 = vmatpush1.msra.mxu0 0.0
        %1734 = vmatprep.subr.mxu0 0.0
        %1735 = vmatpush1.msra.mxu0 0.0
        %1736 = vmatprep.subr.mxu0 0.0
        %1737 = vmatpush1.msra.mxu0 0.0
        %1738 = vmatprep.subr.mxu0 0.0
        %1739 = vmatpush1.msra.mxu0 0.0
        %1740 = vmatprep.subr.mxu0 0.0
        %1741 = vmatpush1.msra.mxu0 0.0
        %1742 = vmatprep.subr.mxu0 0.0
        %1743 = vmatpush1.msra.mxu0 0.0
        %1744 = vmatprep.subr.mxu0 0.0
        %1745 = vmatpush1.msra.mxu0 0.0
        %1746 = vmatprep.subr.mxu0 0.0
        %1747 = vmatpush1.msra.mxu0 0.0
        %1748 = vmatprep.subr.mxu0 0.0
        %1749 = vmatpush1.msra.mxu0 %v1713
        %1750 = vmatprep.subr.mxu0 0.0
        %1751 = vmatpush2.msra.mxu0 0.0
        %1752 = vmatprep.subr.mxu0 0.0
        %1753 = vmatpush2.msra.mxu0 0.0
        %1754 = vmatprep.subr.mxu0 0.0
        %1755 = vmatpush2.msra.mxu0 0.0
        %1756 = vmatprep.subr.mxu0 0.0
        %1757 = vmatpush2.msra.mxu0 0.0
        %1758 = vmatprep.subr.mxu0 0.0
        %1759 = vmatpush2.msra.mxu0 0.0
        %1760 = vmatprep.subr.mxu0 0.0
        %1761 = vmatpush2.msra.mxu0 0.0
        %1762 = vmatprep.subr.mxu0 0.0
        %1763 = vmatpush2.msra.mxu0 0.0
        %1764 = vmatprep.subr.mxu0 0.0
        %1765 = vmatpush2.msra.mxu0 0.0
        %1766 = vmatprep.subr.mxu0 0.0
        %1767 = vmatpush2.msra.mxu0 0.0
        %1768 = vmatprep.subr.mxu0 0.0
        %1769 = vmatpush2.msra.mxu0 0.0
        %1770 = vmatprep.subr.mxu0 0.0
        %1771 = vmatpush2.msra.mxu0 0.0
        %1772 = vmatprep.subr.mxu0 0.0
        %1773 = vmatpush2.msra.mxu0 0.0
        %1774 = vmatprep.subr.mxu0 0.0
        %1775 = vmatpush2.msra.mxu0 0.0
        %1776 = vmatprep.subr.mxu0 0.0
        %1777 = vmatpush2.msra.mxu0 0.0
        %1778 = vmatprep.subr.mxu0 0.0
        %1779 = vmatpush2.msra.mxu0 0.0
        %1780 = vmatprep.subr.mxu0 0.0
        %1781 = vmatpush2.msra.mxu0 0.0
        %1782 = vmatprep.mubr.f32.mxu0 0.0
        %1783 = vmatmul.mubr.f32.gmra.mxu0 %v1716
        %v1784 = vpop.f32.mrf.mxu0
        %v1785 = vadd.f32 0.0, %v1784
        %v1786 = vpop.f32.mrf.mxu0
        %1787 = vdwg.mxu0
        %1788 = vrot.lane.b32.xlu0 %v642, 80
        %v1789 = vpop.permute.xlu0 %1788
        %1790 = vrot.lane.b32.xlu0 %v720, 80
        %v1791 = vpop.permute.xlu0 %1790
        %v1792 = vsel %vm801, %v1789, 0
        %v1794 = vsel %vm801, %v1791, 0
        %1796 = vmatprep.subr.mxu0 0.0
        %1797 = vmatpush1.xpose.msra.mxu0 0.0
        %1798 = vmatprep.subr.mxu0 0.0
        %1799 = vmatpush1.xpose.msra.mxu0 0.0
        %1800 = vmatprep.subr.mxu0 0.0
        %1801 = vmatpush1.xpose.msra.mxu0 0.0
        %1802 = vmatprep.subr.mxu0 0.0
        %1803 = vmatpush1.xpose.msra.mxu0 0.0
        %1804 = vmatprep.subr.mxu0 0.0
        %1805 = vmatpush1.xpose.msra.mxu0 0.0
        %1806 = vmatprep.subr.mxu0 0.0
        %1807 = vmatpush1.xpose.msra.mxu0 0.0
        %1808 = vmatprep.subr.mxu0 0.0
        %1809 = vmatpush1.xpose.msra.mxu0 0.0
        %1810 = vmatprep.subr.mxu0 0.0
        %1811 = vmatpush1.xpose.msra.mxu0 0.0
        %1812 = vmatprep.subr.mxu0 0.0
        %1813 = vmatpush1.xpose.msra.mxu0 0.0
        %1814 = vmatprep.subr.mxu0 0.0
        %1815 = vmatpush1.xpose.msra.mxu0 0.0
        %1816 = vmatprep.subr.mxu0 0.0
        %1817 = vmatpush1.xpose.msra.mxu0 0.0
        %1818 = vmatprep.subr.mxu0 0.0
        %1819 = vmatpush1.xpose.msra.mxu0 0.0
        %1820 = vmatprep.subr.mxu0 0.0
        %1821 = vmatpush1.xpose.msra.mxu0 0.0
        %1822 = vmatprep.subr.mxu0 0.0
        %1823 = vmatpush1.xpose.msra.mxu0 0.0
        %1824 = vmatprep.subr.mxu0 0.0
        %1825 = vmatpush1.xpose.msra.mxu0 0.0
        %1826 = vmatprep.subr.mxu0 0.0
        %1827 = vmatpush1.xpose.msra.mxu0 %v1794
        %1828 = vmatprep.subr.mxu0 0.0
        %1829 = vmatpush2.xpose.msra.mxu0 0.0
        %1830 = vmatprep.subr.mxu0 0.0
        %1831 = vmatpush2.xpose.msra.mxu0 0.0
        %1832 = vmatprep.subr.mxu0 0.0
        %1833 = vmatpush2.xpose.msra.mxu0 0.0
        %1834 = vmatprep.subr.mxu0 0.0
        %1835 = vmatpush2.xpose.msra.mxu0 0.0
        %1836 = vmatprep.subr.mxu0 0.0
        %1837 = vmatpush2.xpose.msra.mxu0 0.0
        %1838 = vmatprep.subr.mxu0 0.0
        %1839 = vmatpush2.xpose.msra.mxu0 0.0
        %1840 = vmatprep.subr.mxu0 0.0
        %1841 = vmatpush2.xpose.msra.mxu0 0.0
        %1842 = vmatprep.subr.mxu0 0.0
        %1843 = vmatpush2.xpose.msra.mxu0 0.0
        %1844 = vmatprep.subr.mxu0 0.0
        %1845 = vmatpush2.xpose.msra.mxu0 0.0
        %1846 = vmatprep.subr.mxu0 0.0
        %1847 = vmatpush2.xpose.msra.mxu0 0.0
        %1848 = vmatprep.subr.mxu0 0.0
        %1849 = vmatpush2.xpose.msra.mxu0 0.0
        %1850 = vmatprep.subr.mxu0 0.0
        %1851 = vmatpush2.xpose.msra.mxu0 0.0
        %1852 = vmatprep.subr.mxu0 0.0
        %1853 = vmatpush2.xpose.msra.mxu0 0.0
        %1854 = vmatprep.subr.mxu0 0.0
        %1855 = vmatpush2.xpose.msra.mxu0 0.0
        %1856 = vmatprep.subr.mxu0 0.0
        %1857 = vmatpush2.xpose.msra.mxu0 0.0
        %1858 = vmatprep.subr.mxu0 0.0
        %1859 = vmatpush2.xpose.msra.mxu0 0.0
        %1860 = vmatprep.mubr.f32.mxu0 0.0
        %1861 = vmatmul.mubr.f32.gmra.mxu0 %v1792
        %v1862 = vpop.f32.mrf.mxu0
        %v1863 = vadd.f32 0.0, %v1862
        %v1864 = vpop.f32.mrf.mxu0
        %1865 = vdwg.mxu0
        %v1866 = vsel %vm801, %v1863, -inf
        %1867 = vmax.xlane.f32.xlu0 %v1866
        %v1868 = vpop.xlane.xlu0 %1867
        %v1869 = vsub.f32 %v1863, %v1868
        %v1870 = vmul.f32 %v1869, 1.442695
        %v1871 = vpow.pop %v1870
        %v1872 = vsel %vm801, %v1871, 0.0
        %1873 = vadd.xlane.f32.xlu0 %v1872
        %v1874 = vpop.xlane.xlu0 %1873
        %v1875 = vrcp.pop %v1874
        %v1876 = vmul.f32 %v1871, %v1875
        %1877 = vrot.lane.b32.xlu0 %v798, 80
        %v1878 = vpop.permute.xlu0 %1877
        %v1881 = vsel %vm801, %v1876, 0
        %1883 = vmatprep.subr.mxu0 0.0
        %1884 = vmatpush1.msra.mxu0 0.0
        %1885 = vmatprep.subr.mxu0 0.0
        %1886 = vmatpush1.msra.mxu0 0.0
        %1887 = vmatprep.subr.mxu0 0.0
        %1888 = vmatpush1.msra.mxu0 0.0
        %1889 = vmatprep.subr.mxu0 0.0
        %1890 = vmatpush1.msra.mxu0 0.0
        %1891 = vmatprep.subr.mxu0 0.0
        %1892 = vmatpush1.msra.mxu0 0.0
        %1893 = vmatprep.subr.mxu0 0.0
        %1894 = vmatpush1.msra.mxu0 0.0
        %1895 = vmatprep.subr.mxu0 0.0
        %1896 = vmatpush1.msra.mxu0 0.0
        %1897 = vmatprep.subr.mxu0 0.0
        %1898 = vmatpush1.msra.mxu0 0.0
        %1899 = vmatprep.subr.mxu0 0.0
        %1900 = vmatpush1.msra.mxu0 0.0
        %1901 = vmatprep.subr.mxu0 0.0
        %1902 = vmatpush1.msra.mxu0 0.0
        %1903 = vmatprep.subr.mxu0 0.0
        %1904 = vmatpush1.msra.mxu0 0.0
        %1905 = vmatprep.subr.mxu0 0.0
        %1906 = vmatpush1.msra.mxu0 0.0
        %1907 = vmatprep.subr.mxu0 0.0
        %1908 = vmatpush1.msra.mxu0 0.0
        %1909 = vmatprep.subr.mxu0 0.0
        %1910 = vmatpush1.msra.mxu0 0.0
        %1911 = vmatprep.subr.mxu0 0.0
        %1912 = vmatpush1.msra.mxu0 0.0
        %1913 = vmatprep.subr.mxu0 0.0
        %1914 = vmatpush1.msra.mxu0 %v1878
        %1915 = vmatprep.subr.mxu0 0.0
        %1916 = vmatpush2.msra.mxu0 0.0
        %1917 = vmatprep.subr.mxu0 0.0
        %1918 = vmatpush2.msra.mxu0 0.0
        %1919 = vmatprep.subr.mxu0 0.0
        %1920 = vmatpush2.msra.mxu0 0.0
        %1921 = vmatprep.subr.mxu0 0.0
        %1922 = vmatpush2.msra.mxu0 0.0
        %1923 = vmatprep.subr.mxu0 0.0
        %1924 = vmatpush2.msra.mxu0 0.0
        %1925 = vmatprep.subr.mxu0 0.0
        %1926 = vmatpush2.msra.mxu0 0.0
        %1927 = vmatprep.subr.mxu0 0.0
        %1928 = vmatpush2.msra.mxu0 0.0
        %1929 = vmatprep.subr.mxu0 0.0
        %1930 = vmatpush2.msra.mxu0 0.0
        %1931 = vmatprep.subr.mxu0 0.0
        %1932 = vmatpush2.msra.mxu0 0.0
        %1933 = vmatprep.subr.mxu0 0.0
        %1934 = vmatpush2.msra.mxu0 0.0
        %1935 = vmatprep.subr.mxu0 0.0
        %1936 = vmatpush2.msra.mxu0 0.0
        %1937 = vmatprep.subr.mxu0 0.0
        %1938 = vmatpush2.msra.mxu0 0.0
        %1939 = vmatprep.subr.mxu0 0.0
        %1940 = vmatpush2.msra.mxu0 0.0
        %1941 = vmatprep.subr.mxu0 0.0
        %1942 = vmatpush2.msra.mxu0 0.0
        %1943 = vmatprep.subr.mxu0 0.0
        %1944 = vmatpush2.msra.mxu0 0.0
        %1945 = vmatprep.subr.mxu0 0.0
        %1946 = vmatpush2.msra.mxu0 0.0
        %1947 = vmatprep.mubr.f32.mxu0 0.0
        %1948 = vmatmul.mubr.f32.gmra.mxu0 %v1881
        %v1949 = vpop.f32.mrf.mxu0
        %v1950 = vadd.f32 0.0, %v1949
        %v1951 = vpop.f32.mrf.mxu0
        %1952 = vdwg.mxu0
        %1953 = vrot.lane.b32.xlu0 %v642, 72
        %v1954 = vpop.permute.xlu0 %1953
        %1955 = vrot.lane.b32.xlu0 %v720, 72
        %v1956 = vpop.permute.xlu0 %1955
        %v1957 = vsel %vm801, %v1954, 0
        %v1959 = vsel %vm801, %v1956, 0
        %1961 = vmatprep.subr.mxu0 0.0
        %1962 = vmatpush1.xpose.msra.mxu0 0.0
        %1963 = vmatprep.subr.mxu0 0.0
        %1964 = vmatpush1.xpose.msra.mxu0 0.0
        %1965 = vmatprep.subr.mxu0 0.0
        %1966 = vmatpush1.xpose.msra.mxu0 0.0
        %1967 = vmatprep.subr.mxu0 0.0
        %1968 = vmatpush1.xpose.msra.mxu0 0.0
        %1969 = vmatprep.subr.mxu0 0.0
        %1970 = vmatpush1.xpose.msra.mxu0 0.0
        %1971 = vmatprep.subr.mxu0 0.0
        %1972 = vmatpush1.xpose.msra.mxu0 0.0
        %1973 = vmatprep.subr.mxu0 0.0
        %1974 = vmatpush1.xpose.msra.mxu0 0.0
        %1975 = vmatprep.subr.mxu0 0.0
        %1976 = vmatpush1.xpose.msra.mxu0 0.0
        %1977 = vmatprep.subr.mxu0 0.0
        %1978 = vmatpush1.xpose.msra.mxu0 0.0
        %1979 = vmatprep.subr.mxu0 0.0
        %1980 = vmatpush1.xpose.msra.mxu0 0.0
        %1981 = vmatprep.subr.mxu0 0.0
        %1982 = vmatpush1.xpose.msra.mxu0 0.0
        %1983 = vmatprep.subr.mxu0 0.0
        %1984 = vmatpush1.xpose.msra.mxu0 0.0
        %1985 = vmatprep.subr.mxu0 0.0
        %1986 = vmatpush1.xpose.msra.mxu0 0.0
        %1987 = vmatprep.subr.mxu0 0.0
        %1988 = vmatpush1.xpose.msra.mxu0 0.0
        %1989 = vmatprep.subr.mxu0 0.0
        %1990 = vmatpush1.xpose.msra.mxu0 0.0
        %1991 = vmatprep.subr.mxu0 0.0
        %1992 = vmatpush1.xpose.msra.mxu0 %v1959
        %1993 = vmatprep.subr.mxu0 0.0
        %1994 = vmatpush2.xpose.msra.mxu0 0.0
        %1995 = vmatprep.subr.mxu0 0.0
        %1996 = vmatpush2.xpose.msra.mxu0 0.0
        %1997 = vmatprep.subr.mxu0 0.0
        %1998 = vmatpush2.xpose.msra.mxu0 0.0
        %1999 = vmatprep.subr.mxu0 0.0
        %2000 = vmatpush2.xpose.msra.mxu0 0.0
        %2001 = vmatprep.subr.mxu0 0.0
        %2002 = vmatpush2.xpose.msra.mxu0 0.0
        %2003 = vmatprep.subr.mxu0 0.0
        %2004 = vmatpush2.xpose.msra.mxu0 0.0
        %2005 = vmatprep.subr.mxu0 0.0
        %2006 = vmatpush2.xpose.msra.mxu0 0.0
        %2007 = vmatprep.subr.mxu0 0.0
        %2008 = vmatpush2.xpose.msra.mxu0 0.0
        %2009 = vmatprep.subr.mxu0 0.0
        %2010 = vmatpush2.xpose.msra.mxu0 0.0
        %2011 = vmatprep.subr.mxu0 0.0
        %2012 = vmatpush2.xpose.msra.mxu0 0.0
        %2013 = vmatprep.subr.mxu0 0.0
        %2014 = vmatpush2.xpose.msra.mxu0 0.0
        %2015 = vmatprep.subr.mxu0 0.0
        %2016 = vmatpush2.xpose.msra.mxu0 0.0
        %2017 = vmatprep.subr.mxu0 0.0
        %2018 = vmatpush2.xpose.msra.mxu0 0.0
        %2019 = vmatprep.subr.mxu0 0.0
        %2020 = vmatpush2.xpose.msra.mxu0 0.0
        %2021 = vmatprep.subr.mxu0 0.0
        %2022 = vmatpush2.xpose.msra.mxu0 0.0
        %2023 = vmatprep.subr.mxu0 0.0
        %2024 = vmatpush2.xpose.msra.mxu0 0.0
        %2025 = vmatprep.mubr.f32.mxu0 0.0
        %2026 = vmatmul.mubr.f32.gmra.mxu0 %v1957
        %v2027 = vpop.f32.mrf.mxu0
        %v2028 = vadd.f32 0.0, %v2027
        %v2029 = vpop.f32.mrf.mxu0
        %2030 = vdwg.mxu0
        %v2031 = vsel %vm801, %v2028, -inf
        %2032 = vmax.xlane.f32.xlu0 %v2031
        %v2033 = vpop.xlane.xlu0 %2032
        %v2034 = vsub.f32 %v2028, %v2033
        %v2035 = vmul.f32 %v2034, 1.442695
        %v2036 = vpow.pop %v2035
        %v2037 = vsel %vm801, %v2036, 0.0
        %2038 = vadd.xlane.f32.xlu0 %v2037
        %v2039 = vpop.xlane.xlu0 %2038
        %v2040 = vrcp.pop %v2039
        %v2041 = vmul.f32 %v2036, %v2040
        %2042 = vrot.lane.b32.xlu0 %v798, 72
        %v2043 = vpop.permute.xlu0 %2042
        %v2046 = vsel %vm801, %v2041, 0
        %2048 = vmatprep.subr.mxu0 0.0
        %2049 = vmatpush1.msra.mxu0 0.0
        %2050 = vmatprep.subr.mxu0 0.0
        %2051 = vmatpush1.msra.mxu0 0.0
        %2052 = vmatprep.subr.mxu0 0.0
        %2053 = vmatpush1.msra.mxu0 0.0
        %2054 = vmatprep.subr.mxu0 0.0
        %2055 = vmatpush1.msra.mxu0 0.0
        %2056 = vmatprep.subr.mxu0 0.0
        %2057 = vmatpush1.msra.mxu0 0.0
        %2058 = vmatprep.subr.mxu0 0.0
        %2059 = vmatpush1.msra.mxu0 0.0
        %2060 = vmatprep.subr.mxu0 0.0
        %2061 = vmatpush1.msra.mxu0 0.0
        %2062 = vmatprep.subr.mxu0 0.0
        %2063 = vmatpush1.msra.mxu0 0.0
        %2064 = vmatprep.subr.mxu0 0.0
        %2065 = vmatpush1.msra.mxu0 0.0
        %2066 = vmatprep.subr.mxu0 0.0
        %2067 = vmatpush1.msra.mxu0 0.0
        %2068 = vmatprep.subr.mxu0 0.0
        %2069 = vmatpush1.msra.mxu0 0.0
        %2070 = vmatprep.subr.mxu0 0.0
        %2071 = vmatpush1.msra.mxu0 0.0
        %2072 = vmatprep.subr.mxu0 0.0
        %2073 = vmatpush1.msra.mxu0 0.0
        %2074 = vmatprep.subr.mxu0 0.0
        %2075 = vmatpush1.msra.mxu0 0.0
        %2076 = vmatprep.subr.mxu0 0.0
        %2077 = vmatpush1.msra.mxu0 0.0
        %2078 = vmatprep.subr.mxu0 0.0
        %2079 = vmatpush1.msra.mxu0 %v2043
        %2080 = vmatprep.subr.mxu0 0.0
        %2081 = vmatpush2.msra.mxu0 0.0
        %2082 = vmatprep.subr.mxu0 0.0
        %2083 = vmatpush2.msra.mxu0 0.0
        %2084 = vmatprep.subr.mxu0 0.0
        %2085 = vmatpush2.msra.mxu0 0.0
        %2086 = vmatprep.subr.mxu0 0.0
        %2087 = vmatpush2.msra.mxu0 0.0
        %2088 = vmatprep.subr.mxu0 0.0
        %2089 = vmatpush2.msra.mxu0 0.0
        %2090 = vmatprep.subr.mxu0 0.0
        %2091 = vmatpush2.msra.mxu0 0.0
        %2092 = vmatprep.subr.mxu0 0.0
        %2093 = vmatpush2.msra.mxu0 0.0
        %2094 = vmatprep.subr.mxu0 0.0
        %2095 = vmatpush2.msra.mxu0 0.0
        %2096 = vmatprep.subr.mxu0 0.0
        %2097 = vmatpush2.msra.mxu0 0.0
        %2098 = vmatprep.subr.mxu0 0.0
        %2099 = vmatpush2.msra.mxu0 0.0
        %2100 = vmatprep.subr.mxu0 0.0
        %2101 = vmatpush2.msra.mxu0 0.0
        %2102 = vmatprep.subr.mxu0 0.0
        %2103 = vmatpush2.msra.mxu0 0.0
        %2104 = vmatprep.subr.mxu0 0.0
        %2105 = vmatpush2.msra.mxu0 0.0
        %2106 = vmatprep.subr.mxu0 0.0
        %2107 = vmatpush2.msra.mxu0 0.0
        %2108 = vmatprep.subr.mxu0 0.0
        %2109 = vmatpush2.msra.mxu0 0.0
        %2110 = vmatprep.subr.mxu0 0.0
        %2111 = vmatpush2.msra.mxu0 0.0
        %2112 = vmatprep.mubr.f32.mxu0 0.0
        %2113 = vmatmul.mubr.f32.gmra.mxu0 %v2046
        %v2114 = vpop.f32.mrf.mxu0
        %v2115 = vadd.f32 0.0, %v2114
        %v2116 = vpop.f32.mrf.mxu0
        %2117 = vdwg.mxu0
        %2119 = vrot.lane.b32.xlu0 %v1125, 8
        %v2120 = vpop.permute.xlu0 %2119
        %2123 = vrot.lane.b32.xlu0 %v1290, 16
        %v2124 = vpop.permute.xlu0 %2123
        %2127 = vrot.lane.b32.xlu0 %v1455, 24
        %v2128 = vpop.permute.xlu0 %2127
        %2131 = vrot.lane.b32.xlu0 %v1620, 32
        %v2132 = vpop.permute.xlu0 %2131
        %2135 = vrot.lane.b32.xlu0 %v1785, 40
        %v2136 = vpop.permute.xlu0 %2135
        %2139 = vrot.lane.b32.xlu0 %v1950, 48
        %v2140 = vpop.permute.xlu0 %2139
        %2143 = vrot.lane.b32.xlu0 %v2115, 56
        %v2144 = vpop.permute.xlu0 %2143
        %v2146 = vsel %vm801, %v959, %v2120
        %vm2147 = vcmask 130048
        %v2148 = vsel %vm2147, %v2146, %v2124
        %vm2149 = vcmask 195584
        %v2150 = vsel %vm2149, %v2148, %v2128
        %vm2151 = vcmask 261120
        %v2152 = vsel %vm2151, %v2150, %v2132
        %vm2153 = vcmask 326656
        %v2154 = vsel %vm2153, %v2152, %v2136
        %vm2155 = vcmask 392192
        %v2156 = vsel %vm2155, %v2154, %v2140
        %vm2157 = vcmask 457728
        %v2158 = vsel %vm2157, %v2156, %v2144
        %v2159 = vld [vmem:[%s7] sm:$0xff]
        %v2160 = vld [vmem:[%s7 + $0x8] sm:$0xff]
        %v2161 = vld [vmem:[%s7 + $0x10] sm:$0xff]
        %v2162 = vld [vmem:[%s7 + $0x18] sm:$0xff]
        %v2163 = vld [vmem:[%s7 + $0x20] sm:$0xff]
        %v2164 = vld [vmem:[%s7 + $0x28] sm:$0xff]
        %v2165 = vld [vmem:[%s7 + $0x30] sm:$0xff]
        %v2166 = vld [vmem:[%s7 + $0x38] sm:$0xff]
        %v2167 = vld [vmem:[%s8] sm:$0x1]
        %v2169 = vlaneseq
        %v2170 = vshrl.u32 %v2169, 7
        %v2171 = vsub.s32 0, %v2170
        %v2172 = vrot.slane %v2167, %v2171
        %v2175 = vsel %vm571, %v2158, 0
        %2177 = vmatprep.subr.mxu0 0.0
        %2178 = vmatpush1.msra.mxu0 0.0
        %2179 = vmatprep.subr.mxu0 0.0
        %2180 = vmatpush1.msra.mxu0 0.0
        %2181 = vmatprep.subr.mxu0 0.0
        %2182 = vmatpush1.msra.mxu0 0.0
        %2183 = vmatprep.subr.mxu0 0.0
        %2184 = vmatpush1.msra.mxu0 0.0
        %2185 = vmatprep.subr.mxu0 0.0
        %2186 = vmatpush1.msra.mxu0 0.0
        %2187 = vmatprep.subr.mxu0 0.0
        %2188 = vmatpush1.msra.mxu0 0.0
        %2189 = vmatprep.subr.mxu0 0.0
        %2190 = vmatpush1.msra.mxu0 0.0
        %2191 = vmatprep.subr.mxu0 0.0
        %2192 = vmatpush1.msra.mxu0 0.0
        %2193 = vmatprep.subr.mxu0 0.0
        %2194 = vmatpush1.msra.mxu0 %v2166
        %2195 = vmatprep.subr.mxu0 0.0
        %2196 = vmatpush1.msra.mxu0 %v2165
        %2197 = vmatprep.subr.mxu0 0.0
        %2198 = vmatpush1.msra.mxu0 %v2164
        %2199 = vmatprep.subr.mxu0 0.0
        %2200 = vmatpush1.msra.mxu0 %v2163
        %2201 = vmatprep.subr.mxu0 0.0
        %2202 = vmatpush1.msra.mxu0 %v2162
        %2203 = vmatprep.subr.mxu0 0.0
        %2204 = vmatpush1.msra.mxu0 %v2161
        %2205 = vmatprep.subr.mxu0 0.0
        %2206 = vmatpush1.msra.mxu0 %v2160
        %2207 = vmatprep.subr.mxu0 0.0
        %2208 = vmatpush1.msra.mxu0 %v2159
        %2209 = vmatprep.subr.mxu0 0.0
        %2210 = vmatpush2.msra.mxu0 0.0
        %2211 = vmatprep.subr.mxu0 0.0
        %2212 = vmatpush2.msra.mxu0 0.0
        %2213 = vmatprep.subr.mxu0 0.0
        %2214 = vmatpush2.msra.mxu0 0.0
        %2215 = vmatprep.subr.mxu0 0.0
        %2216 = vmatpush2.msra.mxu0 0.0
        %2217 = vmatprep.subr.mxu0 0.0
        %2218 = vmatpush2.msra.mxu0 0.0
        %2219 = vmatprep.subr.mxu0 0.0
        %2220 = vmatpush2.msra.mxu0 0.0
        %2221 = vmatprep.subr.mxu0 0.0
        %2222 = vmatpush2.msra.mxu0 0.0
        %2223 = vmatprep.subr.mxu0 0.0
        %2224 = vmatpush2.msra.mxu0 0.0
        %2225 = vmatprep.subr.mxu0 0.0
        %2226 = vmatpush2.msra.mxu0 0.0
        %2227 = vmatprep.subr.mxu0 0.0
        %2228 = vmatpush2.msra.mxu0 0.0
        %2229 = vmatprep.subr.mxu0 0.0
        %2230 = vmatpush2.msra.mxu0 0.0
        %2231 = vmatprep.subr.mxu0 0.0
        %2232 = vmatpush2.msra.mxu0 0.0
        %2233 = vmatprep.subr.mxu0 0.0
        %2234 = vmatpush2.msra.mxu0 0.0
        %2235 = vmatprep.subr.mxu0 0.0
        %2236 = vmatpush2.msra.mxu0 0.0
        %2237 = vmatprep.subr.mxu0 0.0
        %2238 = vmatpush2.msra.mxu0 0.0
        %2239 = vmatprep.subr.mxu0 0.0
        %2240 = vmatpush2.msra.mxu0 0.0
        %2241 = vmatprep.mubr.f32.mxu0 0.0
        %2242 = vmatmul.mubr.f32.gmra.mxu0 %v2175
        %v2243 = vpop.f32.mrf.mxu0
        %v2244 = vadd.f32 %v2172, %v2243
        %v2245 = vpop.f32.mrf.mxu0
        %2246 = vdwg.mxu0
        %v2247 = vadd.f32 %v2244, %v562
        %v2248 = vld [vmem:[%s9] sm:$0x1]
        %v2249 = vld [vmem:[%s10] sm:$0x1]
        %v2250 = vsel %vm571, %v2247, 0.0
        %2251 = vadd.xlane.f32.xlu0 %v2250
        %v2252 = vpop.xlane.xlu0 %2251
        %v2253 = vrcp.pop 64.0
        %v2254 = vmul.f32 %v2252, %v2253
        %v2255 = vsub.f32 %v2247, %v2254
        %v2256 = vmul.f32 %v2255, %v2255
        %v2257 = vsel %vm571, %v2256, 0.0
        %2258 = vadd.xlane.f32.xlu0 %v2257
        %v2259 = vpop.xlane.xlu0 %2258
        %v2260 = vmul.f32 %v2259, %v2253
        %v2261 = vadd.f32 %v2260, 1e-05
        %v2262 = vrsqrt.pop %v2261
        %v2263 = vmul.f32 %v2255, %v2262
        %v2265 = vlaneseq
        %v2266 = vshrl.u32 %v2265, 7
        %v2267 = vsub.s32 0, %v2266
        %v2268 = vrot.slane %v2248, %v2267
        %v2270 = vmul.f32 %v2263, %v2268
        %v2272 = vlaneseq
        %v2273 = vshrl.u32 %v2272, 7
        %v2274 = vsub.s32 0, %v2273
        %v2275 = vrot.slane %v2249, %v2274
        %v2277 = vadd.f32 %v2270, %v2275
        %v2278 = vld [vmem:[%s11] sm:$0xff]
        %v2279 = vld [vmem:[%s11 + $0x8] sm:$0xff]
        %v2280 = vld [vmem:[%s11 + $0x10] sm:$0xff]
        %v2281 = vld [vmem:[%s11 + $0x18] sm:$0xff]
        %v2282 = vld [vmem:[%s11 + $0x20] sm:$0xff]
        %v2283 = vld [vmem:[%s11 + $0x28] sm:$0xff]
        %v2284 = vld [vmem:[%s11 + $0x30] sm:$0xff]
        %v2285 = vld [vmem:[%s11 + $0x38] sm:$0xff]
        %v2286 = vld [vmem:[%s11 + $0x40] sm:$0xff]
        %v2287 = vld [vmem:[%s11 + $0x48] sm:$0xff]
        %v2288 = vld [vmem:[%s11 + $0x50] sm:$0xff]
        %v2289 = vld [vmem:[%s11 + $0x58] sm:$0xff]
        %v2290 = vld [vmem:[%s11 + $0x60] sm:$0xff]
        %v2291 = vld [vmem:[%s11 + $0x68] sm:$0xff]
        %v2292 = vld [vmem:[%s11 + $0x70] sm:$0xff]
        %v2293 = vld [vmem:[%s11 + $0x78] sm:$0xff]
        %v2294 = vld [vmem:[%s12] sm:$0x3]
        %v2296 = vlaneseq
        %v2297 = vshrl.u32 %v2296, 7
        %v2298 = vsub.s32 0, %v2297
        %v2299 = vrot.slane %v2294, %v2298
        %v2300 = vlaneseq
        %v2301 = vshrl.u32 %v2300, 7
        %v2302 = vsub.s32 1, %v2301
        %v2303 = vrot.slane %v2294, %v2302
        %v2307 = vsel %vm571, %v2277, 0
        %2309 = vmatprep.subr.mxu0 0.0
        %2310 = vmatpush1.msra.mxu0 0.0
        %2311 = vmatprep.subr.mxu0 0.0
        %2312 = vmatpush1.msra.mxu0 0.0
        %2313 = vmatprep.subr.mxu0 0.0
        %2314 = vmatpush1.msra.mxu0 0.0
        %2315 = vmatprep.subr.mxu0 0.0
        %2316 = vmatpush1.msra.mxu0 0.0
        %2317 = vmatprep.subr.mxu0 0.0
        %2318 = vmatpush1.msra.mxu0 0.0
        %2319 = vmatprep.subr.mxu0 0.0
        %2320 = vmatpush1.msra.mxu0 0.0
        %2321 = vmatprep.subr.mxu0 0.0
        %2322 = vmatpush1.msra.mxu0 0.0
        %2323 = vmatprep.subr.mxu0 0.0
        %2324 = vmatpush1.msra.mxu0 0.0
        %2325 = vmatprep.subr.mxu0 %v2293
        %2326 = vmatpush1.msra.mxu0 %v2292
        %2327 = vmatprep.subr.mxu0 %v2291
        %2328 = vmatpush1.msra.mxu0 %v2290
        %2329 = vmatprep.subr.mxu0 %v2289
        %2330 = vmatpush1.msra.mxu0 %v2288
        %2331 = vmatprep.subr.mxu0 %v2287
        %2332 = vmatpush1.msra.mxu0 %v2286
        %2333 = vmatprep.subr.mxu0 %v2285
        %2334 = vmatpush1.msra.mxu0 %v2284
        %2335 = vmatprep.subr.mxu0 %v2283
        %2336 = vmatpush1.msra.mxu0 %v2282
        %2337 = vmatprep.subr.mxu0 %v2281
        %2338 = vmatpush1.msra.mxu0 %v2280
        %2339 = vmatprep.subr.mxu0 %v2279
        %2340 = vmatpush1.msra.mxu0 %v2278
        %2341 = vmatprep.subr.mxu0 0.0
        %2342 = vmatpush2.msra.mxu0 0.0
        %2343 = vmatprep.subr.mxu0 0.0
        %2344 = vmatpush2.msra.mxu0 0.0
        %2345 = vmatprep.subr.mxu0 0.0
        %2346 = vmatpush2.msra.mxu0 0.0
        %2347 = vmatprep.subr.mxu0 0.0
        %2348 = vmatpush2.msra.mxu0 0.0
        %2349 = vmatprep.subr.mxu0 0.0
        %2350 = vmatpush2.msra.mxu0 0.0
        %2351 = vmatprep.subr.mxu0 0.0
        %2352 = vmatpush2.msra.mxu0 0.0
        %2353 = vmatprep.subr.mxu0 0.0
        %2354 = vmatpush2.msra.mxu0 0.0
        %2355 = vmatprep.subr.mxu0 0.0
        %2356 = vmatpush2.msra.mxu0 0.0
        %2357 = vmatprep.subr.mxu0 0.0
        %2358 = vmatpush2.msra.mxu0 0.0
        %2359 = vmatprep.subr.mxu0 0.0
        %2360 = vmatpush2.msra.mxu0 0.0
        %2361 = vmatprep.subr.mxu0 0.0
        %2362 = vmatpush2.msra.mxu0 0.0
        %2363 = vmatprep.subr.mxu0 0.0
        %2364 = vmatpush2.msra.mxu0 0.0
        %2365 = vmatprep.subr.mxu0 0.0
        %2366 = vmatpush2.msra.mxu0 0.0
        %2367 = vmatprep.subr.mxu0 0.0
        %2368 = vmatpush2.msra.mxu0 0.0
        %2369 = vmatprep.subr.mxu0 0.0
        %2370 = vmatpush2.msra.mxu0 0.0
        %2371 = vmatprep.subr.mxu0 0.0
        %2372 = vmatpush2.msra.mxu0 0.0
        %2373 = vmatprep.mubr.f32.mxu0 0.0
        %2374 = vmatmul.mubr.f32.gmra.mxu0 %v2307
        %v2375 = vpop.f32.mrf.mxu0
        %v2376 = vadd.f32 %v2299, %v2375
        %v2377 = vpop.f32.mrf.mxu0
        %v2378 = vadd.f32 %v2303, %v2377
        %2379 = vdwg.mxu0
        %v2380 = vmax.f32 %v2376, 0.0
        %v2381 = vmax.f32 %v2378, 0.0
        %v2382 = vld [vmem:[%s13] sm:$0xff]
        %v2383 = vld [vmem:[%s13 + $0x8] sm:$0xff]
        %v2384 = vld [vmem:[%s13 + $0x10] sm:$0xff]
        %v2385 = vld [vmem:[%s13 + $0x18] sm:$0xff]
        %v2386 = vld [vmem:[%s13 + $0x20] sm:$0xff]
        %v2387 = vld [vmem:[%s13 + $0x28] sm:$0xff]
        %v2388 = vld [vmem:[%s13 + $0x30] sm:$0xff]
        %v2389 = vld [vmem:[%s13 + $0x38] sm:$0xff]
        %v2390 = vld [vmem:[%s13 + $0x40] sm:$0xff]
        %v2391 = vld [vmem:[%s13 + $0x48] sm:$0xff]
        %v2392 = vld [vmem:[%s13 + $0x50] sm:$0xff]
        %v2393 = vld [vmem:[%s13 + $0x58] sm:$0xff]
        %v2394 = vld [vmem:[%s13 + $0x60] sm:$0xff]
        %v2395 = vld [vmem:[%s13 + $0x68] sm:$0xff]
        %v2396 = vld [vmem:[%s13 + $0x70] sm:$0xff]
        %v2397 = vld [vmem:[%s13 + $0x78] sm:$0xff]
        %v2398 = vld [vmem:[%s13 + $0x80] sm:$0xff]
        %v2399 = vld [vmem:[%s13 + $0x88] sm:$0xff]
        %v2400 = vld [vmem:[%s13 + $0x90] sm:$0xff]
        %v2401 = vld [vmem:[%s13 + $0x98] sm:$0xff]
        %v2402 = vld [vmem:[%s13 + $0xa0] sm:$0xff]
        %v2403 = vld [vmem:[%s13 + $0xa8] sm:$0xff]
        %v2404 = vld [vmem:[%s13 + $0xb0] sm:$0xff]
        %v2405 = vld [vmem:[%s13 + $0xb8] sm:$0xff]
        %v2406 = vld [vmem:[%s13 + $0xc0] sm:$0xff]
        %v2407 = vld [vmem:[%s13 + $0xc8] sm:$0xff]
        %v2408 = vld [vmem:[%s13 + $0xd0] sm:$0xff]
        %v2409 = vld [vmem:[%s13 + $0xd8] sm:$0xff]
        %v2410 = vld [vmem:[%s13 + $0xe0] sm:$0xff]
        %v2411 = vld [vmem:[%s13 + $0xe8] sm:$0xff]
        %v2412 = vld [vmem:[%s13 + $0xf0] sm:$0xff]
        %v2413 = vld [vmem:[%s13 + $0xf8] sm:$0xff]
        %v2414 = vld [vmem:[%s14] sm:$0x1]
        %v2416 = vlaneseq
        %v2417 = vshrl.u32 %v2416, 7
        %v2418 = vsub.s32 0, %v2417
        %v2419 = vrot.slane %v2414, %v2418
        %2421 = vmatprep.subr.mxu0 0.0
        %2422 = vmatpush1.msra.mxu0 %v2397
        %2423 = vmatprep.subr.mxu0 0.0
        %2424 = vmatpush1.msra.mxu0 %v2396
        %2425 = vmatprep.subr.mxu0 0.0
        %2426 = vmatpush1.msra.mxu0 %v2395
        %2427 = vmatprep.subr.mxu0 0.0
        %2428 = vmatpush1.msra.mxu0 %v2394
        %2429 = vmatprep.subr.mxu0 0.0
        %2430 = vmatpush1.msra.mxu0 %v2393
        %2431 = vmatprep.subr.mxu0 0.0
        %2432 = vmatpush1.msra.mxu0 %v2392
        %2433 = vmatprep.subr.mxu0 0.0
        %2434 = vmatpush1.msra.mxu0 %v2391
        %2435 = vmatprep.subr.mxu0 0.0
        %2436 = vmatpush1.msra.mxu0 %v2390
        %2437 = vmatprep.subr.mxu0 0.0
        %2438 = vmatpush1.msra.mxu0 %v2389
        %2439 = vmatprep.subr.mxu0 0.0
        %2440 = vmatpush1.msra.mxu0 %v2388
        %2441 = vmatprep.subr.mxu0 0.0
        %2442 = vmatpush1.msra.mxu0 %v2387
        %2443 = vmatprep.subr.mxu0 0.0
        %2444 = vmatpush1.msra.mxu0 %v2386
        %2445 = vmatprep.subr.mxu0 0.0
        %2446 = vmatpush1.msra.mxu0 %v2385
        %2447 = vmatprep.subr.mxu0 0.0
        %2448 = vmatpush1.msra.mxu0 %v2384
        %2449 = vmatprep.subr.mxu0 0.0
        %2450 = vmatpush1.msra.mxu0 %v2383
        %2451 = vmatprep.subr.mxu0 0.0
        %2452 = vmatpush1.msra.mxu0 %v2382
        %2453 = vmatprep.subr.mxu0 0.0
        %2454 = vmatpush2.msra.mxu0 %v2413
        %2455 = vmatprep.subr.mxu0 0.0
        %2456 = vmatpush2.msra.mxu0 %v2412
        %2457 = vmatprep.subr.mxu0 0.0
        %2458 = vmatpush2.msra.mxu0 %v2411
        %2459 = vmatprep.subr.mxu0 0.0
        %2460 = vmatpush2.msra.mxu0 %v2410
        %2461 = vmatprep.subr.mxu0 0.0
        %2462 = vmatpush2.msra.mxu0 %v2409
        %2463 = vmatprep.subr.mxu0 0.0
        %2464 = vmatpush2.msra.mxu0 %v2408
        %2465 = vmatprep.subr.mxu0 0.0
        %2466 = vmatpush2.msra.mxu0 %v2407
        %2467 = vmatprep.subr.mxu0 0.0
        %2468 = vmatpush2.msra.mxu0 %v2406
        %2469 = vmatprep.subr.mxu0 0.0
        %2470 = vmatpush2.msra.mxu0 %v2405
        %2471 = vmatprep.subr.mxu0 0.0
        %2472 = vmatpush2.msra.mxu0 %v2404
        %2473 = vmatprep.subr.mxu0 0.0
        %2474 = vmatpush2.msra.mxu0 %v2403
        %2475 = vmatprep.subr.mxu0 0.0
        %2476 = vmatpush2.msra.mxu0 %v2402
        %2477 = vmatprep.subr.mxu0 0.0
        %2478 = vmatpush2.msra.mxu0 %v2401
        %2479 = vmatprep.subr.mxu0 0.0
        %2480 = vmatpush2.msra.mxu0 %v2400
        %2481 = vmatprep.subr.mxu0 0.0
        %2482 = vmatpush2.msra.mxu0 %v2399
        %2483 = vmatprep.subr.mxu0 0.0
        %2484 = vmatpush2.msra.mxu0 %v2398
        %2485 = vmatprep.mubr.f32.mxu0 %v2381
        %2486 = vmatmul.mubr.f32.gmra.mxu0 %v2380
        %v2487 = vpop.f32.mrf.mxu0
        %v2488 = vadd.f32 %v2419, %v2487
        %v2489 = vpop.f32.mrf.mxu0
        %2490 = vdwg.mxu0
        %v2491 = vadd.f32 %v2488, %v2277
        %v2492 = vld [vmem:[%s15] sm:$0x1]
        %v2493 = vld [vmem:[%s16] sm:$0x1]
        %v2494 = vsel %vm571, %v2491, 0.0
        %2495 = vadd.xlane.f32.xlu0 %v2494
        %v2496 = vpop.xlane.xlu0 %2495
        %v2497 = vmul.f32 %v2496, %v2253
        %v2498 = vsub.f32 %v2491, %v2497
        %v2499 = vmul.f32 %v2498, %v2498
        %v2500 = vsel %vm571, %v2499, 0.0
        %2501 = vadd.xlane.f32.xlu0 %v2500
        %v2502 = vpop.xlane.xlu0 %2501
        %v2503 = vmul.f32 %v2502, %v2253
        %v2504 = vadd.f32 %v2503, 1e-05
        %v2505 = vrsqrt.pop %v2504
        %v2506 = vmul.f32 %v2498, %v2505
        %v2508 = vlaneseq
        %v2509 = vshrl.u32 %v2508, 7
        %v2510 = vsub.s32 0, %v2509
        %v2511 = vrot.slane %v2492, %v2510
        %v2513 = vmul.f32 %v2506, %v2511
        %v2515 = vlaneseq
        %v2516 = vshrl.u32 %v2515, 7
        %v2517 = vsub.s32 0, %v2516
        %v2518 = vrot.slane %v2493, %v2517
        %v2520 = vadd.f32 %v2513, %v2518
        %s2521 = scalar_lea.vmem %s4, 64
        %v2522 = vld [vmem:[%s2521] sm:$0xff]
        %v2523 = vld [vmem:[%s2521 + $0x8] sm:$0xff]
        %v2524 = vld [vmem:[%s2521 + $0x10] sm:$0xff]
        %v2525 = vld [vmem:[%s2521 + $0x18] sm:$0xff]
        %v2526 = vld [vmem:[%s2521 + $0x20] sm:$0xff]
        %v2527 = vld [vmem:[%s2521 + $0x28] sm:$0xff]
        %v2528 = vld [vmem:[%s2521 + $0x30] sm:$0xff]
        %v2529 = vld [vmem:[%s2521 + $0x38] sm:$0xff]
        %v2531 = vsel %vm571, %v2520, 0
        %2533 = vmatprep.subr.mxu0 0.0
        %2534 = vmatpush1.msra.mxu0 0.0
        %2535 = vmatprep.subr.mxu0 0.0
        %2536 = vmatpush1.msra.mxu0 0.0
        %2537 = vmatprep.subr.mxu0 0.0
        %2538 = vmatpush1.msra.mxu0 0.0
        %2539 = vmatprep.subr.mxu0 0.0
        %2540 = vmatpush1.msra.mxu0 0.0
        %2541 = vmatprep.subr.mxu0 0.0
        %2542 = vmatpush1.msra.mxu0 0.0
        %2543 = vmatprep.subr.mxu0 0.0
        %2544 = vmatpush1.msra.mxu0 0.0
        %2545 = vmatprep.subr.mxu0 0.0
        %2546 = vmatpush1.msra.mxu0 0.0
        %2547 = vmatprep.subr.mxu0 0.0
        %2548 = vmatpush1.msra.mxu0 0.0
        %2549 = vmatprep.subr.mxu0 0.0
        %2550 = vmatpush1.msra.mxu0 %v2529
        %2551 = vmatprep.subr.mxu0 0.0
        %2552 = vmatpush1.msra.mxu0 %v2528
        %2553 = vmatprep.subr.mxu0 0.0
        %2554 = vmatpush1.msra.mxu0 %v2527
        %2555 = vmatprep.subr.mxu0 0.0
        %2556 = vmatpush1.msra.mxu0 %v2526
        %2557 = vmatprep.subr.mxu0 0.0
        %2558 = vmatpush1.msra.mxu0 %v2525
        %2559 = vmatprep.subr.mxu0 0.0
        %2560 = vmatpush1.msra.mxu0 %v2524
        %2561 = vmatprep.subr.mxu0 0.0
        %2562 = vmatpush1.msra.mxu0 %v2523
        %2563 = vmatprep.subr.mxu0 0.0
        %2564 = vmatpush1.msra.mxu0 %v2522
        %2565 = vmatprep.subr.mxu0 0.0
        %2566 = vmatpush2.msra.mxu0 0.0
        %2567 = vmatprep.subr.mxu0 0.0
        %2568 = vmatpush2.msra.mxu0 0.0
        %2569 = vmatprep.subr.mxu0 0.0
        %2570 = vmatpush2.msra.mxu0 0.0
        %2571 = vmatprep.subr.mxu0 0.0
        %2572 = vmatpush2.msra.mxu0 0.0
        %2573 = vmatprep.subr.mxu0 0.0
        %2574 = vmatpush2.msra.mxu0 0.0
        %2575 = vmatprep.subr.mxu0 0.0
        %2576 = vmatpush2.msra.mxu0 0.0
        %2577 = vmatprep.subr.mxu0 0.0
        %2578 = vmatpush2.msra.mxu0 0.0
        %2579 = vmatprep.subr.mxu0 0.0
        %2580 = vmatpush2.msra.mxu0 0.0
        %2581 = vmatprep.subr.mxu0 0.0
        %2582 = vmatpush2.msra.mxu0 0.0
        %2583 = vmatprep.subr.mxu0 0.0
        %2584 = vmatpush2.msra.mxu0 0.0
        %2585 = vmatprep.subr.mxu0 0.0
        %2586 = vmatpush2.msra.mxu0 0.0
        %2587 = vmatprep.subr.mxu0 0.0
        %2588 = vmatpush2.msra.mxu0 0.0
        %2589 = vmatprep.subr.mxu0 0.0
        %2590 = vmatpush2.msra.mxu0 0.0
        %2591 = vmatprep.subr.mxu0 0.0
        %2592 = vmatpush2.msra.mxu0 0.0
        %2593 = vmatprep.subr.mxu0 0.0
        %2594 = vmatpush2.msra.mxu0 0.0
        %2595 = vmatprep.subr.mxu0 0.0
        %2596 = vmatpush2.msra.mxu0 0.0
        %2597 = vmatprep.mubr.f32.mxu0 0.0
        %2598 = vmatmul.mubr.f32.gmra.mxu0 %v2531
        %v2599 = vpop.f32.mrf.mxu0
        %v2600 = vadd.f32 0.0, %v2599
        %v2601 = vpop.f32.mrf.mxu0
        %2602 = vdwg.mxu0
        %s2603 = scalar_lea.vmem %s5, 64
        %v2604 = vld [vmem:[%s2603] sm:$0xff]
        %v2605 = vld [vmem:[%s2603 + $0x8] sm:$0xff]
        %v2606 = vld [vmem:[%s2603 + $0x10] sm:$0xff]
        %v2607 = vld [vmem:[%s2603 + $0x18] sm:$0xff]
        %v2608 = vld [vmem:[%s2603 + $0x20] sm:$0xff]
        %v2609 = vld [vmem:[%s2603 + $0x28] sm:$0xff]
        %v2610 = vld [vmem:[%s2603 + $0x30] sm:$0xff]
        %v2611 = vld [vmem:[%s2603 + $0x38] sm:$0xff]
        %2612 = vmatprep.subr.mxu0 0.0
        %2613 = vmatpush1.msra.mxu0 0.0
        %2614 = vmatprep.subr.mxu0 0.0
        %2615 = vmatpush1.msra.mxu0 0.0
        %2616 = vmatprep.subr.mxu0 0.0
        %2617 = vmatpush1.msra.mxu0 0.0
        %2618 = vmatprep.subr.mxu0 0.0
        %2619 = vmatpush1.msra.mxu0 0.0
        %2620 = vmatprep.subr.mxu0 0.0
        %2621 = vmatpush1.msra.mxu0 0.0
        %2622 = vmatprep.subr.mxu0 0.0
        %2623 = vmatpush1.msra.mxu0 0.0
        %2624 = vmatprep.subr.mxu0 0.0
        %2625 = vmatpush1.msra.mxu0 0.0
        %2626 = vmatprep.subr.mxu0 0.0
        %2627 = vmatpush1.msra.mxu0 0.0
        %2628 = vmatprep.subr.mxu0 0.0
        %2629 = vmatpush1.msra.mxu0 %v2611
        %2630 = vmatprep.subr.mxu0 0.0
        %2631 = vmatpush1.msra.mxu0 %v2610
        %2632 = vmatprep.subr.mxu0 0.0
        %2633 = vmatpush1.msra.mxu0 %v2609
        %2634 = vmatprep.subr.mxu0 0.0
        %2635 = vmatpush1.msra.mxu0 %v2608
        %2636 = vmatprep.subr.mxu0 0.0
        %2637 = vmatpush1.msra.mxu0 %v2607
        %2638 = vmatprep.subr.mxu0 0.0
        %2639 = vmatpush1.msra.mxu0 %v2606
        %2640 = vmatprep.subr.mxu0 0.0
        %2641 = vmatpush1.msra.mxu0 %v2605
        %2642 = vmatprep.subr.mxu0 0.0
        %2643 = vmatpush1.msra.mxu0 %v2604
        %2644 = vmatprep.subr.mxu0 0.0
        %2645 = vmatpush2.msra.mxu0 0.0
        %2646 = vmatprep.subr.mxu0 0.0
        %2647 = vmatpush2.msra.mxu0 0.0
        %2648 = vmatprep.subr.mxu0 0.0
        %2649 = vmatpush2.msra.mxu0 0.0
        %2650 = vmatprep.subr.mxu0 0.0
        %2651 = vmatpush2.msra.mxu0 0.0
        %2652 = vmatprep.subr.mxu0 0.0
        %2653 = vmatpush2.msra.mxu0 0.0
        %2654 = vmatprep.subr.mxu0 0.0
        %2655 = vmatpush2.msra.mxu0 0.0
        %2656 = vmatprep.subr.mxu0 0.0
        %2657 = vmatpush2.msra.mxu0 0.0
        %2658 = vmatprep.subr.mxu0 0.0
        %2659 = vmatpush2.msra.mxu0 0.0
        %2660 = vmatprep.subr.mxu0 0.0
        %2661 = vmatpush2.msra.mxu0 0.0
        %2662 = vmatprep.subr.mxu0 0.0
        %2663 = vmatpush2.msra.mxu0 0.0
        %2664 = vmatprep.subr.mxu0 0.0
        %2665 = vmatpush2.msra.mxu0 0.0
        %2666 = vmatprep.subr.mxu0 0.0
        %2667 = vmatpush2.msra.mxu0 0.0
        %2668 = vmatprep.subr.mxu0 0.0
        %2669 = vmatpush2.msra.mxu0 0.0
        %2670 = vmatprep.subr.mxu0 0.0
        %2671 = vmatpush2.msra.mxu0 0.0
        %2672 = vmatprep.subr.mxu0 0.0
        %2673 = vmatpush2.msra.mxu0 0.0
        %2674 = vmatprep.subr.mxu0 0.0
        %2675 = vmatpush2.msra.mxu0 0.0
        %2676 = vmatprep.mubr.f32.mxu0 0.0
        %2677 = vmatmul.mubr.f32.gmra.mxu0 %v2531
        %v2678 = vpop.f32.mrf.mxu0
        %v2679 = vadd.f32 0.0, %v2678
        %v2680 = vpop.f32.mrf.mxu0
        %2681 = vdwg.mxu0
        %s2682 = scalar_lea.vmem %s6, 64
        %v2683 = vld [vmem:[%s2682] sm:$0xff]
        %v2684 = vld [vmem:[%s2682 + $0x8] sm:$0xff]
        %v2685 = vld [vmem:[%s2682 + $0x10] sm:$0xff]
        %v2686 = vld [vmem:[%s2682 + $0x18] sm:$0xff]
        %v2687 = vld [vmem:[%s2682 + $0x20] sm:$0xff]
        %v2688 = vld [vmem:[%s2682 + $0x28] sm:$0xff]
        %v2689 = vld [vmem:[%s2682 + $0x30] sm:$0xff]
        %v2690 = vld [vmem:[%s2682 + $0x38] sm:$0xff]
        %2691 = vmatprep.subr.mxu0 0.0
        %2692 = vmatpush1.msra.mxu0 0.0
        %2693 = vmatprep.subr.mxu0 0.0
        %2694 = vmatpush1.msra.mxu0 0.0
        %2695 = vmatprep.subr.mxu0 0.0
        %2696 = vmatpush1.msra.mxu0 0.0
        %2697 = vmatprep.subr.mxu0 0.0
        %2698 = vmatpush1.msra.mxu0 0.0
        %2699 = vmatprep.subr.mxu0 0.0
        %2700 = vmatpush1.msra.mxu0 0.0
        %2701 = vmatprep.subr.mxu0 0.0
        %2702 = vmatpush1.msra.mxu0 0.0
        %2703 = vmatprep.subr.mxu0 0.0
        %2704 = vmatpush1.msra.mxu0 0.0
        %2705 = vmatprep.subr.mxu0 0.0
        %2706 = vmatpush1.msra.mxu0 0.0
        %2707 = vmatprep.subr.mxu0 0.0
        %2708 = vmatpush1.msra.mxu0 %v2690
        %2709 = vmatprep.subr.mxu0 0.0
        %2710 = vmatpush1.msra.mxu0 %v2689
        %2711 = vmatprep.subr.mxu0 0.0
        %2712 = vmatpush1.msra.mxu0 %v2688
        %2713 = vmatprep.subr.mxu0 0.0
        %2714 = vmatpush1.msra.mxu0 %v2687
        %2715 = vmatprep.subr.mxu0 0.0
        %2716 = vmatpush1.msra.mxu0 %v2686
        %2717 = vmatprep.subr.mxu0 0.0
        %2718 = vmatpush1.msra.mxu0 %v2685
        %2719 = vmatprep.subr.mxu0 0.0
        %2720 = vmatpush1.msra.mxu0 %v2684
        %2721 = vmatprep.subr.mxu0 0.0
        %2722 = vmatpush1.msra.mxu0 %v2683
        %2723 = vmatprep.subr.mxu0 0.0
        %2724 = vmatpush2.msra.mxu0 0.0
        %2725 = vmatprep.subr.mxu0 0.0
        %2726 = vmatpush2.msra.mxu0 0.0
        %2727 = vmatprep.subr.mxu0 0.0
        %2728 = vmatpush2.msra.mxu0 0.0
        %2729 = vmatprep.subr.mxu0 0.0
        %2730 = vmatpush2.msra.mxu0 0.0
        %2731 = vmatprep.subr.mxu0 0.0
        %2732 = vmatpush2.msra.mxu0 0.0
        %2733 = vmatprep.subr.mxu0 0.0
        %2734 = vmatpush2.msra.mxu0 0.0
        %2735 = vmatprep.subr.mxu0 0.0
        %2736 = vmatpush2.msra.mxu0 0.0
        %2737 = vmatprep.subr.mxu0 0.0
        %2738 = vmatpush2.msra.mxu0 0.0
        %2739 = vmatprep.subr.mxu0 0.0
        %2740 = vmatpush2.msra.mxu0 0.0
        %2741 = vmatprep.subr.mxu0 0.0
        %2742 = vmatpush2.msra.mxu0 0.0
        %2743 = vmatprep.subr.mxu0 0.0
        %2744 = vmatpush2.msra.mxu0 0.0
        %2745 = vmatprep.subr.mxu0 0.0
        %2746 = vmatpush2.msra.mxu0 0.0
        %2747 = vmatprep.subr.mxu0 0.0
        %2748 = vmatpush2.msra.mxu0 0.0
        %2749 = vmatprep.subr.mxu0 0.0
        %2750 = vmatpush2.msra.mxu0 0.0
        %2751 = vmatprep.subr.mxu0 0.0
        %2752 = vmatpush2.msra.mxu0 0.0
        %2753 = vmatprep.subr.mxu0 0.0
        %2754 = vmatpush2.msra.mxu0 0.0
        %2755 = vmatprep.mubr.f32.mxu0 0.0
        %2756 = vmatmul.mubr.f32.gmra.mxu0 %v2531
        %v2757 = vpop.f32.mrf.mxu0
        %v2758 = vadd.f32 0.0, %v2757
        %v2759 = vpop.f32.mrf.mxu0
        %2760 = vdwg.mxu0
        %v2762 = vsel %vm801, %v2600, 0
        %v2765 = vsel %vm801, %v2679, 0
        %2767 = vmatprep.subr.mxu0 0.0
        %2768 = vmatpush1.xpose.msra.mxu0 0.0
        %2769 = vmatprep.subr.mxu0 0.0
        %2770 = vmatpush1.xpose.msra.mxu0 0.0
        %2771 = vmatprep.subr.mxu0 0.0
        %2772 = vmatpush1.xpose.msra.mxu0 0.0
        %2773 = vmatprep.subr.mxu0 0.0
        %2774 = vmatpush1.xpose.msra.mxu0 0.0
        %2775 = vmatprep.subr.mxu0 0.0
        %2776 = vmatpush1.xpose.msra.mxu0 0.0
        %2777 = vmatprep.subr.mxu0 0.0
        %2778 = vmatpush1.xpose.msra.mxu0 0.0
        %2779 = vmatprep.subr.mxu0 0.0
        %2780 = vmatpush1.xpose.msra.mxu0 0.0
        %2781 = vmatprep.subr.mxu0 0.0
        %2782 = vmatpush1.xpose.msra.mxu0 0.0
        %2783 = vmatprep.subr.mxu0 0.0
        %2784 = vmatpush1.xpose.msra.mxu0 0.0
        %2785 = vmatprep.subr.mxu0 0.0
        %2786 = vmatpush1.xpose.msra.mxu0 0.0
        %2787 = vmatprep.subr.mxu0 0.0
        %2788 = vmatpush1.xpose.msra.mxu0 0.0
        %2789 = vmatprep.subr.mxu0 0.0
        %2790 = vmatpush1.xpose.msra.mxu0 0.0
        %2791 = vmatprep.subr.mxu0 0.0
        %2792 = vmatpush1.xpose.msra.mxu0 0.0
        %2793 = vmatprep.subr.mxu0 0.0
        %2794 = vmatpush1.xpose.msra.mxu0 0.0
        %2795 = vmatprep.subr.mxu0 0.0
        %2796 = vmatpush1.xpose.msra.mxu0 0.0
        %2797 = vmatprep.subr.mxu0 0.0
        %2798 = vmatpush1.xpose.msra.mxu0 %v2765
        %2799 = vmatprep.subr.mxu0 0.0
        %2800 = vmatpush2.xpose.msra.mxu0 0.0
        %2801 = vmatprep.subr.mxu0 0.0
        %2802 = vmatpush2.xpose.msra.mxu0 0.0
        %2803 = vmatprep.subr.mxu0 0.0
        %2804 = vmatpush2.xpose.msra.mxu0 0.0
        %2805 = vmatprep.subr.mxu0 0.0
        %2806 = vmatpush2.xpose.msra.mxu0 0.0
        %2807 = vmatprep.subr.mxu0 0.0
        %2808 = vmatpush2.xpose.msra.mxu0 0.0
        %2809 = vmatprep.subr.mxu0 0.0
        %2810 = vmatpush2.xpose.msra.mxu0 0.0
        %2811 = vmatprep.subr.mxu0 0.0
        %2812 = vmatpush2.xpose.msra.mxu0 0.0
        %2813 = vmatprep.subr.mxu0 0.0
        %2814 = vmatpush2.xpose.msra.mxu0 0.0
        %2815 = vmatprep.subr.mxu0 0.0
        %2816 = vmatpush2.xpose.msra.mxu0 0.0
        %2817 = vmatprep.subr.mxu0 0.0
        %2818 = vmatpush2.xpose.msra.mxu0 0.0
        %2819 = vmatprep.subr.mxu0 0.0
        %2820 = vmatpush2.xpose.msra.mxu0 0.0
        %2821 = vmatprep.subr.mxu0 0.0
        %2822 = vmatpush2.xpose.msra.mxu0 0.0
        %2823 = vmatprep.subr.mxu0 0.0
        %2824 = vmatpush2.xpose.msra.mxu0 0.0
        %2825 = vmatprep.subr.mxu0 0.0
        %2826 = vmatpush2.xpose.msra.mxu0 0.0
        %2827 = vmatprep.subr.mxu0 0.0
        %2828 = vmatpush2.xpose.msra.mxu0 0.0
        %2829 = vmatprep.subr.mxu0 0.0
        %2830 = vmatpush2.xpose.msra.mxu0 0.0
        %2831 = vmatprep.mubr.f32.mxu0 0.0
        %2832 = vmatmul.mubr.f32.gmra.mxu0 %v2762
        %v2833 = vpop.f32.mrf.mxu0
        %v2834 = vadd.f32 0.0, %v2833
        %v2835 = vpop.f32.mrf.mxu0
        %2836 = vdwg.mxu0
        %v2837 = vsel %vm801, %v2834, -inf
        %2838 = vmax.xlane.f32.xlu0 %v2837
        %v2839 = vpop.xlane.xlu0 %2838
        %v2840 = vsub.f32 %v2834, %v2839
        %v2841 = vmul.f32 %v2840, 1.442695
        %v2842 = vpow.pop %v2841
        %v2843 = vsel %vm801, %v2842, 0.0
        %2844 = vadd.xlane.f32.xlu0 %v2843
        %v2845 = vpop.xlane.xlu0 %2844
        %v2846 = vrcp.pop %v2845
        %v2847 = vmul.f32 %v2842, %v2846
        %v2849 = vsel %vm801, %v2847, 0
        %2851 = vmatprep.subr.mxu0 0.0
        %2852 = vmatpush1.msra.mxu0 0.0
        %2853 = vmatprep.subr.mxu0 0.0
        %2854 = vmatpush1.msra.mxu0 0.0
        %2855 = vmatprep.subr.mxu0 0.0
        %2856 = vmatpush1.msra.mxu0 0.0
        %2857 = vmatprep.subr.mxu0 0.0
        %2858 = vmatpush1.msra.mxu0 0.0
        %2859 = vmatprep.subr.mxu0 0.0
        %2860 = vmatpush1.msra.mxu0 0.0
        %2861 = vmatprep.subr.mxu0 0.0
        %2862 = vmatpush1.msra.mxu0 0.0
        %2863 = vmatprep.subr.mxu0 0.0
        %2864 = vmatpush1.msra.mxu0 0.0
        %2865 = vmatprep.subr.mxu0 0.0
        %2866 = vmatpush1.msra.mxu0 0.0
        %2867 = vmatprep.subr.mxu0 0.0
        %2868 = vmatpush1.msra.mxu0 0.0
        %2869 = vmatprep.subr.mxu0 0.0
        %2870 = vmatpush1.msra.mxu0 0.0
        %2871 = vmatprep.subr.mxu0 0.0
        %2872 = vmatpush1.msra.mxu0 0.0
        %2873 = vmatprep.subr.mxu0 0.0
        %2874 = vmatpush1.msra.mxu0 0.0
        %2875 = vmatprep.subr.mxu0 0.0
        %2876 = vmatpush1.msra.mxu0 0.0
        %2877 = vmatprep.subr.mxu0 0.0
        %2878 = vmatpush1.msra.mxu0 0.0
        %2879 = vmatprep.subr.mxu0 0.0
        %2880 = vmatpush1.msra.mxu0 0.0
        %2881 = vmatprep.subr.mxu0 0.0
        %2882 = vmatpush1.msra.mxu0 %v2758
        %2883 = vmatprep.subr.mxu0 0.0
        %2884 = vmatpush2.msra.mxu0 0.0
        %2885 = vmatprep.subr.mxu0 0.0
        %2886 = vmatpush2.msra.mxu0 0.0
        %2887 = vmatprep.subr.mxu0 0.0
        %2888 = vmatpush2.msra.mxu0 0.0
        %2889 = vmatprep.subr.mxu0 0.0
        %2890 = vmatpush2.msra.mxu0 0.0
        %2891 = vmatprep.subr.mxu0 0.0
        %2892 = vmatpush2.msra.mxu0 0.0
        %2893 = vmatprep.subr.mxu0 0.0
        %2894 = vmatpush2.msra.mxu0 0.0
        %2895 = vmatprep.subr.mxu0 0.0
        %2896 = vmatpush2.msra.mxu0 0.0
        %2897 = vmatprep.subr.mxu0 0.0
        %2898 = vmatpush2.msra.mxu0 0.0
        %2899 = vmatprep.subr.mxu0 0.0
        %2900 = vmatpush2.msra.mxu0 0.0
        %2901 = vmatprep.subr.mxu0 0.0
        %2902 = vmatpush2.msra.mxu0 0.0
        %2903 = vmatprep.subr.mxu0 0.0
        %2904 = vmatpush2.msra.mxu0 0.0
        %2905 = vmatprep.subr.mxu0 0.0
        %2906 = vmatpush2.msra.mxu0 0.0
        %2907 = vmatprep.subr.mxu0 0.0
        %2908 = vmatpush2.msra.mxu0 0.0
        %2909 = vmatprep.subr.mxu0 0.0
        %2910 = vmatpush2.msra.mxu0 0.0
        %2911 = vmatprep.subr.mxu0 0.0
        %2912 = vmatpush2.msra.mxu0 0.0
        %2913 = vmatprep.subr.mxu0 0.0
        %2914 = vmatpush2.msra.mxu0 0.0
        %2915 = vmatprep.mubr.f32.mxu0 0.0
        %2916 = vmatmul.mubr.f32.gmra.mxu0 %v2849
        %v2917 = vpop.f32.mrf.mxu0
        %v2918 = vadd.f32 0.0, %v2917
        %v2919 = vpop.f32.mrf.mxu0
        %2920 = vdwg.mxu0
        %2921 = vrot.lane.b32.xlu0 %v2600, 120
        %v2922 = vpop.permute.xlu0 %2921
        %2923 = vrot.lane.b32.xlu0 %v2679, 120
        %v2924 = vpop.permute.xlu0 %2923
        %v2925 = vsel %vm801, %v2922, 0
        %v2927 = vsel %vm801, %v2924, 0
        %2929 = vmatprep.subr.mxu0 0.0
        %2930 = vmatpush1.xpose.msra.mxu0 0.0
        %2931 = vmatprep.subr.mxu0 0.0
        %2932 = vmatpush1.xpose.msra.mxu0 0.0
        %2933 = vmatprep.subr.mxu0 0.0
        %2934 = vmatpush1.xpose.msra.mxu0 0.0
        %2935 = vmatprep.subr.mxu0 0.0
        %2936 = vmatpush1.xpose.msra.mxu0 0.0
        %2937 = vmatprep.subr.mxu0 0.0
        %2938 = vmatpush1.xpose.msra.mxu0 0.0
        %2939 = vmatprep.subr.mxu0 0.0
        %2940 = vmatpush1.xpose.msra.mxu0 0.0
        %2941 = vmatprep.subr.mxu0 0.0
        %2942 = vmatpush1.xpose.msra.mxu0 0.0
        %2943 = vmatprep.subr.mxu0 0.0
        %2944 = vmatpush1.xpose.msra.mxu0 0.0
        %2945 = vmatprep.subr.mxu0 0.0
        %2946 = vmatpush1.xpose.msra.mxu0 0.0
        %2947 = vmatprep.subr.mxu0 0.0
        %2948 = vmatpush1.xpose.msra.mxu0 0.0
        %2949 = vmatprep.subr.mxu0 0.0
        %2950 = vmatpush1.xpose.msra.mxu0 0.0
        %2951 = vmatprep.subr.mxu0 0.0
        %2952 = vmatpush1.xpose.msra.mxu0 0.0
        %2953 = vmatprep.subr.mxu0 0.0
        %2954 = vmatpush1.xpose.msra.mxu0 0.0
        %2955 = vmatprep.subr.mxu0 0.0
        %2956 = vmatpush1.xpose.msra.mxu0 0.0
        %2957 = vmatprep.subr.mxu0 0.0
        %2958 = vmatpush1.xpose.msra.mxu0 0.0
        %2959 = vmatprep.subr.mxu0 0.0
        %2960 = vmatpush1.xpose.msra.mxu0 %v2927
        %2961 = vmatprep.subr.mxu0 0.0
        %2962 = vmatpush2.xpose.msra.mxu0 0.0
        %2963 = vmatprep.subr.mxu0 0.0
        %2964 = vmatpush2.xpose.msra.mxu0 0.0
        %2965 = vmatprep.subr.mxu0 0.0
        %2966 = vmatpush2.xpose.msra.mxu0 0.0
        %2967 = vmatprep.subr.mxu0 0.0
        %2968 = vmatpush2.xpose.msra.mxu0 0.0
        %2969 = vmatprep.subr.mxu0 0.0
        %2970 = vmatpush2.xpose.msra.mxu0 0.0
        %2971 = vmatprep.subr.mxu0 0.0
        %2972 = vmatpush2.xpose.msra.mxu0 0.0
        %2973 = vmatprep.subr.mxu0 0.0
        %2974 = vmatpush2.xpose.msra.mxu0 0.0
        %2975 = vmatprep.subr.mxu0 0.0
        %2976 = vmatpush2.xpose.msra.mxu0 0.0
        %2977 = vmatprep.subr.mxu0 0.0
        %2978 = vmatpush2.xpose.msra.mxu0 0.0
        %2979 = vmatprep.subr.mxu0 0.0
        %2980 = vmatpush2.xpose.msra.mxu0 0.0
        %2981 = vmatprep.subr.mxu0 0.0
        %2982 = vmatpush2.xpose.msra.mxu0 0.0
        %2983 = vmatprep.subr.mxu0 0.0
        %2984 = vmatpush2.xpose.msra.mxu0 0.0
        %2985 = vmatprep.subr.mxu0 0.0
        %2986 = vmatpush2.xpose.msra.mxu0 0.0
        %2987 = vmatprep.subr.mxu0 0.0
        %2988 = vmatpush2.xpose.msra.mxu0 0.0
        %2989 = vmatprep.subr.mxu0 0.0
        %2990 = vmatpush2.xpose.msra.mxu0 0.0
        %2991 = vmatprep.subr.mxu0 0.0
        %2992 = vmatpush2.xpose.msra.mxu0 0.0
        %2993 = vmatprep.mubr.f32.mxu0 0.0
        %2994 = vmatmul.mubr.f32.gmra.mxu0 %v2925
        %v2995 = vpop.f32.mrf.mxu0
        %v2996 = vadd.f32 0.0, %v2995
        %v2997 = vpop.f32.mrf.mxu0
        %2998 = vdwg.mxu0
        %v2999 = vsel %vm801, %v2996, -inf
        %3000 = vmax.xlane.f32.xlu0 %v2999
        %v3001 = vpop.xlane.xlu0 %3000
        %v3002 = vsub.f32 %v2996, %v3001
        %v3003 = vmul.f32 %v3002, 1.442695
        %v3004 = vpow.pop %v3003
        %v3005 = vsel %vm801, %v3004, 0.0
        %3006 = vadd.xlane.f32.xlu0 %v3005
        %v3007 = vpop.xlane.xlu0 %3006
        %v3008 = vrcp.pop %v3007
        %v3009 = vmul.f32 %v3004, %v3008
        %3011 = vrot.lane.b32.xlu0 %v2758, 120
        %v3012 = vpop.permute.xlu0 %3011
        %v3015 = vsel %vm801, %v3009, 0
        %3017 = vmatprep.subr.mxu0 0.0
        %3018 = vmatpush1.msra.mxu0 0.0
        %3019 = vmatprep.subr.mxu0 0.0
        %3020 = vmatpush1.msra.mxu0 0.0
        %3021 = vmatprep.subr.mxu0 0.0
        %3022 = vmatpush1.msra.mxu0 0.0
        %3023 = vmatprep.subr.mxu0 0.0
        %3024 = vmatpush1.msra.mxu0 0.0
        %3025 = vmatprep.subr.mxu0 0.0
        %3026 = vmatpush1.msra.mxu0 0.0
        %3027 = vmatprep.subr.mxu0 0.0
        %3028 = vmatpush1.msra.mxu0 0.0
        %3029 = vmatprep.subr.mxu0 0.0
        %3030 = vmatpush1.msra.mxu0 0.0
        %3031 = vmatprep.subr.mxu0 0.0
        %3032 = vmatpush1.msra.mxu0 0.0
        %3033 = vmatprep.subr.mxu0 0.0
        %3034 = vmatpush1.msra.mxu0 0.0
        %3035 = vmatprep.subr.mxu0 0.0
        %3036 = vmatpush1.msra.mxu0 0.0
        %3037 = vmatprep.subr.mxu0 0.0
        %3038 = vmatpush1.msra.mxu0 0.0
        %3039 = vmatprep.subr.mxu0 0.0
        %3040 = vmatpush1.msra.mxu0 0.0
        %3041 = vmatprep.subr.mxu0 0.0
        %3042 = vmatpush1.msra.mxu0 0.0
        %3043 = vmatprep.subr.mxu0 0.0
        %3044 = vmatpush1.msra.mxu0 0.0
        %3045 = vmatprep.subr.mxu0 0.0
        %3046 = vmatpush1.msra.mxu0 0.0
        %3047 = vmatprep.subr.mxu0 0.0
        %3048 = vmatpush1.msra.mxu0 %v3012
        %3049 = vmatprep.subr.mxu0 0.0
        %3050 = vmatpush2.msra.mxu0 0.0
        %3051 = vmatprep.subr.mxu0 0.0
        %3052 = vmatpush2.msra.mxu0 0.0
        %3053 = vmatprep.subr.mxu0 0.0
        %3054 = vmatpush2.msra.mxu0 0.0
        %3055 = vmatprep.subr.mxu0 0.0
        %3056 = vmatpush2.msra.mxu0 0.0
        %3057 = vmatprep.subr.mxu0 0.0
        %3058 = vmatpush2.msra.mxu0 0.0
        %3059 = vmatprep.subr.mxu0 0.0
        %3060 = vmatpush2.msra.mxu0 0.0
        %3061 = vmatprep.subr.mxu0 0.0
        %3062 = vmatpush2.msra.mxu0 0.0
        %3063 = vmatprep.subr.mxu0 0.0
        %3064 = vmatpush2.msra.mxu0 0.0
        %3065 = vmatprep.subr.mxu0 0.0
        %3066 = vmatpush2.msra.mxu0 0.0
        %3067 = vmatprep.subr.mxu0 0.0
        %3068 = vmatpush2.msra.mxu0 0.0
        %3069 = vmatprep.subr.mxu0 0.0
        %3070 = vmatpush2.msra.mxu0 0.0
        %3071 = vmatprep.subr.mxu0 0.0
        %3072 = vmatpush2.msra.mxu0 0.0
        %3073 = vmatprep.subr.mxu0 0.0
        %3074 = vmatpush2.msra.mxu0 0.0
        %3075 = vmatprep.subr.mxu0 0.0
        %3076 = vmatpush2.msra.mxu0 0.0
        %3077 = vmatprep.subr.mxu0 0.0
        %3078 = vmatpush2.msra.mxu0 0.0
        %3079 = vmatprep.subr.mxu0 0.0
        %3080 = vmatpush2.msra.mxu0 0.0
        %3081 = vmatprep.mubr.f32.mxu0 0.0
        %3082 = vmatmul.mubr.f32.gmra.mxu0 %v3015
        %v3083 = vpop.f32.mrf.mxu0
        %v3084 = vadd.f32 0.0, %v3083
        %v3085 = vpop.f32.mrf.mxu0
        %3086 = vdwg.mxu0
        %3087 = vrot.lane.b32.xlu0 %v2600, 112
        %v3088 = vpop.permute.xlu0 %3087
        %3089 = vrot.lane.b32.xlu0 %v2679, 112
        %v3090 = vpop.permute.xlu0 %3089
        %v3091 = vsel %vm801, %v3088, 0
        %v3093 = vsel %vm801, %v3090, 0
        %3095 = vmatprep.subr.mxu0 0.0
        %3096 = vmatpush1.xpose.msra.mxu0 0.0
        %3097 = vmatprep.subr.mxu0 0.0
        %3098 = vmatpush1.xpose.msra.mxu0 0.0
        %3099 = vmatprep.subr.mxu0 0.0
        %3100 = vmatpush1.xpose.msra.mxu0 0.0
        %3101 = vmatprep.subr.mxu0 0.0
        %3102 = vmatpush1.xpose.msra.mxu0 0.0
        %3103 = vmatprep.subr.mxu0 0.0
        %3104 = vmatpush1.xpose.msra.mxu0 0.0
        %3105 = vmatprep.subr.mxu0 0.0
        %3106 = vmatpush1.xpose.msra.mxu0 0.0
        %3107 = vmatprep.subr.mxu0 0.0
        %3108 = vmatpush1.xpose.msra.mxu0 0.0
        %3109 = vmatprep.subr.mxu0 0.0
        %3110 = vmatpush1.xpose.msra.mxu0 0.0
        %3111 = vmatprep.subr.mxu0 0.0
        %3112 = vmatpush1.xpose.msra.mxu0 0.0
        %3113 = vmatprep.subr.mxu0 0.0
        %3114 = vmatpush1.xpose.msra.mxu0 0.0
        %3115 = vmatprep.subr.mxu0 0.0
        %3116 = vmatpush1.xpose.msra.mxu0 0.0
        %3117 = vmatprep.subr.mxu0 0.0
        %3118 = vmatpush1.xpose.msra.mxu0 0.0
        %3119 = vmatprep.subr.mxu0 0.0
        %3120 = vmatpush1.xpose.msra.mxu0 0.0
        %3121 = vmatprep.subr.mxu0 0.0
        %3122 = vmatpush1.xpose.msra.mxu0 0.0
        %3123 = vmatprep.subr.mxu0 0.0
        %3124 = vmatpush1.xpose.msra.mxu0 0.0
        %3125 = vmatprep.subr.mxu0 0.0
        %3126 = vmatpush1.xpose.msra.mxu0 %v3093
        %3127 = vmatprep.subr.mxu0 0.0
        %3128 = vmatpush2.xpose.msra.mxu0 0.0
        %3129 = vmatprep.subr.mxu0 0.0
        %3130 = vmatpush2.xpose.msra.mxu0 0.0
        %3131 = vmatprep.subr.mxu0 0.0
        %3132 = vmatpush2.xpose.msra.mxu0 0.0
        %3133 = vmatprep.subr.mxu0 0.0
        %3134 = vmatpush2.xpose.msra.mxu0 0.0
        %3135 = vmatprep.subr.mxu0 0.0
        %3136 = vmatpush2.xpose.msra.mxu0 0.0
        %3137 = vmatprep.subr.mxu0 0.0
        %3138 = vmatpush2.xpose.msra.mxu0 0.0
        %3139 = vmatprep.subr.mxu0 0.0
        %3140 = vmatpush2.xpose.msra.mxu0 0.0
        %3141 = vmatprep.subr.mxu0 0.0
        %3142 = vmatpush2.xpose.msra.mxu0 0.0
        %3143 = vmatprep.subr.mxu0 0.0
        %3144 = vmatpush2.xpose.msra.mxu0 0.0
        %3145 = vmatprep.subr.mxu0 0.0
        %3146 = vmatpush2.xpose.msra.mxu0 0.0
        %3147 = vmatprep.subr.mxu0 0.0
        %3148 = vmatpush2.xpose.msra.mxu0 0.0
        %3149 = vmatprep.subr.mxu0 0.0
        %3150 = vmatpush2.xpose.msra.mxu0 0.0
        %3151 = vmatprep.subr.mxu0 0.0
        %3152 = vmatpush2.xpose.msra.mxu0 0.0
        %3153 = vmatprep.subr.mxu0 0.0
        %3154 = vmatpush2.xpose.msra.mxu0 0.0
        %3155 = vmatprep.subr.mxu0 0.0
        %3156 = vmatpush2.xpose.msra.mxu0 0.0
        %3157 = vmatprep.subr.mxu0 0.0
        %3158 = vmatpush2.xpose.msra.mxu0 0.0
        %3159 = vmatprep.mubr.f32.mxu0 0.0
        %3160 = vmatmul.mubr.f32.gmra.mxu0 %v3091
        %v3161 = vpop.f32.mrf.mxu0
        %v3162 = vadd.f32 0.0, %v3161
        %v3163 = vpop.f32.mrf.mxu0
        %3164 = vdwg.mxu0
        %v3165 = vsel %vm801, %v3162, -inf
        %3166 = vmax.xlane.f32.xlu0 %v3165
        %v3167 = vpop.xlane.xlu0 %3166
        %v3168 = vsub.f32 %v3162, %v3167
        %v3169 = vmul.f32 %v3168, 1.442695
        %v3170 = vpow.pop %v3169
        %v3171 = vsel %vm801, %v3170, 0.0
        %3172 = vadd.xlane.f32.xlu0 %v3171
        %v3173 = vpop.xlane.xlu0 %3172
        %v3174 = vrcp.pop %v3173
        %v3175 = vmul.f32 %v3170, %v3174
        %3176 = vrot.lane.b32.xlu0 %v2758, 112
        %v3177 = vpop.permute.xlu0 %3176
        %v3180 = vsel %vm801, %v3175, 0
        %3182 = vmatprep.subr.mxu0 0.0
        %3183 = vmatpush1.msra.mxu0 0.0
        %3184 = vmatprep.subr.mxu0 0.0
        %3185 = vmatpush1.msra.mxu0 0.0
        %3186 = vmatprep.subr.mxu0 0.0
        %3187 = vmatpush1.msra.mxu0 0.0
        %3188 = vmatprep.subr.mxu0 0.0
        %3189 = vmatpush1.msra.mxu0 0.0
        %3190 = vmatprep.subr.mxu0 0.0
        %3191 = vmatpush1.msra.mxu0 0.0
        %3192 = vmatprep.subr.mxu0 0.0
        %3193 = vmatpush1.msra.mxu0 0.0
        %3194 = vmatprep.subr.mxu0 0.0
        %3195 = vmatpush1.msra.mxu0 0.0
        %3196 = vmatprep.subr.mxu0 0.0
        %3197 = vmatpush1.msra.mxu0 0.0
        %3198 = vmatprep.subr.mxu0 0.0
        %3199 = vmatpush1.msra.mxu0 0.0
        %3200 = vmatprep.subr.mxu0 0.0
        %3201 = vmatpush1.msra.mxu0 0.0
        %3202 = vmatprep.subr.mxu0 0.0
        %3203 = vmatpush1.msra.mxu0 0.0
        %3204 = vmatprep.subr.mxu0 0.0
        %3205 = vmatpush1.msra.mxu0 0.0
        %3206 = vmatprep.subr.mxu0 0.0
        %3207 = vmatpush1.msra.mxu0 0.0
        %3208 = vmatprep.subr.mxu0 0.0
        %3209 = vmatpush1.msra.mxu0 0.0
        %3210 = vmatprep.subr.mxu0 0.0
        %3211 = vmatpush1.msra.mxu0 0.0
        %3212 = vmatprep.subr.mxu0 0.0
        %3213 = vmatpush1.msra.mxu0 %v3177
        %3214 = vmatprep.subr.mxu0 0.0
        %3215 = vmatpush2.msra.mxu0 0.0
        %3216 = vmatprep.subr.mxu0 0.0
        %3217 = vmatpush2.msra.mxu0 0.0
        %3218 = vmatprep.subr.mxu0 0.0
        %3219 = vmatpush2.msra.mxu0 0.0
        %3220 = vmatprep.subr.mxu0 0.0
        %3221 = vmatpush2.msra.mxu0 0.0
        %3222 = vmatprep.subr.mxu0 0.0
        %3223 = vmatpush2.msra.mxu0 0.0
        %3224 = vmatprep.subr.mxu0 0.0
        %3225 = vmatpush2.msra.mxu0 0.0
        %3226 = vmatprep.subr.mxu0 0.0
        %3227 = vmatpush2.msra.mxu0 0.0
        %3228 = vmatprep.subr.mxu0 0.0
        %3229 = vmatpush2.msra.mxu0 0.0
        %3230 = vmatprep.subr.mxu0 0.0
        %3231 = vmatpush2.msra.mxu0 0.0
        %3232 = vmatprep.subr.mxu0 0.0
        %3233 = vmatpush2.msra.mxu0 0.0
        %3234 = vmatprep.subr.mxu0 0.0
        %3235 = vmatpush2.msra.mxu0 0.0
        %3236 = vmatprep.subr.mxu0 0.0
        %3237 = vmatpush2.msra.mxu0 0.0
        %3238 = vmatprep.subr.mxu0 0.0
        %3239 = vmatpush2.msra.mxu0 0.0
        %3240 = vmatprep.subr.mxu0 0.0
        %3241 = vmatpush2.msra.mxu0 0.0
        %3242 = vmatprep.subr.mxu0 0.0
        %3243 = vmatpush2.msra.mxu0 0.0
        %3244 = vmatprep.subr.mxu0 0.0
        %3245 = vmatpush2.msra.mxu0 0.0
        %3246 = vmatprep.mubr.f32.mxu0 0.0
        %3247 = vmatmul.mubr.f32.gmra.mxu0 %v3180
        %v3248 = vpop.f32.mrf.mxu0
        %v3249 = vadd.f32 0.0, %v3248
        %v3250 = vpop.f32.mrf.mxu0
        %3251 = vdwg.mxu0
        %3252 = vrot.lane.b32.xlu0 %v2600, 104
        %v3253 = vpop.permute.xlu0 %3252
        %3254 = vrot.lane.b32.xlu0 %v2679, 104
        %v3255 = vpop.permute.xlu0 %3254
        %v3256 = vsel %vm801, %v3253, 0
        %v3258 = vsel %vm801, %v3255, 0
        %3260 = vmatprep.subr.mxu0 0.0
        %3261 = vmatpush1.xpose.msra.mxu0 0.0
        %3262 = vmatprep.subr.mxu0 0.0
        %3263 = vmatpush1.xpose.msra.mxu0 0.0
        %3264 = vmatprep.subr.mxu0 0.0
        %3265 = vmatpush1.xpose.msra.mxu0 0.0
        %3266 = vmatprep.subr.mxu0 0.0
        %3267 = vmatpush1.xpose.msra.mxu0 0.0
        %3268 = vmatprep.subr.mxu0 0.0
        %3269 = vmatpush1.xpose.msra.mxu0 0.0
        %3270 = vmatprep.subr.mxu0 0.0
        %3271 = vmatpush1.xpose.msra.mxu0 0.0
        %3272 = vmatprep.subr.mxu0 0.0
        %3273 = vmatpush1.xpose.msra.mxu0 0.0
        %3274 = vmatprep.subr.mxu0 0.0
        %3275 = vmatpush1.xpose.msra.mxu0 0.0
        %3276 = vmatprep.subr.mxu0 0.0
        %3277 = vmatpush1.xpose.msra.mxu0 0.0
        %3278 = vmatprep.subr.mxu0 0.0
        %3279 = vmatpush1.xpose.msra.mxu0 0.0
        %3280 = vmatprep.subr.mxu0 0.0
        %3281 = vmatpush1.xpose.msra.mxu0 0.0
        %3282 = vmatprep.subr.mxu0 0.0
        %3283 = vmatpush1.xpose.msra.mxu0 0.0
        %3284 = vmatprep.subr.mxu0 0.0
        %3285 = vmatpush1.xpose.msra.mxu0 0.0
        %3286 = vmatprep.subr.mxu0 0.0
        %3287 = vmatpush1.xpose.msra.mxu0 0.0
        %3288 = vmatprep.subr.mxu0 0.0
        %3289 = vmatpush1.xpose.msra.mxu0 0.0
        %3290 = vmatprep.subr.mxu0 0.0
        %3291 = vmatpush1.xpose.msra.mxu0 %v3258
        %3292 = vmatprep.subr.mxu0 0.0
        %3293 = vmatpush2.xpose.msra.mxu0 0.0
        %3294 = vmatprep.subr.mxu0 0.0
        %3295 = vmatpush2.xpose.msra.mxu0 0.0
        %3296 = vmatprep.subr.mxu0 0.0
        %3297 = vmatpush2.xpose.msra.mxu0 0.0
        %3298 = vmatprep.subr.mxu0 0.0
        %3299 = vmatpush2.xpose.msra.mxu0 0.0
        %3300 = vmatprep.subr.mxu0 0.0
        %3301 = vmatpush2.xpose.msra.mxu0 0.0
        %3302 = vmatprep.subr.mxu0 0.0
        %3303 = vmatpush2.xpose.msra.mxu0 0.0
        %3304 = vmatprep.subr.mxu0 0.0
        %3305 = vmatpush2.xpose.msra.mxu0 0.0
        %3306 = vmatprep.subr.mxu0 0.0
        %3307 = vmatpush2.xpose.msra.mxu0 0.0
        %3308 = vmatprep.subr.mxu0 0.0
        %3309 = vmatpush2.xpose.msra.mxu0 0.0
        %3310 = vmatprep.subr.mxu0 0.0
        %3311 = vmatpush2.xpose.msra.mxu0 0.0
        %3312 = vmatprep.subr.mxu0 0.0
        %3313 = vmatpush2.xpose.msra.mxu0 0.0
        %3314 = vmatprep.subr.mxu0 0.0
        %3315 = vmatpush2.xpose.msra.mxu0 0.0
        %3316 = vmatprep.subr.mxu0 0.0
        %3317 = vmatpush2.xpose.msra.mxu0 0.0
        %3318 = vmatprep.subr.mxu0 0.0
        %3319 = vmatpush2.xpose.msra.mxu0 0.0
        %3320 = vmatprep.subr.mxu0 0.0
        %3321 = vmatpush2.xpose.msra.mxu0 0.0
        %3322 = vmatprep.subr.mxu0 0.0
        %3323 = vmatpush2.xpose.msra.mxu0 0.0
        %3324 = vmatprep.mubr.f32.mxu0 0.0
        %3325 = vmatmul.mubr.f32.gmra.mxu0 %v3256
        %v3326 = vpop.f32.mrf.mxu0
        %v3327 = vadd.f32 0.0, %v3326
        %v3328 = vpop.f32.mrf.mxu0
        %3329 = vdwg.mxu0
        %v3330 = vsel %vm801, %v3327, -inf
        %3331 = vmax.xlane.f32.xlu0 %v3330
        %v3332 = vpop.xlane.xlu0 %3331
        %v3333 = vsub.f32 %v3327, %v3332
        %v3334 = vmul.f32 %v3333, 1.442695
        %v3335 = vpow.pop %v3334
        %v3336 = vsel %vm801, %v3335, 0.0
        %3337 = vadd.xlane.f32.xlu0 %v3336
        %v3338 = vpop.xlane.xlu0 %3337
        %v3339 = vrcp.pop %v3338
        %v3340 = vmul.f32 %v3335, %v3339
        %3341 = vrot.lane.b32.xlu0 %v2758, 104
        %v3342 = vpop.permute.xlu0 %3341
        %v3345 = vsel %vm801, %v3340, 0
        %3347 = vmatprep.subr.mxu0 0.0
        %3348 = vmatpush1.msra.mxu0 0.0
        %3349 = vmatprep.subr.mxu0 0.0
        %3350 = vmatpush1.msra.mxu0 0.0
        %3351 = vmatprep.subr.mxu0 0.0
        %3352 = vmatpush1.msra.mxu0 0.0
        %3353 = vmatprep.subr.mxu0 0.0
        %3354 = vmatpush1.msra.mxu0 0.0
        %3355 = vmatprep.subr.mxu0 0.0
        %3356 = vmatpush1.msra.mxu0 0.0
        %3357 = vmatprep.subr.mxu0 0.0
        %3358 = vmatpush1.msra.mxu0 0.0
        %3359 = vmatprep.subr.mxu0 0.0
        %3360 = vmatpush1.msra.mxu0 0.0
        %3361 = vmatprep.subr.mxu0 0.0
        %3362 = vmatpush1.msra.mxu0 0.0
        %3363 = vmatprep.subr.mxu0 0.0
        %3364 = vmatpush1.msra.mxu0 0.0
        %3365 = vmatprep.subr.mxu0 0.0
        %3366 = vmatpush1.msra.mxu0 0.0
        %3367 = vmatprep.subr.mxu0 0.0
        %3368 = vmatpush1.msra.mxu0 0.0
        %3369 = vmatprep.subr.mxu0 0.0
        %3370 = vmatpush1.msra.mxu0 0.0
        %3371 = vmatprep.subr.mxu0 0.0
        %3372 = vmatpush1.msra.mxu0 0.0
        %3373 = vmatprep.subr.mxu0 0.0
        %3374 = vmatpush1.msra.mxu0 0.0
        %3375 = vmatprep.subr.mxu0 0.0
        %3376 = vmatpush1.msra.mxu0 0.0
        %3377 = vmatprep.subr.mxu0 0.0
        %3378 = vmatpush1.msra.mxu0 %v3342
        %3379 = vmatprep.subr.mxu0 0.0
        %3380 = vmatpush2.msra.mxu0 0.0
        %3381 = vmatprep.subr.mxu0 0.0
        %3382 = vmatpush2.msra.mxu0 0.0
        %3383 = vmatprep.subr.mxu0 0.0
        %3384 = vmatpush2.msra.mxu0 0.0
        %3385 = vmatprep.subr.mxu0 0.0
        %3386 = vmatpush2.msra.mxu0 0.0
        %3387 = vmatprep.subr.mxu0 0.0
        %3388 = vmatpush2.msra.mxu0 0.0
        %3389 = vmatprep.subr.mxu0 0.0
        %3390 = vmatpush2.msra.mxu0 0.0
        %3391 = vmatprep.subr.mxu0 0.0
        %3392 = vmatpush2.msra.mxu0 0.0
        %3393 = vmatprep.subr.mxu0 0.0
        %3394 = vmatpush2.msra.mxu0 0.0
        %3395 = vmatprep.subr.mxu0 0.0
        %3396 = vmatpush2.msra.mxu0 0.0
        %3397 = vmatprep.subr.mxu0 0.0
        %3398 = vmatpush2.msra.mxu0 0.0
        %3399 = vmatprep.subr.mxu0 0.0
        %3400 = vmatpush2.msra.mxu0 0.0
        %3401 = vmatprep.subr.mxu0 0.0
        %3402 = vmatpush2.msra.mxu0 0.0
        %3403 = vmatprep.subr.mxu0 0.0
        %3404 = vmatpush2.msra.mxu0 0.0
        %3405 = vmatprep.subr.mxu0 0.0
        %3406 = vmatpush2.msra.mxu0 0.0
        %3407 = vmatprep.subr.mxu0 0.0
        %3408 = vmatpush2.msra.mxu0 0.0
        %3409 = vmatprep.subr.mxu0 0.0
        %3410 = vmatpush2.msra.mxu0 0.0
        %3411 = vmatprep.mubr.f32.mxu0 0.0
        %3412 = vmatmul.mubr.f32.gmra.mxu0 %v3345
        %v3413 = vpop.f32.mrf.mxu0
        %v3414 = vadd.f32 0.0, %v3413
        %v3415 = vpop.f32.mrf.mxu0
        %3416 = vdwg.mxu0
        %3417 = vrot.lane.b32.xlu0 %v2600, 96
        %v3418 = vpop.permute.xlu0 %3417
        %3419 = vrot.lane.b32.xlu0 %v2679, 96
        %v3420 = vpop.permute.xlu0 %3419
        %v3421 = vsel %vm801, %v3418, 0
        %v3423 = vsel %vm801, %v3420, 0
        %3425 = vmatprep.subr.mxu0 0.0
        %3426 = vmatpush1.xpose.msra.mxu0 0.0
        %3427 = vmatprep.subr.mxu0 0.0
        %3428 = vmatpush1.xpose.msra.mxu0 0.0
        %3429 = vmatprep.subr.mxu0 0.0
        %3430 = vmatpush1.xpose.msra.mxu0 0.0
        %3431 = vmatprep.subr.mxu0 0.0
        %3432 = vmatpush1.xpose.msra.mxu0 0.0
        %3433 = vmatprep.subr.mxu0 0.0
        %3434 = vmatpush1.xpose.msra.mxu0 0.0
        %3435 = vmatprep.subr.mxu0 0.0
        %3436 = vmatpush1.xpose.msra.mxu0 0.0
        %3437 = vmatprep.subr.mxu0 0.0
        %3438 = vmatpush1.xpose.msra.mxu0 0.0
        %3439 = vmatprep.subr.mxu0 0.0
        %3440 = vmatpush1.xpose.msra.mxu0 0.0
        %3441 = vmatprep.subr.mxu0 0.0
        %3442 = vmatpush1.xpose.msra.mxu0 0.0
        %3443 = vmatprep.subr.mxu0 0.0
        %3444 = vmatpush1.xpose.msra.mxu0 0.0
        %3445 = vmatprep.subr.mxu0 0.0
        %3446 = vmatpush1.xpose.msra.mxu0 0.0
        %3447 = vmatprep.subr.mxu0 0.0
        %3448 = vmatpush1.xpose.msra.mxu0 0.0
        %3449 = vmatprep.subr.mxu0 0.0
        %3450 = vmatpush1.xpose.msra.mxu0 0.0
        %3451 = vmatprep.subr.mxu0 0.0
        %3452 = vmatpush1.xpose.msra.mxu0 0.0
        %3453 = vmatprep.subr.mxu0 0.0
        %3454 = vmatpush1.xpose.msra.mxu0 0.0
        %3455 = vmatprep.subr.mxu0 0.0
        %3456 = vmatpush1.xpose.msra.mxu0 %v3423
        %3457 = vmatprep.subr.mxu0 0.0
        %3458 = vmatpush2.xpose.msra.mxu0 0.0
        %3459 = vmatprep.subr.mxu0 0.0
        %3460 = vmatpush2.xpose.msra.mxu0 0.0
        %3461 = vmatprep.subr.mxu0 0.0
        %3462 = vmatpush2.xpose.msra.mxu0 0.0
        %3463 = vmatprep.subr.mxu0 0.0
        %3464 = vmatpush2.xpose.msra.mxu0 0.0
        %3465 = vmatprep.subr.mxu0 0.0
        %3466 = vmatpush2.xpose.msra.mxu0 0.0
        %3467 = vmatprep.subr.mxu0 0.0
        %3468 = vmatpush2.xpose.msra.mxu0 0.0
        %3469 = vmatprep.subr.mxu0 0.0
        %3470 = vmatpush2.xpose.msra.mxu0 0.0
        %3471 = vmatprep.subr.mxu0 0.0
        %3472 = vmatpush2.xpose.msra.mxu0 0.0
        %3473 = vmatprep.subr.mxu0 0.0
        %3474 = vmatpush2.xpose.msra.mxu0 0.0
        %3475 = vmatprep.subr.mxu0 0.0
        %3476 = vmatpush2.xpose.msra.mxu0 0.0
        %3477 = vmatprep.subr.mxu0 0.0
        %3478 = vmatpush2.xpose.msra.mxu0 0.0
        %3479 = vmatprep.subr.mxu0 0.0
        %3480 = vmatpush2.xpose.msra.mxu0 0.0
        %3481 = vmatprep.subr.mxu0 0.0
        %3482 = vmatpush2.xpose.msra.mxu0 0.0
        %3483 = vmatprep.subr.mxu0 0.0
        %3484 = vmatpush2.xpose.msra.mxu0 0.0
        %3485 = vmatprep.subr.mxu0 0.0
        %3486 = vmatpush2.xpose.msra.mxu0 0.0
        %3487 = vmatprep.subr.mxu0 0.0
        %3488 = vmatpush2.xpose.msra.mxu0 0.0
        %3489 = vmatprep.mubr.f32.mxu0 0.0
        %3490 = vmatmul.mubr.f32.gmra.mxu0 %v3421
        %v3491 = vpop.f32.mrf.mxu0
        %v3492 = vadd.f32 0.0, %v3491
        %v3493 = vpop.f32.mrf.mxu0
        %3494 = vdwg.mxu0
        %v3495 = vsel %vm801, %v3492, -inf
        %3496 = vmax.xlane.f32.xlu0 %v3495
        %v3497 = vpop.xlane.xlu0 %3496
        %v3498 = vsub.f32 %v3492, %v3497
        %v3499 = vmul.f32 %v3498, 1.442695
        %v3500 = vpow.pop %v3499
        %v3501 = vsel %vm801, %v3500, 0.0
        %3502 = vadd.xlane.f32.xlu0 %v3501
        %v3503 = vpop.xlane.xlu0 %3502
        %v3504 = vrcp.pop %v3503
        %v3505 = vmul.f32 %v3500, %v3504
        %3506 = vrot.lane.b32.xlu0 %v2758, 96
        %v3507 = vpop.permute.xlu0 %3506
        %v3510 = vsel %vm801, %v3505, 0
        %3512 = vmatprep.subr.mxu0 0.0
        %3513 = vmatpush1.msra.mxu0 0.0
        %3514 = vmatprep.subr.mxu0 0.0
        %3515 = vmatpush1.msra.mxu0 0.0
        %3516 = vmatprep.subr.mxu0 0.0
        %3517 = vmatpush1.msra.mxu0 0.0
        %3518 = vmatprep.subr.mxu0 0.0
        %3519 = vmatpush1.msra.mxu0 0.0
        %3520 = vmatprep.subr.mxu0 0.0
        %3521 = vmatpush1.msra.mxu0 0.0
        %3522 = vmatprep.subr.mxu0 0.0
        %3523 = vmatpush1.msra.mxu0 0.0
        %3524 = vmatprep.subr.mxu0 0.0
        %3525 = vmatpush1.msra.mxu0 0.0
        %3526 = vmatprep.subr.mxu0 0.0
        %3527 = vmatpush1.msra.mxu0 0.0
        %3528 = vmatprep.subr.mxu0 0.0
        %3529 = vmatpush1.msra.mxu0 0.0
        %3530 = vmatprep.subr.mxu0 0.0
        %3531 = vmatpush1.msra.mxu0 0.0
        %3532 = vmatprep.subr.mxu0 0.0
        %3533 = vmatpush1.msra.mxu0 0.0
        %3534 = vmatprep.subr.mxu0 0.0
        %3535 = vmatpush1.msra.mxu0 0.0
        %3536 = vmatprep.subr.mxu0 0.0
        %3537 = vmatpush1.msra.mxu0 0.0
        %3538 = vmatprep.subr.mxu0 0.0
        %3539 = vmatpush1.msra.mxu0 0.0
        %3540 = vmatprep.subr.mxu0 0.0
        %3541 = vmatpush1.msra.mxu0 0.0
        %3542 = vmatprep.subr.mxu0 0.0
        %3543 = vmatpush1.msra.mxu0 %v3507
        %3544 = vmatprep.subr.mxu0 0.0
        %3545 = vmatpush2.msra.mxu0 0.0
        %3546 = vmatprep.subr.mxu0 0.0
        %3547 = vmatpush2.msra.mxu0 0.0
        %3548 = vmatprep.subr.mxu0 0.0
        %3549 = vmatpush2.msra.mxu0 0.0
        %3550 = vmatprep.subr.mxu0 0.0
        %3551 = vmatpush2.msra.mxu0 0.0
        %3552 = vmatprep.subr.mxu0 0.0
        %3553 = vmatpush2.msra.mxu0 0.0
        %3554 = vmatprep.subr.mxu0 0.0
        %3555 = vmatpush2.msra.mxu0 0.0
        %3556 = vmatprep.subr.mxu0 0.0
        %3557 = vmatpush2.msra.mxu0 0.0
        %3558 = vmatprep.subr.mxu0 0.0
        %3559 = vmatpush2.msra.mxu0 0.0
        %3560 = vmatprep.subr.mxu0 0.0
        %3561 = vmatpush2.msra.mxu0 0.0
        %3562 = vmatprep.subr.mxu0 0.0
        %3563 = vmatpush2.msra.mxu0 0.0
        %3564 = vmatprep.subr.mxu0 0.0
        %3565 = vmatpush2.msra.mxu0 0.0
        %3566 = vmatprep.subr.mxu0 0.0
        %3567 = vmatpush2.msra.mxu0 0.0
        %3568 = vmatprep.subr.mxu0 0.0
        %3569 = vmatpush2.msra.mxu0 0.0
        %3570 = vmatprep.subr.mxu0 0.0
        %3571 = vmatpush2.msra.mxu0 0.0
        %3572 = vmatprep.subr.mxu0 0.0
        %3573 = vmatpush2.msra.mxu0 0.0
        %3574 = vmatprep.subr.mxu0 0.0
        %3575 = vmatpush2.msra.mxu0 0.0
        %3576 = vmatprep.mubr.f32.mxu0 0.0
        %3577 = vmatmul.mubr.f32.gmra.mxu0 %v3510
        %v3578 = vpop.f32.mrf.mxu0
        %v3579 = vadd.f32 0.0, %v3578
        %v3580 = vpop.f32.mrf.mxu0
        %3581 = vdwg.mxu0
        %3582 = vrot.lane.b32.xlu0 %v2600, 88
        %v3583 = vpop.permute.xlu0 %3582
        %3584 = vrot.lane.b32.xlu0 %v2679, 88
        %v3585 = vpop.permute.xlu0 %3584
        %v3586 = vsel %vm801, %v3583, 0
        %v3588 = vsel %vm801, %v3585, 0
        %3590 = vmatprep.subr.mxu0 0.0
        %3591 = vmatpush1.xpose.msra.mxu0 0.0
        %3592 = vmatprep.subr.mxu0 0.0
        %3593 = vmatpush1.xpose.msra.mxu0 0.0
        %3594 = vmatprep.subr.mxu0 0.0
        %3595 = vmatpush1.xpose.msra.mxu0 0.0
        %3596 = vmatprep.subr.mxu0 0.0
        %3597 = vmatpush1.xpose.msra.mxu0 0.0
        %3598 = vmatprep.subr.mxu0 0.0
        %3599 = vmatpush1.xpose.msra.mxu0 0.0
        %3600 = vmatprep.subr.mxu0 0.0
        %3601 = vmatpush1.xpose.msra.mxu0 0.0
        %3602 = vmatprep.subr.mxu0 0.0
        %3603 = vmatpush1.xpose.msra.mxu0 0.0
        %3604 = vmatprep.subr.mxu0 0.0
        %3605 = vmatpush1.xpose.msra.mxu0 0.0
        %3606 = vmatprep.subr.mxu0 0.0
        %3607 = vmatpush1.xpose.msra.mxu0 0.0
        %3608 = vmatprep.subr.mxu0 0.0
        %3609 = vmatpush1.xpose.msra.mxu0 0.0
        %3610 = vmatprep.subr.mxu0 0.0
        %3611 = vmatpush1.xpose.msra.mxu0 0.0
        %3612 = vmatprep.subr.mxu0 0.0
        %3613 = vmatpush1.xpose.msra.mxu0 0.0
        %3614 = vmatprep.subr.mxu0 0.0
        %3615 = vmatpush1.xpose.msra.mxu0 0.0
        %3616 = vmatprep.subr.mxu0 0.0
        %3617 = vmatpush1.xpose.msra.mxu0 0.0
        %3618 = vmatprep.subr.mxu0 0.0
        %3619 = vmatpush1.xpose.msra.mxu0 0.0
        %3620 = vmatprep.subr.mxu0 0.0
        %3621 = vmatpush1.xpose.msra.mxu0 %v3588
        %3622 = vmatprep.subr.mxu0 0.0
        %3623 = vmatpush2.xpose.msra.mxu0 0.0
        %3624 = vmatprep.subr.mxu0 0.0
        %3625 = vmatpush2.xpose.msra.mxu0 0.0
        %3626 = vmatprep.subr.mxu0 0.0
        %3627 = vmatpush2.xpose.msra.mxu0 0.0
        %3628 = vmatprep.subr.mxu0 0.0
        %3629 = vmatpush2.xpose.msra.mxu0 0.0
        %3630 = vmatprep.subr.mxu0 0.0
        %3631 = vmatpush2.xpose.msra.mxu0 0.0
        %3632 = vmatprep.subr.mxu0 0.0
        %3633 = vmatpush2.xpose.msra.mxu0 0.0
        %3634 = vmatprep.subr.mxu0 0.0
        %3635 = vmatpush2.xpose.msra.mxu0 0.0
        %3636 = vmatprep.subr.mxu0 0.0
        %3637 = vmatpush2.xpose.msra.mxu0 0.0
        %3638 = vmatprep.subr.mxu0 0.0
        %3639 = vmatpush2.xpose.msra.mxu0 0.0
        %3640 = vmatprep.subr.mxu0 0.0
        %3641 = vmatpush2.xpose.msra.mxu0 0.0
        %3642 = vmatprep.subr.mxu0 0.0
        %3643 = vmatpush2.xpose.msra.mxu0 0.0
        %3644 = vmatprep.subr.mxu0 0.0
        %3645 = vmatpush2.xpose.msra.mxu0 0.0
        %3646 = vmatprep.subr.mxu0 0.0
        %3647 = vmatpush2.xpose.msra.mxu0 0.0
        %3648 = vmatprep.subr.mxu0 0.0
        %3649 = vmatpush2.xpose.msra.mxu0 0.0
        %3650 = vmatprep.subr.mxu0 0.0
        %3651 = vmatpush2.xpose.msra.mxu0 0.0
        %3652 = vmatprep.subr.mxu0 0.0
        %3653 = vmatpush2.xpose.msra.mxu0 0.0
        %3654 = vmatprep.mubr.f32.mxu0 0.0
        %3655 = vmatmul.mubr.f32.gmra.mxu0 %v3586
        %v3656 = vpop.f32.mrf.mxu0
        %v3657 = vadd.f32 0.0, %v3656
        %v3658 = vpop.f32.mrf.mxu0
        %3659 = vdwg.mxu0
        %v3660 = vsel %vm801, %v3657, -inf
        %3661 = vmax.xlane.f32.xlu0 %v3660
        %v3662 = vpop.xlane.xlu0 %3661
        %v3663 = vsub.f32 %v3657, %v3662
        %v3664 = vmul.f32 %v3663, 1.442695
        %v3665 = vpow.pop %v3664
        %v3666 = vsel %vm801, %v3665, 0.0
        %3667 = vadd.xlane.f32.xlu0 %v3666
        %v3668 = vpop.xlane.xlu0 %3667
        %v3669 = vrcp.pop %v3668
        %v3670 = vmul.f32 %v3665, %v3669
        %3671 = vrot.lane.b32.xlu0 %v2758, 88
        %v3672 = vpop.permute.xlu0 %3671
        %v3675 = vsel %vm801, %v3670, 0
        %3677 = vmatprep.subr.mxu0 0.0
        %3678 = vmatpush1.msra.mxu0 0.0
        %3679 = vmatprep.subr.mxu0 0.0
        %3680 = vmatpush1.msra.mxu0 0.0
        %3681 = vmatprep.subr.mxu0 0.0
        %3682 = vmatpush1.msra.mxu0 0.0
        %3683 = vmatprep.subr.mxu0 0.0
        %3684 = vmatpush1.msra.mxu0 0.0
        %3685 = vmatprep.subr.mxu0 0.0
        %3686 = vmatpush1.msra.mxu0 0.0
        %3687 = vmatprep.subr.mxu0 0.0
        %3688 = vmatpush1.msra.mxu0 0.0
        %3689 = vmatprep.subr.mxu0 0.0
        %3690 = vmatpush1.msra.mxu0 0.0
        %3691 = vmatprep.subr.mxu0 0.0
        %3692 = vmatpush1.msra.mxu0 0.0
        %3693 = vmatprep.subr.mxu0 0.0
        %3694 = vmatpush1.msra.mxu0 0.0
        %3695 = vmatprep.subr.mxu0 0.0
        %3696 = vmatpush1.msra.mxu0 0.0
        %3697 = vmatprep.subr.mxu0 0.0
        %3698 = vmatpush1.msra.mxu0 0.0
        %3699 = vmatprep.subr.mxu0 0.0
        %3700 = vmatpush1.msra.mxu0 0.0
        %3701 = vmatprep.subr.mxu0 0.0
        %3702 = vmatpush1.msra.mxu0 0.0
        %3703 = vmatprep.subr.mxu0 0.0
        %3704 = vmatpush1.msra.mxu0 0.0
        %3705 = vmatprep.subr.mxu0 0.0
        %3706 = vmatpush1.msra.mxu0 0.0
        %3707 = vmatprep.subr.mxu0 0.0
        %3708 = vmatpush1.msra.mxu0 %v3672
        %3709 = vmatprep.subr.mxu0 0.0
        %3710 = vmatpush2.msra.mxu0 0.0
        %3711 = vmatprep.subr.mxu0 0.0
        %3712 = vmatpush2.msra.mxu0 0.0
        %3713 = vmatprep.subr.mxu0 0.0
        %3714 = vmatpush2.msra.mxu0 0.0
        %3715 = vmatprep.subr.mxu0 0.0
        %3716 = vmatpush2.msra.mxu0 0.0
        %3717 = vmatprep.subr.mxu0 0.0
        %3718 = vmatpush2.msra.mxu0 0.0
        %3719 = vmatprep.subr.mxu0 0.0
        %3720 = vmatpush2.msra.mxu0 0.0
        %3721 = vmatprep.subr.mxu0 0.0
        %3722 = vmatpush2.msra.mxu0 0.0
        %3723 = vmatprep.subr.mxu0 0.0
        %3724 = vmatpush2.msra.mxu0 0.0
        %3725 = vmatprep.subr.mxu0 0.0
        %3726 = vmatpush2.msra.mxu0 0.0
        %3727 = vmatprep.subr.mxu0 0.0
        %3728 = vmatpush2.msra.mxu0 0.0
        %3729 = vmatprep.subr.mxu0 0.0
        %3730 = vmatpush2.msra.mxu0 0.0
        %3731 = vmatprep.subr.mxu0 0.0
        %3732 = vmatpush2.msra.mxu0 0.0
        %3733 = vmatprep.subr.mxu0 0.0
        %3734 = vmatpush2.msra.mxu0 0.0
        %3735 = vmatprep.subr.mxu0 0.0
        %3736 = vmatpush2.msra.mxu0 0.0
        %3737 = vmatprep.subr.mxu0 0.0
        %3738 = vmatpush2.msra.mxu0 0.0
        %3739 = vmatprep.subr.mxu0 0.0
        %3740 = vmatpush2.msra.mxu0 0.0
        %3741 = vmatprep.mubr.f32.mxu0 0.0
        %3742 = vmatmul.mubr.f32.gmra.mxu0 %v3675
        %v3743 = vpop.f32.mrf.mxu0
        %v3744 = vadd.f32 0.0, %v3743
        %v3745 = vpop.f32.mrf.mxu0
        %3746 = vdwg.mxu0
        %3747 = vrot.lane.b32.xlu0 %v2600, 80
        %v3748 = vpop.permute.xlu0 %3747
        %3749 = vrot.lane.b32.xlu0 %v2679, 80
        %v3750 = vpop.permute.xlu0 %3749
        %v3751 = vsel %vm801, %v3748, 0
        %v3753 = vsel %vm801, %v3750, 0
        %3755 = vmatprep.subr.mxu0 0.0
        %3756 = vmatpush1.xpose.msra.mxu0 0.0
        %3757 = vmatprep.subr.mxu0 0.0
        %3758 = vmatpush1.xpose.msra.mxu0 0.0
        %3759 = vmatprep.subr.mxu0 0.0
        %3760 = vmatpush1.xpose.msra.mxu0 0.0
        %3761 = vmatprep.subr.mxu0 0.0
        %3762 = vmatpush1.xpose.msra.mxu0 0.0
        %3763 = vmatprep.subr.mxu0 0.0
        %3764 = vmatpush1.xpose.msra.mxu0 0.0
        %3765 = vmatprep.subr.mxu0 0.0
        %3766 = vmatpush1.xpose.msra.mxu0 0.0
        %3767 = vmatprep.subr.mxu0 0.0
        %3768 = vmatpush1.xpose.msra.mxu0 0.0
        %3769 = vmatprep.subr.mxu0 0.0
        %3770 = vmatpush1.xpose.msra.mxu0 0.0
        %3771 = vmatprep.subr.mxu0 0.0
        %3772 = vmatpush1.xpose.msra.mxu0 0.0
        %3773 = vmatprep.subr.mxu0 0.0
        %3774 = vmatpush1.xpose.msra.mxu0 0.0
        %3775 = vmatprep.subr.mxu0 0.0
        %3776 = vmatpush1.xpose.msra.mxu0 0.0
        %3777 = vmatprep.subr.mxu0 0.0
        %3778 = vmatpush1.xpose.msra.mxu0 0.0
        %3779 = vmatprep.subr.mxu0 0.0
        %3780 = vmatpush1.xpose.msra.mxu0 0.0
        %3781 = vmatprep.subr.mxu0 0.0
        %3782 = vmatpush1.xpose.msra.mxu0 0.0
        %3783 = vmatprep.subr.mxu0 0.0
        %3784 = vmatpush1.xpose.msra.mxu0 0.0
        %3785 = vmatprep.subr.mxu0 0.0
        %3786 = vmatpush1.xpose.msra.mxu0 %v3753
        %3787 = vmatprep.subr.mxu0 0.0
        %3788 = vmatpush2.xpose.msra.mxu0 0.0
        %3789 = vmatprep.subr.mxu0 0.0
        %3790 = vmatpush2.xpose.msra.mxu0 0.0
        %3791 = vmatprep.subr.mxu0 0.0
        %3792 = vmatpush2.xpose.msra.mxu0 0.0
        %3793 = vmatprep.subr.mxu0 0.0
        %3794 = vmatpush2.xpose.msra.mxu0 0.0
        %3795 = vmatprep.subr.mxu0 0.0
        %3796 = vmatpush2.xpose.msra.mxu0 0.0
        %3797 = vmatprep.subr.mxu0 0.0
        %3798 = vmatpush2.xpose.msra.mxu0 0.0
        %3799 = vmatprep.subr.mxu0 0.0
        %3800 = vmatpush2.xpose.msra.mxu0 0.0
        %3801 = vmatprep.subr.mxu0 0.0
        %3802 = vmatpush2.xpose.msra.mxu0 0.0
        %3803 = vmatprep.subr.mxu0 0.0
        %3804 = vmatpush2.xpose.msra.mxu0 0.0
        %3805 = vmatprep.subr.mxu0 0.0
        %3806 = vmatpush2.xpose.msra.mxu0 0.0
        %3807 = vmatprep.subr.mxu0 0.0
        %3808 = vmatpush2.xpose.msra.mxu0 0.0
        %3809 = vmatprep.subr.mxu0 0.0
        %3810 = vmatpush2.xpose.msra.mxu0 0.0
        %3811 = vmatprep.subr.mxu0 0.0
        %3812 = vmatpush2.xpose.msra.mxu0 0.0
        %3813 = vmatprep.subr.mxu0 0.0
        %3814 = vmatpush2.xpose.msra.mxu0 0.0
        %3815 = vmatprep.subr.mxu0 0.0
        %3816 = vmatpush2.xpose.msra.mxu0 0.0
        %3817 = vmatprep.subr.mxu0 0.0
        %3818 = vmatpush2.xpose.msra.mxu0 0.0
        %3819 = vmatprep.mubr.f32.mxu0 0.0
        %3820 = vmatmul.mubr.f32.gmra.mxu0 %v3751
        %v3821 = vpop.f32.mrf.mxu0
        %v3822 = vadd.f32 0.0, %v3821
        %v3823 = vpop.f32.mrf.mxu0
        %3824 = vdwg.mxu0
        %v3825 = vsel %vm801, %v3822, -inf
        %3826 = vmax.xlane.f32.xlu0 %v3825
        %v3827 = vpop.xlane.xlu0 %3826
        %v3828 = vsub.f32 %v3822, %v3827
        %v3829 = vmul.f32 %v3828, 1.442695
        %v3830 = vpow.pop %v3829
        %v3831 = vsel %vm801, %v3830, 0.0
        %3832 = vadd.xlane.f32.xlu0 %v3831
        %v3833 = vpop.xlane.xlu0 %3832
        %v3834 = vrcp.pop %v3833
        %v3835 = vmul.f32 %v3830, %v3834
        %3836 = vrot.lane.b32.xlu0 %v2758, 80
        %v3837 = vpop.permute.xlu0 %3836
        %v3840 = vsel %vm801, %v3835, 0
        %3842 = vmatprep.subr.mxu0 0.0
        %3843 = vmatpush1.msra.mxu0 0.0
        %3844 = vmatprep.subr.mxu0 0.0
        %3845 = vmatpush1.msra.mxu0 0.0
        %3846 = vmatprep.subr.mxu0 0.0
        %3847 = vmatpush1.msra.mxu0 0.0
        %3848 = vmatprep.subr.mxu0 0.0
        %3849 = vmatpush1.msra.mxu0 0.0
        %3850 = vmatprep.subr.mxu0 0.0
        %3851 = vmatpush1.msra.mxu0 0.0
        %3852 = vmatprep.subr.mxu0 0.0
        %3853 = vmatpush1.msra.mxu0 0.0
        %3854 = vmatprep.subr.mxu0 0.0
        %3855 = vmatpush1.msra.mxu0 0.0
        %3856 = vmatprep.subr.mxu0 0.0
        %3857 = vmatpush1.msra.mxu0 0.0
        %3858 = vmatprep.subr.mxu0 0.0
        %3859 = vmatpush1.msra.mxu0 0.0
        %3860 = vmatprep.subr.mxu0 0.0
        %3861 = vmatpush1.msra.mxu0 0.0
        %3862 = vmatprep.subr.mxu0 0.0
        %3863 = vmatpush1.msra.mxu0 0.0
        %3864 = vmatprep.subr.mxu0 0.0
        %3865 = vmatpush1.msra.mxu0 0.0
        %3866 = vmatprep.subr.mxu0 0.0
        %3867 = vmatpush1.msra.mxu0 0.0
        %3868 = vmatprep.subr.mxu0 0.0
        %3869 = vmatpush1.msra.mxu0 0.0
        %3870 = vmatprep.subr.mxu0 0.0
        %3871 = vmatpush1.msra.mxu0 0.0
        %3872 = vmatprep.subr.mxu0 0.0
        %3873 = vmatpush1.msra.mxu0 %v3837
        %3874 = vmatprep.subr.mxu0 0.0
        %3875 = vmatpush2.msra.mxu0 0.0
        %3876 = vmatprep.subr.mxu0 0.0
        %3877 = vmatpush2.msra.mxu0 0.0
        %3878 = vmatprep.subr.mxu0 0.0
        %3879 = vmatpush2.msra.mxu0 0.0
        %3880 = vmatprep.subr.mxu0 0.0
        %3881 = vmatpush2.msra.mxu0 0.0
        %3882 = vmatprep.subr.mxu0 0.0
        %3883 = vmatpush2.msra.mxu0 0.0
        %3884 = vmatprep.subr.mxu0 0.0
        %3885 = vmatpush2.msra.mxu0 0.0
        %3886 = vmatprep.subr.mxu0 0.0
        %3887 = vmatpush2.msra.mxu0 0.0
        %3888 = vmatprep.subr.mxu0 0.0
        %3889 = vmatpush2.msra.mxu0 0.0
        %3890 = vmatprep.subr.mxu0 0.0
        %3891 = vmatpush2.msra.mxu0 0.0
        %3892 = vmatprep.subr.mxu0 0.0
        %3893 = vmatpush2.msra.mxu0 0.0
        %3894 = vmatprep.subr.mxu0 0.0
        %3895 = vmatpush2.msra.mxu0 0.0
        %3896 = vmatprep.subr.mxu0 0.0
        %3897 = vmatpush2.msra.mxu0 0.0
        %3898 = vmatprep.subr.mxu0 0.0
        %3899 = vmatpush2.msra.mxu0 0.0
        %3900 = vmatprep.subr.mxu0 0.0
        %3901 = vmatpush2.msra.mxu0 0.0
        %3902 = vmatprep.subr.mxu0 0.0
        %3903 = vmatpush2.msra.mxu0 0.0
        %3904 = vmatprep.subr.mxu0 0.0
        %3905 = vmatpush2.msra.mxu0 0.0
        %3906 = vmatprep.mubr.f32.mxu0 0.0
        %3907 = vmatmul.mubr.f32.gmra.mxu0 %v3840
        %v3908 = vpop.f32.mrf.mxu0
        %v3909 = vadd.f32 0.0, %v3908
        %v3910 = vpop.f32.mrf.mxu0
        %3911 = vdwg.mxu0
        %3912 = vrot.lane.b32.xlu0 %v2600, 72
        %v3913 = vpop.permute.xlu0 %3912
        %3914 = vrot.lane.b32.xlu0 %v2679, 72
        %v3915 = vpop.permute.xlu0 %3914
        %v3916 = vsel %vm801, %v3913, 0
        %v3918 = vsel %vm801, %v3915, 0
        %3920 = vmatprep.subr.mxu0 0.0
        %3921 = vmatpush1.xpose.msra.mxu0 0.0
        %3922 = vmatprep.subr.mxu0 0.0
        %3923 = vmatpush1.xpose.msra.mxu0 0.0
        %3924 = vmatprep.subr.mxu0 0.0
        %3925 = vmatpush1.xpose.msra.mxu0 0.0
        %3926 = vmatprep.subr.mxu0 0.0
        %3927 = vmatpush1.xpose.msra.mxu0 0.0
        %3928 = vmatprep.subr.mxu0 0.0
        %3929 = vmatpush1.xpose.msra.mxu0 0.0
        %3930 = vmatprep.subr.mxu0 0.0
        %3931 = vmatpush1.xpose.msra.mxu0 0.0
        %3932 = vmatprep.subr.mxu0 0.0
        %3933 = vmatpush1.xpose.msra.mxu0 0.0
        %3934 = vmatprep.subr.mxu0 0.0
        %3935 = vmatpush1.xpose.msra.mxu0 0.0
        %3936 = vmatprep.subr.mxu0 0.0
        %3937 = vmatpush1.xpose.msra.mxu0 0.0
        %3938 = vmatprep.subr.mxu0 0.0
        %3939 = vmatpush1.xpose.msra.mxu0 0.0
        %3940 = vmatprep.subr.mxu0 0.0
        %3941 = vmatpush1.xpose.msra.mxu0 0.0
        %3942 = vmatprep.subr.mxu0 0.0
        %3943 = vmatpush1.xpose.msra.mxu0 0.0
        %3944 = vmatprep.subr.mxu0 0.0
        %3945 = vmatpush1.xpose.msra.mxu0 0.0
        %3946 = vmatprep.subr.mxu0 0.0
        %3947 = vmatpush1.xpose.msra.mxu0 0.0
        %3948 = vmatprep.subr.mxu0 0.0
        %3949 = vmatpush1.xpose.msra.mxu0 0.0
        %3950 = vmatprep.subr.mxu0 0.0
        %3951 = vmatpush1.xpose.msra.mxu0 %v3918
        %3952 = vmatprep.subr.mxu0 0.0
        %3953 = vmatpush2.xpose.msra.mxu0 0.0
        %3954 = vmatprep.subr.mxu0 0.0
        %3955 = vmatpush2.xpose.msra.mxu0 0.0
        %3956 = vmatprep.subr.mxu0 0.0
        %3957 = vmatpush2.xpose.msra.mxu0 0.0
        %3958 = vmatprep.subr.mxu0 0.0
        %3959 = vmatpush2.xpose.msra.mxu0 0.0
        %3960 = vmatprep.subr.mxu0 0.0
        %3961 = vmatpush2.xpose.msra.mxu0 0.0
        %3962 = vmatprep.subr.mxu0 0.0
        %3963 = vmatpush2.xpose.msra.mxu0 0.0
        %3964 = vmatprep.subr.mxu0 0.0
        %3965 = vmatpush2.xpose.msra.mxu0 0.0
        %3966 = vmatprep.subr.mxu0 0.0
        %3967 = vmatpush2.xpose.msra.mxu0 0.0
        %3968 = vmatprep.subr.mxu0 0.0
        %3969 = vmatpush2.xpose.msra.mxu0 0.0
        %3970 = vmatprep.subr.mxu0 0.0
        %3971 = vmatpush2.xpose.msra.mxu0 0.0
        %3972 = vmatprep.subr.mxu0 0.0
        %3973 = vmatpush2.xpose.msra.mxu0 0.0
        %3974 = vmatprep.subr.mxu0 0.0
        %3975 = vmatpush2.xpose.msra.mxu0 0.0
        %3976 = vmatprep.subr.mxu0 0.0
        %3977 = vmatpush2.xpose.msra.mxu0 0.0
        %3978 = vmatprep.subr.mxu0 0.0
        %3979 = vmatpush2.xpose.msra.mxu0 0.0
        %3980 = vmatprep.subr.mxu0 0.0
        %3981 = vmatpush2.xpose.msra.mxu0 0.0
        %3982 = vmatprep.subr.mxu0 0.0
        %3983 = vmatpush2.xpose.msra.mxu0 0.0
        %3984 = vmatprep.mubr.f32.mxu0 0.0
        %3985 = vmatmul.mubr.f32.gmra.mxu0 %v3916
        %v3986 = vpop.f32.mrf.mxu0
        %v3987 = vadd.f32 0.0, %v3986
        %v3988 = vpop.f32.mrf.mxu0
        %3989 = vdwg.mxu0
        %v3990 = vsel %vm801, %v3987, -inf
        %3991 = vmax.xlane.f32.xlu0 %v3990
        %v3992 = vpop.xlane.xlu0 %3991
        %v3993 = vsub.f32 %v3987, %v3992
        %v3994 = vmul.f32 %v3993, 1.442695
        %v3995 = vpow.pop %v3994
        %v3996 = vsel %vm801, %v3995, 0.0
        %3997 = vadd.xlane.f32.xlu0 %v3996
        %v3998 = vpop.xlane.xlu0 %3997
        %v3999 = vrcp.pop %v3998
        %v4000 = vmul.f32 %v3995, %v3999
        %4001 = vrot.lane.b32.xlu0 %v2758, 72
        %v4002 = vpop.permute.xlu0 %4001
        %v4005 = vsel %vm801, %v4000, 0
        %4007 = vmatprep.subr.mxu0 0.0
        %4008 = vmatpush1.msra.mxu0 0.0
        %4009 = vmatprep.subr.mxu0 0.0
        %4010 = vmatpush1.msra.mxu0 0.0
        %4011 = vmatprep.subr.mxu0 0.0
        %4012 = vmatpush1.msra.mxu0 0.0
        %4013 = vmatprep.subr.mxu0 0.0
        %4014 = vmatpush1.msra.mxu0 0.0
        %4015 = vmatprep.subr.mxu0 0.0
        %4016 = vmatpush1.msra.mxu0 0.0
        %4017 = vmatprep.subr.mxu0 0.0
        %4018 = vmatpush1.msra.mxu0 0.0
        %4019 = vmatprep.subr.mxu0 0.0
        %4020 = vmatpush1.msra.mxu0 0.0
        %4021 = vmatprep.subr.mxu0 0.0
        %4022 = vmatpush1.msra.mxu0 0.0
        %4023 = vmatprep.subr.mxu0 0.0
        %4024 = vmatpush1.msra.mxu0 0.0
        %4025 = vmatprep.subr.mxu0 0.0
        %4026 = vmatpush1.msra.mxu0 0.0
        %4027 = vmatprep.subr.mxu0 0.0
        %4028 = vmatpush1.msra.mxu0 0.0
        %4029 = vmatprep.subr.mxu0 0.0
        %4030 = vmatpush1.msra.mxu0 0.0
        %4031 = vmatprep.subr.mxu0 0.0
        %4032 = vmatpush1.msra.mxu0 0.0
        %4033 = vmatprep.subr.mxu0 0.0
        %4034 = vmatpush1.msra.mxu0 0.0
        %4035 = vmatprep.subr.mxu0 0.0
        %4036 = vmatpush1.msra.mxu0 0.0
        %4037 = vmatprep.subr.mxu0 0.0
        %4038 = vmatpush1.msra.mxu0 %v4002
        %4039 = vmatprep.subr.mxu0 0.0
        %4040 = vmatpush2.msra.mxu0 0.0
        %4041 = vmatprep.subr.mxu0 0.0
        %4042 = vmatpush2.msra.mxu0 0.0
        %4043 = vmatprep.subr.mxu0 0.0
        %4044 = vmatpush2.msra.mxu0 0.0
        %4045 = vmatprep.subr.mxu0 0.0
        %4046 = vmatpush2.msra.mxu0 0.0
        %4047 = vmatprep.subr.mxu0 0.0
        %4048 = vmatpush2.msra.mxu0 0.0
        %4049 = vmatprep.subr.mxu0 0.0
        %4050 = vmatpush2.msra.mxu0 0.0
        %4051 = vmatprep.subr.mxu0 0.0
        %4052 = vmatpush2.msra.mxu0 0.0
        %4053 = vmatprep.subr.mxu0 0.0
        %4054 = vmatpush2.msra.mxu0 0.0
        %4055 = vmatprep.subr.mxu0 0.0
        %4056 = vmatpush2.msra.mxu0 0.0
        %4057 = vmatprep.subr.mxu0 0.0
        %4058 = vmatpush2.msra.mxu0 0.0
        %4059 = vmatprep.subr.mxu0 0.0
        %4060 = vmatpush2.msra.mxu0 0.0
        %4061 = vmatprep.subr.mxu0 0.0
        %4062 = vmatpush2.msra.mxu0 0.0
        %4063 = vmatprep.subr.mxu0 0.0
        %4064 = vmatpush2.msra.mxu0 0.0
        %4065 = vmatprep.subr.mxu0 0.0
        %4066 = vmatpush2.msra.mxu0 0.0
        %4067 = vmatprep.subr.mxu0 0.0
        %4068 = vmatpush2.msra.mxu0 0.0
        %4069 = vmatprep.subr.mxu0 0.0
        %4070 = vmatpush2.msra.mxu0 0.0
        %4071 = vmatprep.mubr.f32.mxu0 0.0
        %4072 = vmatmul.mubr.f32.gmra.mxu0 %v4005
        %v4073 = vpop.f32.mrf.mxu0
        %v4074 = vadd.f32 0.0, %v4073
        %v4075 = vpop.f32.mrf.mxu0
        %4076 = vdwg.mxu0
        %4078 = vrot.lane.b32.xlu0 %v3084, 8
        %v4079 = vpop.permute.xlu0 %4078
        %4082 = vrot.lane.b32.xlu0 %v3249, 16
        %v4083 = vpop.permute.xlu0 %4082
        %4086 = vrot.lane.b32.xlu0 %v3414, 24
        %v4087 = vpop.permute.xlu0 %4086
        %4090 = vrot.lane.b32.xlu0 %v3579, 32
        %v4091 = vpop.permute.xlu0 %4090
        %4094 = vrot.lane.b32.xlu0 %v3744, 40
        %v4095 = vpop.permute.xlu0 %4094
        %4098 = vrot.lane.b32.xlu0 %v3909, 48
        %v4099 = vpop.permute.xlu0 %4098
        %4102 = vrot.lane.b32.xlu0 %v4074, 56
        %v4103 = vpop.permute.xlu0 %4102
        %v4105 = vsel %vm801, %v2918, %v4079
        %v4106 = vsel %vm2147, %v4105, %v4083
        %v4107 = vsel %vm2149, %v4106, %v4087
        %v4108 = vsel %vm2151, %v4107, %v4091
        %v4109 = vsel %vm2153, %v4108, %v4095
        %v4110 = vsel %vm2155, %v4109, %v4099
        %v4111 = vsel %vm2157, %v4110, %v4103
        %s4112 = scalar_lea.vmem %s7, 64
        %v4113 = vld [vmem:[%s4112] sm:$0xff]
        %v4114 = vld [vmem:[%s4112 + $0x8] sm:$0xff]
        %v4115 = vld [vmem:[%s4112 + $0x10] sm:$0xff]
        %v4116 = vld [vmem:[%s4112 + $0x18] sm:$0xff]
        %v4117 = vld [vmem:[%s4112 + $0x20] sm:$0xff]
        %v4118 = vld [vmem:[%s4112 + $0x28] sm:$0xff]
        %v4119 = vld [vmem:[%s4112 + $0x30] sm:$0xff]
        %v4120 = vld [vmem:[%s4112 + $0x38] sm:$0xff]
        %s4121 = scalar_lea.vmem %s8, 1
        %v4122 = vld [vmem:[%s4121] sm:$0x1]
        %v4124 = vlaneseq
        %v4125 = vshrl.u32 %v4124, 7
        %v4126 = vsub.s32 0, %v4125
        %v4127 = vrot.slane %v4122, %v4126
        %v4130 = vsel %vm571, %v4111, 0
        %4132 = vmatprep.subr.mxu0 0.0
        %4133 = vmatpush1.msra.mxu0 0.0
        %4134 = vmatprep.subr.mxu0 0.0
        %4135 = vmatpush1.msra.mxu0 0.0
        %4136 = vmatprep.subr.mxu0 0.0
        %4137 = vmatpush1.msra.mxu0 0.0
        %4138 = vmatprep.subr.mxu0 0.0
        %4139 = vmatpush1.msra.mxu0 0.0
        %4140 = vmatprep.subr.mxu0 0.0
        %4141 = vmatpush1.msra.mxu0 0.0
        %4142 = vmatprep.subr.mxu0 0.0
        %4143 = vmatpush1.msra.mxu0 0.0
        %4144 = vmatprep.subr.mxu0 0.0
        %4145 = vmatpush1.msra.mxu0 0.0
        %4146 = vmatprep.subr.mxu0 0.0
        %4147 = vmatpush1.msra.mxu0 0.0
        %4148 = vmatprep.subr.mxu0 0.0
        %4149 = vmatpush1.msra.mxu0 %v4120
        %4150 = vmatprep.subr.mxu0 0.0
        %4151 = vmatpush1.msra.mxu0 %v4119
        %4152 = vmatprep.subr.mxu0 0.0
        %4153 = vmatpush1.msra.mxu0 %v4118
        %4154 = vmatprep.subr.mxu0 0.0
        %4155 = vmatpush1.msra.mxu0 %v4117
        %4156 = vmatprep.subr.mxu0 0.0
        %4157 = vmatpush1.msra.mxu0 %v4116
        %4158 = vmatprep.subr.mxu0 0.0
        %4159 = vmatpush1.msra.mxu0 %v4115
        %4160 = vmatprep.subr.mxu0 0.0
        %4161 = vmatpush1.msra.mxu0 %v4114
        %4162 = vmatprep.subr.mxu0 0.0
        %4163 = vmatpush1.msra.mxu0 %v4113
        %4164 = vmatprep.subr.mxu0 0.0
        %4165 = vmatpush2.msra.mxu0 0.0
        %4166 = vmatprep.subr.mxu0 0.0
        %4167 = vmatpush2.msra.mxu0 0.0
        %4168 = vmatprep.subr.mxu0 0.0
        %4169 = vmatpush2.msra.mxu0 0.0
        %4170 = vmatprep.subr.mxu0 0.0
        %4171 = vmatpush2.msra.mxu0 0.0
        %4172 = vmatprep.subr.mxu0 0.0
        %4173 = vmatpush2.msra.mxu0 0.0
        %4174 = vmatprep.subr.mxu0 0.0
        %4175 = vmatpush2.msra.mxu0 0.0
        %4176 = vmatprep.subr.mxu0 0.0
        %4177 = vmatpush2.msra.mxu0 0.0
        %4178 = vmatprep.subr.mxu0 0.0
        %4179 = vmatpush2.msra.mxu0 0.0
        %4180 = vmatprep.subr.mxu0 0.0
        %4181 = vmatpush2.msra.mxu0 0.0
        %4182 = vmatprep.subr.mxu0 0.0
        %4183 = vmatpush2.msra.mxu0 0.0
        %4184 = vmatprep.subr.mxu0 0.0
        %4185 = vmatpush2.msra.mxu0 0.0
        %4186 = vmatprep.subr.mxu0 0.0
        %4187 = vmatpush2.msra.mxu0 0.0
        %4188 = vmatprep.subr.mxu0 0.0
        %4189 = vmatpush2.msra.mxu0 0.0
        %4190 = vmatprep.subr.mxu0 0.0
        %4191 = vmatpush2.msra.mxu0 0.0
        %4192 = vmatprep.subr.mxu0 0.0
        %4193 = vmatpush2.msra.mxu0 0.0
        %4194 = vmatprep.subr.mxu0 0.0
        %4195 = vmatpush2.msra.mxu0 0.0
        %4196 = vmatprep.mubr.f32.mxu0 0.0
        %4197 = vmatmul.mubr.f32.gmra.mxu0 %v4130
        %v4198 = vpop.f32.mrf.mxu0
        %v4199 = vadd.f32 %v4127, %v4198
        %v4200 = vpop.f32.mrf.mxu0
        %4201 = vdwg.mxu0
        %v4202 = vadd.f32 %v4199, %v2520
        %s4203 = scalar_lea.vmem %s9, 1
        %v4204 = vld [vmem:[%s4203] sm:$0x1]
        %s4205 = scalar_lea.vmem %s10, 1
        %v4206 = vld [vmem:[%s4205] sm:$0x1]
        %v4207 = vsel %vm571, %v4202, 0.0
        %4208 = vadd.xlane.f32.xlu0 %v4207
        %v4209 = vpop.xlane.xlu0 %4208
        %v4210 = vmul.f32 %v4209, %v2253
        %v4211 = vsub.f32 %v4202, %v4210
        %v4212 = vmul.f32 %v4211, %v4211
        %v4213 = vsel %vm571, %v4212, 0.0
        %4214 = vadd.xlane.f32.xlu0 %v4213
        %v4215 = vpop.xlane.xlu0 %4214
        %v4216 = vmul.f32 %v4215, %v2253
        %v4217 = vadd.f32 %v4216, 1e-05
        %v4218 = vrsqrt.pop %v4217
        %v4219 = vmul.f32 %v4211, %v4218
        %v4221 = vlaneseq
        %v4222 = vshrl.u32 %v4221, 7
        %v4223 = vsub.s32 0, %v4222
        %v4224 = vrot.slane %v4204, %v4223
        %v4226 = vmul.f32 %v4219, %v4224
        %v4228 = vlaneseq
        %v4229 = vshrl.u32 %v4228, 7
        %v4230 = vsub.s32 0, %v4229
        %v4231 = vrot.slane %v4206, %v4230
        %v4233 = vadd.f32 %v4226, %v4231
        %s4234 = scalar_lea.vmem %s11, 128
        %v4235 = vld [vmem:[%s4234] sm:$0xff]
        %v4236 = vld [vmem:[%s4234 + $0x8] sm:$0xff]
        %v4237 = vld [vmem:[%s4234 + $0x10] sm:$0xff]
        %v4238 = vld [vmem:[%s4234 + $0x18] sm:$0xff]
        %v4239 = vld [vmem:[%s4234 + $0x20] sm:$0xff]
        %v4240 = vld [vmem:[%s4234 + $0x28] sm:$0xff]
        %v4241 = vld [vmem:[%s4234 + $0x30] sm:$0xff]
        %v4242 = vld [vmem:[%s4234 + $0x38] sm:$0xff]
        %v4243 = vld [vmem:[%s4234 + $0x40] sm:$0xff]
        %v4244 = vld [vmem:[%s4234 + $0x48] sm:$0xff]
        %v4245 = vld [vmem:[%s4234 + $0x50] sm:$0xff]
        %v4246 = vld [vmem:[%s4234 + $0x58] sm:$0xff]
        %v4247 = vld [vmem:[%s4234 + $0x60] sm:$0xff]
        %v4248 = vld [vmem:[%s4234 + $0x68] sm:$0xff]
        %v4249 = vld [vmem:[%s4234 + $0x70] sm:$0xff]
        %v4250 = vld [vmem:[%s4234 + $0x78] sm:$0xff]
        %s4251 = scalar_lea.vmem %s12, 2
        %v4252 = vld [vmem:[%s4251] sm:$0x3]
        %v4254 = vlaneseq
        %v4255 = vshrl.u32 %v4254, 7
        %v4256 = vsub.s32 0, %v4255
        %v4257 = vrot.slane %v4252, %v4256
        %v4258 = vlaneseq
        %v4259 = vshrl.u32 %v4258, 7
        %v4260 = vsub.s32 1, %v4259
        %v4261 = vrot.slane %v4252, %v4260
        %v4265 = vsel %vm571, %v4233, 0
        %4267 = vmatprep.subr.mxu0 0.0
        %4268 = vmatpush1.msra.mxu0 0.0
        %4269 = vmatprep.subr.mxu0 0.0
        %4270 = vmatpush1.msra.mxu0 0.0
        %4271 = vmatprep.subr.mxu0 0.0
        %4272 = vmatpush1.msra.mxu0 0.0
        %4273 = vmatprep.subr.mxu0 0.0
        %4274 = vmatpush1.msra.mxu0 0.0
        %4275 = vmatprep.subr.mxu0 0.0
        %4276 = vmatpush1.msra.mxu0 0.0
        %4277 = vmatprep.subr.mxu0 0.0
        %4278 = vmatpush1.msra.mxu0 0.0
        %4279 = vmatprep.subr.mxu0 0.0
        %4280 = vmatpush1.msra.mxu0 0.0
        %4281 = vmatprep.subr.mxu0 0.0
        %4282 = vmatpush1.msra.mxu0 0.0
        %4283 = vmatprep.subr.mxu0 %v4250
        %4284 = vmatpush1.msra.mxu0 %v4249
        %4285 = vmatprep.subr.mxu0 %v4248
        %4286 = vmatpush1.msra.mxu0 %v4247
        %4287 = vmatprep.subr.mxu0 %v4246
        %4288 = vmatpush1.msra.mxu0 %v4245
        %4289 = vmatprep.subr.mxu0 %v4244
        %4290 = vmatpush1.msra.mxu0 %v4243
        %4291 = vmatprep.subr.mxu0 %v4242
        %4292 = vmatpush1.msra.mxu0 %v4241
        %4293 = vmatprep.subr.mxu0 %v4240
        %4294 = vmatpush1.msra.mxu0 %v4239
        %4295 = vmatprep.subr.mxu0 %v4238
        %4296 = vmatpush1.msra.mxu0 %v4237
        %4297 = vmatprep.subr.mxu0 %v4236
        %4298 = vmatpush1.msra.mxu0 %v4235
        %4299 = vmatprep.subr.mxu0 0.0
        %4300 = vmatpush2.msra.mxu0 0.0
        %4301 = vmatprep.subr.mxu0 0.0
        %4302 = vmatpush2.msra.mxu0 0.0
        %4303 = vmatprep.subr.mxu0 0.0
        %4304 = vmatpush2.msra.mxu0 0.0
        %4305 = vmatprep.subr.mxu0 0.0
        %4306 = vmatpush2.msra.mxu0 0.0
        %4307 = vmatprep.subr.mxu0 0.0
        %4308 = vmatpush2.msra.mxu0 0.0
        %4309 = vmatprep.subr.mxu0 0.0
        %4310 = vmatpush2.msra.mxu0 0.0
        %4311 = vmatprep.subr.mxu0 0.0
        %4312 = vmatpush2.msra.mxu0 0.0
        %4313 = vmatprep.subr.mxu0 0.0
        %4314 = vmatpush2.msra.mxu0 0.0
        %4315 = vmatprep.subr.mxu0 0.0
        %4316 = vmatpush2.msra.mxu0 0.0
        %4317 = vmatprep.subr.mxu0 0.0
        %4318 = vmatpush2.msra.mxu0 0.0
        %4319 = vmatprep.subr.mxu0 0.0
        %4320 = vmatpush2.msra.mxu0 0.0
        %4321 = vmatprep.subr.mxu0 0.0
        %4322 = vmatpush2.msra.mxu0 0.0
        %4323 = vmatprep.subr.mxu0 0.0
        %4324 = vmatpush2.msra.mxu0 0.0
        %4325 = vmatprep.subr.mxu0 0.0
        %4326 = vmatpush2.msra.mxu0 0.0
        %4327 = vmatprep.subr.mxu0 0.0
        %4328 = vmatpush2.msra.mxu0 0.0
        %4329 = vmatprep.subr.mxu0 0.0
        %4330 = vmatpush2.msra.mxu0 0.0
        %4331 = vmatprep.mubr.f32.mxu0 0.0
        %4332 = vmatmul.mubr.f32.gmra.mxu0 %v4265
        %v4333 = vpop.f32.mrf.mxu0
        %v4334 = vadd.f32 %v4257, %v4333
        %v4335 = vpop.f32.mrf.mxu0
        %v4336 = vadd.f32 %v4261, %v4335
        %4337 = vdwg.mxu0
        %v4338 = vmax.f32 %v4334, 0.0
        %v4339 = vmax.f32 %v4336, 0.0
        %s4340 = scalar_lea.vmem %s13, 256
        %v4341 = vld [vmem:[%s4340] sm:$0xff]
        %v4342 = vld [vmem:[%s4340 + $0x8] sm:$0xff]
        %v4343 = vld [vmem:[%s4340 + $0x10] sm:$0xff]
        %v4344 = vld [vmem:[%s4340 + $0x18] sm:$0xff]
        %v4345 = vld [vmem:[%s4340 + $0x20] sm:$0xff]
        %v4346 = vld [vmem:[%s4340 + $0x28] sm:$0xff]
        %v4347 = vld [vmem:[%s4340 + $0x30] sm:$0xff]
        %v4348 = vld [vmem:[%s4340 + $0x38] sm:$0xff]
        %v4349 = vld [vmem:[%s4340 + $0x40] sm:$0xff]
        %v4350 = vld [vmem:[%s4340 + $0x48] sm:$0xff]
        %v4351 = vld [vmem:[%s4340 + $0x50] sm:$0xff]
        %v4352 = vld [vmem:[%s4340 + $0x58] sm:$0xff]
        %v4353 = vld [vmem:[%s4340 + $0x60] sm:$0xff]
        %v4354 = vld [vmem:[%s4340 + $0x68] sm:$0xff]
        %v4355 = vld [vmem:[%s4340 + $0x70] sm:$0xff]
        %v4356 = vld [vmem:[%s4340 + $0x78] sm:$0xff]
        %v4357 = vld [vmem:[%s4340 + $0x80] sm:$0xff]
        %v4358 = vld [vmem:[%s4340 + $0x88] sm:$0xff]
        %v4359 = vld [vmem:[%s4340 + $0x90] sm:$0xff]
        %v4360 = vld [vmem:[%s4340 + $0x98] sm:$0xff]
        %v4361 = vld [vmem:[%s4340 + $0xa0] sm:$0xff]
        %v4362 = vld [vmem:[%s4340 + $0xa8] sm:$0xff]
        %v4363 = vld [vmem:[%s4340 + $0xb0] sm:$0xff]
        %v4364 = vld [vmem:[%s4340 + $0xb8] sm:$0xff]
        %v4365 = vld [vmem:[%s4340 + $0xc0] sm:$0xff]
        %v4366 = vld [vmem:[%s4340 + $0xc8] sm:$0xff]
        %v4367 = vld [vmem:[%s4340 + $0xd0] sm:$0xff]
        %v4368 = vld [vmem:[%s4340 + $0xd8] sm:$0xff]
        %v4369 = vld [vmem:[%s4340 + $0xe0] sm:$0xff]
        %v4370 = vld [vmem:[%s4340 + $0xe8] sm:$0xff]
        %v4371 = vld [vmem:[%s4340 + $0xf0] sm:$0xff]
        %v4372 = vld [vmem:[%s4340 + $0xf8] sm:$0xff]
        %s4373 = scalar_lea.vmem %s14, 1
        %v4374 = vld [vmem:[%s4373] sm:$0x1]
        %v4376 = vlaneseq
        %v4377 = vshrl.u32 %v4376, 7
        %v4378 = vsub.s32 0, %v4377
        %v4379 = vrot.slane %v4374, %v4378
        %4381 = vmatprep.subr.mxu0 0.0
        %4382 = vmatpush1.msra.mxu0 %v4356
        %4383 = vmatprep.subr.mxu0 0.0
        %4384 = vmatpush1.msra.mxu0 %v4355
        %4385 = vmatprep.subr.mxu0 0.0
        %4386 = vmatpush1.msra.mxu0 %v4354
        %4387 = vmatprep.subr.mxu0 0.0
        %4388 = vmatpush1.msra.mxu0 %v4353
        %4389 = vmatprep.subr.mxu0 0.0
        %4390 = vmatpush1.msra.mxu0 %v4352
        %4391 = vmatprep.subr.mxu0 0.0
        %4392 = vmatpush1.msra.mxu0 %v4351
        %4393 = vmatprep.subr.mxu0 0.0
        %4394 = vmatpush1.msra.mxu0 %v4350
        %4395 = vmatprep.subr.mxu0 0.0
        %4396 = vmatpush1.msra.mxu0 %v4349
        %4397 = vmatprep.subr.mxu0 0.0
        %4398 = vmatpush1.msra.mxu0 %v4348
        %4399 = vmatprep.subr.mxu0 0.0
        %4400 = vmatpush1.msra.mxu0 %v4347
        %4401 = vmatprep.subr.mxu0 0.0
        %4402 = vmatpush1.msra.mxu0 %v4346
        %4403 = vmatprep.subr.mxu0 0.0
        %4404 = vmatpush1.msra.mxu0 %v4345
        %4405 = vmatprep.subr.mxu0 0.0
        %4406 = vmatpush1.msra.mxu0 %v4344
        %4407 = vmatprep.subr.mxu0 0.0
        %4408 = vmatpush1.msra.mxu0 %v4343
        %4409 = vmatprep.subr.mxu0 0.0
        %4410 = vmatpush1.msra.mxu0 %v4342
        %4411 = vmatprep.subr.mxu0 0.0
        %4412 = vmatpush1.msra.mxu0 %v4341
        %4413 = vmatprep.subr.mxu0 0.0
        %4414 = vmatpush2.msra.mxu0 %v4372
        %4415 = vmatprep.subr.mxu0 0.0
        %4416 = vmatpush2.msra.mxu0 %v4371
        %4417 = vmatprep.subr.mxu0 0.0
        %4418 = vmatpush2.msra.mxu0 %v4370
        %4419 = vmatprep.subr.mxu0 0.0
        %4420 = vmatpush2.msra.mxu0 %v4369
        %4421 = vmatprep.subr.mxu0 0.0
        %4422 = vmatpush2.msra.mxu0 %v4368
        %4423 = vmatprep.subr.mxu0 0.0
        %4424 = vmatpush2.msra.mxu0 %v4367
        %4425 = vmatprep.subr.mxu0 0.0
        %4426 = vmatpush2.msra.mxu0 %v4366
        %4427 = vmatprep.subr.mxu0 0.0
        %4428 = vmatpush2.msra.mxu0 %v4365
        %4429 = vmatprep.subr.mxu0 0.0
        %4430 = vmatpush2.msra.mxu0 %v4364
        %4431 = vmatprep.subr.mxu0 0.0
        %4432 = vmatpush2.msra.mxu0 %v4363
        %4433 = vmatprep.subr.mxu0 0.0
        %4434 = vmatpush2.msra.mxu0 %v4362
        %4435 = vmatprep.subr.mxu0 0.0
        %4436 = vmatpush2.msra.mxu0 %v4361
        %4437 = vmatprep.subr.mxu0 0.0
        %4438 = vmatpush2.msra.mxu0 %v4360
        %4439 = vmatprep.subr.mxu0 0.0
        %4440 = vmatpush2.msra.mxu0 %v4359
        %4441 = vmatprep.subr.mxu0 0.0
        %4442 = vmatpush2.msra.mxu0 %v4358
        %4443 = vmatprep.subr.mxu0 0.0
        %4444 = vmatpush2.msra.mxu0 %v4357
        %4445 = vmatprep.mubr.f32.mxu0 %v4339
        %4446 = vmatmul.mubr.f32.gmra.mxu0 %v4338
        %v4447 = vpop.f32.mrf.mxu0
        %v4448 = vadd.f32 %v4379, %v4447
        %v4449 = vpop.f32.mrf.mxu0
        %4450 = vdwg.mxu0
        %v4451 = vadd.f32 %v4448, %v4233
        %s4452 = scalar_lea.vmem %s15, 1
        %v4453 = vld [vmem:[%s4452] sm:$0x1]
        %s4454 = scalar_lea.vmem %s16, 1
        %v4455 = vld [vmem:[%s4454] sm:$0x1]
        %v4456 = vsel %vm571, %v4451, 0.0
        %4457 = vadd.xlane.f32.xlu0 %v4456
        %v4458 = vpop.xlane.xlu0 %4457
        %v4459 = vmul.f32 %v4458, %v2253
        %v4460 = vsub.f32 %v4451, %v4459
        %v4461 = vmul.f32 %v4460, %v4460
        %v4462 = vsel %vm571, %v4461, 0.0
        %4463 = vadd.xlane.f32.xlu0 %v4462
        %v4464 = vpop.xlane.xlu0 %4463
        %v4465 = vmul.f32 %v4464, %v2253
        %v4466 = vadd.f32 %v4465, 1e-05
        %v4467 = vrsqrt.pop %v4466
        %v4468 = vmul.f32 %v4460, %v4467
        %v4470 = vlaneseq
        %v4471 = vshrl.u32 %v4470, 7
        %v4472 = vsub.s32 0, %v4471
        %v4473 = vrot.slane %v4453, %v4472
        %v4475 = vmul.f32 %v4468, %v4473
        %v4477 = vlaneseq
        %v4478 = vshrl.u32 %v4477, 7
        %v4479 = vsub.s32 0, %v4478
        %v4480 = vrot.slane %v4455, %v4479
        %v4482 = vadd.f32 %v4475, %v4480
        %4483 = vst.msk [vmem:[%s539] sm:$0xff] %vm571, %v4482
        %s4484 = sand.u32 %s401, 1
        %s4485 = scalar_lea.sflag [#allocation3], %s4484
        %s4486 = sand.u32 %s401, 1
        %s4487 = smul.addr %s4486, 8
        %s4488 = scalar_lea.vmem [#allocation2], %s4487
        // Predicated region
        $region89: #{bilstm_transformer_forward.5} parent=87 // pred_check
          %p4489 = pneg %p411
        $region90: #{bilstm_transformer_forward.5} parent=87 // pred_check_branch
          %4491 = sbr.rel (%p4489) target = $region92
        $region91: #{bilstm_transformer_forward.5} parent=87 // pred_region
          %s4493 = ssub.s32 128, 128
          %4494 = vsyncadd %s4485, %s4493
          %s4495 = smul.addr %s31, 128
          %s4496 = scalar_lea.hbm %s17, %s4495
          %s4498 = sshll.u32 %s4488, 4
          %s4499 = int_to_ptr.vmem [resolvable:$true] %s4498
          %4501 = dma.vmem_to_hbm [thread:$0]  %s4499, 128, %s4496, %s4485
        $region92: #{bilstm_transformer_forward.5} parent=87 // pred_fallthru
          _
      $region88: #{bilstm_transformer_forward.5} parent=5 // pred_fallthru
        _
      %p4502 = scmp.le.s32.totalorder 2, %s26
      // Predicated region
      $region93: #{bilstm_transformer_forward.5} parent=5 // pred_check
        %p4503 = pneg %p4502
      $region94: #{bilstm_transformer_forward.5} parent=5 // pred_check_branch
        %4505 = sbr.rel (%p4503) target = $region96
      $region95: #{bilstm_transformer_forward.5} parent=5 // pred_region
        %s4506 = ssub.s32 %s26, 2
        // Predicated region
        $region97: #{bilstm_transformer_forward.5} parent=95 // pred_check
          %p4507 = pneg %p417
        $region98: #{bilstm_transformer_forward.5} parent=95 // pred_check_branch
          %4509 = sbr.rel (%p4507) target = $region100
        $region99: #{bilstm_transformer_forward.5} parent=95 // pred_region
          %s4510 = sand.u32 %s402, 1
          %s4511 = scalar_lea.sflag [#allocation3], %s4510
          %s4512 = sand.u32 %s402, 1
          %s4513 = smul.addr %s4512, 8
          %s4514 = scalar_lea.vmem [#allocation2], %s4513
          %4515 = dma.done %s4511, 128
        $region100: #{bilstm_transformer_forward.5} parent=95 // pred_fallthru
          _
      $region96: #{bilstm_transformer_forward.5} parent=5 // pred_fallthru
        _
    $region6: #{bilstm_transformer_forward.5} parent=1 // loop_footer
      %s30 = sadd.s32 1, %s26
    $region7: #{bilstm_transformer_forward.5} parent=1 // loop_footer_branch
      %25 = sbr.rel target = $region3
    $region8: #{bilstm_transformer_forward.5} parent=1 // loop_exit
      _
    %4516 = vsyncpa [#allocation3], 1
    %s4517 = scalar_lea.sflag [#allocation3], 1
    %4518 = vsyncpa %s4517, 1

</llo_original>
